<compile_context>
chip_gen: v5e
topology: v5e:2x2
jax: 0.10.0
libtpu: 0.0.40
codegen_flags: <defaults>
</compile_context>

<pallas_src>
import math
import functools

import jax
import jax.numpy as jnp
from jax import lax
from jax.experimental import pallas as pl
from jax.experimental.pallas import tpu as pltpu


def _make_pe_buffer(d_model: int, max_len: int) -> jnp.ndarray:
    """Pure-JAX replica of the PyTorch __init__ buffer (dim=1 squeezed): [max_len, d_model].
    Used only as the correctness reference; the kernel recomputes pe on the fly."""
    position = jnp.arange(max_len, dtype=jnp.float32)[:, None]
    div_term = jnp.exp(
        jnp.arange(0, d_model, 2, dtype=jnp.float32) * (-math.log(10000.0) / d_model)
    )
    pe = jnp.zeros((max_len, d_model), dtype=jnp.float32)
    pe = pe.at[:, 0::2].set(jnp.sin(position * div_term))
    pe = pe.at[:, 1::2].set(jnp.cos(position * div_term))
    return pe


def _tile_pe(shape, tile_s: int, d_model: int) -> jnp.ndarray:
    """Sinusoidal positional encoding for the current (TS, D) tile, computed in-kernel."""
    row0 = pl.program_id(0) * tile_s
    pos = (lax.broadcasted_iota(jnp.int32, shape, 0) + row0).astype(jnp.float32)
    lane = lax.broadcasted_iota(jnp.int32, shape, 1)
    parity = jnp.bitwise_and(lane, 1)
    even = lane - parity                                   # 2 * (d // 2)
    inv_freq = jnp.exp(even.astype(jnp.float32) * (-math.log(10000.0) / d_model))
    ang = pos * inv_freq
    return jnp.where(parity == 0, jnp.sin(ang), jnp.cos(ang))


def _pe_eval_kernel(x_ref, o_ref, *, tile_s: int, d_model: int):
    y = x_ref[...].astype(jnp.float32) + _tile_pe(x_ref.shape, tile_s, d_model)
    o_ref[...] = y.astype(o_ref.dtype)


def _pe_train_kernel(x_ref, bits_ref, o_ref, *, tile_s: int, d_model: int, p: float):
    y = x_ref[...].astype(jnp.float32) + _tile_pe(x_ref.shape, tile_s, d_model)
    thresh = jnp.uint32(min(int(round(p * 2.0 ** 32)), 0xFFFFFFFF))
    keep = bits_ref[...] >= thresh                         # keep w.p. (1 - p)
    scale = 1.0 / (1.0 - p)
    o_ref[...] = jnp.where(keep, y * scale, 0.0).astype(o_ref.dtype)


def _pick_tile_s(S: int, D: int) -> int:
    # Target ~2 MiB per f32 (TS, D) tile; double-buffered x (+bits) + out then stays
    # well under the scoped-VMEM default on every generation (incl. v7x's 64 MiB VMEM).
    budget_rows = max(8, (2 * 1024 * 1024) // (D * 4))
    ts = min(S, budget_rows)
    if ts < S:
        ts = max(8, (ts // 8) * 8)                         # keep (8, 128) tiling happy
    return ts


def positional_encoding_forward(
    x: jnp.ndarray,
    *,
    p: float = 0.1,
    training: bool = False,
    rng_key=None,
) -> jnp.ndarray:
    """x: [S, D]. Returns squeeze(unsqueeze(x) + pe[:S]) with inverted dropout when training."""
    S, D = x.shape
    tile_s = _pick_tile_s(S, D)
    grid = (pl.cdiv(S, tile_s),)
    block = pl.BlockSpec((tile_s, D), lambda i: (i, 0))
    cparams = pltpu.CompilerParams(dimension_semantics=("parallel",))

    if training and p > 0.0:
        if rng_key is None:
            rng_key = jax.random.PRNGKey(0)
        # TODO(synk): dropout bits come from host-side jax.random (extra HBM stream);
        # pltpu.prng_random_bits would avoid it but has no interpret-mode lowering.
        bits = jax.random.bits(rng_key, (S, D), dtype=jnp.uint32)
        kernel = functools.partial(
            _pe_train_kernel, tile_s=tile_s, d_model=D, p=float(p)
        )
        return pl.pallas_call(
            kernel,
            out_shape=jax.ShapeDtypeStruct((S, D), x.dtype),
            grid=grid,
            in_specs=[block, block],
            out_specs=block,
            compiler_params=cparams,
        )(x, bits)

    kernel = functools.partial(_pe_eval_kernel, tile_s=tile_s, d_model=D)
    return pl.pallas_call(
        kernel,
        out_shape=jax.ShapeDtypeStruct((S, D), x.dtype),
        grid=grid,
        in_specs=[block],
        out_specs=block,
        compiler_params=cparams,
    )(x)


if __name__ == "__main__":
    d_model = 128          # lane-dense last dim (typical transformer width, small)
    max_len = 512
    seq_len = 256
    dropout_p = 0.1

    key = jax.random.PRNGKey(0)
    kx, kd = jax.random.split(key)
    x = jax.random.normal(kx, (seq_len, d_model), dtype=jnp.float32)

    pe_buffer = _make_pe_buffer(d_model, max_len)
    ref = x + pe_buffer[:seq_len, :]

    # Eval-mode forward (dropout is identity): compare against pure-JAX reference.
    y_eval = positional_encoding_forward(x, p=dropout_p, training=False)
    y_eval = jax.block_until_ready(y_eval)
    assert y_eval.shape == (seq_len, d_model)
    assert jnp.allclose(y_eval, ref, atol=1e-4, rtol=1e-5), "eval-mode mismatch vs reference"

    # Train-mode forward: kept entries must equal ref/(1-p), dropped entries are exactly 0,
    # and the drop fraction should be near p.
    y_train = positional_encoding_forward(x, p=dropout_p, training=True, rng_key=kd)
    y_train = jax.block_until_ready(y_train)
    assert y_train.shape == (seq_len, d_model)
    scale = 1.0 / (1.0 - dropout_p)
    kept = y_train != 0.0
    assert jnp.allclose(
        jnp.where(kept, y_train, 0.0),
        jnp.where(kept, ref * scale, 0.0),
        atol=1e-4, rtol=1e-5,
    ), "train-mode kept values mismatch"
    drop_frac = 1.0 - jnp.mean(kept.astype(jnp.float32))
    assert 0.05 <= float(drop_frac) <= 0.15, f"drop fraction {drop_frac} far from p={dropout_p}"

    print("KERNEL_OK")
</pallas_src>

<mosaic_0001>
module attributes {stable_mosaic.version = 11 : i64} {
  func.func @_pe_eval_kernel(%arg0: i32, %arg1: memref<256x128xf32, #tpu.memory_space<vmem>>, %arg2: memref<256x128xf32, #tpu.memory_space<vmem>>) attributes {dimension_semantics = [#tpu.dimension_semantics<parallel>], iteration_bounds = array<i64: 1>, scalar_prefetch = 0 : i64, scratch_operands = 0 : i64, tpu.core_type = #tpu.core_type<tc>, window_params = [{transform_indices = @transform_0, window_bounds = array<i64: 256, 128>}, {transform_indices = @transform_1, window_bounds = array<i64: 256, 128>}]} {
    %c0 = arith.constant 0 : index
    %c0_0 = arith.constant 0 : index
    %0 = vector.load %arg1[%c0, %c0_0] : memref<256x128xf32, #tpu.memory_space<vmem>>, vector<256x128xf32>
    %c256_i32 = arith.constant 256 : i32
    %1 = arith.muli %arg0, %c256_i32 : i32
    %2 = tpu.iota {dimensions = array<i32: 0>} : vector<256x128xi32>
    %3 = vector.broadcast %1 : i32 to vector<256x128xi32>
    %4 = arith.addi %2, %3 : vector<256x128xi32>
    %5 = arith.sitofp %4 : vector<256x128xi32> to vector<256x128xf32>
    %6 = tpu.iota {dimensions = array<i32: 1>} : vector<256x128xi32>
    %c1_i32 = arith.constant 1 : i32
    %7 = vector.broadcast %c1_i32 : i32 to vector<256x128xi32>
    %8 = arith.andi %6, %7 : vector<256x128xi32>
    %9 = arith.subi %6, %8 : vector<256x128xi32>
    %10 = arith.sitofp %9 : vector<256x128xi32> to vector<256x128xf32>
    %cst = arith.constant -0.0719557852 : f32
    %11 = vector.broadcast %cst : f32 to vector<256x128xf32>
    %12 = arith.mulf %10, %11 : vector<256x128xf32>
    %13 = math.exp %12 : vector<256x128xf32>
    %14 = arith.mulf %5, %13 : vector<256x128xf32>
    %c0_i32 = arith.constant 0 : i32
    %15 = vector.broadcast %c0_i32 : i32 to vector<256x128xi32>
    %16 = arith.cmpi eq, %8, %15 : vector<256x128xi32>
    %17 = math.sin %14 : vector<256x128xf32>
    %18 = math.cos %14 : vector<256x128xf32>
    %19 = arith.select %16, %17, %18 : vector<256x128xi1>, vector<256x128xf32>
    %20 = arith.addf %0, %19 : vector<256x128xf32>
    %c0_1 = arith.constant 0 : index
    %c0_2 = arith.constant 0 : index
    %21 = vector.load %arg2[%c0_1, %c0_2] : memref<256x128xf32, #tpu.memory_space<vmem>>, vector<256x128xf32>
    tpu.vector_store %arg2[%c0_1, %c0_2], %20 {strides = array<i32>} : memref<256x128xf32, #tpu.memory_space<vmem>>, vector<256x128xf32>,
    return
  }
  func.func @transform_0(%arg0: i32) -> (i32, i32) {
    %c0_i32 = arith.constant 0 : i32
    %c0_i32_0 = arith.constant 0 : i32
    return %arg0, %c0_i32 : i32, i32
  }
  func.func @transform_1(%arg0: i32) -> (i32, i32) {
    %c0_i32 = arith.constant 0 : i32
    %c0_i32_0 = arith.constant 0 : i32
    return %arg0, %c0_i32 : i32, i32
  }
}

</mosaic_0001>

<llo_original>
// kernel: tpu_custom_call.1
$region0: #{tpu_custom_call.1}
  #allocation0 [shape = 'u32[]', space=smem, size = 0x4, offset = 0x4, fixed_abs, tag = 'smem constant byte address 0x4 - core index']
  #allocation1 [shape = 'u32[72,128]{1,0:T(1,128)}', space=vmem, size = 0x9000, scoped, tag = 'internal scratch']
  %s0 = inlined_call_operand.hbm [shape: f32[256,128], index: 0, kind: input, shape index: {}]
  %s1 = inlined_call_operand.hbm [shape: f32[256,128], index: 1, kind: output, shape index: {}]
  %s2 = sld [smem:[#allocation0]]
  $region18: #{tpu_custom_call.1} parent=0
    _
  %s4 = ssub.s32 1, %s2
  %s5 = scalar_select 0, %s4, %s2
  $region1: #{tpu_custom_call.1} parent=0
    #allocation2 [shape = 'u8[131072]{0}', space=vmem, size = 0x20000, scoped, tag = 'input window, operand 0, single buffered']
    #allocation3 [shape = 's32[1]{0}', space=sflag, size = 0x4, scoped, tag = 'scoped memory for tpu_custom_call.1']
    #allocation4 [shape = 's32[1]{0}', space=sflag, size = 0x4, scoped, tag = 'scoped memory for tpu_custom_call.1']
    #allocation5 [shape = 'u8[131072]{0}', space=vmem, size = 0x20000, scoped, tag = 'output window, operand 0, single buffered']
    %6 = vsyncpa [#allocation3], 0
    %7 = vsyncpa [#allocation4], 0
    // Predicated region
    $region2: #{tpu_custom_call.1} parent=1 // pred_check
      _
    $region3: #{tpu_custom_call.1} parent=1 // pred_check_branch
      %9 = sbr.rel (0) target = $region5
    $region4: #{tpu_custom_call.1} parent=1 // pred_region
      %11 = vsyncadd [#allocation3], 0
      %s12 = sshll.u32 %s0, 4
      %s13 = int_to_ptr.hbm [resolvable:$true] %s12
      %s14 = sshll.u32 [#allocation2], 4
      %s15 = int_to_ptr.vmem [resolvable:$true] %s14
      %20 = dma.hbm_to_vmem [thread:$0]  %s13, 4096, %s15, [#allocation3], 128, 128, 8
    $region5: #{tpu_custom_call.1} parent=1 // pred_fallthru
      _
    // Predicated region
    $region6: #{tpu_custom_call.1} parent=1 // pred_check
      _
    $region7: #{tpu_custom_call.1} parent=1 // pred_check_branch
      %22 = sbr.rel (0) target = $region9
    $region8: #{tpu_custom_call.1} parent=1 // pred_region
      %24 = dma.done [#allocation3], 4096
    $region9: #{tpu_custom_call.1} parent=1 // pred_fallthru
      _
    %v25 = vld [vmem:[#allocation2] sm:$0xff]
    %v26 = vld [vmem:[#allocation2 + $0x8] sm:$0xff]
    %v27 = vld [vmem:[#allocation2 + $0x10] sm:$0xff]
    %v28 = vld [vmem:[#allocation2 + $0x18] sm:$0xff]
    %v29 = vld [vmem:[#allocation2 + $0x20] sm:$0xff]
    %v30 = vld [vmem:[#allocation2 + $0x28] sm:$0xff]
    %v31 = vld [vmem:[#allocation2 + $0x30] sm:$0xff]
    %v32 = vld [vmem:[#allocation2 + $0x38] sm:$0xff]
    %v33 = vld [vmem:[#allocation2 + $0x40] sm:$0xff]
    %v34 = vld [vmem:[#allocation2 + $0x48] sm:$0xff]
    %v35 = vld [vmem:[#allocation2 + $0x50] sm:$0xff]
    %v36 = vld [vmem:[#allocation2 + $0x58] sm:$0xff]
    %v37 = vld [vmem:[#allocation2 + $0x60] sm:$0xff]
    %v38 = vld [vmem:[#allocation2 + $0x68] sm:$0xff]
    %v39 = vld [vmem:[#allocation2 + $0x70] sm:$0xff]
    %v40 = vld [vmem:[#allocation2 + $0x78] sm:$0xff]
    %v41 = vld [vmem:[#allocation2 + $0x80] sm:$0xff]
    %v42 = vld [vmem:[#allocation2 + $0x88] sm:$0xff]
    %v43 = vld [vmem:[#allocation2 + $0x90] sm:$0xff]
    %v44 = vld [vmem:[#allocation2 + $0x98] sm:$0xff]
    %v45 = vld [vmem:[#allocation2 + $0xa0] sm:$0xff]
    %v46 = vld [vmem:[#allocation2 + $0xa8] sm:$0xff]
    %v47 = vld [vmem:[#allocation2 + $0xb0] sm:$0xff]
    %v48 = vld [vmem:[#allocation2 + $0xb8] sm:$0xff]
    %v49 = vld [vmem:[#allocation2 + $0xc0] sm:$0xff]
    %v50 = vld [vmem:[#allocation2 + $0xc8] sm:$0xff]
    %v51 = vld [vmem:[#allocation2 + $0xd0] sm:$0xff]
    %v52 = vld [vmem:[#allocation2 + $0xd8] sm:$0xff]
    %v53 = vld [vmem:[#allocation2 + $0xe0] sm:$0xff]
    %v54 = vld [vmem:[#allocation2 + $0xe8] sm:$0xff]
    %v55 = vld [vmem:[#allocation2 + $0xf0] sm:$0xff]
    %v56 = vld [vmem:[#allocation2 + $0xf8] sm:$0xff]
    %s57 = smul.u32 0, 256
    %v58 = vlaneseq
    %v59 = vshrl.u32 %v58, 7
    %v60 = vadd.s32 %v59, 8
    %v61 = vadd.s32 %v59, 16
    %v62 = vadd.s32 %v59, 24
    %v63 = vadd.s32 %v59, 32
    %v64 = vadd.s32 %v59, 40
    %v65 = vadd.s32 %v59, 48
    %v66 = vadd.s32 %v59, 56
    %v67 = vadd.s32 %v59, 64
    %v68 = vadd.s32 %v59, 72
    %v69 = vadd.s32 %v59, 80
    %v70 = vadd.s32 %v59, 88
    %v71 = vadd.s32 %v59, 96
    %v72 = vadd.s32 %v59, 104
    %v73 = vadd.s32 %v59, 112
    %v74 = vadd.s32 %v59, 120
    %v75 = vadd.s32 %v59, 128
    %v76 = vadd.s32 %v59, 136
    %v77 = vadd.s32 %v59, 144
    %v78 = vadd.s32 %v59, 152
    %v79 = vadd.s32 %v59, 160
    %v80 = vadd.s32 %v59, 168
    %v81 = vadd.s32 %v59, 176
    %v82 = vadd.s32 %v59, 184
    %v83 = vadd.s32 %v59, 192
    %v84 = vadd.s32 %v59, 200
    %v85 = vadd.s32 %v59, 208
    %v86 = vadd.s32 %v59, 216
    %v87 = vadd.s32 %v59, 224
    %v88 = vadd.s32 %v59, 232
    %v89 = vadd.s32 %v59, 240
    %v90 = vadd.s32 %v59, 248
    %v91 = vstv %s57
    %v92 = vadd.s32 %v59, %v91
    %v93 = vadd.s32 %v60, %v91
    %v94 = vadd.s32 %v61, %v91
    %v95 = vadd.s32 %v62, %v91
    %v96 = vadd.s32 %v63, %v91
    %v97 = vadd.s32 %v64, %v91
    %v98 = vadd.s32 %v65, %v91
    %v99 = vadd.s32 %v66, %v91
    %v100 = vadd.s32 %v67, %v91
    %v101 = vadd.s32 %v68, %v91
    %v102 = vadd.s32 %v69, %v91
    %v103 = vadd.s32 %v70, %v91
    %v104 = vadd.s32 %v71, %v91
    %v105 = vadd.s32 %v72, %v91
    %v106 = vadd.s32 %v73, %v91
    %v107 = vadd.s32 %v74, %v91
    %v108 = vadd.s32 %v75, %v91
    %v109 = vadd.s32 %v76, %v91
    %v110 = vadd.s32 %v77, %v91
    %v111 = vadd.s32 %v78, %v91
    %v112 = vadd.s32 %v79, %v91
    %v113 = vadd.s32 %v80, %v91
    %v114 = vadd.s32 %v81, %v91
    %v115 = vadd.s32 %v82, %v91
    %v116 = vadd.s32 %v83, %v91
    %v117 = vadd.s32 %v84, %v91
    %v118 = vadd.s32 %v85, %v91
    %v119 = vadd.s32 %v86, %v91
    %v120 = vadd.s32 %v87, %v91
    %v121 = vadd.s32 %v88, %v91
    %v122 = vadd.s32 %v89, %v91
    %v123 = vadd.s32 %v90, %v91
    %v124 = vcvt.s32.f32 %v92
    %v125 = vcvt.s32.f32 %v93
    %v126 = vcvt.s32.f32 %v94
    %v127 = vcvt.s32.f32 %v95
    %v128 = vcvt.s32.f32 %v96
    %v129 = vcvt.s32.f32 %v97
    %v130 = vcvt.s32.f32 %v98
    %v131 = vcvt.s32.f32 %v99
    %v132 = vcvt.s32.f32 %v100
    %v133 = vcvt.s32.f32 %v101
    %v134 = vcvt.s32.f32 %v102
    %v135 = vcvt.s32.f32 %v103
    %v136 = vcvt.s32.f32 %v104
    %v137 = vcvt.s32.f32 %v105
    %v138 = vcvt.s32.f32 %v106
    %v139 = vcvt.s32.f32 %v107
    %v140 = vcvt.s32.f32 %v108
    %v141 = vcvt.s32.f32 %v109
    %v142 = vcvt.s32.f32 %v110
    %v143 = vcvt.s32.f32 %v111
    %v144 = vcvt.s32.f32 %v112
    %v145 = vcvt.s32.f32 %v113
    %v146 = vcvt.s32.f32 %v114
    %v147 = vcvt.s32.f32 %v115
    %v148 = vcvt.s32.f32 %v116
    %v149 = vcvt.s32.f32 %v117
    %v150 = vcvt.s32.f32 %v118
    %v151 = vcvt.s32.f32 %v119
    %v152 = vcvt.s32.f32 %v120
    %v153 = vcvt.s32.f32 %v121
    %v154 = vcvt.s32.f32 %v122
    %v155 = vcvt.s32.f32 %v123
    %v156 = vlaneseq
    %v157 = vand.u32 %v156, 127
    %v158 = vand.u32 %v157, 1
    %v159 = vsub.s32 %v157, %v158
    %v160 = vcvt.s32.f32 %v159
    %v161 = vmul.f32 %v160, -0.071955785
    %v162 = vmul.f32 %v161, 1.442695
    %v163 = vpow.pop %v162
    %v164 = vmul.f32 %v124, %v163
    %v165 = vmul.f32 %v125, %v163
    %v166 = vmul.f32 %v126, %v163
    %v167 = vmul.f32 %v127, %v163
    %v168 = vmul.f32 %v128, %v163
    %v169 = vmul.f32 %v129, %v163
    %v170 = vmul.f32 %v130, %v163
    %v171 = vmul.f32 %v131, %v163
    %v172 = vmul.f32 %v132, %v163
    %v173 = vmul.f32 %v133, %v163
    %v174 = vmul.f32 %v134, %v163
    %v175 = vmul.f32 %v135, %v163
    %v176 = vmul.f32 %v136, %v163
    %v177 = vmul.f32 %v137, %v163
    %v178 = vmul.f32 %v138, %v163
    %v179 = vmul.f32 %v139, %v163
    %v180 = vmul.f32 %v140, %v163
    %v181 = vmul.f32 %v141, %v163
    %v182 = vmul.f32 %v142, %v163
    %v183 = vmul.f32 %v143, %v163
    %v184 = vmul.f32 %v144, %v163
    %v185 = vmul.f32 %v145, %v163
    %v186 = vmul.f32 %v146, %v163
    %v187 = vmul.f32 %v147, %v163
    %v188 = vmul.f32 %v148, %v163
    %v189 = vmul.f32 %v149, %v163
    %v190 = vmul.f32 %v150, %v163
    %v191 = vmul.f32 %v151, %v163
    %v192 = vmul.f32 %v152, %v163
    %v193 = vmul.f32 %v153, %v163
    %v194 = vmul.f32 %v154, %v163
    %v195 = vmul.f32 %v155, %v163
    %vm196 = vcmp.eq.s32.totalorder %v158, 0
    %v197 = vand.u32 2147483647, %v164
    %vm198 = vcmp.le.f32.partialorder %v197, 0.7853982
    %vm199 = vcmp.lt.s32.totalorder %v164, 0
    %v200 = vand.u32 %v164, 2139095040
    %v201 = vshrl.u32 %v200, 23
    %v202 = vsub.s32 %v201, 127
    %v203 = vand.u32 2147483647, %v164
    %v204 = vand.u32 %v203, 8388607
    %v205 = vor.u32 %v204, 8388608
    %v206 = vsub.s32 0, %v205
    %v207 = vadd.s32 %v202, 1
    %vm208 = vcmp.gt.s32.totalorder %v207, 0
    %v209 = vsel %vm208, %v207, 0
    %v210 = vshrl.u32 %v209, 5
    %v211 = vand.u32 %v209, 31
    %v212 = vsub.s32 32, %v211
    %v213 = vshrl.u32 683565275, %v212
    %v214 = vshll.u32 683565275, %v211
    %v215 = vshrl.u32 2475754826, %v212
    %v216 = vor.u32 %v214, %v215
    %v217 = vshll.u32 2475754826, %v211
    %v218 = vshrl.u32 2131351028, %v212
    %v219 = vor.u32 %v217, %v218
    %v220 = vshll.u32 2131351028, %v211
    %v221 = vshrl.u32 2102212464, %v212
    %v222 = vor.u32 %v220, %v221
    %v223 = vshll.u32 2102212464, %v211
    %v224 = vshrl.u32 920167782, %v212
    %v225 = vor.u32 %v223, %v224
    %v226 = vshll.u32 920167782, %v211
    %v227 = vshrl.u32 1326507024, %v212
    %v228 = vor.u32 %v226, %v227
    %vm229 = vcmp.lt.s32.totalorder %v210, 1
    %vm230 = vcmp.lt.s32.totalorder %v210, 2
    %vm231 = vcmp.lt.s32.totalorder %v210, 3
    %vm232 = vcmp.lt.s32.totalorder %v210, 4
    %v233 = vsel %vm229, %v213, %v216
    %v234 = vsel %vm232, %v222, 2102212464
    %v235 = vsel %vm231, %v219, %v234
    %v236 = vsel %vm230, %v233, %v235
    %v237 = vsel %vm229, %v216, %v219
    %v238 = vsel %vm232, %v225, 920167782
    %v239 = vsel %vm231, %v222, %v238
    %v240 = vsel %vm230, %v237, %v239
    %v241 = vsel %vm229, %v219, %v222
    %v242 = vsel %vm232, %v228, 1326507024
    %v243 = vsel %vm231, %v225, %v242
    %v244 = vsel %vm230, %v241, %v243
    %v245 = vshll.u32 %v205, 8
    %v246 = vand.u32 %v245, 65535
    %v247 = vshrl.u32 %v245, 16
    %v248 = vand.u32 %v244, 65535
    %v249 = vshrl.u32 %v244, 16
    %v250 = vmul.u32 %v246, %v248
    %v251 = vmul.u32 %v246, %v249
    %v252 = vmul.u32 %v247, %v248
    %v253 = vmul.u32 %v247, %v249
    %v254 = vshll.u32 %v251, 16
    %v255 = vshrl.u32 %v251, 16
    %v256 = vshll.u32 %v252, 16
    %v257 = vshrl.u32 %v252, 16
    %vm258 = vc.u32 %v250, %v254
    %v259 = vsel %vm258, 1, 0
    %v260 = vadd.s32 %v250, %v254
    %v261 = vadd.s32 %v253, %v259
    %vm262 = vc.u32 %v260, %v256
    %v263 = vsel %vm262, 1, 0
    %v264 = vadd.s32 %v260, %v256
    %v265 = vadd.s32 %v261, %v263
    %v266 = vadd.s32 %v265, %v255
    %v267 = vadd.s32 %v266, %v257
    %v268 = vand.u32 %v245, 65535
    %v269 = vshrl.u32 %v245, 16
    %v270 = vand.u32 %v240, 65535
    %v271 = vshrl.u32 %v240, 16
    %v272 = vmul.u32 %v268, %v270
    %v273 = vmul.u32 %v268, %v271
    %v274 = vmul.u32 %v269, %v270
    %v275 = vmul.u32 %v269, %v271
    %v276 = vshll.u32 %v273, 16
    %v277 = vshrl.u32 %v273, 16
    %v278 = vshll.u32 %v274, 16
    %v279 = vshrl.u32 %v274, 16
    %vm280 = vc.u32 %v272, %v276
    %v281 = vsel %vm280, 1, 0
    %v282 = vadd.s32 %v272, %v276
    %v283 = vadd.s32 %v275, %v281
    %vm284 = vc.u32 %v282, %v278
    %v285 = vsel %vm284, 1, 0
    %v286 = vadd.s32 %v282, %v278
    %v287 = vadd.s32 %v283, %v285
    %v288 = vadd.s32 %v287, %v277
    %v289 = vadd.s32 %v288, %v279
    %v290 = vmul.u32 %v245, %v236
    %v291 = vadd.s32 %v267, %v286
    %vm292 = vc.u32 %v267, %v286
    %v293 = vadd.s32 %v289, 1
    %v294 = vsel %vm292, %v293, %v289
    %v295 = vadd.s32 %v290, %v294
    %v296 = vadd.s32 %v295, 536870912
    %v297 = vshrl.u32 %v296, 30
    %v298 = vshll.u32 %v297, 30
    %v299 = vsub.s32 %v295, %v298
    %vm300 = vcmp.lt.s32.totalorder %v299, 0
    %v301 = vsub.s32 0, %v299
    %v302 = vsel %vm300, %v301, %v299
    %v303 = vclz %v302
    %v304 = vsub.s32 %v303, 2
    %vm305 = vcmp.gt.s32.totalorder 0, %v304
    %v306 = vsel %vm305, 0, %v304
    %v307 = vsub.s32 32, %v306
    %v308 = vshll.u32 %v299, %v306
    %v309 = vshrl.u32 %v291, %v307
    %v310 = vor.u32 %v308, %v309
    %v311 = vsub.s32 4294967266, %v306
    %v312 = vadd.s32 %v311, 127
    %v313 = vshll.u32 %v312, 23
    %v314 = vor.u32 4788187, %v313
    %v315 = vand.u32 2147483647, %v314
    %v317 = vcvt.s32.f32 %v310
    %v318 = vmul.f32 %v317, %v315
    %v319 = vxor.u32 %v318, 2147483648
    %v320 = vsel %vm199, %v319, %v318
    %v321 = vsub.s32 4, %v297
    %v322 = vsel %vm199, %v321, %v297
    %v323 = vsel %vm198, %v164, %v320
    %v324 = vsel %vm198, 0, %v322
    %v325 = vmul.f32 %v323, %v323
    %v326 = vmul.f32 %v325, -0.001358992
    %v327 = vadd.f32 %v326, 0.041655596
    %v328 = vmul.f32 %v325, %v327
    %v329 = vadd.f32 %v328, -0.4999988
    %v330 = vmul.f32 %v325, %v329
    %v331 = vadd.f32 1.0, %v330
    %v332 = vmul.f32 %v323, %v323
    %v333 = vmul.f32 %v332, -0.00019511016
    %v334 = vadd.f32 %v333, 0.008332121
    %v335 = vmul.f32 %v332, %v334
    %v336 = vadd.f32 %v335, -0.16666654
    %v337 = vmul.f32 %v332, %v336
    %v338 = vadd.f32 %v337, 1.0
    %v339 = vmul.f32 %v338, %v323
    %vm340 = vweird.f32 %v164
    %v341 = vadd.s32 %v324, 3
    %v342 = vand.u32 %v341, 3
    %vm343 = vcmp.lt.s32.totalorder %v342, 2
    %vm344 = vcmp.eq.s32.totalorder %v342, 0
    %v345 = vxor.u32 %v339, 2147483648
    %v346 = vsel %vm344, %v331, %v345
    %vm347 = vcmp.eq.s32.totalorder %v342, 2
    %v348 = vxor.u32 %v331, 2147483648
    %v349 = vsel %vm347, %v348, %v339
    %v350 = vsel %vm343, %v346, %v349
    %v351 = vsel %vm340, nan, %v350
    %v352 = vand.u32 2147483647, %v165
    %vm353 = vcmp.le.f32.partialorder %v352, 0.7853982
    %vm354 = vcmp.lt.s32.totalorder %v165, 0
    %v355 = vand.u32 %v165, 2139095040
    %v356 = vshrl.u32 %v355, 23
    %v357 = vsub.s32 %v356, 127
    %v358 = vand.u32 2147483647, %v165
    %v359 = vand.u32 %v358, 8388607
    %v360 = vor.u32 %v359, 8388608
    %v361 = vsub.s32 0, %v360
    %v362 = vadd.s32 %v357, 1
    %vm363 = vcmp.gt.s32.totalorder %v362, 0
    %v364 = vsel %vm363, %v362, 0
    %v365 = vshrl.u32 %v364, 5
    %v366 = vand.u32 %v364, 31
    %v367 = vsub.s32 32, %v366
    %v368 = vshrl.u32 683565275, %v367
    %v369 = vshll.u32 683565275, %v366
    %v370 = vshrl.u32 2475754826, %v367
    %v371 = vor.u32 %v369, %v370
    %v372 = vshll.u32 2475754826, %v366
    %v373 = vshrl.u32 2131351028, %v367
    %v374 = vor.u32 %v372, %v373
    %v375 = vshll.u32 2131351028, %v366
    %v376 = vshrl.u32 2102212464, %v367
    %v377 = vor.u32 %v375, %v376
    %v378 = vshll.u32 2102212464, %v366
    %v379 = vshrl.u32 920167782, %v367
    %v380 = vor.u32 %v378, %v379
    %v381 = vshll.u32 920167782, %v366
    %v382 = vshrl.u32 1326507024, %v367
    %v383 = vor.u32 %v381, %v382
    %vm384 = vcmp.lt.s32.totalorder %v365, 1
    %vm385 = vcmp.lt.s32.totalorder %v365, 2
    %vm386 = vcmp.lt.s32.totalorder %v365, 3
    %vm387 = vcmp.lt.s32.totalorder %v365, 4
    %v388 = vsel %vm384, %v368, %v371
    %v389 = vsel %vm387, %v377, 2102212464
    %v390 = vsel %vm386, %v374, %v389
    %v391 = vsel %vm385, %v388, %v390
    %v392 = vsel %vm384, %v371, %v374
    %v393 = vsel %vm387, %v380, 920167782
    %v394 = vsel %vm386, %v377, %v393
    %v395 = vsel %vm385, %v392, %v394
    %v396 = vsel %vm384, %v374, %v377
    %v397 = vsel %vm387, %v383, 1326507024
    %v398 = vsel %vm386, %v380, %v397
    %v399 = vsel %vm385, %v396, %v398
    %v400 = vshll.u32 %v360, 8
    %v401 = vand.u32 %v400, 65535
    %v402 = vshrl.u32 %v400, 16
    %v403 = vand.u32 %v399, 65535
    %v404 = vshrl.u32 %v399, 16
    %v405 = vmul.u32 %v401, %v403
    %v406 = vmul.u32 %v401, %v404
    %v407 = vmul.u32 %v402, %v403
    %v408 = vmul.u32 %v402, %v404
    %v409 = vshll.u32 %v406, 16
    %v410 = vshrl.u32 %v406, 16
    %v411 = vshll.u32 %v407, 16
    %v412 = vshrl.u32 %v407, 16
    %vm413 = vc.u32 %v405, %v409
    %v414 = vsel %vm413, 1, 0
    %v415 = vadd.s32 %v405, %v409
    %v416 = vadd.s32 %v408, %v414
    %vm417 = vc.u32 %v415, %v411
    %v418 = vsel %vm417, 1, 0
    %v419 = vadd.s32 %v415, %v411
    %v420 = vadd.s32 %v416, %v418
    %v421 = vadd.s32 %v420, %v410
    %v422 = vadd.s32 %v421, %v412
    %v423 = vand.u32 %v400, 65535
    %v424 = vshrl.u32 %v400, 16
    %v425 = vand.u32 %v395, 65535
    %v426 = vshrl.u32 %v395, 16
    %v427 = vmul.u32 %v423, %v425
    %v428 = vmul.u32 %v423, %v426
    %v429 = vmul.u32 %v424, %v425
    %v430 = vmul.u32 %v424, %v426
    %v431 = vshll.u32 %v428, 16
    %v432 = vshrl.u32 %v428, 16
    %v433 = vshll.u32 %v429, 16
    %v434 = vshrl.u32 %v429, 16
    %vm435 = vc.u32 %v427, %v431
    %v436 = vsel %vm435, 1, 0
    %v437 = vadd.s32 %v427, %v431
    %v438 = vadd.s32 %v430, %v436
    %vm439 = vc.u32 %v437, %v433
    %v440 = vsel %vm439, 1, 0
    %v441 = vadd.s32 %v437, %v433
    %v442 = vadd.s32 %v438, %v440
    %v443 = vadd.s32 %v442, %v432
    %v444 = vadd.s32 %v443, %v434
    %v445 = vmul.u32 %v400, %v391
    %v446 = vadd.s32 %v422, %v441
    %vm447 = vc.u32 %v422, %v441
    %v448 = vadd.s32 %v444, 1
    %v449 = vsel %vm447, %v448, %v444
    %v450 = vadd.s32 %v445, %v449
    %v451 = vadd.s32 %v450, 536870912
    %v452 = vshrl.u32 %v451, 30
    %v453 = vshll.u32 %v452, 30
    %v454 = vsub.s32 %v450, %v453
    %vm455 = vcmp.lt.s32.totalorder %v454, 0
    %v456 = vsub.s32 0, %v454
    %v457 = vsel %vm455, %v456, %v454
    %v458 = vclz %v457
    %v459 = vsub.s32 %v458, 2
    %vm460 = vcmp.gt.s32.totalorder 0, %v459
    %v461 = vsel %vm460, 0, %v459
    %v462 = vsub.s32 32, %v461
    %v463 = vshll.u32 %v454, %v461
    %v464 = vshrl.u32 %v446, %v462
    %v465 = vor.u32 %v463, %v464
    %v466 = vsub.s32 4294967266, %v461
    %v467 = vadd.s32 %v466, 127
    %v468 = vshll.u32 %v467, 23
    %v469 = vor.u32 4788187, %v468
    %v470 = vand.u32 2147483647, %v469
    %v472 = vcvt.s32.f32 %v465
    %v473 = vmul.f32 %v472, %v470
    %v474 = vxor.u32 %v473, 2147483648
    %v475 = vsel %vm354, %v474, %v473
    %v476 = vsub.s32 4, %v452
    %v477 = vsel %vm354, %v476, %v452
    %v478 = vsel %vm353, %v165, %v475
    %v479 = vsel %vm353, 0, %v477
    %v480 = vmul.f32 %v478, %v478
    %v481 = vmul.f32 %v480, -0.001358992
    %v482 = vadd.f32 %v481, 0.041655596
    %v483 = vmul.f32 %v480, %v482
    %v484 = vadd.f32 %v483, -0.4999988
    %v485 = vmul.f32 %v480, %v484
    %v486 = vadd.f32 1.0, %v485
    %v487 = vmul.f32 %v478, %v478
    %v488 = vmul.f32 %v487, -0.00019511016
    %v489 = vadd.f32 %v488, 0.008332121
    %v490 = vmul.f32 %v487, %v489
    %v491 = vadd.f32 %v490, -0.16666654
    %v492 = vmul.f32 %v487, %v491
    %v493 = vadd.f32 %v492, 1.0
    %v494 = vmul.f32 %v493, %v478
    %vm495 = vweird.f32 %v165
    %v496 = vadd.s32 %v479, 3
    %v497 = vand.u32 %v496, 3
    %vm498 = vcmp.lt.s32.totalorder %v497, 2
    %vm499 = vcmp.eq.s32.totalorder %v497, 0
    %v500 = vxor.u32 %v494, 2147483648
    %v501 = vsel %vm499, %v486, %v500
    %vm502 = vcmp.eq.s32.totalorder %v497, 2
    %v503 = vxor.u32 %v486, 2147483648
    %v504 = vsel %vm502, %v503, %v494
    %v505 = vsel %vm498, %v501, %v504
    %v506 = vsel %vm495, nan, %v505
    %v507 = vand.u32 2147483647, %v166
    %vm508 = vcmp.le.f32.partialorder %v507, 0.7853982
    %vm509 = vcmp.lt.s32.totalorder %v166, 0
    %v510 = vand.u32 %v166, 2139095040
    %v511 = vshrl.u32 %v510, 23
    %v512 = vsub.s32 %v511, 127
    %v513 = vand.u32 2147483647, %v166
    %v514 = vand.u32 %v513, 8388607
    %v515 = vor.u32 %v514, 8388608
    %v516 = vsub.s32 0, %v515
    %v517 = vadd.s32 %v512, 1
    %vm518 = vcmp.gt.s32.totalorder %v517, 0
    %v519 = vsel %vm518, %v517, 0
    %v520 = vshrl.u32 %v519, 5
    %v521 = vand.u32 %v519, 31
    %v522 = vsub.s32 32, %v521
    %v523 = vshrl.u32 683565275, %v522
    %v524 = vshll.u32 683565275, %v521
    %v525 = vshrl.u32 2475754826, %v522
    %v526 = vor.u32 %v524, %v525
    %v527 = vshll.u32 2475754826, %v521
    %v528 = vshrl.u32 2131351028, %v522
    %v529 = vor.u32 %v527, %v528
    %v530 = vshll.u32 2131351028, %v521
    %v531 = vshrl.u32 2102212464, %v522
    %v532 = vor.u32 %v530, %v531
    %v533 = vshll.u32 2102212464, %v521
    %v534 = vshrl.u32 920167782, %v522
    %v535 = vor.u32 %v533, %v534
    %v536 = vshll.u32 920167782, %v521
    %v537 = vshrl.u32 1326507024, %v522
    %v538 = vor.u32 %v536, %v537
    %vm539 = vcmp.lt.s32.totalorder %v520, 1
    %vm540 = vcmp.lt.s32.totalorder %v520, 2
    %vm541 = vcmp.lt.s32.totalorder %v520, 3
    %vm542 = vcmp.lt.s32.totalorder %v520, 4
    %v543 = vsel %vm539, %v523, %v526
    %v544 = vsel %vm542, %v532, 2102212464
    %v545 = vsel %vm541, %v529, %v544
    %v546 = vsel %vm540, %v543, %v545
    %v547 = vsel %vm539, %v526, %v529
    %v548 = vsel %vm542, %v535, 920167782
    %v549 = vsel %vm541, %v532, %v548
    %v550 = vsel %vm540, %v547, %v549
    %v551 = vsel %vm539, %v529, %v532
    %v552 = vsel %vm542, %v538, 1326507024
    %v553 = vsel %vm541, %v535, %v552
    %v554 = vsel %vm540, %v551, %v553
    %v555 = vshll.u32 %v515, 8
    %v556 = vand.u32 %v555, 65535
    %v557 = vshrl.u32 %v555, 16
    %v558 = vand.u32 %v554, 65535
    %v559 = vshrl.u32 %v554, 16
    %v560 = vmul.u32 %v556, %v558
    %v561 = vmul.u32 %v556, %v559
    %v562 = vmul.u32 %v557, %v558
    %v563 = vmul.u32 %v557, %v559
    %v564 = vshll.u32 %v561, 16
    %v565 = vshrl.u32 %v561, 16
    %v566 = vshll.u32 %v562, 16
    %v567 = vshrl.u32 %v562, 16
    %vm568 = vc.u32 %v560, %v564
    %v569 = vsel %vm568, 1, 0
    %v570 = vadd.s32 %v560, %v564
    %v571 = vadd.s32 %v563, %v569
    %vm572 = vc.u32 %v570, %v566
    %v573 = vsel %vm572, 1, 0
    %v574 = vadd.s32 %v570, %v566
    %v575 = vadd.s32 %v571, %v573
    %v576 = vadd.s32 %v575, %v565
    %v577 = vadd.s32 %v576, %v567
    %v578 = vand.u32 %v555, 65535
    %v579 = vshrl.u32 %v555, 16
    %v580 = vand.u32 %v550, 65535
    %v581 = vshrl.u32 %v550, 16
    %v582 = vmul.u32 %v578, %v580
    %v583 = vmul.u32 %v578, %v581
    %v584 = vmul.u32 %v579, %v580
    %v585 = vmul.u32 %v579, %v581
    %v586 = vshll.u32 %v583, 16
    %v587 = vshrl.u32 %v583, 16
    %v588 = vshll.u32 %v584, 16
    %v589 = vshrl.u32 %v584, 16
    %vm590 = vc.u32 %v582, %v586
    %v591 = vsel %vm590, 1, 0
    %v592 = vadd.s32 %v582, %v586
    %v593 = vadd.s32 %v585, %v591
    %vm594 = vc.u32 %v592, %v588
    %v595 = vsel %vm594, 1, 0
    %v596 = vadd.s32 %v592, %v588
    %v597 = vadd.s32 %v593, %v595
    %v598 = vadd.s32 %v597, %v587
    %v599 = vadd.s32 %v598, %v589
    %v600 = vmul.u32 %v555, %v546
    %v601 = vadd.s32 %v577, %v596
    %vm602 = vc.u32 %v577, %v596
    %v603 = vadd.s32 %v599, 1
    %v604 = vsel %vm602, %v603, %v599
    %v605 = vadd.s32 %v600, %v604
    %v606 = vadd.s32 %v605, 536870912
    %v607 = vshrl.u32 %v606, 30
    %v608 = vshll.u32 %v607, 30
    %v609 = vsub.s32 %v605, %v608
    %vm610 = vcmp.lt.s32.totalorder %v609, 0
    %v611 = vsub.s32 0, %v609
    %v612 = vsel %vm610, %v611, %v609
    %v613 = vclz %v612
    %v614 = vsub.s32 %v613, 2
    %vm615 = vcmp.gt.s32.totalorder 0, %v614
    %v616 = vsel %vm615, 0, %v614
    %v617 = vsub.s32 32, %v616
    %v618 = vshll.u32 %v609, %v616
    %v619 = vshrl.u32 %v601, %v617
    %v620 = vor.u32 %v618, %v619
    %v621 = vsub.s32 4294967266, %v616
    %v622 = vadd.s32 %v621, 127
    %v623 = vshll.u32 %v622, 23
    %v624 = vor.u32 4788187, %v623
    %v625 = vand.u32 2147483647, %v624
    %v627 = vcvt.s32.f32 %v620
    %v628 = vmul.f32 %v627, %v625
    %v629 = vxor.u32 %v628, 2147483648
    %v630 = vsel %vm509, %v629, %v628
    %v631 = vsub.s32 4, %v607
    %v632 = vsel %vm509, %v631, %v607
    %v633 = vsel %vm508, %v166, %v630
    %v634 = vsel %vm508, 0, %v632
    %v635 = vmul.f32 %v633, %v633
    %v636 = vmul.f32 %v635, -0.001358992
    %v637 = vadd.f32 %v636, 0.041655596
    %v638 = vmul.f32 %v635, %v637
    %v639 = vadd.f32 %v638, -0.4999988
    %v640 = vmul.f32 %v635, %v639
    %v641 = vadd.f32 1.0, %v640
    %v642 = vmul.f32 %v633, %v633
    %v643 = vmul.f32 %v642, -0.00019511016
    %v644 = vadd.f32 %v643, 0.008332121
    %v645 = vmul.f32 %v642, %v644
    %v646 = vadd.f32 %v645, -0.16666654
    %v647 = vmul.f32 %v642, %v646
    %v648 = vadd.f32 %v647, 1.0
    %v649 = vmul.f32 %v648, %v633
    %vm650 = vweird.f32 %v166
    %v651 = vadd.s32 %v634, 3
    %v652 = vand.u32 %v651, 3
    %vm653 = vcmp.lt.s32.totalorder %v652, 2
    %vm654 = vcmp.eq.s32.totalorder %v652, 0
    %v655 = vxor.u32 %v649, 2147483648
    %v656 = vsel %vm654, %v641, %v655
    %vm657 = vcmp.eq.s32.totalorder %v652, 2
    %v658 = vxor.u32 %v641, 2147483648
    %v659 = vsel %vm657, %v658, %v649
    %v660 = vsel %vm653, %v656, %v659
    %v661 = vsel %vm650, nan, %v660
    %v662 = vand.u32 2147483647, %v167
    %vm663 = vcmp.le.f32.partialorder %v662, 0.7853982
    %vm664 = vcmp.lt.s32.totalorder %v167, 0
    %v665 = vand.u32 %v167, 2139095040
    %v666 = vshrl.u32 %v665, 23
    %v667 = vsub.s32 %v666, 127
    %v668 = vand.u32 2147483647, %v167
    %v669 = vand.u32 %v668, 8388607
    %v670 = vor.u32 %v669, 8388608
    %v671 = vsub.s32 0, %v670
    %v672 = vadd.s32 %v667, 1
    %vm673 = vcmp.gt.s32.totalorder %v672, 0
    %v674 = vsel %vm673, %v672, 0
    %v675 = vshrl.u32 %v674, 5
    %v676 = vand.u32 %v674, 31
    %v677 = vsub.s32 32, %v676
    %v678 = vshrl.u32 683565275, %v677
    %v679 = vshll.u32 683565275, %v676
    %v680 = vshrl.u32 2475754826, %v677
    %v681 = vor.u32 %v679, %v680
    %v682 = vshll.u32 2475754826, %v676
    %v683 = vshrl.u32 2131351028, %v677
    %v684 = vor.u32 %v682, %v683
    %v685 = vshll.u32 2131351028, %v676
    %v686 = vshrl.u32 2102212464, %v677
    %v687 = vor.u32 %v685, %v686
    %v688 = vshll.u32 2102212464, %v676
    %v689 = vshrl.u32 920167782, %v677
    %v690 = vor.u32 %v688, %v689
    %v691 = vshll.u32 920167782, %v676
    %v692 = vshrl.u32 1326507024, %v677
    %v693 = vor.u32 %v691, %v692
    %vm694 = vcmp.lt.s32.totalorder %v675, 1
    %vm695 = vcmp.lt.s32.totalorder %v675, 2
    %vm696 = vcmp.lt.s32.totalorder %v675, 3
    %vm697 = vcmp.lt.s32.totalorder %v675, 4
    %v698 = vsel %vm694, %v678, %v681
    %v699 = vsel %vm697, %v687, 2102212464
    %v700 = vsel %vm696, %v684, %v699
    %v701 = vsel %vm695, %v698, %v700
    %v702 = vsel %vm694, %v681, %v684
    %v703 = vsel %vm697, %v690, 920167782
    %v704 = vsel %vm696, %v687, %v703
    %v705 = vsel %vm695, %v702, %v704
    %v706 = vsel %vm694, %v684, %v687
    %v707 = vsel %vm697, %v693, 1326507024
    %v708 = vsel %vm696, %v690, %v707
    %v709 = vsel %vm695, %v706, %v708
    %v710 = vshll.u32 %v670, 8
    %v711 = vand.u32 %v710, 65535
    %v712 = vshrl.u32 %v710, 16
    %v713 = vand.u32 %v709, 65535
    %v714 = vshrl.u32 %v709, 16
    %v715 = vmul.u32 %v711, %v713
    %v716 = vmul.u32 %v711, %v714
    %v717 = vmul.u32 %v712, %v713
    %v718 = vmul.u32 %v712, %v714
    %v719 = vshll.u32 %v716, 16
    %v720 = vshrl.u32 %v716, 16
    %v721 = vshll.u32 %v717, 16
    %v722 = vshrl.u32 %v717, 16
    %vm723 = vc.u32 %v715, %v719
    %v724 = vsel %vm723, 1, 0
    %v725 = vadd.s32 %v715, %v719
    %v726 = vadd.s32 %v718, %v724
    %vm727 = vc.u32 %v725, %v721
    %v728 = vsel %vm727, 1, 0
    %v729 = vadd.s32 %v725, %v721
    %v730 = vadd.s32 %v726, %v728
    %v731 = vadd.s32 %v730, %v720
    %v732 = vadd.s32 %v731, %v722
    %v733 = vand.u32 %v710, 65535
    %v734 = vshrl.u32 %v710, 16
    %v735 = vand.u32 %v705, 65535
    %v736 = vshrl.u32 %v705, 16
    %v737 = vmul.u32 %v733, %v735
    %v738 = vmul.u32 %v733, %v736
    %v739 = vmul.u32 %v734, %v735
    %v740 = vmul.u32 %v734, %v736
    %v741 = vshll.u32 %v738, 16
    %v742 = vshrl.u32 %v738, 16
    %v743 = vshll.u32 %v739, 16
    %v744 = vshrl.u32 %v739, 16
    %vm745 = vc.u32 %v737, %v741
    %v746 = vsel %vm745, 1, 0
    %v747 = vadd.s32 %v737, %v741
    %v748 = vadd.s32 %v740, %v746
    %vm749 = vc.u32 %v747, %v743
    %v750 = vsel %vm749, 1, 0
    %v751 = vadd.s32 %v747, %v743
    %v752 = vadd.s32 %v748, %v750
    %v753 = vadd.s32 %v752, %v742
    %v754 = vadd.s32 %v753, %v744
    %v755 = vmul.u32 %v710, %v701
    %v756 = vadd.s32 %v732, %v751
    %vm757 = vc.u32 %v732, %v751
    %v758 = vadd.s32 %v754, 1
    %v759 = vsel %vm757, %v758, %v754
    %v760 = vadd.s32 %v755, %v759
    %v761 = vadd.s32 %v760, 536870912
    %v762 = vshrl.u32 %v761, 30
    %v763 = vshll.u32 %v762, 30
    %v764 = vsub.s32 %v760, %v763
    %vm765 = vcmp.lt.s32.totalorder %v764, 0
    %v766 = vsub.s32 0, %v764
    %v767 = vsel %vm765, %v766, %v764
    %v768 = vclz %v767
    %v769 = vsub.s32 %v768, 2
    %vm770 = vcmp.gt.s32.totalorder 0, %v769
    %v771 = vsel %vm770, 0, %v769
    %v772 = vsub.s32 32, %v771
    %v773 = vshll.u32 %v764, %v771
    %v774 = vshrl.u32 %v756, %v772
    %v775 = vor.u32 %v773, %v774
    %v776 = vsub.s32 4294967266, %v771
    %v777 = vadd.s32 %v776, 127
    %v778 = vshll.u32 %v777, 23
    %v779 = vor.u32 4788187, %v778
    %v780 = vand.u32 2147483647, %v779
    %v782 = vcvt.s32.f32 %v775
    %v783 = vmul.f32 %v782, %v780
    %v784 = vxor.u32 %v783, 2147483648
    %v785 = vsel %vm664, %v784, %v783
    %v786 = vsub.s32 4, %v762
    %v787 = vsel %vm664, %v786, %v762
    %v788 = vsel %vm663, %v167, %v785
    %v789 = vsel %vm663, 0, %v787
    %v790 = vmul.f32 %v788, %v788
    %v791 = vmul.f32 %v790, -0.001358992
    %v792 = vadd.f32 %v791, 0.041655596
    %v793 = vmul.f32 %v790, %v792
    %v794 = vadd.f32 %v793, -0.4999988
    %v795 = vmul.f32 %v790, %v794
    %v796 = vadd.f32 1.0, %v795
    %v797 = vmul.f32 %v788, %v788
    %v798 = vmul.f32 %v797, -0.00019511016
    %v799 = vadd.f32 %v798, 0.008332121
    %v800 = vmul.f32 %v797, %v799
    %v801 = vadd.f32 %v800, -0.16666654
    %v802 = vmul.f32 %v797, %v801
    %v803 = vadd.f32 %v802, 1.0
    %v804 = vmul.f32 %v803, %v788
    %vm805 = vweird.f32 %v167
    %v806 = vadd.s32 %v789, 3
    %v807 = vand.u32 %v806, 3
    %vm808 = vcmp.lt.s32.totalorder %v807, 2
    %vm809 = vcmp.eq.s32.totalorder %v807, 0
    %v810 = vxor.u32 %v804, 2147483648
    %v811 = vsel %vm809, %v796, %v810
    %vm812 = vcmp.eq.s32.totalorder %v807, 2
    %v813 = vxor.u32 %v796, 2147483648
    %v814 = vsel %vm812, %v813, %v804
    %v815 = vsel %vm808, %v811, %v814
    %v816 = vsel %vm805, nan, %v815
    %v817 = vand.u32 2147483647, %v168
    %vm818 = vcmp.le.f32.partialorder %v817, 0.7853982
    %vm819 = vcmp.lt.s32.totalorder %v168, 0
    %v820 = vand.u32 %v168, 2139095040
    %v821 = vshrl.u32 %v820, 23
    %v822 = vsub.s32 %v821, 127
    %v823 = vand.u32 2147483647, %v168
    %v824 = vand.u32 %v823, 8388607
    %v825 = vor.u32 %v824, 8388608
    %v826 = vsub.s32 0, %v825
    %v827 = vadd.s32 %v822, 1
    %vm828 = vcmp.gt.s32.totalorder %v827, 0
    %v829 = vsel %vm828, %v827, 0
    %v830 = vshrl.u32 %v829, 5
    %v831 = vand.u32 %v829, 31
    %v832 = vsub.s32 32, %v831
    %v833 = vshrl.u32 683565275, %v832
    %v834 = vshll.u32 683565275, %v831
    %v835 = vshrl.u32 2475754826, %v832
    %v836 = vor.u32 %v834, %v835
    %v837 = vshll.u32 2475754826, %v831
    %v838 = vshrl.u32 2131351028, %v832
    %v839 = vor.u32 %v837, %v838
    %v840 = vshll.u32 2131351028, %v831
    %v841 = vshrl.u32 2102212464, %v832
    %v842 = vor.u32 %v840, %v841
    %v843 = vshll.u32 2102212464, %v831
    %v844 = vshrl.u32 920167782, %v832
    %v845 = vor.u32 %v843, %v844
    %v846 = vshll.u32 920167782, %v831
    %v847 = vshrl.u32 1326507024, %v832
    %v848 = vor.u32 %v846, %v847
    %vm849 = vcmp.lt.s32.totalorder %v830, 1
    %vm850 = vcmp.lt.s32.totalorder %v830, 2
    %vm851 = vcmp.lt.s32.totalorder %v830, 3
    %vm852 = vcmp.lt.s32.totalorder %v830, 4
    %v853 = vsel %vm849, %v833, %v836
    %v854 = vsel %vm852, %v842, 2102212464
    %v855 = vsel %vm851, %v839, %v854
    %v856 = vsel %vm850, %v853, %v855
    %v857 = vsel %vm849, %v836, %v839
    %v858 = vsel %vm852, %v845, 920167782
    %v859 = vsel %vm851, %v842, %v858
    %v860 = vsel %vm850, %v857, %v859
    %v861 = vsel %vm849, %v839, %v842
    %v862 = vsel %vm852, %v848, 1326507024
    %v863 = vsel %vm851, %v845, %v862
    %v864 = vsel %vm850, %v861, %v863
    %v865 = vshll.u32 %v825, 8
    %v866 = vand.u32 %v865, 65535
    %v867 = vshrl.u32 %v865, 16
    %v868 = vand.u32 %v864, 65535
    %v869 = vshrl.u32 %v864, 16
    %v870 = vmul.u32 %v866, %v868
    %v871 = vmul.u32 %v866, %v869
    %v872 = vmul.u32 %v867, %v868
    %v873 = vmul.u32 %v867, %v869
    %v874 = vshll.u32 %v871, 16
    %v875 = vshrl.u32 %v871, 16
    %v876 = vshll.u32 %v872, 16
    %v877 = vshrl.u32 %v872, 16
    %vm878 = vc.u32 %v870, %v874
    %v879 = vsel %vm878, 1, 0
    %v880 = vadd.s32 %v870, %v874
    %v881 = vadd.s32 %v873, %v879
    %vm882 = vc.u32 %v880, %v876
    %v883 = vsel %vm882, 1, 0
    %v884 = vadd.s32 %v880, %v876
    %v885 = vadd.s32 %v881, %v883
    %v886 = vadd.s32 %v885, %v875
    %v887 = vadd.s32 %v886, %v877
    %v888 = vand.u32 %v865, 65535
    %v889 = vshrl.u32 %v865, 16
    %v890 = vand.u32 %v860, 65535
    %v891 = vshrl.u32 %v860, 16
    %v892 = vmul.u32 %v888, %v890
    %v893 = vmul.u32 %v888, %v891
    %v894 = vmul.u32 %v889, %v890
    %v895 = vmul.u32 %v889, %v891
    %v896 = vshll.u32 %v893, 16
    %v897 = vshrl.u32 %v893, 16
    %v898 = vshll.u32 %v894, 16
    %v899 = vshrl.u32 %v894, 16
    %vm900 = vc.u32 %v892, %v896
    %v901 = vsel %vm900, 1, 0
    %v902 = vadd.s32 %v892, %v896
    %v903 = vadd.s32 %v895, %v901
    %vm904 = vc.u32 %v902, %v898
    %v905 = vsel %vm904, 1, 0
    %v906 = vadd.s32 %v902, %v898
    %v907 = vadd.s32 %v903, %v905
    %v908 = vadd.s32 %v907, %v897
    %v909 = vadd.s32 %v908, %v899
    %v910 = vmul.u32 %v865, %v856
    %v911 = vadd.s32 %v887, %v906
    %vm912 = vc.u32 %v887, %v906
    %v913 = vadd.s32 %v909, 1
    %v914 = vsel %vm912, %v913, %v909
    %v915 = vadd.s32 %v910, %v914
    %v916 = vadd.s32 %v915, 536870912
    %v917 = vshrl.u32 %v916, 30
    %v918 = vshll.u32 %v917, 30
    %v919 = vsub.s32 %v915, %v918
    %vm920 = vcmp.lt.s32.totalorder %v919, 0
    %v921 = vsub.s32 0, %v919
    %v922 = vsel %vm920, %v921, %v919
    %v923 = vclz %v922
    %v924 = vsub.s32 %v923, 2
    %vm925 = vcmp.gt.s32.totalorder 0, %v924
    %v926 = vsel %vm925, 0, %v924
    %v927 = vsub.s32 32, %v926
    %v928 = vshll.u32 %v919, %v926
    %v929 = vshrl.u32 %v911, %v927
    %v930 = vor.u32 %v928, %v929
    %v931 = vsub.s32 4294967266, %v926
    %v932 = vadd.s32 %v931, 127
    %v933 = vshll.u32 %v932, 23
    %v934 = vor.u32 4788187, %v933
    %v935 = vand.u32 2147483647, %v934
    %v937 = vcvt.s32.f32 %v930
    %v938 = vmul.f32 %v937, %v935
    %v939 = vxor.u32 %v938, 2147483648
    %v940 = vsel %vm819, %v939, %v938
    %v941 = vsub.s32 4, %v917
    %v942 = vsel %vm819, %v941, %v917
    %v943 = vsel %vm818, %v168, %v940
    %v944 = vsel %vm818, 0, %v942
    %v945 = vmul.f32 %v943, %v943
    %v946 = vmul.f32 %v945, -0.001358992
    %v947 = vadd.f32 %v946, 0.041655596
    %v948 = vmul.f32 %v945, %v947
    %v949 = vadd.f32 %v948, -0.4999988
    %v950 = vmul.f32 %v945, %v949
    %v951 = vadd.f32 1.0, %v950
    %v952 = vmul.f32 %v943, %v943
    %v953 = vmul.f32 %v952, -0.00019511016
    %v954 = vadd.f32 %v953, 0.008332121
    %v955 = vmul.f32 %v952, %v954
    %v956 = vadd.f32 %v955, -0.16666654
    %v957 = vmul.f32 %v952, %v956
    %v958 = vadd.f32 %v957, 1.0
    %v959 = vmul.f32 %v958, %v943
    %vm960 = vweird.f32 %v168
    %v961 = vadd.s32 %v944, 3
    %v962 = vand.u32 %v961, 3
    %vm963 = vcmp.lt.s32.totalorder %v962, 2
    %vm964 = vcmp.eq.s32.totalorder %v962, 0
    %v965 = vxor.u32 %v959, 2147483648
    %v966 = vsel %vm964, %v951, %v965
    %vm967 = vcmp.eq.s32.totalorder %v962, 2
    %v968 = vxor.u32 %v951, 2147483648
    %v969 = vsel %vm967, %v968, %v959
    %v970 = vsel %vm963, %v966, %v969
    %v971 = vsel %vm960, nan, %v970
    %v972 = vand.u32 2147483647, %v169
    %vm973 = vcmp.le.f32.partialorder %v972, 0.7853982
    %vm974 = vcmp.lt.s32.totalorder %v169, 0
    %v975 = vand.u32 %v169, 2139095040
    %v976 = vshrl.u32 %v975, 23
    %v977 = vsub.s32 %v976, 127
    %v978 = vand.u32 2147483647, %v169
    %v979 = vand.u32 %v978, 8388607
    %v980 = vor.u32 %v979, 8388608
    %v981 = vsub.s32 0, %v980
    %v982 = vadd.s32 %v977, 1
    %vm983 = vcmp.gt.s32.totalorder %v982, 0
    %v984 = vsel %vm983, %v982, 0
    %v985 = vshrl.u32 %v984, 5
    %v986 = vand.u32 %v984, 31
    %v987 = vsub.s32 32, %v986
    %v988 = vshrl.u32 683565275, %v987
    %v989 = vshll.u32 683565275, %v986
    %v990 = vshrl.u32 2475754826, %v987
    %v991 = vor.u32 %v989, %v990
    %v992 = vshll.u32 2475754826, %v986
    %v993 = vshrl.u32 2131351028, %v987
    %v994 = vor.u32 %v992, %v993
    %v995 = vshll.u32 2131351028, %v986
    %v996 = vshrl.u32 2102212464, %v987
    %v997 = vor.u32 %v995, %v996
    %v998 = vshll.u32 2102212464, %v986
    %v999 = vshrl.u32 920167782, %v987
    %v1000 = vor.u32 %v998, %v999
    %v1001 = vshll.u32 920167782, %v986
    %v1002 = vshrl.u32 1326507024, %v987
    %v1003 = vor.u32 %v1001, %v1002
    %vm1004 = vcmp.lt.s32.totalorder %v985, 1
    %vm1005 = vcmp.lt.s32.totalorder %v985, 2
    %vm1006 = vcmp.lt.s32.totalorder %v985, 3
    %vm1007 = vcmp.lt.s32.totalorder %v985, 4
    %v1008 = vsel %vm1004, %v988, %v991
    %v1009 = vsel %vm1007, %v997, 2102212464
    %v1010 = vsel %vm1006, %v994, %v1009
    %v1011 = vsel %vm1005, %v1008, %v1010
    %v1012 = vsel %vm1004, %v991, %v994
    %v1013 = vsel %vm1007, %v1000, 920167782
    %v1014 = vsel %vm1006, %v997, %v1013
    %v1015 = vsel %vm1005, %v1012, %v1014
    %v1016 = vsel %vm1004, %v994, %v997
    %v1017 = vsel %vm1007, %v1003, 1326507024
    %v1018 = vsel %vm1006, %v1000, %v1017
    %v1019 = vsel %vm1005, %v1016, %v1018
    %v1020 = vshll.u32 %v980, 8
    %v1021 = vand.u32 %v1020, 65535
    %v1022 = vshrl.u32 %v1020, 16
    %v1023 = vand.u32 %v1019, 65535
    %v1024 = vshrl.u32 %v1019, 16
    %v1025 = vmul.u32 %v1021, %v1023
    %v1026 = vmul.u32 %v1021, %v1024
    %v1027 = vmul.u32 %v1022, %v1023
    %v1028 = vmul.u32 %v1022, %v1024
    %v1029 = vshll.u32 %v1026, 16
    %v1030 = vshrl.u32 %v1026, 16
    %v1031 = vshll.u32 %v1027, 16
    %v1032 = vshrl.u32 %v1027, 16
    %vm1033 = vc.u32 %v1025, %v1029
    %v1034 = vsel %vm1033, 1, 0
    %v1035 = vadd.s32 %v1025, %v1029
    %v1036 = vadd.s32 %v1028, %v1034
    %vm1037 = vc.u32 %v1035, %v1031
    %v1038 = vsel %vm1037, 1, 0
    %v1039 = vadd.s32 %v1035, %v1031
    %v1040 = vadd.s32 %v1036, %v1038
    %v1041 = vadd.s32 %v1040, %v1030
    %v1042 = vadd.s32 %v1041, %v1032
    %v1043 = vand.u32 %v1020, 65535
    %v1044 = vshrl.u32 %v1020, 16
    %v1045 = vand.u32 %v1015, 65535
    %v1046 = vshrl.u32 %v1015, 16
    %v1047 = vmul.u32 %v1043, %v1045
    %v1048 = vmul.u32 %v1043, %v1046
    %v1049 = vmul.u32 %v1044, %v1045
    %v1050 = vmul.u32 %v1044, %v1046
    %v1051 = vshll.u32 %v1048, 16
    %v1052 = vshrl.u32 %v1048, 16
    %v1053 = vshll.u32 %v1049, 16
    %v1054 = vshrl.u32 %v1049, 16
    %vm1055 = vc.u32 %v1047, %v1051
    %v1056 = vsel %vm1055, 1, 0
    %v1057 = vadd.s32 %v1047, %v1051
    %v1058 = vadd.s32 %v1050, %v1056
    %vm1059 = vc.u32 %v1057, %v1053
    %v1060 = vsel %vm1059, 1, 0
    %v1061 = vadd.s32 %v1057, %v1053
    %v1062 = vadd.s32 %v1058, %v1060
    %v1063 = vadd.s32 %v1062, %v1052
    %v1064 = vadd.s32 %v1063, %v1054
    %v1065 = vmul.u32 %v1020, %v1011
    %v1066 = vadd.s32 %v1042, %v1061
    %vm1067 = vc.u32 %v1042, %v1061
    %v1068 = vadd.s32 %v1064, 1
    %v1069 = vsel %vm1067, %v1068, %v1064
    %v1070 = vadd.s32 %v1065, %v1069
    %v1071 = vadd.s32 %v1070, 536870912
    %v1072 = vshrl.u32 %v1071, 30
    %v1073 = vshll.u32 %v1072, 30
    %v1074 = vsub.s32 %v1070, %v1073
    %vm1075 = vcmp.lt.s32.totalorder %v1074, 0
    %v1076 = vsub.s32 0, %v1074
    %v1077 = vsel %vm1075, %v1076, %v1074
    %v1078 = vclz %v1077
    %v1079 = vsub.s32 %v1078, 2
    %vm1080 = vcmp.gt.s32.totalorder 0, %v1079
    %v1081 = vsel %vm1080, 0, %v1079
    %v1082 = vsub.s32 32, %v1081
    %v1083 = vshll.u32 %v1074, %v1081
    %v1084 = vshrl.u32 %v1066, %v1082
    %v1085 = vor.u32 %v1083, %v1084
    %v1086 = vsub.s32 4294967266, %v1081
    %v1087 = vadd.s32 %v1086, 127
    %v1088 = vshll.u32 %v1087, 23
    %v1089 = vor.u32 4788187, %v1088
    %v1090 = vand.u32 2147483647, %v1089
    %v1092 = vcvt.s32.f32 %v1085
    %v1093 = vmul.f32 %v1092, %v1090
    %v1094 = vxor.u32 %v1093, 2147483648
    %v1095 = vsel %vm974, %v1094, %v1093
    %v1096 = vsub.s32 4, %v1072
    %v1097 = vsel %vm974, %v1096, %v1072
    %v1098 = vsel %vm973, %v169, %v1095
    %v1099 = vsel %vm973, 0, %v1097
    %v1100 = vmul.f32 %v1098, %v1098
    %v1101 = vmul.f32 %v1100, -0.001358992
    %v1102 = vadd.f32 %v1101, 0.041655596
    %v1103 = vmul.f32 %v1100, %v1102
    %v1104 = vadd.f32 %v1103, -0.4999988
    %v1105 = vmul.f32 %v1100, %v1104
    %v1106 = vadd.f32 1.0, %v1105
    %v1107 = vmul.f32 %v1098, %v1098
    %v1108 = vmul.f32 %v1107, -0.00019511016
    %v1109 = vadd.f32 %v1108, 0.008332121
    %v1110 = vmul.f32 %v1107, %v1109
    %v1111 = vadd.f32 %v1110, -0.16666654
    %v1112 = vmul.f32 %v1107, %v1111
    %v1113 = vadd.f32 %v1112, 1.0
    %v1114 = vmul.f32 %v1113, %v1098
    %vm1115 = vweird.f32 %v169
    %v1116 = vadd.s32 %v1099, 3
    %v1117 = vand.u32 %v1116, 3
    %vm1118 = vcmp.lt.s32.totalorder %v1117, 2
    %vm1119 = vcmp.eq.s32.totalorder %v1117, 0
    %v1120 = vxor.u32 %v1114, 2147483648
    %v1121 = vsel %vm1119, %v1106, %v1120
    %vm1122 = vcmp.eq.s32.totalorder %v1117, 2
    %v1123 = vxor.u32 %v1106, 2147483648
    %v1124 = vsel %vm1122, %v1123, %v1114
    %v1125 = vsel %vm1118, %v1121, %v1124
    %v1126 = vsel %vm1115, nan, %v1125
    %v1127 = vand.u32 2147483647, %v170
    %vm1128 = vcmp.le.f32.partialorder %v1127, 0.7853982
    %vm1129 = vcmp.lt.s32.totalorder %v170, 0
    %v1130 = vand.u32 %v170, 2139095040
    %v1131 = vshrl.u32 %v1130, 23
    %v1132 = vsub.s32 %v1131, 127
    %v1133 = vand.u32 2147483647, %v170
    %v1134 = vand.u32 %v1133, 8388607
    %v1135 = vor.u32 %v1134, 8388608
    %v1136 = vsub.s32 0, %v1135
    %v1137 = vadd.s32 %v1132, 1
    %vm1138 = vcmp.gt.s32.totalorder %v1137, 0
    %v1139 = vsel %vm1138, %v1137, 0
    %v1140 = vshrl.u32 %v1139, 5
    %v1141 = vand.u32 %v1139, 31
    %v1142 = vsub.s32 32, %v1141
    %v1143 = vshrl.u32 683565275, %v1142
    %v1144 = vshll.u32 683565275, %v1141
    %v1145 = vshrl.u32 2475754826, %v1142
    %v1146 = vor.u32 %v1144, %v1145
    %v1147 = vshll.u32 2475754826, %v1141
    %v1148 = vshrl.u32 2131351028, %v1142
    %v1149 = vor.u32 %v1147, %v1148
    %v1150 = vshll.u32 2131351028, %v1141
    %v1151 = vshrl.u32 2102212464, %v1142
    %v1152 = vor.u32 %v1150, %v1151
    %v1153 = vshll.u32 2102212464, %v1141
    %v1154 = vshrl.u32 920167782, %v1142
    %v1155 = vor.u32 %v1153, %v1154
    %v1156 = vshll.u32 920167782, %v1141
    %v1157 = vshrl.u32 1326507024, %v1142
    %v1158 = vor.u32 %v1156, %v1157
    %vm1159 = vcmp.lt.s32.totalorder %v1140, 1
    %vm1160 = vcmp.lt.s32.totalorder %v1140, 2
    %vm1161 = vcmp.lt.s32.totalorder %v1140, 3
    %vm1162 = vcmp.lt.s32.totalorder %v1140, 4
    %v1163 = vsel %vm1159, %v1143, %v1146
    %v1164 = vsel %vm1162, %v1152, 2102212464
    %v1165 = vsel %vm1161, %v1149, %v1164
    %v1166 = vsel %vm1160, %v1163, %v1165
    %v1167 = vsel %vm1159, %v1146, %v1149
    %v1168 = vsel %vm1162, %v1155, 920167782
    %v1169 = vsel %vm1161, %v1152, %v1168
    %v1170 = vsel %vm1160, %v1167, %v1169
    %v1171 = vsel %vm1159, %v1149, %v1152
    %v1172 = vsel %vm1162, %v1158, 1326507024
    %v1173 = vsel %vm1161, %v1155, %v1172
    %v1174 = vsel %vm1160, %v1171, %v1173
    %v1175 = vshll.u32 %v1135, 8
    %v1176 = vand.u32 %v1175, 65535
    %v1177 = vshrl.u32 %v1175, 16
    %v1178 = vand.u32 %v1174, 65535
    %v1179 = vshrl.u32 %v1174, 16
    %v1180 = vmul.u32 %v1176, %v1178
    %v1181 = vmul.u32 %v1176, %v1179
    %v1182 = vmul.u32 %v1177, %v1178
    %v1183 = vmul.u32 %v1177, %v1179
    %v1184 = vshll.u32 %v1181, 16
    %v1185 = vshrl.u32 %v1181, 16
    %v1186 = vshll.u32 %v1182, 16
    %v1187 = vshrl.u32 %v1182, 16
    %vm1188 = vc.u32 %v1180, %v1184
    %v1189 = vsel %vm1188, 1, 0
    %v1190 = vadd.s32 %v1180, %v1184
    %v1191 = vadd.s32 %v1183, %v1189
    %vm1192 = vc.u32 %v1190, %v1186
    %v1193 = vsel %vm1192, 1, 0
    %v1194 = vadd.s32 %v1190, %v1186
    %v1195 = vadd.s32 %v1191, %v1193
    %v1196 = vadd.s32 %v1195, %v1185
    %v1197 = vadd.s32 %v1196, %v1187
    %v1198 = vand.u32 %v1175, 65535
    %v1199 = vshrl.u32 %v1175, 16
    %v1200 = vand.u32 %v1170, 65535
    %v1201 = vshrl.u32 %v1170, 16
    %v1202 = vmul.u32 %v1198, %v1200
    %v1203 = vmul.u32 %v1198, %v1201
    %v1204 = vmul.u32 %v1199, %v1200
    %v1205 = vmul.u32 %v1199, %v1201
    %v1206 = vshll.u32 %v1203, 16
    %v1207 = vshrl.u32 %v1203, 16
    %v1208 = vshll.u32 %v1204, 16
    %v1209 = vshrl.u32 %v1204, 16
    %vm1210 = vc.u32 %v1202, %v1206
    %v1211 = vsel %vm1210, 1, 0
    %v1212 = vadd.s32 %v1202, %v1206
    %v1213 = vadd.s32 %v1205, %v1211
    %vm1214 = vc.u32 %v1212, %v1208
    %v1215 = vsel %vm1214, 1, 0
    %v1216 = vadd.s32 %v1212, %v1208
    %v1217 = vadd.s32 %v1213, %v1215
    %v1218 = vadd.s32 %v1217, %v1207
    %v1219 = vadd.s32 %v1218, %v1209
    %v1220 = vmul.u32 %v1175, %v1166
    %v1221 = vadd.s32 %v1197, %v1216
    %vm1222 = vc.u32 %v1197, %v1216
    %v1223 = vadd.s32 %v1219, 1
    %v1224 = vsel %vm1222, %v1223, %v1219
    %v1225 = vadd.s32 %v1220, %v1224
    %v1226 = vadd.s32 %v1225, 536870912
    %v1227 = vshrl.u32 %v1226, 30
    %v1228 = vshll.u32 %v1227, 30
    %v1229 = vsub.s32 %v1225, %v1228
    %vm1230 = vcmp.lt.s32.totalorder %v1229, 0
    %v1231 = vsub.s32 0, %v1229
    %v1232 = vsel %vm1230, %v1231, %v1229
    %v1233 = vclz %v1232
    %v1234 = vsub.s32 %v1233, 2
    %vm1235 = vcmp.gt.s32.totalorder 0, %v1234
    %v1236 = vsel %vm1235, 0, %v1234
    %v1237 = vsub.s32 32, %v1236
    %v1238 = vshll.u32 %v1229, %v1236
    %v1239 = vshrl.u32 %v1221, %v1237
    %v1240 = vor.u32 %v1238, %v1239
    %v1241 = vsub.s32 4294967266, %v1236
    %v1242 = vadd.s32 %v1241, 127
    %v1243 = vshll.u32 %v1242, 23
    %v1244 = vor.u32 4788187, %v1243
    %v1245 = vand.u32 2147483647, %v1244
    %v1247 = vcvt.s32.f32 %v1240
    %v1248 = vmul.f32 %v1247, %v1245
    %v1249 = vxor.u32 %v1248, 2147483648
    %v1250 = vsel %vm1129, %v1249, %v1248
    %v1251 = vsub.s32 4, %v1227
    %v1252 = vsel %vm1129, %v1251, %v1227
    %v1253 = vsel %vm1128, %v170, %v1250
    %v1254 = vsel %vm1128, 0, %v1252
    %v1255 = vmul.f32 %v1253, %v1253
    %v1256 = vmul.f32 %v1255, -0.001358992
    %v1257 = vadd.f32 %v1256, 0.041655596
    %v1258 = vmul.f32 %v1255, %v1257
    %v1259 = vadd.f32 %v1258, -0.4999988
    %v1260 = vmul.f32 %v1255, %v1259
    %v1261 = vadd.f32 1.0, %v1260
    %v1262 = vmul.f32 %v1253, %v1253
    %v1263 = vmul.f32 %v1262, -0.00019511016
    %v1264 = vadd.f32 %v1263, 0.008332121
    %v1265 = vmul.f32 %v1262, %v1264
    %v1266 = vadd.f32 %v1265, -0.16666654
    %v1267 = vmul.f32 %v1262, %v1266
    %v1268 = vadd.f32 %v1267, 1.0
    %v1269 = vmul.f32 %v1268, %v1253
    %vm1270 = vweird.f32 %v170
    %v1271 = vadd.s32 %v1254, 3
    %v1272 = vand.u32 %v1271, 3
    %vm1273 = vcmp.lt.s32.totalorder %v1272, 2
    %vm1274 = vcmp.eq.s32.totalorder %v1272, 0
    %v1275 = vxor.u32 %v1269, 2147483648
    %v1276 = vsel %vm1274, %v1261, %v1275
    %vm1277 = vcmp.eq.s32.totalorder %v1272, 2
    %v1278 = vxor.u32 %v1261, 2147483648
    %v1279 = vsel %vm1277, %v1278, %v1269
    %v1280 = vsel %vm1273, %v1276, %v1279
    %v1281 = vsel %vm1270, nan, %v1280
    %v1282 = vand.u32 2147483647, %v171
    %vm1283 = vcmp.le.f32.partialorder %v1282, 0.7853982
    %vm1284 = vcmp.lt.s32.totalorder %v171, 0
    %v1285 = vand.u32 %v171, 2139095040
    %v1286 = vshrl.u32 %v1285, 23
    %v1287 = vsub.s32 %v1286, 127
    %v1288 = vand.u32 2147483647, %v171
    %v1289 = vand.u32 %v1288, 8388607
    %v1290 = vor.u32 %v1289, 8388608
    %v1291 = vsub.s32 0, %v1290
    %v1292 = vadd.s32 %v1287, 1
    %vm1293 = vcmp.gt.s32.totalorder %v1292, 0
    %v1294 = vsel %vm1293, %v1292, 0
    %v1295 = vshrl.u32 %v1294, 5
    %v1296 = vand.u32 %v1294, 31
    %v1297 = vsub.s32 32, %v1296
    %v1298 = vshrl.u32 683565275, %v1297
    %v1299 = vshll.u32 683565275, %v1296
    %v1300 = vshrl.u32 2475754826, %v1297
    %v1301 = vor.u32 %v1299, %v1300
    %v1302 = vshll.u32 2475754826, %v1296
    %v1303 = vshrl.u32 2131351028, %v1297
    %v1304 = vor.u32 %v1302, %v1303
    %v1305 = vshll.u32 2131351028, %v1296
    %v1306 = vshrl.u32 2102212464, %v1297
    %v1307 = vor.u32 %v1305, %v1306
    %v1308 = vshll.u32 2102212464, %v1296
    %v1309 = vshrl.u32 920167782, %v1297
    %v1310 = vor.u32 %v1308, %v1309
    %v1311 = vshll.u32 920167782, %v1296
    %v1312 = vshrl.u32 1326507024, %v1297
    %v1313 = vor.u32 %v1311, %v1312
    %vm1314 = vcmp.lt.s32.totalorder %v1295, 1
    %vm1315 = vcmp.lt.s32.totalorder %v1295, 2
    %vm1316 = vcmp.lt.s32.totalorder %v1295, 3
    %vm1317 = vcmp.lt.s32.totalorder %v1295, 4
    %v1318 = vsel %vm1314, %v1298, %v1301
    %v1319 = vsel %vm1317, %v1307, 2102212464
    %v1320 = vsel %vm1316, %v1304, %v1319
    %v1321 = vsel %vm1315, %v1318, %v1320
    %v1322 = vsel %vm1314, %v1301, %v1304
    %v1323 = vsel %vm1317, %v1310, 920167782
    %v1324 = vsel %vm1316, %v1307, %v1323
    %v1325 = vsel %vm1315, %v1322, %v1324
    %v1326 = vsel %vm1314, %v1304, %v1307
    %v1327 = vsel %vm1317, %v1313, 1326507024
    %v1328 = vsel %vm1316, %v1310, %v1327
    %v1329 = vsel %vm1315, %v1326, %v1328
    %v1330 = vshll.u32 %v1290, 8
    %v1331 = vand.u32 %v1330, 65535
    %v1332 = vshrl.u32 %v1330, 16
    %v1333 = vand.u32 %v1329, 65535
    %v1334 = vshrl.u32 %v1329, 16
    %v1335 = vmul.u32 %v1331, %v1333
    %v1336 = vmul.u32 %v1331, %v1334
    %v1337 = vmul.u32 %v1332, %v1333
    %v1338 = vmul.u32 %v1332, %v1334
    %v1339 = vshll.u32 %v1336, 16
    %v1340 = vshrl.u32 %v1336, 16
    %v1341 = vshll.u32 %v1337, 16
    %v1342 = vshrl.u32 %v1337, 16
    %vm1343 = vc.u32 %v1335, %v1339
    %v1344 = vsel %vm1343, 1, 0
    %v1345 = vadd.s32 %v1335, %v1339
    %v1346 = vadd.s32 %v1338, %v1344
    %vm1347 = vc.u32 %v1345, %v1341
    %v1348 = vsel %vm1347, 1, 0
    %v1349 = vadd.s32 %v1345, %v1341
    %v1350 = vadd.s32 %v1346, %v1348
    %v1351 = vadd.s32 %v1350, %v1340
    %v1352 = vadd.s32 %v1351, %v1342
    %v1353 = vand.u32 %v1330, 65535
    %v1354 = vshrl.u32 %v1330, 16
    %v1355 = vand.u32 %v1325, 65535
    %v1356 = vshrl.u32 %v1325, 16
    %v1357 = vmul.u32 %v1353, %v1355
    %v1358 = vmul.u32 %v1353, %v1356
    %v1359 = vmul.u32 %v1354, %v1355
    %v1360 = vmul.u32 %v1354, %v1356
    %v1361 = vshll.u32 %v1358, 16
    %v1362 = vshrl.u32 %v1358, 16
    %v1363 = vshll.u32 %v1359, 16
    %v1364 = vshrl.u32 %v1359, 16
    %vm1365 = vc.u32 %v1357, %v1361
    %v1366 = vsel %vm1365, 1, 0
    %v1367 = vadd.s32 %v1357, %v1361
    %v1368 = vadd.s32 %v1360, %v1366
    %vm1369 = vc.u32 %v1367, %v1363
    %v1370 = vsel %vm1369, 1, 0
    %v1371 = vadd.s32 %v1367, %v1363
    %v1372 = vadd.s32 %v1368, %v1370
    %v1373 = vadd.s32 %v1372, %v1362
    %v1374 = vadd.s32 %v1373, %v1364
    %v1375 = vmul.u32 %v1330, %v1321
    %v1376 = vadd.s32 %v1352, %v1371
    %vm1377 = vc.u32 %v1352, %v1371
    %v1378 = vadd.s32 %v1374, 1
    %v1379 = vsel %vm1377, %v1378, %v1374
    %v1380 = vadd.s32 %v1375, %v1379
    %v1381 = vadd.s32 %v1380, 536870912
    %v1382 = vshrl.u32 %v1381, 30
    %v1383 = vshll.u32 %v1382, 30
    %v1384 = vsub.s32 %v1380, %v1383
    %vm1385 = vcmp.lt.s32.totalorder %v1384, 0
    %v1386 = vsub.s32 0, %v1384
    %v1387 = vsel %vm1385, %v1386, %v1384
    %v1388 = vclz %v1387
    %v1389 = vsub.s32 %v1388, 2
    %vm1390 = vcmp.gt.s32.totalorder 0, %v1389
    %v1391 = vsel %vm1390, 0, %v1389
    %v1392 = vsub.s32 32, %v1391
    %v1393 = vshll.u32 %v1384, %v1391
    %v1394 = vshrl.u32 %v1376, %v1392
    %v1395 = vor.u32 %v1393, %v1394
    %v1396 = vsub.s32 4294967266, %v1391
    %v1397 = vadd.s32 %v1396, 127
    %v1398 = vshll.u32 %v1397, 23
    %v1399 = vor.u32 4788187, %v1398
    %v1400 = vand.u32 2147483647, %v1399
    %v1402 = vcvt.s32.f32 %v1395
    %v1403 = vmul.f32 %v1402, %v1400
    %v1404 = vxor.u32 %v1403, 2147483648
    %v1405 = vsel %vm1284, %v1404, %v1403
    %v1406 = vsub.s32 4, %v1382
    %v1407 = vsel %vm1284, %v1406, %v1382
    %v1408 = vsel %vm1283, %v171, %v1405
    %v1409 = vsel %vm1283, 0, %v1407
    %v1410 = vmul.f32 %v1408, %v1408
    %v1411 = vmul.f32 %v1410, -0.001358992
    %v1412 = vadd.f32 %v1411, 0.041655596
    %v1413 = vmul.f32 %v1410, %v1412
    %v1414 = vadd.f32 %v1413, -0.4999988
    %v1415 = vmul.f32 %v1410, %v1414
    %v1416 = vadd.f32 1.0, %v1415
    %v1417 = vmul.f32 %v1408, %v1408
    %v1418 = vmul.f32 %v1417, -0.00019511016
    %v1419 = vadd.f32 %v1418, 0.008332121
    %v1420 = vmul.f32 %v1417, %v1419
    %v1421 = vadd.f32 %v1420, -0.16666654
    %v1422 = vmul.f32 %v1417, %v1421
    %v1423 = vadd.f32 %v1422, 1.0
    %v1424 = vmul.f32 %v1423, %v1408
    %vm1425 = vweird.f32 %v171
    %v1426 = vadd.s32 %v1409, 3
    %v1427 = vand.u32 %v1426, 3
    %vm1428 = vcmp.lt.s32.totalorder %v1427, 2
    %vm1429 = vcmp.eq.s32.totalorder %v1427, 0
    %v1430 = vxor.u32 %v1424, 2147483648
    %v1431 = vsel %vm1429, %v1416, %v1430
    %vm1432 = vcmp.eq.s32.totalorder %v1427, 2
    %v1433 = vxor.u32 %v1416, 2147483648
    %v1434 = vsel %vm1432, %v1433, %v1424
    %v1435 = vsel %vm1428, %v1431, %v1434
    %v1436 = vsel %vm1425, nan, %v1435
    %v1437 = vand.u32 2147483647, %v172
    %vm1438 = vcmp.le.f32.partialorder %v1437, 0.7853982
    %vm1439 = vcmp.lt.s32.totalorder %v172, 0
    %v1440 = vand.u32 %v172, 2139095040
    %v1441 = vshrl.u32 %v1440, 23
    %v1442 = vsub.s32 %v1441, 127
    %v1443 = vand.u32 2147483647, %v172
    %v1444 = vand.u32 %v1443, 8388607
    %v1445 = vor.u32 %v1444, 8388608
    %v1446 = vsub.s32 0, %v1445
    %v1447 = vadd.s32 %v1442, 1
    %vm1448 = vcmp.gt.s32.totalorder %v1447, 0
    %v1449 = vsel %vm1448, %v1447, 0
    %v1450 = vshrl.u32 %v1449, 5
    %v1451 = vand.u32 %v1449, 31
    %v1452 = vsub.s32 32, %v1451
    %v1453 = vshrl.u32 683565275, %v1452
    %v1454 = vshll.u32 683565275, %v1451
    %v1455 = vshrl.u32 2475754826, %v1452
    %v1456 = vor.u32 %v1454, %v1455
    %v1457 = vshll.u32 2475754826, %v1451
    %v1458 = vshrl.u32 2131351028, %v1452
    %v1459 = vor.u32 %v1457, %v1458
    %v1460 = vshll.u32 2131351028, %v1451
    %v1461 = vshrl.u32 2102212464, %v1452
    %v1462 = vor.u32 %v1460, %v1461
    %v1463 = vshll.u32 2102212464, %v1451
    %v1464 = vshrl.u32 920167782, %v1452
    %v1465 = vor.u32 %v1463, %v1464
    %v1466 = vshll.u32 920167782, %v1451
    %v1467 = vshrl.u32 1326507024, %v1452
    %v1468 = vor.u32 %v1466, %v1467
    %vm1469 = vcmp.lt.s32.totalorder %v1450, 1
    %vm1470 = vcmp.lt.s32.totalorder %v1450, 2
    %vm1471 = vcmp.lt.s32.totalorder %v1450, 3
    %vm1472 = vcmp.lt.s32.totalorder %v1450, 4
    %v1473 = vsel %vm1469, %v1453, %v1456
    %v1474 = vsel %vm1472, %v1462, 2102212464
    %v1475 = vsel %vm1471, %v1459, %v1474
    %v1476 = vsel %vm1470, %v1473, %v1475
    %v1477 = vsel %vm1469, %v1456, %v1459
    %v1478 = vsel %vm1472, %v1465, 920167782
    %v1479 = vsel %vm1471, %v1462, %v1478
    %v1480 = vsel %vm1470, %v1477, %v1479
    %v1481 = vsel %vm1469, %v1459, %v1462
    %v1482 = vsel %vm1472, %v1468, 1326507024
    %v1483 = vsel %vm1471, %v1465, %v1482
    %v1484 = vsel %vm1470, %v1481, %v1483
    %v1485 = vshll.u32 %v1445, 8
    %v1486 = vand.u32 %v1485, 65535
    %v1487 = vshrl.u32 %v1485, 16
    %v1488 = vand.u32 %v1484, 65535
    %v1489 = vshrl.u32 %v1484, 16
    %v1490 = vmul.u32 %v1486, %v1488
    %v1491 = vmul.u32 %v1486, %v1489
    %v1492 = vmul.u32 %v1487, %v1488
    %v1493 = vmul.u32 %v1487, %v1489
    %v1494 = vshll.u32 %v1491, 16
    %v1495 = vshrl.u32 %v1491, 16
    %v1496 = vshll.u32 %v1492, 16
    %v1497 = vshrl.u32 %v1492, 16
    %vm1498 = vc.u32 %v1490, %v1494
    %v1499 = vsel %vm1498, 1, 0
    %v1500 = vadd.s32 %v1490, %v1494
    %v1501 = vadd.s32 %v1493, %v1499
    %vm1502 = vc.u32 %v1500, %v1496
    %v1503 = vsel %vm1502, 1, 0
    %v1504 = vadd.s32 %v1500, %v1496
    %v1505 = vadd.s32 %v1501, %v1503
    %v1506 = vadd.s32 %v1505, %v1495
    %v1507 = vadd.s32 %v1506, %v1497
    %v1508 = vand.u32 %v1485, 65535
    %v1509 = vshrl.u32 %v1485, 16
    %v1510 = vand.u32 %v1480, 65535
    %v1511 = vshrl.u32 %v1480, 16
    %v1512 = vmul.u32 %v1508, %v1510
    %v1513 = vmul.u32 %v1508, %v1511
    %v1514 = vmul.u32 %v1509, %v1510
    %v1515 = vmul.u32 %v1509, %v1511
    %v1516 = vshll.u32 %v1513, 16
    %v1517 = vshrl.u32 %v1513, 16
    %v1518 = vshll.u32 %v1514, 16
    %v1519 = vshrl.u32 %v1514, 16
    %vm1520 = vc.u32 %v1512, %v1516
    %v1521 = vsel %vm1520, 1, 0
    %v1522 = vadd.s32 %v1512, %v1516
    %v1523 = vadd.s32 %v1515, %v1521
    %vm1524 = vc.u32 %v1522, %v1518
    %v1525 = vsel %vm1524, 1, 0
    %v1526 = vadd.s32 %v1522, %v1518
    %v1527 = vadd.s32 %v1523, %v1525
    %v1528 = vadd.s32 %v1527, %v1517
    %v1529 = vadd.s32 %v1528, %v1519
    %v1530 = vmul.u32 %v1485, %v1476
    %v1531 = vadd.s32 %v1507, %v1526
    %vm1532 = vc.u32 %v1507, %v1526
    %v1533 = vadd.s32 %v1529, 1
    %v1534 = vsel %vm1532, %v1533, %v1529
    %v1535 = vadd.s32 %v1530, %v1534
    %v1536 = vadd.s32 %v1535, 536870912
    %v1537 = vshrl.u32 %v1536, 30
    %v1538 = vshll.u32 %v1537, 30
    %v1539 = vsub.s32 %v1535, %v1538
    %vm1540 = vcmp.lt.s32.totalorder %v1539, 0
    %v1541 = vsub.s32 0, %v1539
    %v1542 = vsel %vm1540, %v1541, %v1539
    %v1543 = vclz %v1542
    %v1544 = vsub.s32 %v1543, 2
    %vm1545 = vcmp.gt.s32.totalorder 0, %v1544
    %v1546 = vsel %vm1545, 0, %v1544
    %v1547 = vsub.s32 32, %v1546
    %v1548 = vshll.u32 %v1539, %v1546
    %v1549 = vshrl.u32 %v1531, %v1547
    %v1550 = vor.u32 %v1548, %v1549
    %v1551 = vsub.s32 4294967266, %v1546
    %v1552 = vadd.s32 %v1551, 127
    %v1553 = vshll.u32 %v1552, 23
    %v1554 = vor.u32 4788187, %v1553
    %v1555 = vand.u32 2147483647, %v1554
    %v1557 = vcvt.s32.f32 %v1550
    %v1558 = vmul.f32 %v1557, %v1555
    %v1559 = vxor.u32 %v1558, 2147483648
    %v1560 = vsel %vm1439, %v1559, %v1558
    %v1561 = vsub.s32 4, %v1537
    %v1562 = vsel %vm1439, %v1561, %v1537
    %v1563 = vsel %vm1438, %v172, %v1560
    %v1564 = vsel %vm1438, 0, %v1562
    %v1565 = vmul.f32 %v1563, %v1563
    %v1566 = vmul.f32 %v1565, -0.001358992
    %v1567 = vadd.f32 %v1566, 0.041655596
    %v1568 = vmul.f32 %v1565, %v1567
    %v1569 = vadd.f32 %v1568, -0.4999988
    %v1570 = vmul.f32 %v1565, %v1569
    %v1571 = vadd.f32 1.0, %v1570
    %v1572 = vmul.f32 %v1563, %v1563
    %v1573 = vmul.f32 %v1572, -0.00019511016
    %v1574 = vadd.f32 %v1573, 0.008332121
    %v1575 = vmul.f32 %v1572, %v1574
    %v1576 = vadd.f32 %v1575, -0.16666654
    %v1577 = vmul.f32 %v1572, %v1576
    %v1578 = vadd.f32 %v1577, 1.0
    %v1579 = vmul.f32 %v1578, %v1563
    %vm1580 = vweird.f32 %v172
    %v1581 = vadd.s32 %v1564, 3
    %v1582 = vand.u32 %v1581, 3
    %vm1583 = vcmp.lt.s32.totalorder %v1582, 2
    %vm1584 = vcmp.eq.s32.totalorder %v1582, 0
    %v1585 = vxor.u32 %v1579, 2147483648
    %v1586 = vsel %vm1584, %v1571, %v1585
    %vm1587 = vcmp.eq.s32.totalorder %v1582, 2
    %v1588 = vxor.u32 %v1571, 2147483648
    %v1589 = vsel %vm1587, %v1588, %v1579
    %v1590 = vsel %vm1583, %v1586, %v1589
    %v1591 = vsel %vm1580, nan, %v1590
    %v1592 = vand.u32 2147483647, %v173
    %vm1593 = vcmp.le.f32.partialorder %v1592, 0.7853982
    %vm1594 = vcmp.lt.s32.totalorder %v173, 0
    %v1595 = vand.u32 %v173, 2139095040
    %v1596 = vshrl.u32 %v1595, 23
    %v1597 = vsub.s32 %v1596, 127
    %v1598 = vand.u32 2147483647, %v173
    %v1599 = vand.u32 %v1598, 8388607
    %v1600 = vor.u32 %v1599, 8388608
    %v1601 = vsub.s32 0, %v1600
    %v1602 = vadd.s32 %v1597, 1
    %vm1603 = vcmp.gt.s32.totalorder %v1602, 0
    %v1604 = vsel %vm1603, %v1602, 0
    %v1605 = vshrl.u32 %v1604, 5
    %v1606 = vand.u32 %v1604, 31
    %v1607 = vsub.s32 32, %v1606
    %v1608 = vshrl.u32 683565275, %v1607
    %v1609 = vshll.u32 683565275, %v1606
    %v1610 = vshrl.u32 2475754826, %v1607
    %v1611 = vor.u32 %v1609, %v1610
    %v1612 = vshll.u32 2475754826, %v1606
    %v1613 = vshrl.u32 2131351028, %v1607
    %v1614 = vor.u32 %v1612, %v1613
    %v1615 = vshll.u32 2131351028, %v1606
    %v1616 = vshrl.u32 2102212464, %v1607
    %v1617 = vor.u32 %v1615, %v1616
    %v1618 = vshll.u32 2102212464, %v1606
    %v1619 = vshrl.u32 920167782, %v1607
    %v1620 = vor.u32 %v1618, %v1619
    %v1621 = vshll.u32 920167782, %v1606
    %v1622 = vshrl.u32 1326507024, %v1607
    %v1623 = vor.u32 %v1621, %v1622
    %vm1624 = vcmp.lt.s32.totalorder %v1605, 1
    %vm1625 = vcmp.lt.s32.totalorder %v1605, 2
    %vm1626 = vcmp.lt.s32.totalorder %v1605, 3
    %vm1627 = vcmp.lt.s32.totalorder %v1605, 4
    %v1628 = vsel %vm1624, %v1608, %v1611
    %v1629 = vsel %vm1627, %v1617, 2102212464
    %v1630 = vsel %vm1626, %v1614, %v1629
    %v1631 = vsel %vm1625, %v1628, %v1630
    %v1632 = vsel %vm1624, %v1611, %v1614
    %v1633 = vsel %vm1627, %v1620, 920167782
    %v1634 = vsel %vm1626, %v1617, %v1633
    %v1635 = vsel %vm1625, %v1632, %v1634
    %v1636 = vsel %vm1624, %v1614, %v1617
    %v1637 = vsel %vm1627, %v1623, 1326507024
    %v1638 = vsel %vm1626, %v1620, %v1637
    %v1639 = vsel %vm1625, %v1636, %v1638
    %v1640 = vshll.u32 %v1600, 8
    %v1641 = vand.u32 %v1640, 65535
    %v1642 = vshrl.u32 %v1640, 16
    %v1643 = vand.u32 %v1639, 65535
    %v1644 = vshrl.u32 %v1639, 16
    %v1645 = vmul.u32 %v1641, %v1643
    %v1646 = vmul.u32 %v1641, %v1644
    %v1647 = vmul.u32 %v1642, %v1643
    %v1648 = vmul.u32 %v1642, %v1644
    %v1649 = vshll.u32 %v1646, 16
    %v1650 = vshrl.u32 %v1646, 16
    %v1651 = vshll.u32 %v1647, 16
    %v1652 = vshrl.u32 %v1647, 16
    %vm1653 = vc.u32 %v1645, %v1649
    %v1654 = vsel %vm1653, 1, 0
    %v1655 = vadd.s32 %v1645, %v1649
    %v1656 = vadd.s32 %v1648, %v1654
    %vm1657 = vc.u32 %v1655, %v1651
    %v1658 = vsel %vm1657, 1, 0
    %v1659 = vadd.s32 %v1655, %v1651
    %v1660 = vadd.s32 %v1656, %v1658
    %v1661 = vadd.s32 %v1660, %v1650
    %v1662 = vadd.s32 %v1661, %v1652
    %v1663 = vand.u32 %v1640, 65535
    %v1664 = vshrl.u32 %v1640, 16
    %v1665 = vand.u32 %v1635, 65535
    %v1666 = vshrl.u32 %v1635, 16
    %v1667 = vmul.u32 %v1663, %v1665
    %v1668 = vmul.u32 %v1663, %v1666
    %v1669 = vmul.u32 %v1664, %v1665
    %v1670 = vmul.u32 %v1664, %v1666
    %v1671 = vshll.u32 %v1668, 16
    %v1672 = vshrl.u32 %v1668, 16
    %v1673 = vshll.u32 %v1669, 16
    %v1674 = vshrl.u32 %v1669, 16
    %vm1675 = vc.u32 %v1667, %v1671
    %v1676 = vsel %vm1675, 1, 0
    %v1677 = vadd.s32 %v1667, %v1671
    %v1678 = vadd.s32 %v1670, %v1676
    %vm1679 = vc.u32 %v1677, %v1673
    %v1680 = vsel %vm1679, 1, 0
    %v1681 = vadd.s32 %v1677, %v1673
    %v1682 = vadd.s32 %v1678, %v1680
    %v1683 = vadd.s32 %v1682, %v1672
    %v1684 = vadd.s32 %v1683, %v1674
    %v1685 = vmul.u32 %v1640, %v1631
    %v1686 = vadd.s32 %v1662, %v1681
    %vm1687 = vc.u32 %v1662, %v1681
    %v1688 = vadd.s32 %v1684, 1
    %v1689 = vsel %vm1687, %v1688, %v1684
    %v1690 = vadd.s32 %v1685, %v1689
    %v1691 = vadd.s32 %v1690, 536870912
    %v1692 = vshrl.u32 %v1691, 30
    %v1693 = vshll.u32 %v1692, 30
    %v1694 = vsub.s32 %v1690, %v1693
    %vm1695 = vcmp.lt.s32.totalorder %v1694, 0
    %v1696 = vsub.s32 0, %v1694
    %v1697 = vsel %vm1695, %v1696, %v1694
    %v1698 = vclz %v1697
    %v1699 = vsub.s32 %v1698, 2
    %vm1700 = vcmp.gt.s32.totalorder 0, %v1699
    %v1701 = vsel %vm1700, 0, %v1699
    %v1702 = vsub.s32 32, %v1701
    %v1703 = vshll.u32 %v1694, %v1701
    %v1704 = vshrl.u32 %v1686, %v1702
    %v1705 = vor.u32 %v1703, %v1704
    %v1706 = vsub.s32 4294967266, %v1701
    %v1707 = vadd.s32 %v1706, 127
    %v1708 = vshll.u32 %v1707, 23
    %v1709 = vor.u32 4788187, %v1708
    %v1710 = vand.u32 2147483647, %v1709
    %v1712 = vcvt.s32.f32 %v1705
    %v1713 = vmul.f32 %v1712, %v1710
    %v1714 = vxor.u32 %v1713, 2147483648
    %v1715 = vsel %vm1594, %v1714, %v1713
    %v1716 = vsub.s32 4, %v1692
    %v1717 = vsel %vm1594, %v1716, %v1692
    %v1718 = vsel %vm1593, %v173, %v1715
    %v1719 = vsel %vm1593, 0, %v1717
    %v1720 = vmul.f32 %v1718, %v1718
    %v1721 = vmul.f32 %v1720, -0.001358992
    %v1722 = vadd.f32 %v1721, 0.041655596
    %v1723 = vmul.f32 %v1720, %v1722
    %v1724 = vadd.f32 %v1723, -0.4999988
    %v1725 = vmul.f32 %v1720, %v1724
    %v1726 = vadd.f32 1.0, %v1725
    %v1727 = vmul.f32 %v1718, %v1718
    %v1728 = vmul.f32 %v1727, -0.00019511016
    %v1729 = vadd.f32 %v1728, 0.008332121
    %v1730 = vmul.f32 %v1727, %v1729
    %v1731 = vadd.f32 %v1730, -0.16666654
    %v1732 = vmul.f32 %v1727, %v1731
    %v1733 = vadd.f32 %v1732, 1.0
    %v1734 = vmul.f32 %v1733, %v1718
    %vm1735 = vweird.f32 %v173
    %v1736 = vadd.s32 %v1719, 3
    %v1737 = vand.u32 %v1736, 3
    %vm1738 = vcmp.lt.s32.totalorder %v1737, 2
    %vm1739 = vcmp.eq.s32.totalorder %v1737, 0
    %v1740 = vxor.u32 %v1734, 2147483648
    %v1741 = vsel %vm1739, %v1726, %v1740
    %vm1742 = vcmp.eq.s32.totalorder %v1737, 2
    %v1743 = vxor.u32 %v1726, 2147483648
    %v1744 = vsel %vm1742, %v1743, %v1734
    %v1745 = vsel %vm1738, %v1741, %v1744
    %v1746 = vsel %vm1735, nan, %v1745
    %v1747 = vand.u32 2147483647, %v174
    %vm1748 = vcmp.le.f32.partialorder %v1747, 0.7853982
    %vm1749 = vcmp.lt.s32.totalorder %v174, 0
    %v1750 = vand.u32 %v174, 2139095040
    %v1751 = vshrl.u32 %v1750, 23
    %v1752 = vsub.s32 %v1751, 127
    %v1753 = vand.u32 2147483647, %v174
    %v1754 = vand.u32 %v1753, 8388607
    %v1755 = vor.u32 %v1754, 8388608
    %v1756 = vsub.s32 0, %v1755
    %v1757 = vadd.s32 %v1752, 1
    %vm1758 = vcmp.gt.s32.totalorder %v1757, 0
    %v1759 = vsel %vm1758, %v1757, 0
    %v1760 = vshrl.u32 %v1759, 5
    %v1761 = vand.u32 %v1759, 31
    %v1762 = vsub.s32 32, %v1761
    %v1763 = vshrl.u32 683565275, %v1762
    %v1764 = vshll.u32 683565275, %v1761
    %v1765 = vshrl.u32 2475754826, %v1762
    %v1766 = vor.u32 %v1764, %v1765
    %v1767 = vshll.u32 2475754826, %v1761
    %v1768 = vshrl.u32 2131351028, %v1762
    %v1769 = vor.u32 %v1767, %v1768
    %v1770 = vshll.u32 2131351028, %v1761
    %v1771 = vshrl.u32 2102212464, %v1762
    %v1772 = vor.u32 %v1770, %v1771
    %v1773 = vshll.u32 2102212464, %v1761
    %v1774 = vshrl.u32 920167782, %v1762
    %v1775 = vor.u32 %v1773, %v1774
    %v1776 = vshll.u32 920167782, %v1761
    %v1777 = vshrl.u32 1326507024, %v1762
    %v1778 = vor.u32 %v1776, %v1777
    %vm1779 = vcmp.lt.s32.totalorder %v1760, 1
    %vm1780 = vcmp.lt.s32.totalorder %v1760, 2
    %vm1781 = vcmp.lt.s32.totalorder %v1760, 3
    %vm1782 = vcmp.lt.s32.totalorder %v1760, 4
    %v1783 = vsel %vm1779, %v1763, %v1766
    %v1784 = vsel %vm1782, %v1772, 2102212464
    %v1785 = vsel %vm1781, %v1769, %v1784
    %v1786 = vsel %vm1780, %v1783, %v1785
    %v1787 = vsel %vm1779, %v1766, %v1769
    %v1788 = vsel %vm1782, %v1775, 920167782
    %v1789 = vsel %vm1781, %v1772, %v1788
    %v1790 = vsel %vm1780, %v1787, %v1789
    %v1791 = vsel %vm1779, %v1769, %v1772
    %v1792 = vsel %vm1782, %v1778, 1326507024
    %v1793 = vsel %vm1781, %v1775, %v1792
    %v1794 = vsel %vm1780, %v1791, %v1793
    %v1795 = vshll.u32 %v1755, 8
    %v1796 = vand.u32 %v1795, 65535
    %v1797 = vshrl.u32 %v1795, 16
    %v1798 = vand.u32 %v1794, 65535
    %v1799 = vshrl.u32 %v1794, 16
    %v1800 = vmul.u32 %v1796, %v1798
    %v1801 = vmul.u32 %v1796, %v1799
    %v1802 = vmul.u32 %v1797, %v1798
    %v1803 = vmul.u32 %v1797, %v1799
    %v1804 = vshll.u32 %v1801, 16
    %v1805 = vshrl.u32 %v1801, 16
    %v1806 = vshll.u32 %v1802, 16
    %v1807 = vshrl.u32 %v1802, 16
    %vm1808 = vc.u32 %v1800, %v1804
    %v1809 = vsel %vm1808, 1, 0
    %v1810 = vadd.s32 %v1800, %v1804
    %v1811 = vadd.s32 %v1803, %v1809
    %vm1812 = vc.u32 %v1810, %v1806
    %v1813 = vsel %vm1812, 1, 0
    %v1814 = vadd.s32 %v1810, %v1806
    %v1815 = vadd.s32 %v1811, %v1813
    %v1816 = vadd.s32 %v1815, %v1805
    %v1817 = vadd.s32 %v1816, %v1807
    %v1818 = vand.u32 %v1795, 65535
    %v1819 = vshrl.u32 %v1795, 16
    %v1820 = vand.u32 %v1790, 65535
    %v1821 = vshrl.u32 %v1790, 16
    %v1822 = vmul.u32 %v1818, %v1820
    %v1823 = vmul.u32 %v1818, %v1821
    %v1824 = vmul.u32 %v1819, %v1820
    %v1825 = vmul.u32 %v1819, %v1821
    %v1826 = vshll.u32 %v1823, 16
    %v1827 = vshrl.u32 %v1823, 16
    %v1828 = vshll.u32 %v1824, 16
    %v1829 = vshrl.u32 %v1824, 16
    %vm1830 = vc.u32 %v1822, %v1826
    %v1831 = vsel %vm1830, 1, 0
    %v1832 = vadd.s32 %v1822, %v1826
    %v1833 = vadd.s32 %v1825, %v1831
    %vm1834 = vc.u32 %v1832, %v1828
    %v1835 = vsel %vm1834, 1, 0
    %v1836 = vadd.s32 %v1832, %v1828
    %v1837 = vadd.s32 %v1833, %v1835
    %v1838 = vadd.s32 %v1837, %v1827
    %v1839 = vadd.s32 %v1838, %v1829
    %v1840 = vmul.u32 %v1795, %v1786
    %v1841 = vadd.s32 %v1817, %v1836
    %vm1842 = vc.u32 %v1817, %v1836
    %v1843 = vadd.s32 %v1839, 1
    %v1844 = vsel %vm1842, %v1843, %v1839
    %v1845 = vadd.s32 %v1840, %v1844
    %v1846 = vadd.s32 %v1845, 536870912
    %v1847 = vshrl.u32 %v1846, 30
    %v1848 = vshll.u32 %v1847, 30
    %v1849 = vsub.s32 %v1845, %v1848
    %vm1850 = vcmp.lt.s32.totalorder %v1849, 0
    %v1851 = vsub.s32 0, %v1849
    %v1852 = vsel %vm1850, %v1851, %v1849
    %v1853 = vclz %v1852
    %v1854 = vsub.s32 %v1853, 2
    %vm1855 = vcmp.gt.s32.totalorder 0, %v1854
    %v1856 = vsel %vm1855, 0, %v1854
    %v1857 = vsub.s32 32, %v1856
    %v1858 = vshll.u32 %v1849, %v1856
    %v1859 = vshrl.u32 %v1841, %v1857
    %v1860 = vor.u32 %v1858, %v1859
    %v1861 = vsub.s32 4294967266, %v1856
    %v1862 = vadd.s32 %v1861, 127
    %v1863 = vshll.u32 %v1862, 23
    %v1864 = vor.u32 4788187, %v1863
    %v1865 = vand.u32 2147483647, %v1864
    %v1867 = vcvt.s32.f32 %v1860
    %v1868 = vmul.f32 %v1867, %v1865
    %v1869 = vxor.u32 %v1868, 2147483648
    %v1870 = vsel %vm1749, %v1869, %v1868
    %v1871 = vsub.s32 4, %v1847
    %v1872 = vsel %vm1749, %v1871, %v1847
    %v1873 = vsel %vm1748, %v174, %v1870
    %v1874 = vsel %vm1748, 0, %v1872
    %v1875 = vmul.f32 %v1873, %v1873
    %v1876 = vmul.f32 %v1875, -0.001358992
    %v1877 = vadd.f32 %v1876, 0.041655596
    %v1878 = vmul.f32 %v1875, %v1877
    %v1879 = vadd.f32 %v1878, -0.4999988
    %v1880 = vmul.f32 %v1875, %v1879
    %v1881 = vadd.f32 1.0, %v1880
    %v1882 = vmul.f32 %v1873, %v1873
    %v1883 = vmul.f32 %v1882, -0.00019511016
    %v1884 = vadd.f32 %v1883, 0.008332121
    %v1885 = vmul.f32 %v1882, %v1884
    %v1886 = vadd.f32 %v1885, -0.16666654
    %v1887 = vmul.f32 %v1882, %v1886
    %v1888 = vadd.f32 %v1887, 1.0
    %v1889 = vmul.f32 %v1888, %v1873
    %vm1890 = vweird.f32 %v174
    %v1891 = vadd.s32 %v1874, 3
    %v1892 = vand.u32 %v1891, 3
    %vm1893 = vcmp.lt.s32.totalorder %v1892, 2
    %vm1894 = vcmp.eq.s32.totalorder %v1892, 0
    %v1895 = vxor.u32 %v1889, 2147483648
    %v1896 = vsel %vm1894, %v1881, %v1895
    %vm1897 = vcmp.eq.s32.totalorder %v1892, 2
    %v1898 = vxor.u32 %v1881, 2147483648
    %v1899 = vsel %vm1897, %v1898, %v1889
    %v1900 = vsel %vm1893, %v1896, %v1899
    %v1901 = vsel %vm1890, nan, %v1900
    %v1902 = vand.u32 2147483647, %v175
    %vm1903 = vcmp.le.f32.partialorder %v1902, 0.7853982
    %vm1904 = vcmp.lt.s32.totalorder %v175, 0
    %v1905 = vand.u32 %v175, 2139095040
    %v1906 = vshrl.u32 %v1905, 23
    %v1907 = vsub.s32 %v1906, 127
    %v1908 = vand.u32 2147483647, %v175
    %v1909 = vand.u32 %v1908, 8388607
    %v1910 = vor.u32 %v1909, 8388608
    %v1911 = vsub.s32 0, %v1910
    %v1912 = vadd.s32 %v1907, 1
    %vm1913 = vcmp.gt.s32.totalorder %v1912, 0
    %v1914 = vsel %vm1913, %v1912, 0
    %v1915 = vshrl.u32 %v1914, 5
    %v1916 = vand.u32 %v1914, 31
    %v1917 = vsub.s32 32, %v1916
    %v1918 = vshrl.u32 683565275, %v1917
    %v1919 = vshll.u32 683565275, %v1916
    %v1920 = vshrl.u32 2475754826, %v1917
    %v1921 = vor.u32 %v1919, %v1920
    %v1922 = vshll.u32 2475754826, %v1916
    %v1923 = vshrl.u32 2131351028, %v1917
    %v1924 = vor.u32 %v1922, %v1923
    %v1925 = vshll.u32 2131351028, %v1916
    %v1926 = vshrl.u32 2102212464, %v1917
    %v1927 = vor.u32 %v1925, %v1926
    %v1928 = vshll.u32 2102212464, %v1916
    %v1929 = vshrl.u32 920167782, %v1917
    %v1930 = vor.u32 %v1928, %v1929
    %v1931 = vshll.u32 920167782, %v1916
    %v1932 = vshrl.u32 1326507024, %v1917
    %v1933 = vor.u32 %v1931, %v1932
    %vm1934 = vcmp.lt.s32.totalorder %v1915, 1
    %vm1935 = vcmp.lt.s32.totalorder %v1915, 2
    %vm1936 = vcmp.lt.s32.totalorder %v1915, 3
    %vm1937 = vcmp.lt.s32.totalorder %v1915, 4
    %v1938 = vsel %vm1934, %v1918, %v1921
    %v1939 = vsel %vm1937, %v1927, 2102212464
    %v1940 = vsel %vm1936, %v1924, %v1939
    %v1941 = vsel %vm1935, %v1938, %v1940
    %v1942 = vsel %vm1934, %v1921, %v1924
    %v1943 = vsel %vm1937, %v1930, 920167782
    %v1944 = vsel %vm1936, %v1927, %v1943
    %v1945 = vsel %vm1935, %v1942, %v1944
    %v1946 = vsel %vm1934, %v1924, %v1927
    %v1947 = vsel %vm1937, %v1933, 1326507024
    %v1948 = vsel %vm1936, %v1930, %v1947
    %v1949 = vsel %vm1935, %v1946, %v1948
    %v1950 = vshll.u32 %v1910, 8
    %v1951 = vand.u32 %v1950, 65535
    %v1952 = vshrl.u32 %v1950, 16
    %v1953 = vand.u32 %v1949, 65535
    %v1954 = vshrl.u32 %v1949, 16
    %v1955 = vmul.u32 %v1951, %v1953
    %v1956 = vmul.u32 %v1951, %v1954
    %v1957 = vmul.u32 %v1952, %v1953
    %v1958 = vmul.u32 %v1952, %v1954
    %v1959 = vshll.u32 %v1956, 16
    %v1960 = vshrl.u32 %v1956, 16
    %v1961 = vshll.u32 %v1957, 16
    %v1962 = vshrl.u32 %v1957, 16
    %vm1963 = vc.u32 %v1955, %v1959
    %v1964 = vsel %vm1963, 1, 0
    %v1965 = vadd.s32 %v1955, %v1959
    %v1966 = vadd.s32 %v1958, %v1964
    %vm1967 = vc.u32 %v1965, %v1961
    %v1968 = vsel %vm1967, 1, 0
    %v1969 = vadd.s32 %v1965, %v1961
    %v1970 = vadd.s32 %v1966, %v1968
    %v1971 = vadd.s32 %v1970, %v1960
    %v1972 = vadd.s32 %v1971, %v1962
    %v1973 = vand.u32 %v1950, 65535
    %v1974 = vshrl.u32 %v1950, 16
    %v1975 = vand.u32 %v1945, 65535
    %v1976 = vshrl.u32 %v1945, 16
    %v1977 = vmul.u32 %v1973, %v1975
    %v1978 = vmul.u32 %v1973, %v1976
    %v1979 = vmul.u32 %v1974, %v1975
    %v1980 = vmul.u32 %v1974, %v1976
    %v1981 = vshll.u32 %v1978, 16
    %v1982 = vshrl.u32 %v1978, 16
    %v1983 = vshll.u32 %v1979, 16
    %v1984 = vshrl.u32 %v1979, 16
    %vm1985 = vc.u32 %v1977, %v1981
    %v1986 = vsel %vm1985, 1, 0
    %v1987 = vadd.s32 %v1977, %v1981
    %v1988 = vadd.s32 %v1980, %v1986
    %vm1989 = vc.u32 %v1987, %v1983
    %v1990 = vsel %vm1989, 1, 0
    %v1991 = vadd.s32 %v1987, %v1983
    %v1992 = vadd.s32 %v1988, %v1990
    %v1993 = vadd.s32 %v1992, %v1982
    %v1994 = vadd.s32 %v1993, %v1984
    %v1995 = vmul.u32 %v1950, %v1941
    %v1996 = vadd.s32 %v1972, %v1991
    %vm1997 = vc.u32 %v1972, %v1991
    %v1998 = vadd.s32 %v1994, 1
    %v1999 = vsel %vm1997, %v1998, %v1994
    %v2000 = vadd.s32 %v1995, %v1999
    %v2001 = vadd.s32 %v2000, 536870912
    %v2002 = vshrl.u32 %v2001, 30
    %v2003 = vshll.u32 %v2002, 30
    %v2004 = vsub.s32 %v2000, %v2003
    %vm2005 = vcmp.lt.s32.totalorder %v2004, 0
    %v2006 = vsub.s32 0, %v2004
    %v2007 = vsel %vm2005, %v2006, %v2004
    %v2008 = vclz %v2007
    %v2009 = vsub.s32 %v2008, 2
    %vm2010 = vcmp.gt.s32.totalorder 0, %v2009
    %v2011 = vsel %vm2010, 0, %v2009
    %v2012 = vsub.s32 32, %v2011
    %v2013 = vshll.u32 %v2004, %v2011
    %v2014 = vshrl.u32 %v1996, %v2012
    %v2015 = vor.u32 %v2013, %v2014
    %v2016 = vsub.s32 4294967266, %v2011
    %v2017 = vadd.s32 %v2016, 127
    %v2018 = vshll.u32 %v2017, 23
    %v2019 = vor.u32 4788187, %v2018
    %v2020 = vand.u32 2147483647, %v2019
    %v2022 = vcvt.s32.f32 %v2015
    %v2023 = vmul.f32 %v2022, %v2020
    %v2024 = vxor.u32 %v2023, 2147483648
    %v2025 = vsel %vm1904, %v2024, %v2023
    %v2026 = vsub.s32 4, %v2002
    %v2027 = vsel %vm1904, %v2026, %v2002
    %v2028 = vsel %vm1903, %v175, %v2025
    %v2029 = vsel %vm1903, 0, %v2027
    %v2030 = vmul.f32 %v2028, %v2028
    %v2031 = vmul.f32 %v2030, -0.001358992
    %v2032 = vadd.f32 %v2031, 0.041655596
    %v2033 = vmul.f32 %v2030, %v2032
    %v2034 = vadd.f32 %v2033, -0.4999988
    %v2035 = vmul.f32 %v2030, %v2034
    %v2036 = vadd.f32 1.0, %v2035
    %v2037 = vmul.f32 %v2028, %v2028
    %v2038 = vmul.f32 %v2037, -0.00019511016
    %v2039 = vadd.f32 %v2038, 0.008332121
    %v2040 = vmul.f32 %v2037, %v2039
    %v2041 = vadd.f32 %v2040, -0.16666654
    %v2042 = vmul.f32 %v2037, %v2041
    %v2043 = vadd.f32 %v2042, 1.0
    %v2044 = vmul.f32 %v2043, %v2028
    %vm2045 = vweird.f32 %v175
    %v2046 = vadd.s32 %v2029, 3
    %v2047 = vand.u32 %v2046, 3
    %vm2048 = vcmp.lt.s32.totalorder %v2047, 2
    %vm2049 = vcmp.eq.s32.totalorder %v2047, 0
    %v2050 = vxor.u32 %v2044, 2147483648
    %v2051 = vsel %vm2049, %v2036, %v2050
    %vm2052 = vcmp.eq.s32.totalorder %v2047, 2
    %v2053 = vxor.u32 %v2036, 2147483648
    %v2054 = vsel %vm2052, %v2053, %v2044
    %v2055 = vsel %vm2048, %v2051, %v2054
    %v2056 = vsel %vm2045, nan, %v2055
    %v2057 = vand.u32 2147483647, %v176
    %vm2058 = vcmp.le.f32.partialorder %v2057, 0.7853982
    %vm2059 = vcmp.lt.s32.totalorder %v176, 0
    %v2060 = vand.u32 %v176, 2139095040
    %v2061 = vshrl.u32 %v2060, 23
    %v2062 = vsub.s32 %v2061, 127
    %v2063 = vand.u32 2147483647, %v176
    %v2064 = vand.u32 %v2063, 8388607
    %v2065 = vor.u32 %v2064, 8388608
    %v2066 = vsub.s32 0, %v2065
    %v2067 = vadd.s32 %v2062, 1
    %vm2068 = vcmp.gt.s32.totalorder %v2067, 0
    %v2069 = vsel %vm2068, %v2067, 0
    %v2070 = vshrl.u32 %v2069, 5
    %v2071 = vand.u32 %v2069, 31
    %v2072 = vsub.s32 32, %v2071
    %v2073 = vshrl.u32 683565275, %v2072
    %v2074 = vshll.u32 683565275, %v2071
    %v2075 = vshrl.u32 2475754826, %v2072
    %v2076 = vor.u32 %v2074, %v2075
    %v2077 = vshll.u32 2475754826, %v2071
    %v2078 = vshrl.u32 2131351028, %v2072
    %v2079 = vor.u32 %v2077, %v2078
    %v2080 = vshll.u32 2131351028, %v2071
    %v2081 = vshrl.u32 2102212464, %v2072
    %v2082 = vor.u32 %v2080, %v2081
    %v2083 = vshll.u32 2102212464, %v2071
    %v2084 = vshrl.u32 920167782, %v2072
    %v2085 = vor.u32 %v2083, %v2084
    %v2086 = vshll.u32 920167782, %v2071
    %v2087 = vshrl.u32 1326507024, %v2072
    %v2088 = vor.u32 %v2086, %v2087
    %vm2089 = vcmp.lt.s32.totalorder %v2070, 1
    %vm2090 = vcmp.lt.s32.totalorder %v2070, 2
    %vm2091 = vcmp.lt.s32.totalorder %v2070, 3
    %vm2092 = vcmp.lt.s32.totalorder %v2070, 4
    %v2093 = vsel %vm2089, %v2073, %v2076
    %v2094 = vsel %vm2092, %v2082, 2102212464
    %v2095 = vsel %vm2091, %v2079, %v2094
    %v2096 = vsel %vm2090, %v2093, %v2095
    %v2097 = vsel %vm2089, %v2076, %v2079
    %v2098 = vsel %vm2092, %v2085, 920167782
    %v2099 = vsel %vm2091, %v2082, %v2098
    %v2100 = vsel %vm2090, %v2097, %v2099
    %v2101 = vsel %vm2089, %v2079, %v2082
    %v2102 = vsel %vm2092, %v2088, 1326507024
    %v2103 = vsel %vm2091, %v2085, %v2102
    %v2104 = vsel %vm2090, %v2101, %v2103
    %v2105 = vshll.u32 %v2065, 8
    %v2106 = vand.u32 %v2105, 65535
    %v2107 = vshrl.u32 %v2105, 16
    %v2108 = vand.u32 %v2104, 65535
    %v2109 = vshrl.u32 %v2104, 16
    %v2110 = vmul.u32 %v2106, %v2108
    %v2111 = vmul.u32 %v2106, %v2109
    %v2112 = vmul.u32 %v2107, %v2108
    %v2113 = vmul.u32 %v2107, %v2109
    %v2114 = vshll.u32 %v2111, 16
    %v2115 = vshrl.u32 %v2111, 16
    %v2116 = vshll.u32 %v2112, 16
    %v2117 = vshrl.u32 %v2112, 16
    %vm2118 = vc.u32 %v2110, %v2114
    %v2119 = vsel %vm2118, 1, 0
    %v2120 = vadd.s32 %v2110, %v2114
    %v2121 = vadd.s32 %v2113, %v2119
    %vm2122 = vc.u32 %v2120, %v2116
    %v2123 = vsel %vm2122, 1, 0
    %v2124 = vadd.s32 %v2120, %v2116
    %v2125 = vadd.s32 %v2121, %v2123
    %v2126 = vadd.s32 %v2125, %v2115
    %v2127 = vadd.s32 %v2126, %v2117
    %v2128 = vand.u32 %v2105, 65535
    %v2129 = vshrl.u32 %v2105, 16
    %v2130 = vand.u32 %v2100, 65535
    %v2131 = vshrl.u32 %v2100, 16
    %v2132 = vmul.u32 %v2128, %v2130
    %v2133 = vmul.u32 %v2128, %v2131
    %v2134 = vmul.u32 %v2129, %v2130
    %v2135 = vmul.u32 %v2129, %v2131
    %v2136 = vshll.u32 %v2133, 16
    %v2137 = vshrl.u32 %v2133, 16
    %v2138 = vshll.u32 %v2134, 16
    %v2139 = vshrl.u32 %v2134, 16
    %vm2140 = vc.u32 %v2132, %v2136
    %v2141 = vsel %vm2140, 1, 0
    %v2142 = vadd.s32 %v2132, %v2136
    %v2143 = vadd.s32 %v2135, %v2141
    %vm2144 = vc.u32 %v2142, %v2138
    %v2145 = vsel %vm2144, 1, 0
    %v2146 = vadd.s32 %v2142, %v2138
    %v2147 = vadd.s32 %v2143, %v2145
    %v2148 = vadd.s32 %v2147, %v2137
    %v2149 = vadd.s32 %v2148, %v2139
    %v2150 = vmul.u32 %v2105, %v2096
    %v2151 = vadd.s32 %v2127, %v2146
    %vm2152 = vc.u32 %v2127, %v2146
    %v2153 = vadd.s32 %v2149, 1
    %v2154 = vsel %vm2152, %v2153, %v2149
    %v2155 = vadd.s32 %v2150, %v2154
    %v2156 = vadd.s32 %v2155, 536870912
    %v2157 = vshrl.u32 %v2156, 30
    %v2158 = vshll.u32 %v2157, 30
    %v2159 = vsub.s32 %v2155, %v2158
    %vm2160 = vcmp.lt.s32.totalorder %v2159, 0
    %v2161 = vsub.s32 0, %v2159
    %v2162 = vsel %vm2160, %v2161, %v2159
    %v2163 = vclz %v2162
    %v2164 = vsub.s32 %v2163, 2
    %vm2165 = vcmp.gt.s32.totalorder 0, %v2164
    %v2166 = vsel %vm2165, 0, %v2164
    %v2167 = vsub.s32 32, %v2166
    %v2168 = vshll.u32 %v2159, %v2166
    %v2169 = vshrl.u32 %v2151, %v2167
    %v2170 = vor.u32 %v2168, %v2169
    %v2171 = vsub.s32 4294967266, %v2166
    %v2172 = vadd.s32 %v2171, 127
    %v2173 = vshll.u32 %v2172, 23
    %v2174 = vor.u32 4788187, %v2173
    %v2175 = vand.u32 2147483647, %v2174
    %v2177 = vcvt.s32.f32 %v2170
    %v2178 = vmul.f32 %v2177, %v2175
    %v2179 = vxor.u32 %v2178, 2147483648
    %v2180 = vsel %vm2059, %v2179, %v2178
    %v2181 = vsub.s32 4, %v2157
    %v2182 = vsel %vm2059, %v2181, %v2157
    %v2183 = vsel %vm2058, %v176, %v2180
    %v2184 = vsel %vm2058, 0, %v2182
    %v2185 = vmul.f32 %v2183, %v2183
    %v2186 = vmul.f32 %v2185, -0.001358992
    %v2187 = vadd.f32 %v2186, 0.041655596
    %v2188 = vmul.f32 %v2185, %v2187
    %v2189 = vadd.f32 %v2188, -0.4999988
    %v2190 = vmul.f32 %v2185, %v2189
    %v2191 = vadd.f32 1.0, %v2190
    %v2192 = vmul.f32 %v2183, %v2183
    %v2193 = vmul.f32 %v2192, -0.00019511016
    %v2194 = vadd.f32 %v2193, 0.008332121
    %v2195 = vmul.f32 %v2192, %v2194
    %v2196 = vadd.f32 %v2195, -0.16666654
    %v2197 = vmul.f32 %v2192, %v2196
    %v2198 = vadd.f32 %v2197, 1.0
    %v2199 = vmul.f32 %v2198, %v2183
    %vm2200 = vweird.f32 %v176
    %v2201 = vadd.s32 %v2184, 3
    %v2202 = vand.u32 %v2201, 3
    %vm2203 = vcmp.lt.s32.totalorder %v2202, 2
    %vm2204 = vcmp.eq.s32.totalorder %v2202, 0
    %v2205 = vxor.u32 %v2199, 2147483648
    %v2206 = vsel %vm2204, %v2191, %v2205
    %vm2207 = vcmp.eq.s32.totalorder %v2202, 2
    %v2208 = vxor.u32 %v2191, 2147483648
    %v2209 = vsel %vm2207, %v2208, %v2199
    %v2210 = vsel %vm2203, %v2206, %v2209
    %v2211 = vsel %vm2200, nan, %v2210
    %v2212 = vand.u32 2147483647, %v177
    %vm2213 = vcmp.le.f32.partialorder %v2212, 0.7853982
    %vm2214 = vcmp.lt.s32.totalorder %v177, 0
    %v2215 = vand.u32 %v177, 2139095040
    %v2216 = vshrl.u32 %v2215, 23
    %v2217 = vsub.s32 %v2216, 127
    %v2218 = vand.u32 2147483647, %v177
    %v2219 = vand.u32 %v2218, 8388607
    %v2220 = vor.u32 %v2219, 8388608
    %v2221 = vsub.s32 0, %v2220
    %v2222 = vadd.s32 %v2217, 1
    %vm2223 = vcmp.gt.s32.totalorder %v2222, 0
    %v2224 = vsel %vm2223, %v2222, 0
    %v2225 = vshrl.u32 %v2224, 5
    %v2226 = vand.u32 %v2224, 31
    %v2227 = vsub.s32 32, %v2226
    %v2228 = vshrl.u32 683565275, %v2227
    %v2229 = vshll.u32 683565275, %v2226
    %v2230 = vshrl.u32 2475754826, %v2227
    %v2231 = vor.u32 %v2229, %v2230
    %v2232 = vshll.u32 2475754826, %v2226
    %v2233 = vshrl.u32 2131351028, %v2227
    %v2234 = vor.u32 %v2232, %v2233
    %v2235 = vshll.u32 2131351028, %v2226
    %v2236 = vshrl.u32 2102212464, %v2227
    %v2237 = vor.u32 %v2235, %v2236
    %v2238 = vshll.u32 2102212464, %v2226
    %v2239 = vshrl.u32 920167782, %v2227
    %v2240 = vor.u32 %v2238, %v2239
    %v2241 = vshll.u32 920167782, %v2226
    %v2242 = vshrl.u32 1326507024, %v2227
    %v2243 = vor.u32 %v2241, %v2242
    %vm2244 = vcmp.lt.s32.totalorder %v2225, 1
    %vm2245 = vcmp.lt.s32.totalorder %v2225, 2
    %vm2246 = vcmp.lt.s32.totalorder %v2225, 3
    %vm2247 = vcmp.lt.s32.totalorder %v2225, 4
    %v2248 = vsel %vm2244, %v2228, %v2231
    %v2249 = vsel %vm2247, %v2237, 2102212464
    %v2250 = vsel %vm2246, %v2234, %v2249
    %v2251 = vsel %vm2245, %v2248, %v2250
    %v2252 = vsel %vm2244, %v2231, %v2234
    %v2253 = vsel %vm2247, %v2240, 920167782
    %v2254 = vsel %vm2246, %v2237, %v2253
    %v2255 = vsel %vm2245, %v2252, %v2254
    %v2256 = vsel %vm2244, %v2234, %v2237
    %v2257 = vsel %vm2247, %v2243, 1326507024
    %v2258 = vsel %vm2246, %v2240, %v2257
    %v2259 = vsel %vm2245, %v2256, %v2258
    %v2260 = vshll.u32 %v2220, 8
    %v2261 = vand.u32 %v2260, 65535
    %v2262 = vshrl.u32 %v2260, 16
    %v2263 = vand.u32 %v2259, 65535
    %v2264 = vshrl.u32 %v2259, 16
    %v2265 = vmul.u32 %v2261, %v2263
    %v2266 = vmul.u32 %v2261, %v2264
    %v2267 = vmul.u32 %v2262, %v2263
    %v2268 = vmul.u32 %v2262, %v2264
    %v2269 = vshll.u32 %v2266, 16
    %v2270 = vshrl.u32 %v2266, 16
    %v2271 = vshll.u32 %v2267, 16
    %v2272 = vshrl.u32 %v2267, 16
    %vm2273 = vc.u32 %v2265, %v2269
    %v2274 = vsel %vm2273, 1, 0
    %v2275 = vadd.s32 %v2265, %v2269
    %v2276 = vadd.s32 %v2268, %v2274
    %vm2277 = vc.u32 %v2275, %v2271
    %v2278 = vsel %vm2277, 1, 0
    %v2279 = vadd.s32 %v2275, %v2271
    %v2280 = vadd.s32 %v2276, %v2278
    %v2281 = vadd.s32 %v2280, %v2270
    %v2282 = vadd.s32 %v2281, %v2272
    %v2283 = vand.u32 %v2260, 65535
    %v2284 = vshrl.u32 %v2260, 16
    %v2285 = vand.u32 %v2255, 65535
    %v2286 = vshrl.u32 %v2255, 16
    %v2287 = vmul.u32 %v2283, %v2285
    %v2288 = vmul.u32 %v2283, %v2286
    %v2289 = vmul.u32 %v2284, %v2285
    %v2290 = vmul.u32 %v2284, %v2286
    %v2291 = vshll.u32 %v2288, 16
    %v2292 = vshrl.u32 %v2288, 16
    %v2293 = vshll.u32 %v2289, 16
    %v2294 = vshrl.u32 %v2289, 16
    %vm2295 = vc.u32 %v2287, %v2291
    %v2296 = vsel %vm2295, 1, 0
    %v2297 = vadd.s32 %v2287, %v2291
    %v2298 = vadd.s32 %v2290, %v2296
    %vm2299 = vc.u32 %v2297, %v2293
    %v2300 = vsel %vm2299, 1, 0
    %v2301 = vadd.s32 %v2297, %v2293
    %v2302 = vadd.s32 %v2298, %v2300
    %v2303 = vadd.s32 %v2302, %v2292
    %v2304 = vadd.s32 %v2303, %v2294
    %v2305 = vmul.u32 %v2260, %v2251
    %v2306 = vadd.s32 %v2282, %v2301
    %vm2307 = vc.u32 %v2282, %v2301
    %v2308 = vadd.s32 %v2304, 1
    %v2309 = vsel %vm2307, %v2308, %v2304
    %v2310 = vadd.s32 %v2305, %v2309
    %v2311 = vadd.s32 %v2310, 536870912
    %v2312 = vshrl.u32 %v2311, 30
    %v2313 = vshll.u32 %v2312, 30
    %v2314 = vsub.s32 %v2310, %v2313
    %vm2315 = vcmp.lt.s32.totalorder %v2314, 0
    %v2316 = vsub.s32 0, %v2314
    %v2317 = vsel %vm2315, %v2316, %v2314
    %v2318 = vclz %v2317
    %v2319 = vsub.s32 %v2318, 2
    %vm2320 = vcmp.gt.s32.totalorder 0, %v2319
    %v2321 = vsel %vm2320, 0, %v2319
    %v2322 = vsub.s32 32, %v2321
    %v2323 = vshll.u32 %v2314, %v2321
    %v2324 = vshrl.u32 %v2306, %v2322
    %v2325 = vor.u32 %v2323, %v2324
    %v2326 = vsub.s32 4294967266, %v2321
    %v2327 = vadd.s32 %v2326, 127
    %v2328 = vshll.u32 %v2327, 23
    %v2329 = vor.u32 4788187, %v2328
    %v2330 = vand.u32 2147483647, %v2329
    %v2332 = vcvt.s32.f32 %v2325
    %v2333 = vmul.f32 %v2332, %v2330
    %v2334 = vxor.u32 %v2333, 2147483648
    %v2335 = vsel %vm2214, %v2334, %v2333
    %v2336 = vsub.s32 4, %v2312
    %v2337 = vsel %vm2214, %v2336, %v2312
    %v2338 = vsel %vm2213, %v177, %v2335
    %v2339 = vsel %vm2213, 0, %v2337
    %v2340 = vmul.f32 %v2338, %v2338
    %v2341 = vmul.f32 %v2340, -0.001358992
    %v2342 = vadd.f32 %v2341, 0.041655596
    %v2343 = vmul.f32 %v2340, %v2342
    %v2344 = vadd.f32 %v2343, -0.4999988
    %v2345 = vmul.f32 %v2340, %v2344
    %v2346 = vadd.f32 1.0, %v2345
    %v2347 = vmul.f32 %v2338, %v2338
    %v2348 = vmul.f32 %v2347, -0.00019511016
    %v2349 = vadd.f32 %v2348, 0.008332121
    %v2350 = vmul.f32 %v2347, %v2349
    %v2351 = vadd.f32 %v2350, -0.16666654
    %v2352 = vmul.f32 %v2347, %v2351
    %v2353 = vadd.f32 %v2352, 1.0
    %v2354 = vmul.f32 %v2353, %v2338
    %vm2355 = vweird.f32 %v177
    %v2356 = vadd.s32 %v2339, 3
    %v2357 = vand.u32 %v2356, 3
    %vm2358 = vcmp.lt.s32.totalorder %v2357, 2
    %vm2359 = vcmp.eq.s32.totalorder %v2357, 0
    %v2360 = vxor.u32 %v2354, 2147483648
    %v2361 = vsel %vm2359, %v2346, %v2360
    %vm2362 = vcmp.eq.s32.totalorder %v2357, 2
    %v2363 = vxor.u32 %v2346, 2147483648
    %v2364 = vsel %vm2362, %v2363, %v2354
    %v2365 = vsel %vm2358, %v2361, %v2364
    %v2366 = vsel %vm2355, nan, %v2365
    %v2367 = vand.u32 2147483647, %v178
    %vm2368 = vcmp.le.f32.partialorder %v2367, 0.7853982
    %vm2369 = vcmp.lt.s32.totalorder %v178, 0
    %v2370 = vand.u32 %v178, 2139095040
    %v2371 = vshrl.u32 %v2370, 23
    %v2372 = vsub.s32 %v2371, 127
    %v2373 = vand.u32 2147483647, %v178
    %v2374 = vand.u32 %v2373, 8388607
    %v2375 = vor.u32 %v2374, 8388608
    %v2376 = vsub.s32 0, %v2375
    %v2377 = vadd.s32 %v2372, 1
    %vm2378 = vcmp.gt.s32.totalorder %v2377, 0
    %v2379 = vsel %vm2378, %v2377, 0
    %v2380 = vshrl.u32 %v2379, 5
    %v2381 = vand.u32 %v2379, 31
    %v2382 = vsub.s32 32, %v2381
    %v2383 = vshrl.u32 683565275, %v2382
    %v2384 = vshll.u32 683565275, %v2381
    %v2385 = vshrl.u32 2475754826, %v2382
    %v2386 = vor.u32 %v2384, %v2385
    %v2387 = vshll.u32 2475754826, %v2381
    %v2388 = vshrl.u32 2131351028, %v2382
    %v2389 = vor.u32 %v2387, %v2388
    %v2390 = vshll.u32 2131351028, %v2381
    %v2391 = vshrl.u32 2102212464, %v2382
    %v2392 = vor.u32 %v2390, %v2391
    %v2393 = vshll.u32 2102212464, %v2381
    %v2394 = vshrl.u32 920167782, %v2382
    %v2395 = vor.u32 %v2393, %v2394
    %v2396 = vshll.u32 920167782, %v2381
    %v2397 = vshrl.u32 1326507024, %v2382
    %v2398 = vor.u32 %v2396, %v2397
    %vm2399 = vcmp.lt.s32.totalorder %v2380, 1
    %vm2400 = vcmp.lt.s32.totalorder %v2380, 2
    %vm2401 = vcmp.lt.s32.totalorder %v2380, 3
    %vm2402 = vcmp.lt.s32.totalorder %v2380, 4
    %v2403 = vsel %vm2399, %v2383, %v2386
    %v2404 = vsel %vm2402, %v2392, 2102212464
    %v2405 = vsel %vm2401, %v2389, %v2404
    %v2406 = vsel %vm2400, %v2403, %v2405
    %v2407 = vsel %vm2399, %v2386, %v2389
    %v2408 = vsel %vm2402, %v2395, 920167782
    %v2409 = vsel %vm2401, %v2392, %v2408
    %v2410 = vsel %vm2400, %v2407, %v2409
    %v2411 = vsel %vm2399, %v2389, %v2392
    %v2412 = vsel %vm2402, %v2398, 1326507024
    %v2413 = vsel %vm2401, %v2395, %v2412
    %v2414 = vsel %vm2400, %v2411, %v2413
    %v2415 = vshll.u32 %v2375, 8
    %v2416 = vand.u32 %v2415, 65535
    %v2417 = vshrl.u32 %v2415, 16
    %v2418 = vand.u32 %v2414, 65535
    %v2419 = vshrl.u32 %v2414, 16
    %v2420 = vmul.u32 %v2416, %v2418
    %v2421 = vmul.u32 %v2416, %v2419
    %v2422 = vmul.u32 %v2417, %v2418
    %v2423 = vmul.u32 %v2417, %v2419
    %v2424 = vshll.u32 %v2421, 16
    %v2425 = vshrl.u32 %v2421, 16
    %v2426 = vshll.u32 %v2422, 16
    %v2427 = vshrl.u32 %v2422, 16
    %vm2428 = vc.u32 %v2420, %v2424
    %v2429 = vsel %vm2428, 1, 0
    %v2430 = vadd.s32 %v2420, %v2424
    %v2431 = vadd.s32 %v2423, %v2429
    %vm2432 = vc.u32 %v2430, %v2426
    %v2433 = vsel %vm2432, 1, 0
    %v2434 = vadd.s32 %v2430, %v2426
    %v2435 = vadd.s32 %v2431, %v2433
    %v2436 = vadd.s32 %v2435, %v2425
    %v2437 = vadd.s32 %v2436, %v2427
    %v2438 = vand.u32 %v2415, 65535
    %v2439 = vshrl.u32 %v2415, 16
    %v2440 = vand.u32 %v2410, 65535
    %v2441 = vshrl.u32 %v2410, 16
    %v2442 = vmul.u32 %v2438, %v2440
    %v2443 = vmul.u32 %v2438, %v2441
    %v2444 = vmul.u32 %v2439, %v2440
    %v2445 = vmul.u32 %v2439, %v2441
    %v2446 = vshll.u32 %v2443, 16
    %v2447 = vshrl.u32 %v2443, 16
    %v2448 = vshll.u32 %v2444, 16
    %v2449 = vshrl.u32 %v2444, 16
    %vm2450 = vc.u32 %v2442, %v2446
    %v2451 = vsel %vm2450, 1, 0
    %v2452 = vadd.s32 %v2442, %v2446
    %v2453 = vadd.s32 %v2445, %v2451
    %vm2454 = vc.u32 %v2452, %v2448
    %v2455 = vsel %vm2454, 1, 0
    %v2456 = vadd.s32 %v2452, %v2448
    %v2457 = vadd.s32 %v2453, %v2455
    %v2458 = vadd.s32 %v2457, %v2447
    %v2459 = vadd.s32 %v2458, %v2449
    %v2460 = vmul.u32 %v2415, %v2406
    %v2461 = vadd.s32 %v2437, %v2456
    %vm2462 = vc.u32 %v2437, %v2456
    %v2463 = vadd.s32 %v2459, 1
    %v2464 = vsel %vm2462, %v2463, %v2459
    %v2465 = vadd.s32 %v2460, %v2464
    %v2466 = vadd.s32 %v2465, 536870912
    %v2467 = vshrl.u32 %v2466, 30
    %v2468 = vshll.u32 %v2467, 30
    %v2469 = vsub.s32 %v2465, %v2468
    %vm2470 = vcmp.lt.s32.totalorder %v2469, 0
    %v2471 = vsub.s32 0, %v2469
    %v2472 = vsel %vm2470, %v2471, %v2469
    %v2473 = vclz %v2472
    %v2474 = vsub.s32 %v2473, 2
    %vm2475 = vcmp.gt.s32.totalorder 0, %v2474
    %v2476 = vsel %vm2475, 0, %v2474
    %v2477 = vsub.s32 32, %v2476
    %v2478 = vshll.u32 %v2469, %v2476
    %v2479 = vshrl.u32 %v2461, %v2477
    %v2480 = vor.u32 %v2478, %v2479
    %v2481 = vsub.s32 4294967266, %v2476
    %v2482 = vadd.s32 %v2481, 127
    %v2483 = vshll.u32 %v2482, 23
    %v2484 = vor.u32 4788187, %v2483
    %v2485 = vand.u32 2147483647, %v2484
    %v2487 = vcvt.s32.f32 %v2480
    %v2488 = vmul.f32 %v2487, %v2485
    %v2489 = vxor.u32 %v2488, 2147483648
    %v2490 = vsel %vm2369, %v2489, %v2488
    %v2491 = vsub.s32 4, %v2467
    %v2492 = vsel %vm2369, %v2491, %v2467
    %v2493 = vsel %vm2368, %v178, %v2490
    %v2494 = vsel %vm2368, 0, %v2492
    %v2495 = vmul.f32 %v2493, %v2493
    %v2496 = vmul.f32 %v2495, -0.001358992
    %v2497 = vadd.f32 %v2496, 0.041655596
    %v2498 = vmul.f32 %v2495, %v2497
    %v2499 = vadd.f32 %v2498, -0.4999988
    %v2500 = vmul.f32 %v2495, %v2499
    %v2501 = vadd.f32 1.0, %v2500
    %v2502 = vmul.f32 %v2493, %v2493
    %v2503 = vmul.f32 %v2502, -0.00019511016
    %v2504 = vadd.f32 %v2503, 0.008332121
    %v2505 = vmul.f32 %v2502, %v2504
    %v2506 = vadd.f32 %v2505, -0.16666654
    %v2507 = vmul.f32 %v2502, %v2506
    %v2508 = vadd.f32 %v2507, 1.0
    %v2509 = vmul.f32 %v2508, %v2493
    %vm2510 = vweird.f32 %v178
    %v2511 = vadd.s32 %v2494, 3
    %v2512 = vand.u32 %v2511, 3
    %vm2513 = vcmp.lt.s32.totalorder %v2512, 2
    %vm2514 = vcmp.eq.s32.totalorder %v2512, 0
    %v2515 = vxor.u32 %v2509, 2147483648
    %v2516 = vsel %vm2514, %v2501, %v2515
    %vm2517 = vcmp.eq.s32.totalorder %v2512, 2
    %v2518 = vxor.u32 %v2501, 2147483648
    %v2519 = vsel %vm2517, %v2518, %v2509
    %v2520 = vsel %vm2513, %v2516, %v2519
    %v2521 = vsel %vm2510, nan, %v2520
    %v2522 = vand.u32 2147483647, %v179
    %vm2523 = vcmp.le.f32.partialorder %v2522, 0.7853982
    %vm2524 = vcmp.lt.s32.totalorder %v179, 0
    %v2525 = vand.u32 %v179, 2139095040
    %v2526 = vshrl.u32 %v2525, 23
    %v2527 = vsub.s32 %v2526, 127
    %v2528 = vand.u32 2147483647, %v179
    %v2529 = vand.u32 %v2528, 8388607
    %v2530 = vor.u32 %v2529, 8388608
    %v2531 = vsub.s32 0, %v2530
    %v2532 = vadd.s32 %v2527, 1
    %vm2533 = vcmp.gt.s32.totalorder %v2532, 0
    %v2534 = vsel %vm2533, %v2532, 0
    %v2535 = vshrl.u32 %v2534, 5
    %v2536 = vand.u32 %v2534, 31
    %v2537 = vsub.s32 32, %v2536
    %v2538 = vshrl.u32 683565275, %v2537
    %v2539 = vshll.u32 683565275, %v2536
    %v2540 = vshrl.u32 2475754826, %v2537
    %v2541 = vor.u32 %v2539, %v2540
    %v2542 = vshll.u32 2475754826, %v2536
    %v2543 = vshrl.u32 2131351028, %v2537
    %v2544 = vor.u32 %v2542, %v2543
    %v2545 = vshll.u32 2131351028, %v2536
    %v2546 = vshrl.u32 2102212464, %v2537
    %v2547 = vor.u32 %v2545, %v2546
    %v2548 = vshll.u32 2102212464, %v2536
    %v2549 = vshrl.u32 920167782, %v2537
    %v2550 = vor.u32 %v2548, %v2549
    %v2551 = vshll.u32 920167782, %v2536
    %v2552 = vshrl.u32 1326507024, %v2537
    %v2553 = vor.u32 %v2551, %v2552
    %vm2554 = vcmp.lt.s32.totalorder %v2535, 1
    %vm2555 = vcmp.lt.s32.totalorder %v2535, 2
    %vm2556 = vcmp.lt.s32.totalorder %v2535, 3
    %vm2557 = vcmp.lt.s32.totalorder %v2535, 4
    %v2558 = vsel %vm2554, %v2538, %v2541
    %v2559 = vsel %vm2557, %v2547, 2102212464
    %v2560 = vsel %vm2556, %v2544, %v2559
    %v2561 = vsel %vm2555, %v2558, %v2560
    %v2562 = vsel %vm2554, %v2541, %v2544
    %v2563 = vsel %vm2557, %v2550, 920167782
    %v2564 = vsel %vm2556, %v2547, %v2563
    %v2565 = vsel %vm2555, %v2562, %v2564
    %v2566 = vsel %vm2554, %v2544, %v2547
    %v2567 = vsel %vm2557, %v2553, 1326507024
    %v2568 = vsel %vm2556, %v2550, %v2567
    %v2569 = vsel %vm2555, %v2566, %v2568
    %v2570 = vshll.u32 %v2530, 8
    %v2571 = vand.u32 %v2570, 65535
    %v2572 = vshrl.u32 %v2570, 16
    %v2573 = vand.u32 %v2569, 65535
    %v2574 = vshrl.u32 %v2569, 16
    %v2575 = vmul.u32 %v2571, %v2573
    %v2576 = vmul.u32 %v2571, %v2574
    %v2577 = vmul.u32 %v2572, %v2573
    %v2578 = vmul.u32 %v2572, %v2574
    %v2579 = vshll.u32 %v2576, 16
    %v2580 = vshrl.u32 %v2576, 16
    %v2581 = vshll.u32 %v2577, 16
    %v2582 = vshrl.u32 %v2577, 16
    %vm2583 = vc.u32 %v2575, %v2579
    %v2584 = vsel %vm2583, 1, 0
    %v2585 = vadd.s32 %v2575, %v2579
    %v2586 = vadd.s32 %v2578, %v2584
    %vm2587 = vc.u32 %v2585, %v2581
    %v2588 = vsel %vm2587, 1, 0
    %v2589 = vadd.s32 %v2585, %v2581
    %v2590 = vadd.s32 %v2586, %v2588
    %v2591 = vadd.s32 %v2590, %v2580
    %v2592 = vadd.s32 %v2591, %v2582
    %v2593 = vand.u32 %v2570, 65535
    %v2594 = vshrl.u32 %v2570, 16
    %v2595 = vand.u32 %v2565, 65535
    %v2596 = vshrl.u32 %v2565, 16
    %v2597 = vmul.u32 %v2593, %v2595
    %v2598 = vmul.u32 %v2593, %v2596
    %v2599 = vmul.u32 %v2594, %v2595
    %v2600 = vmul.u32 %v2594, %v2596
    %v2601 = vshll.u32 %v2598, 16
    %v2602 = vshrl.u32 %v2598, 16
    %v2603 = vshll.u32 %v2599, 16
    %v2604 = vshrl.u32 %v2599, 16
    %vm2605 = vc.u32 %v2597, %v2601
    %v2606 = vsel %vm2605, 1, 0
    %v2607 = vadd.s32 %v2597, %v2601
    %v2608 = vadd.s32 %v2600, %v2606
    %vm2609 = vc.u32 %v2607, %v2603
    %v2610 = vsel %vm2609, 1, 0
    %v2611 = vadd.s32 %v2607, %v2603
    %v2612 = vadd.s32 %v2608, %v2610
    %v2613 = vadd.s32 %v2612, %v2602
    %v2614 = vadd.s32 %v2613, %v2604
    %v2615 = vmul.u32 %v2570, %v2561
    %v2616 = vadd.s32 %v2592, %v2611
    %vm2617 = vc.u32 %v2592, %v2611
    %v2618 = vadd.s32 %v2614, 1
    %v2619 = vsel %vm2617, %v2618, %v2614
    %v2620 = vadd.s32 %v2615, %v2619
    %v2621 = vadd.s32 %v2620, 536870912
    %v2622 = vshrl.u32 %v2621, 30
    %v2623 = vshll.u32 %v2622, 30
    %v2624 = vsub.s32 %v2620, %v2623
    %vm2625 = vcmp.lt.s32.totalorder %v2624, 0
    %v2626 = vsub.s32 0, %v2624
    %v2627 = vsel %vm2625, %v2626, %v2624
    %v2628 = vclz %v2627
    %v2629 = vsub.s32 %v2628, 2
    %vm2630 = vcmp.gt.s32.totalorder 0, %v2629
    %v2631 = vsel %vm2630, 0, %v2629
    %v2632 = vsub.s32 32, %v2631
    %v2633 = vshll.u32 %v2624, %v2631
    %v2634 = vshrl.u32 %v2616, %v2632
    %v2635 = vor.u32 %v2633, %v2634
    %v2636 = vsub.s32 4294967266, %v2631
    %v2637 = vadd.s32 %v2636, 127
    %v2638 = vshll.u32 %v2637, 23
    %v2639 = vor.u32 4788187, %v2638
    %v2640 = vand.u32 2147483647, %v2639
    %v2642 = vcvt.s32.f32 %v2635
    %v2643 = vmul.f32 %v2642, %v2640
    %v2644 = vxor.u32 %v2643, 2147483648
    %v2645 = vsel %vm2524, %v2644, %v2643
    %v2646 = vsub.s32 4, %v2622
    %v2647 = vsel %vm2524, %v2646, %v2622
    %v2648 = vsel %vm2523, %v179, %v2645
    %v2649 = vsel %vm2523, 0, %v2647
    %v2650 = vmul.f32 %v2648, %v2648
    %v2651 = vmul.f32 %v2650, -0.001358992
    %v2652 = vadd.f32 %v2651, 0.041655596
    %v2653 = vmul.f32 %v2650, %v2652
    %v2654 = vadd.f32 %v2653, -0.4999988
    %v2655 = vmul.f32 %v2650, %v2654
    %v2656 = vadd.f32 1.0, %v2655
    %v2657 = vmul.f32 %v2648, %v2648
    %v2658 = vmul.f32 %v2657, -0.00019511016
    %v2659 = vadd.f32 %v2658, 0.008332121
    %v2660 = vmul.f32 %v2657, %v2659
    %v2661 = vadd.f32 %v2660, -0.16666654
    %v2662 = vmul.f32 %v2657, %v2661
    %v2663 = vadd.f32 %v2662, 1.0
    %v2664 = vmul.f32 %v2663, %v2648
    %vm2665 = vweird.f32 %v179
    %v2666 = vadd.s32 %v2649, 3
    %v2667 = vand.u32 %v2666, 3
    %vm2668 = vcmp.lt.s32.totalorder %v2667, 2
    %vm2669 = vcmp.eq.s32.totalorder %v2667, 0
    %v2670 = vxor.u32 %v2664, 2147483648
    %v2671 = vsel %vm2669, %v2656, %v2670
    %vm2672 = vcmp.eq.s32.totalorder %v2667, 2
    %v2673 = vxor.u32 %v2656, 2147483648
    %v2674 = vsel %vm2672, %v2673, %v2664
    %v2675 = vsel %vm2668, %v2671, %v2674
    %v2676 = vsel %vm2665, nan, %v2675
    %v2677 = vand.u32 2147483647, %v180
    %vm2678 = vcmp.le.f32.partialorder %v2677, 0.7853982
    %vm2679 = vcmp.lt.s32.totalorder %v180, 0
    %v2680 = vand.u32 %v180, 2139095040
    %v2681 = vshrl.u32 %v2680, 23
    %v2682 = vsub.s32 %v2681, 127
    %v2683 = vand.u32 2147483647, %v180
    %v2684 = vand.u32 %v2683, 8388607
    %v2685 = vor.u32 %v2684, 8388608
    %v2686 = vsub.s32 0, %v2685
    %v2687 = vadd.s32 %v2682, 1
    %vm2688 = vcmp.gt.s32.totalorder %v2687, 0
    %v2689 = vsel %vm2688, %v2687, 0
    %v2690 = vshrl.u32 %v2689, 5
    %v2691 = vand.u32 %v2689, 31
    %v2692 = vsub.s32 32, %v2691
    %v2693 = vshrl.u32 683565275, %v2692
    %v2694 = vshll.u32 683565275, %v2691
    %v2695 = vshrl.u32 2475754826, %v2692
    %v2696 = vor.u32 %v2694, %v2695
    %v2697 = vshll.u32 2475754826, %v2691
    %v2698 = vshrl.u32 2131351028, %v2692
    %v2699 = vor.u32 %v2697, %v2698
    %v2700 = vshll.u32 2131351028, %v2691
    %v2701 = vshrl.u32 2102212464, %v2692
    %v2702 = vor.u32 %v2700, %v2701
    %v2703 = vshll.u32 2102212464, %v2691
    %v2704 = vshrl.u32 920167782, %v2692
    %v2705 = vor.u32 %v2703, %v2704
    %v2706 = vshll.u32 920167782, %v2691
    %v2707 = vshrl.u32 1326507024, %v2692
    %v2708 = vor.u32 %v2706, %v2707
    %vm2709 = vcmp.lt.s32.totalorder %v2690, 1
    %vm2710 = vcmp.lt.s32.totalorder %v2690, 2
    %vm2711 = vcmp.lt.s32.totalorder %v2690, 3
    %vm2712 = vcmp.lt.s32.totalorder %v2690, 4
    %v2713 = vsel %vm2709, %v2693, %v2696
    %v2714 = vsel %vm2712, %v2702, 2102212464
    %v2715 = vsel %vm2711, %v2699, %v2714
    %v2716 = vsel %vm2710, %v2713, %v2715
    %v2717 = vsel %vm2709, %v2696, %v2699
    %v2718 = vsel %vm2712, %v2705, 920167782
    %v2719 = vsel %vm2711, %v2702, %v2718
    %v2720 = vsel %vm2710, %v2717, %v2719
    %v2721 = vsel %vm2709, %v2699, %v2702
    %v2722 = vsel %vm2712, %v2708, 1326507024
    %v2723 = vsel %vm2711, %v2705, %v2722
    %v2724 = vsel %vm2710, %v2721, %v2723
    %v2725 = vshll.u32 %v2685, 8
    %v2726 = vand.u32 %v2725, 65535
    %v2727 = vshrl.u32 %v2725, 16
    %v2728 = vand.u32 %v2724, 65535
    %v2729 = vshrl.u32 %v2724, 16
    %v2730 = vmul.u32 %v2726, %v2728
    %v2731 = vmul.u32 %v2726, %v2729
    %v2732 = vmul.u32 %v2727, %v2728
    %v2733 = vmul.u32 %v2727, %v2729
    %v2734 = vshll.u32 %v2731, 16
    %v2735 = vshrl.u32 %v2731, 16
    %v2736 = vshll.u32 %v2732, 16
    %v2737 = vshrl.u32 %v2732, 16
    %vm2738 = vc.u32 %v2730, %v2734
    %v2739 = vsel %vm2738, 1, 0
    %v2740 = vadd.s32 %v2730, %v2734
    %v2741 = vadd.s32 %v2733, %v2739
    %vm2742 = vc.u32 %v2740, %v2736
    %v2743 = vsel %vm2742, 1, 0
    %v2744 = vadd.s32 %v2740, %v2736
    %v2745 = vadd.s32 %v2741, %v2743
    %v2746 = vadd.s32 %v2745, %v2735
    %v2747 = vadd.s32 %v2746, %v2737
    %v2748 = vand.u32 %v2725, 65535
    %v2749 = vshrl.u32 %v2725, 16
    %v2750 = vand.u32 %v2720, 65535
    %v2751 = vshrl.u32 %v2720, 16
    %v2752 = vmul.u32 %v2748, %v2750
    %v2753 = vmul.u32 %v2748, %v2751
    %v2754 = vmul.u32 %v2749, %v2750
    %v2755 = vmul.u32 %v2749, %v2751
    %v2756 = vshll.u32 %v2753, 16
    %v2757 = vshrl.u32 %v2753, 16
    %v2758 = vshll.u32 %v2754, 16
    %v2759 = vshrl.u32 %v2754, 16
    %vm2760 = vc.u32 %v2752, %v2756
    %v2761 = vsel %vm2760, 1, 0
    %v2762 = vadd.s32 %v2752, %v2756
    %v2763 = vadd.s32 %v2755, %v2761
    %vm2764 = vc.u32 %v2762, %v2758
    %v2765 = vsel %vm2764, 1, 0
    %v2766 = vadd.s32 %v2762, %v2758
    %v2767 = vadd.s32 %v2763, %v2765
    %v2768 = vadd.s32 %v2767, %v2757
    %v2769 = vadd.s32 %v2768, %v2759
    %v2770 = vmul.u32 %v2725, %v2716
    %v2771 = vadd.s32 %v2747, %v2766
    %vm2772 = vc.u32 %v2747, %v2766
    %v2773 = vadd.s32 %v2769, 1
    %v2774 = vsel %vm2772, %v2773, %v2769
    %v2775 = vadd.s32 %v2770, %v2774
    %v2776 = vadd.s32 %v2775, 536870912
    %v2777 = vshrl.u32 %v2776, 30
    %v2778 = vshll.u32 %v2777, 30
    %v2779 = vsub.s32 %v2775, %v2778
    %vm2780 = vcmp.lt.s32.totalorder %v2779, 0
    %v2781 = vsub.s32 0, %v2779
    %v2782 = vsel %vm2780, %v2781, %v2779
    %v2783 = vclz %v2782
    %v2784 = vsub.s32 %v2783, 2
    %vm2785 = vcmp.gt.s32.totalorder 0, %v2784
    %v2786 = vsel %vm2785, 0, %v2784
    %v2787 = vsub.s32 32, %v2786
    %v2788 = vshll.u32 %v2779, %v2786
    %v2789 = vshrl.u32 %v2771, %v2787
    %v2790 = vor.u32 %v2788, %v2789
    %v2791 = vsub.s32 4294967266, %v2786
    %v2792 = vadd.s32 %v2791, 127
    %v2793 = vshll.u32 %v2792, 23
    %v2794 = vor.u32 4788187, %v2793
    %v2795 = vand.u32 2147483647, %v2794
    %v2797 = vcvt.s32.f32 %v2790
    %v2798 = vmul.f32 %v2797, %v2795
    %v2799 = vxor.u32 %v2798, 2147483648
    %v2800 = vsel %vm2679, %v2799, %v2798
    %v2801 = vsub.s32 4, %v2777
    %v2802 = vsel %vm2679, %v2801, %v2777
    %v2803 = vsel %vm2678, %v180, %v2800
    %v2804 = vsel %vm2678, 0, %v2802
    %v2805 = vmul.f32 %v2803, %v2803
    %v2806 = vmul.f32 %v2805, -0.001358992
    %v2807 = vadd.f32 %v2806, 0.041655596
    %v2808 = vmul.f32 %v2805, %v2807
    %v2809 = vadd.f32 %v2808, -0.4999988
    %v2810 = vmul.f32 %v2805, %v2809
    %v2811 = vadd.f32 1.0, %v2810
    %v2812 = vmul.f32 %v2803, %v2803
    %v2813 = vmul.f32 %v2812, -0.00019511016
    %v2814 = vadd.f32 %v2813, 0.008332121
    %v2815 = vmul.f32 %v2812, %v2814
    %v2816 = vadd.f32 %v2815, -0.16666654
    %v2817 = vmul.f32 %v2812, %v2816
    %v2818 = vadd.f32 %v2817, 1.0
    %v2819 = vmul.f32 %v2818, %v2803
    %vm2820 = vweird.f32 %v180
    %v2821 = vadd.s32 %v2804, 3
    %v2822 = vand.u32 %v2821, 3
    %vm2823 = vcmp.lt.s32.totalorder %v2822, 2
    %vm2824 = vcmp.eq.s32.totalorder %v2822, 0
    %v2825 = vxor.u32 %v2819, 2147483648
    %v2826 = vsel %vm2824, %v2811, %v2825
    %vm2827 = vcmp.eq.s32.totalorder %v2822, 2
    %v2828 = vxor.u32 %v2811, 2147483648
    %v2829 = vsel %vm2827, %v2828, %v2819
    %v2830 = vsel %vm2823, %v2826, %v2829
    %v2831 = vsel %vm2820, nan, %v2830
    %v2832 = vand.u32 2147483647, %v181
    %vm2833 = vcmp.le.f32.partialorder %v2832, 0.7853982
    %vm2834 = vcmp.lt.s32.totalorder %v181, 0
    %v2835 = vand.u32 %v181, 2139095040
    %v2836 = vshrl.u32 %v2835, 23
    %v2837 = vsub.s32 %v2836, 127
    %v2838 = vand.u32 2147483647, %v181
    %v2839 = vand.u32 %v2838, 8388607
    %v2840 = vor.u32 %v2839, 8388608
    %v2841 = vsub.s32 0, %v2840
    %v2842 = vadd.s32 %v2837, 1
    %vm2843 = vcmp.gt.s32.totalorder %v2842, 0
    %v2844 = vsel %vm2843, %v2842, 0
    %v2845 = vshrl.u32 %v2844, 5
    %v2846 = vand.u32 %v2844, 31
    %v2847 = vsub.s32 32, %v2846
    %v2848 = vshrl.u32 683565275, %v2847
    %v2849 = vshll.u32 683565275, %v2846
    %v2850 = vshrl.u32 2475754826, %v2847
    %v2851 = vor.u32 %v2849, %v2850
    %v2852 = vshll.u32 2475754826, %v2846
    %v2853 = vshrl.u32 2131351028, %v2847
    %v2854 = vor.u32 %v2852, %v2853
    %v2855 = vshll.u32 2131351028, %v2846
    %v2856 = vshrl.u32 2102212464, %v2847
    %v2857 = vor.u32 %v2855, %v2856
    %v2858 = vshll.u32 2102212464, %v2846
    %v2859 = vshrl.u32 920167782, %v2847
    %v2860 = vor.u32 %v2858, %v2859
    %v2861 = vshll.u32 920167782, %v2846
    %v2862 = vshrl.u32 1326507024, %v2847
    %v2863 = vor.u32 %v2861, %v2862
    %vm2864 = vcmp.lt.s32.totalorder %v2845, 1
    %vm2865 = vcmp.lt.s32.totalorder %v2845, 2
    %vm2866 = vcmp.lt.s32.totalorder %v2845, 3
    %vm2867 = vcmp.lt.s32.totalorder %v2845, 4
    %v2868 = vsel %vm2864, %v2848, %v2851
    %v2869 = vsel %vm2867, %v2857, 2102212464
    %v2870 = vsel %vm2866, %v2854, %v2869
    %v2871 = vsel %vm2865, %v2868, %v2870
    %v2872 = vsel %vm2864, %v2851, %v2854
    %v2873 = vsel %vm2867, %v2860, 920167782
    %v2874 = vsel %vm2866, %v2857, %v2873
    %v2875 = vsel %vm2865, %v2872, %v2874
    %v2876 = vsel %vm2864, %v2854, %v2857
    %v2877 = vsel %vm2867, %v2863, 1326507024
    %v2878 = vsel %vm2866, %v2860, %v2877
    %v2879 = vsel %vm2865, %v2876, %v2878
    %v2880 = vshll.u32 %v2840, 8
    %v2881 = vand.u32 %v2880, 65535
    %v2882 = vshrl.u32 %v2880, 16
    %v2883 = vand.u32 %v2879, 65535
    %v2884 = vshrl.u32 %v2879, 16
    %v2885 = vmul.u32 %v2881, %v2883
    %v2886 = vmul.u32 %v2881, %v2884
    %v2887 = vmul.u32 %v2882, %v2883
    %v2888 = vmul.u32 %v2882, %v2884
    %v2889 = vshll.u32 %v2886, 16
    %v2890 = vshrl.u32 %v2886, 16
    %v2891 = vshll.u32 %v2887, 16
    %v2892 = vshrl.u32 %v2887, 16
    %vm2893 = vc.u32 %v2885, %v2889
    %v2894 = vsel %vm2893, 1, 0
    %v2895 = vadd.s32 %v2885, %v2889
    %v2896 = vadd.s32 %v2888, %v2894
    %vm2897 = vc.u32 %v2895, %v2891
    %v2898 = vsel %vm2897, 1, 0
    %v2899 = vadd.s32 %v2895, %v2891
    %v2900 = vadd.s32 %v2896, %v2898
    %v2901 = vadd.s32 %v2900, %v2890
    %v2902 = vadd.s32 %v2901, %v2892
    %v2903 = vand.u32 %v2880, 65535
    %v2904 = vshrl.u32 %v2880, 16
    %v2905 = vand.u32 %v2875, 65535
    %v2906 = vshrl.u32 %v2875, 16
    %v2907 = vmul.u32 %v2903, %v2905
    %v2908 = vmul.u32 %v2903, %v2906
    %v2909 = vmul.u32 %v2904, %v2905
    %v2910 = vmul.u32 %v2904, %v2906
    %v2911 = vshll.u32 %v2908, 16
    %v2912 = vshrl.u32 %v2908, 16
    %v2913 = vshll.u32 %v2909, 16
    %v2914 = vshrl.u32 %v2909, 16
    %vm2915 = vc.u32 %v2907, %v2911
    %v2916 = vsel %vm2915, 1, 0
    %v2917 = vadd.s32 %v2907, %v2911
    %v2918 = vadd.s32 %v2910, %v2916
    %vm2919 = vc.u32 %v2917, %v2913
    %v2920 = vsel %vm2919, 1, 0
    %v2921 = vadd.s32 %v2917, %v2913
    %v2922 = vadd.s32 %v2918, %v2920
    %v2923 = vadd.s32 %v2922, %v2912
    %v2924 = vadd.s32 %v2923, %v2914
    %v2925 = vmul.u32 %v2880, %v2871
    %v2926 = vadd.s32 %v2902, %v2921
    %vm2927 = vc.u32 %v2902, %v2921
    %v2928 = vadd.s32 %v2924, 1
    %v2929 = vsel %vm2927, %v2928, %v2924
    %v2930 = vadd.s32 %v2925, %v2929
    %v2931 = vadd.s32 %v2930, 536870912
    %v2932 = vshrl.u32 %v2931, 30
    %v2933 = vshll.u32 %v2932, 30
    %v2934 = vsub.s32 %v2930, %v2933
    %vm2935 = vcmp.lt.s32.totalorder %v2934, 0
    %v2936 = vsub.s32 0, %v2934
    %v2937 = vsel %vm2935, %v2936, %v2934
    %v2938 = vclz %v2937
    %v2939 = vsub.s32 %v2938, 2
    %vm2940 = vcmp.gt.s32.totalorder 0, %v2939
    %v2941 = vsel %vm2940, 0, %v2939
    %v2942 = vsub.s32 32, %v2941
    %v2943 = vshll.u32 %v2934, %v2941
    %v2944 = vshrl.u32 %v2926, %v2942
    %v2945 = vor.u32 %v2943, %v2944
    %v2946 = vsub.s32 4294967266, %v2941
    %v2947 = vadd.s32 %v2946, 127
    %v2948 = vshll.u32 %v2947, 23
    %v2949 = vor.u32 4788187, %v2948
    %v2950 = vand.u32 2147483647, %v2949
    %v2952 = vcvt.s32.f32 %v2945
    %v2953 = vmul.f32 %v2952, %v2950
    %v2954 = vxor.u32 %v2953, 2147483648
    %v2955 = vsel %vm2834, %v2954, %v2953
    %v2956 = vsub.s32 4, %v2932
    %v2957 = vsel %vm2834, %v2956, %v2932
    %v2958 = vsel %vm2833, %v181, %v2955
    %v2959 = vsel %vm2833, 0, %v2957
    %v2960 = vmul.f32 %v2958, %v2958
    %v2961 = vmul.f32 %v2960, -0.001358992
    %v2962 = vadd.f32 %v2961, 0.041655596
    %v2963 = vmul.f32 %v2960, %v2962
    %v2964 = vadd.f32 %v2963, -0.4999988
    %v2965 = vmul.f32 %v2960, %v2964
    %v2966 = vadd.f32 1.0, %v2965
    %v2967 = vmul.f32 %v2958, %v2958
    %v2968 = vmul.f32 %v2967, -0.00019511016
    %v2969 = vadd.f32 %v2968, 0.008332121
    %v2970 = vmul.f32 %v2967, %v2969
    %v2971 = vadd.f32 %v2970, -0.16666654
    %v2972 = vmul.f32 %v2967, %v2971
    %v2973 = vadd.f32 %v2972, 1.0
    %v2974 = vmul.f32 %v2973, %v2958
    %vm2975 = vweird.f32 %v181
    %v2976 = vadd.s32 %v2959, 3
    %v2977 = vand.u32 %v2976, 3
    %vm2978 = vcmp.lt.s32.totalorder %v2977, 2
    %vm2979 = vcmp.eq.s32.totalorder %v2977, 0
    %v2980 = vxor.u32 %v2974, 2147483648
    %v2981 = vsel %vm2979, %v2966, %v2980
    %vm2982 = vcmp.eq.s32.totalorder %v2977, 2
    %v2983 = vxor.u32 %v2966, 2147483648
    %v2984 = vsel %vm2982, %v2983, %v2974
    %v2985 = vsel %vm2978, %v2981, %v2984
    %v2986 = vsel %vm2975, nan, %v2985
    %v2987 = vand.u32 2147483647, %v182
    %vm2988 = vcmp.le.f32.partialorder %v2987, 0.7853982
    %vm2989 = vcmp.lt.s32.totalorder %v182, 0
    %v2990 = vand.u32 %v182, 2139095040
    %v2991 = vshrl.u32 %v2990, 23
    %v2992 = vsub.s32 %v2991, 127
    %v2993 = vand.u32 2147483647, %v182
    %v2994 = vand.u32 %v2993, 8388607
    %v2995 = vor.u32 %v2994, 8388608
    %v2996 = vsub.s32 0, %v2995
    %v2997 = vadd.s32 %v2992, 1
    %vm2998 = vcmp.gt.s32.totalorder %v2997, 0
    %v2999 = vsel %vm2998, %v2997, 0
    %v3000 = vshrl.u32 %v2999, 5
    %v3001 = vand.u32 %v2999, 31
    %v3002 = vsub.s32 32, %v3001
    %v3003 = vshrl.u32 683565275, %v3002
    %v3004 = vshll.u32 683565275, %v3001
    %v3005 = vshrl.u32 2475754826, %v3002
    %v3006 = vor.u32 %v3004, %v3005
    %v3007 = vshll.u32 2475754826, %v3001
    %v3008 = vshrl.u32 2131351028, %v3002
    %v3009 = vor.u32 %v3007, %v3008
    %v3010 = vshll.u32 2131351028, %v3001
    %v3011 = vshrl.u32 2102212464, %v3002
    %v3012 = vor.u32 %v3010, %v3011
    %v3013 = vshll.u32 2102212464, %v3001
    %v3014 = vshrl.u32 920167782, %v3002
    %v3015 = vor.u32 %v3013, %v3014
    %v3016 = vshll.u32 920167782, %v3001
    %v3017 = vshrl.u32 1326507024, %v3002
    %v3018 = vor.u32 %v3016, %v3017
    %vm3019 = vcmp.lt.s32.totalorder %v3000, 1
    %vm3020 = vcmp.lt.s32.totalorder %v3000, 2
    %vm3021 = vcmp.lt.s32.totalorder %v3000, 3
    %vm3022 = vcmp.lt.s32.totalorder %v3000, 4
    %v3023 = vsel %vm3019, %v3003, %v3006
    %v3024 = vsel %vm3022, %v3012, 2102212464
    %v3025 = vsel %vm3021, %v3009, %v3024
    %v3026 = vsel %vm3020, %v3023, %v3025
    %v3027 = vsel %vm3019, %v3006, %v3009
    %v3028 = vsel %vm3022, %v3015, 920167782
    %v3029 = vsel %vm3021, %v3012, %v3028
    %v3030 = vsel %vm3020, %v3027, %v3029
    %v3031 = vsel %vm3019, %v3009, %v3012
    %v3032 = vsel %vm3022, %v3018, 1326507024
    %v3033 = vsel %vm3021, %v3015, %v3032
    %v3034 = vsel %vm3020, %v3031, %v3033
    %v3035 = vshll.u32 %v2995, 8
    %v3036 = vand.u32 %v3035, 65535
    %v3037 = vshrl.u32 %v3035, 16
    %v3038 = vand.u32 %v3034, 65535
    %v3039 = vshrl.u32 %v3034, 16
    %v3040 = vmul.u32 %v3036, %v3038
    %v3041 = vmul.u32 %v3036, %v3039
    %v3042 = vmul.u32 %v3037, %v3038
    %v3043 = vmul.u32 %v3037, %v3039
    %v3044 = vshll.u32 %v3041, 16
    %v3045 = vshrl.u32 %v3041, 16
    %v3046 = vshll.u32 %v3042, 16
    %v3047 = vshrl.u32 %v3042, 16
    %vm3048 = vc.u32 %v3040, %v3044
    %v3049 = vsel %vm3048, 1, 0
    %v3050 = vadd.s32 %v3040, %v3044
    %v3051 = vadd.s32 %v3043, %v3049
    %vm3052 = vc.u32 %v3050, %v3046
    %v3053 = vsel %vm3052, 1, 0
    %v3054 = vadd.s32 %v3050, %v3046
    %v3055 = vadd.s32 %v3051, %v3053
    %v3056 = vadd.s32 %v3055, %v3045
    %v3057 = vadd.s32 %v3056, %v3047
    %v3058 = vand.u32 %v3035, 65535
    %v3059 = vshrl.u32 %v3035, 16
    %v3060 = vand.u32 %v3030, 65535
    %v3061 = vshrl.u32 %v3030, 16
    %v3062 = vmul.u32 %v3058, %v3060
    %v3063 = vmul.u32 %v3058, %v3061
    %v3064 = vmul.u32 %v3059, %v3060
    %v3065 = vmul.u32 %v3059, %v3061
    %v3066 = vshll.u32 %v3063, 16
    %v3067 = vshrl.u32 %v3063, 16
    %v3068 = vshll.u32 %v3064, 16
    %v3069 = vshrl.u32 %v3064, 16
    %vm3070 = vc.u32 %v3062, %v3066
    %v3071 = vsel %vm3070, 1, 0
    %v3072 = vadd.s32 %v3062, %v3066
    %v3073 = vadd.s32 %v3065, %v3071
    %vm3074 = vc.u32 %v3072, %v3068
    %v3075 = vsel %vm3074, 1, 0
    %v3076 = vadd.s32 %v3072, %v3068
    %v3077 = vadd.s32 %v3073, %v3075
    %v3078 = vadd.s32 %v3077, %v3067
    %v3079 = vadd.s32 %v3078, %v3069
    %v3080 = vmul.u32 %v3035, %v3026
    %v3081 = vadd.s32 %v3057, %v3076
    %vm3082 = vc.u32 %v3057, %v3076
    %v3083 = vadd.s32 %v3079, 1
    %v3084 = vsel %vm3082, %v3083, %v3079
    %v3085 = vadd.s32 %v3080, %v3084
    %v3086 = vadd.s32 %v3085, 536870912
    %v3087 = vshrl.u32 %v3086, 30
    %v3088 = vshll.u32 %v3087, 30
    %v3089 = vsub.s32 %v3085, %v3088
    %vm3090 = vcmp.lt.s32.totalorder %v3089, 0
    %v3091 = vsub.s32 0, %v3089
    %v3092 = vsel %vm3090, %v3091, %v3089
    %v3093 = vclz %v3092
    %v3094 = vsub.s32 %v3093, 2
    %vm3095 = vcmp.gt.s32.totalorder 0, %v3094
    %v3096 = vsel %vm3095, 0, %v3094
    %v3097 = vsub.s32 32, %v3096
    %v3098 = vshll.u32 %v3089, %v3096
    %v3099 = vshrl.u32 %v3081, %v3097
    %v3100 = vor.u32 %v3098, %v3099
    %v3101 = vsub.s32 4294967266, %v3096
    %v3102 = vadd.s32 %v3101, 127
    %v3103 = vshll.u32 %v3102, 23
    %v3104 = vor.u32 4788187, %v3103
    %v3105 = vand.u32 2147483647, %v3104
    %v3107 = vcvt.s32.f32 %v3100
    %v3108 = vmul.f32 %v3107, %v3105
    %v3109 = vxor.u32 %v3108, 2147483648
    %v3110 = vsel %vm2989, %v3109, %v3108
    %v3111 = vsub.s32 4, %v3087
    %v3112 = vsel %vm2989, %v3111, %v3087
    %v3113 = vsel %vm2988, %v182, %v3110
    %v3114 = vsel %vm2988, 0, %v3112
    %v3115 = vmul.f32 %v3113, %v3113
    %v3116 = vmul.f32 %v3115, -0.001358992
    %v3117 = vadd.f32 %v3116, 0.041655596
    %v3118 = vmul.f32 %v3115, %v3117
    %v3119 = vadd.f32 %v3118, -0.4999988
    %v3120 = vmul.f32 %v3115, %v3119
    %v3121 = vadd.f32 1.0, %v3120
    %v3122 = vmul.f32 %v3113, %v3113
    %v3123 = vmul.f32 %v3122, -0.00019511016
    %v3124 = vadd.f32 %v3123, 0.008332121
    %v3125 = vmul.f32 %v3122, %v3124
    %v3126 = vadd.f32 %v3125, -0.16666654
    %v3127 = vmul.f32 %v3122, %v3126
    %v3128 = vadd.f32 %v3127, 1.0
    %v3129 = vmul.f32 %v3128, %v3113
    %vm3130 = vweird.f32 %v182
    %v3131 = vadd.s32 %v3114, 3
    %v3132 = vand.u32 %v3131, 3
    %vm3133 = vcmp.lt.s32.totalorder %v3132, 2
    %vm3134 = vcmp.eq.s32.totalorder %v3132, 0
    %v3135 = vxor.u32 %v3129, 2147483648
    %v3136 = vsel %vm3134, %v3121, %v3135
    %vm3137 = vcmp.eq.s32.totalorder %v3132, 2
    %v3138 = vxor.u32 %v3121, 2147483648
    %v3139 = vsel %vm3137, %v3138, %v3129
    %v3140 = vsel %vm3133, %v3136, %v3139
    %v3141 = vsel %vm3130, nan, %v3140
    %v3142 = vand.u32 2147483647, %v183
    %vm3143 = vcmp.le.f32.partialorder %v3142, 0.7853982
    %vm3144 = vcmp.lt.s32.totalorder %v183, 0
    %v3145 = vand.u32 %v183, 2139095040
    %v3146 = vshrl.u32 %v3145, 23
    %v3147 = vsub.s32 %v3146, 127
    %v3148 = vand.u32 2147483647, %v183
    %v3149 = vand.u32 %v3148, 8388607
    %v3150 = vor.u32 %v3149, 8388608
    %v3151 = vsub.s32 0, %v3150
    %v3152 = vadd.s32 %v3147, 1
    %vm3153 = vcmp.gt.s32.totalorder %v3152, 0
    %v3154 = vsel %vm3153, %v3152, 0
    %v3155 = vshrl.u32 %v3154, 5
    %v3156 = vand.u32 %v3154, 31
    %v3157 = vsub.s32 32, %v3156
    %v3158 = vshrl.u32 683565275, %v3157
    %v3159 = vshll.u32 683565275, %v3156
    %v3160 = vshrl.u32 2475754826, %v3157
    %v3161 = vor.u32 %v3159, %v3160
    %v3162 = vshll.u32 2475754826, %v3156
    %v3163 = vshrl.u32 2131351028, %v3157
    %v3164 = vor.u32 %v3162, %v3163
    %v3165 = vshll.u32 2131351028, %v3156
    %v3166 = vshrl.u32 2102212464, %v3157
    %v3167 = vor.u32 %v3165, %v3166
    %v3168 = vshll.u32 2102212464, %v3156
    %v3169 = vshrl.u32 920167782, %v3157
    %v3170 = vor.u32 %v3168, %v3169
    %v3171 = vshll.u32 920167782, %v3156
    %v3172 = vshrl.u32 1326507024, %v3157
    %v3173 = vor.u32 %v3171, %v3172
    %vm3174 = vcmp.lt.s32.totalorder %v3155, 1
    %vm3175 = vcmp.lt.s32.totalorder %v3155, 2
    %vm3176 = vcmp.lt.s32.totalorder %v3155, 3
    %vm3177 = vcmp.lt.s32.totalorder %v3155, 4
    %v3178 = vsel %vm3174, %v3158, %v3161
    %v3179 = vsel %vm3177, %v3167, 2102212464
    %v3180 = vsel %vm3176, %v3164, %v3179
    %v3181 = vsel %vm3175, %v3178, %v3180
    %v3182 = vsel %vm3174, %v3161, %v3164
    %v3183 = vsel %vm3177, %v3170, 920167782
    %v3184 = vsel %vm3176, %v3167, %v3183
    %v3185 = vsel %vm3175, %v3182, %v3184
    %v3186 = vsel %vm3174, %v3164, %v3167
    %v3187 = vsel %vm3177, %v3173, 1326507024
    %v3188 = vsel %vm3176, %v3170, %v3187
    %v3189 = vsel %vm3175, %v3186, %v3188
    %v3190 = vshll.u32 %v3150, 8
    %v3191 = vand.u32 %v3190, 65535
    %v3192 = vshrl.u32 %v3190, 16
    %v3193 = vand.u32 %v3189, 65535
    %v3194 = vshrl.u32 %v3189, 16
    %v3195 = vmul.u32 %v3191, %v3193
    %v3196 = vmul.u32 %v3191, %v3194
    %v3197 = vmul.u32 %v3192, %v3193
    %v3198 = vmul.u32 %v3192, %v3194
    %v3199 = vshll.u32 %v3196, 16
    %v3200 = vshrl.u32 %v3196, 16
    %v3201 = vshll.u32 %v3197, 16
    %v3202 = vshrl.u32 %v3197, 16
    %vm3203 = vc.u32 %v3195, %v3199
    %v3204 = vsel %vm3203, 1, 0
    %v3205 = vadd.s32 %v3195, %v3199
    %v3206 = vadd.s32 %v3198, %v3204
    %vm3207 = vc.u32 %v3205, %v3201
    %v3208 = vsel %vm3207, 1, 0
    %v3209 = vadd.s32 %v3205, %v3201
    %v3210 = vadd.s32 %v3206, %v3208
    %v3211 = vadd.s32 %v3210, %v3200
    %v3212 = vadd.s32 %v3211, %v3202
    %v3213 = vand.u32 %v3190, 65535
    %v3214 = vshrl.u32 %v3190, 16
    %v3215 = vand.u32 %v3185, 65535
    %v3216 = vshrl.u32 %v3185, 16
    %v3217 = vmul.u32 %v3213, %v3215
    %v3218 = vmul.u32 %v3213, %v3216
    %v3219 = vmul.u32 %v3214, %v3215
    %v3220 = vmul.u32 %v3214, %v3216
    %v3221 = vshll.u32 %v3218, 16
    %v3222 = vshrl.u32 %v3218, 16
    %v3223 = vshll.u32 %v3219, 16
    %v3224 = vshrl.u32 %v3219, 16
    %vm3225 = vc.u32 %v3217, %v3221
    %v3226 = vsel %vm3225, 1, 0
    %v3227 = vadd.s32 %v3217, %v3221
    %v3228 = vadd.s32 %v3220, %v3226
    %vm3229 = vc.u32 %v3227, %v3223
    %v3230 = vsel %vm3229, 1, 0
    %v3231 = vadd.s32 %v3227, %v3223
    %v3232 = vadd.s32 %v3228, %v3230
    %v3233 = vadd.s32 %v3232, %v3222
    %v3234 = vadd.s32 %v3233, %v3224
    %v3235 = vmul.u32 %v3190, %v3181
    %v3236 = vadd.s32 %v3212, %v3231
    %vm3237 = vc.u32 %v3212, %v3231
    %v3238 = vadd.s32 %v3234, 1
    %v3239 = vsel %vm3237, %v3238, %v3234
    %v3240 = vadd.s32 %v3235, %v3239
    %v3241 = vadd.s32 %v3240, 536870912
    %v3242 = vshrl.u32 %v3241, 30
    %v3243 = vshll.u32 %v3242, 30
    %v3244 = vsub.s32 %v3240, %v3243
    %vm3245 = vcmp.lt.s32.totalorder %v3244, 0
    %v3246 = vsub.s32 0, %v3244
    %v3247 = vsel %vm3245, %v3246, %v3244
    %v3248 = vclz %v3247
    %v3249 = vsub.s32 %v3248, 2
    %vm3250 = vcmp.gt.s32.totalorder 0, %v3249
    %v3251 = vsel %vm3250, 0, %v3249
    %v3252 = vsub.s32 32, %v3251
    %v3253 = vshll.u32 %v3244, %v3251
    %v3254 = vshrl.u32 %v3236, %v3252
    %v3255 = vor.u32 %v3253, %v3254
    %v3256 = vsub.s32 4294967266, %v3251
    %v3257 = vadd.s32 %v3256, 127
    %v3258 = vshll.u32 %v3257, 23
    %v3259 = vor.u32 4788187, %v3258
    %v3260 = vand.u32 2147483647, %v3259
    %v3262 = vcvt.s32.f32 %v3255
    %v3263 = vmul.f32 %v3262, %v3260
    %v3264 = vxor.u32 %v3263, 2147483648
    %v3265 = vsel %vm3144, %v3264, %v3263
    %v3266 = vsub.s32 4, %v3242
    %v3267 = vsel %vm3144, %v3266, %v3242
    %v3268 = vsel %vm3143, %v183, %v3265
    %v3269 = vsel %vm3143, 0, %v3267
    %v3270 = vmul.f32 %v3268, %v3268
    %v3271 = vmul.f32 %v3270, -0.001358992
    %v3272 = vadd.f32 %v3271, 0.041655596
    %v3273 = vmul.f32 %v3270, %v3272
    %v3274 = vadd.f32 %v3273, -0.4999988
    %v3275 = vmul.f32 %v3270, %v3274
    %v3276 = vadd.f32 1.0, %v3275
    %v3277 = vmul.f32 %v3268, %v3268
    %v3278 = vmul.f32 %v3277, -0.00019511016
    %v3279 = vadd.f32 %v3278, 0.008332121
    %v3280 = vmul.f32 %v3277, %v3279
    %v3281 = vadd.f32 %v3280, -0.16666654
    %v3282 = vmul.f32 %v3277, %v3281
    %v3283 = vadd.f32 %v3282, 1.0
    %v3284 = vmul.f32 %v3283, %v3268
    %vm3285 = vweird.f32 %v183
    %v3286 = vadd.s32 %v3269, 3
    %v3287 = vand.u32 %v3286, 3
    %vm3288 = vcmp.lt.s32.totalorder %v3287, 2
    %vm3289 = vcmp.eq.s32.totalorder %v3287, 0
    %v3290 = vxor.u32 %v3284, 2147483648
    %v3291 = vsel %vm3289, %v3276, %v3290
    %vm3292 = vcmp.eq.s32.totalorder %v3287, 2
    %v3293 = vxor.u32 %v3276, 2147483648
    %v3294 = vsel %vm3292, %v3293, %v3284
    %v3295 = vsel %vm3288, %v3291, %v3294
    %v3296 = vsel %vm3285, nan, %v3295
    %v3297 = vand.u32 2147483647, %v184
    %vm3298 = vcmp.le.f32.partialorder %v3297, 0.7853982
    %vm3299 = vcmp.lt.s32.totalorder %v184, 0
    %v3300 = vand.u32 %v184, 2139095040
    %v3301 = vshrl.u32 %v3300, 23
    %v3302 = vsub.s32 %v3301, 127
    %v3303 = vand.u32 2147483647, %v184
    %v3304 = vand.u32 %v3303, 8388607
    %v3305 = vor.u32 %v3304, 8388608
    %v3306 = vsub.s32 0, %v3305
    %v3307 = vadd.s32 %v3302, 1
    %vm3308 = vcmp.gt.s32.totalorder %v3307, 0
    %v3309 = vsel %vm3308, %v3307, 0
    %v3310 = vshrl.u32 %v3309, 5
    %v3311 = vand.u32 %v3309, 31
    %v3312 = vsub.s32 32, %v3311
    %v3313 = vshrl.u32 683565275, %v3312
    %v3314 = vshll.u32 683565275, %v3311
    %v3315 = vshrl.u32 2475754826, %v3312
    %v3316 = vor.u32 %v3314, %v3315
    %v3317 = vshll.u32 2475754826, %v3311
    %v3318 = vshrl.u32 2131351028, %v3312
    %v3319 = vor.u32 %v3317, %v3318
    %v3320 = vshll.u32 2131351028, %v3311
    %v3321 = vshrl.u32 2102212464, %v3312
    %v3322 = vor.u32 %v3320, %v3321
    %v3323 = vshll.u32 2102212464, %v3311
    %v3324 = vshrl.u32 920167782, %v3312
    %v3325 = vor.u32 %v3323, %v3324
    %v3326 = vshll.u32 920167782, %v3311
    %v3327 = vshrl.u32 1326507024, %v3312
    %v3328 = vor.u32 %v3326, %v3327
    %vm3329 = vcmp.lt.s32.totalorder %v3310, 1
    %vm3330 = vcmp.lt.s32.totalorder %v3310, 2
    %vm3331 = vcmp.lt.s32.totalorder %v3310, 3
    %vm3332 = vcmp.lt.s32.totalorder %v3310, 4
    %v3333 = vsel %vm3329, %v3313, %v3316
    %v3334 = vsel %vm3332, %v3322, 2102212464
    %v3335 = vsel %vm3331, %v3319, %v3334
    %v3336 = vsel %vm3330, %v3333, %v3335
    %v3337 = vsel %vm3329, %v3316, %v3319
    %v3338 = vsel %vm3332, %v3325, 920167782
    %v3339 = vsel %vm3331, %v3322, %v3338
    %v3340 = vsel %vm3330, %v3337, %v3339
    %v3341 = vsel %vm3329, %v3319, %v3322
    %v3342 = vsel %vm3332, %v3328, 1326507024
    %v3343 = vsel %vm3331, %v3325, %v3342
    %v3344 = vsel %vm3330, %v3341, %v3343
    %v3345 = vshll.u32 %v3305, 8
    %v3346 = vand.u32 %v3345, 65535
    %v3347 = vshrl.u32 %v3345, 16
    %v3348 = vand.u32 %v3344, 65535
    %v3349 = vshrl.u32 %v3344, 16
    %v3350 = vmul.u32 %v3346, %v3348
    %v3351 = vmul.u32 %v3346, %v3349
    %v3352 = vmul.u32 %v3347, %v3348
    %v3353 = vmul.u32 %v3347, %v3349
    %v3354 = vshll.u32 %v3351, 16
    %v3355 = vshrl.u32 %v3351, 16
    %v3356 = vshll.u32 %v3352, 16
    %v3357 = vshrl.u32 %v3352, 16
    %vm3358 = vc.u32 %v3350, %v3354
    %v3359 = vsel %vm3358, 1, 0
    %v3360 = vadd.s32 %v3350, %v3354
    %v3361 = vadd.s32 %v3353, %v3359
    %vm3362 = vc.u32 %v3360, %v3356
    %v3363 = vsel %vm3362, 1, 0
    %v3364 = vadd.s32 %v3360, %v3356
    %v3365 = vadd.s32 %v3361, %v3363
    %v3366 = vadd.s32 %v3365, %v3355
    %v3367 = vadd.s32 %v3366, %v3357
    %v3368 = vand.u32 %v3345, 65535
    %v3369 = vshrl.u32 %v3345, 16
    %v3370 = vand.u32 %v3340, 65535
    %v3371 = vshrl.u32 %v3340, 16
    %v3372 = vmul.u32 %v3368, %v3370
    %v3373 = vmul.u32 %v3368, %v3371
    %v3374 = vmul.u32 %v3369, %v3370
    %v3375 = vmul.u32 %v3369, %v3371
    %v3376 = vshll.u32 %v3373, 16
    %v3377 = vshrl.u32 %v3373, 16
    %v3378 = vshll.u32 %v3374, 16
    %v3379 = vshrl.u32 %v3374, 16
    %vm3380 = vc.u32 %v3372, %v3376
    %v3381 = vsel %vm3380, 1, 0
    %v3382 = vadd.s32 %v3372, %v3376
    %v3383 = vadd.s32 %v3375, %v3381
    %vm3384 = vc.u32 %v3382, %v3378
    %v3385 = vsel %vm3384, 1, 0
    %v3386 = vadd.s32 %v3382, %v3378
    %v3387 = vadd.s32 %v3383, %v3385
    %v3388 = vadd.s32 %v3387, %v3377
    %v3389 = vadd.s32 %v3388, %v3379
    %v3390 = vmul.u32 %v3345, %v3336
    %v3391 = vadd.s32 %v3367, %v3386
    %vm3392 = vc.u32 %v3367, %v3386
    %v3393 = vadd.s32 %v3389, 1
    %v3394 = vsel %vm3392, %v3393, %v3389
    %v3395 = vadd.s32 %v3390, %v3394
    %v3396 = vadd.s32 %v3395, 536870912
    %v3397 = vshrl.u32 %v3396, 30
    %v3398 = vshll.u32 %v3397, 30
    %v3399 = vsub.s32 %v3395, %v3398
    %vm3400 = vcmp.lt.s32.totalorder %v3399, 0
    %v3401 = vsub.s32 0, %v3399
    %v3402 = vsel %vm3400, %v3401, %v3399
    %v3403 = vclz %v3402
    %v3404 = vsub.s32 %v3403, 2
    %vm3405 = vcmp.gt.s32.totalorder 0, %v3404
    %v3406 = vsel %vm3405, 0, %v3404
    %v3407 = vsub.s32 32, %v3406
    %v3408 = vshll.u32 %v3399, %v3406
    %v3409 = vshrl.u32 %v3391, %v3407
    %v3410 = vor.u32 %v3408, %v3409
    %v3411 = vsub.s32 4294967266, %v3406
    %v3412 = vadd.s32 %v3411, 127
    %v3413 = vshll.u32 %v3412, 23
    %v3414 = vor.u32 4788187, %v3413
    %v3415 = vand.u32 2147483647, %v3414
    %v3417 = vcvt.s32.f32 %v3410
    %v3418 = vmul.f32 %v3417, %v3415
    %v3419 = vxor.u32 %v3418, 2147483648
    %v3420 = vsel %vm3299, %v3419, %v3418
    %v3421 = vsub.s32 4, %v3397
    %v3422 = vsel %vm3299, %v3421, %v3397
    %v3423 = vsel %vm3298, %v184, %v3420
    %v3424 = vsel %vm3298, 0, %v3422
    %v3425 = vmul.f32 %v3423, %v3423
    %v3426 = vmul.f32 %v3425, -0.001358992
    %v3427 = vadd.f32 %v3426, 0.041655596
    %v3428 = vmul.f32 %v3425, %v3427
    %v3429 = vadd.f32 %v3428, -0.4999988
    %v3430 = vmul.f32 %v3425, %v3429
    %v3431 = vadd.f32 1.0, %v3430
    %v3432 = vmul.f32 %v3423, %v3423
    %v3433 = vmul.f32 %v3432, -0.00019511016
    %v3434 = vadd.f32 %v3433, 0.008332121
    %v3435 = vmul.f32 %v3432, %v3434
    %v3436 = vadd.f32 %v3435, -0.16666654
    %v3437 = vmul.f32 %v3432, %v3436
    %v3438 = vadd.f32 %v3437, 1.0
    %v3439 = vmul.f32 %v3438, %v3423
    %vm3440 = vweird.f32 %v184
    %v3441 = vadd.s32 %v3424, 3
    %v3442 = vand.u32 %v3441, 3
    %vm3443 = vcmp.lt.s32.totalorder %v3442, 2
    %vm3444 = vcmp.eq.s32.totalorder %v3442, 0
    %v3445 = vxor.u32 %v3439, 2147483648
    %v3446 = vsel %vm3444, %v3431, %v3445
    %vm3447 = vcmp.eq.s32.totalorder %v3442, 2
    %v3448 = vxor.u32 %v3431, 2147483648
    %v3449 = vsel %vm3447, %v3448, %v3439
    %v3450 = vsel %vm3443, %v3446, %v3449
    %v3451 = vsel %vm3440, nan, %v3450
    %v3452 = vand.u32 2147483647, %v185
    %vm3453 = vcmp.le.f32.partialorder %v3452, 0.7853982
    %vm3454 = vcmp.lt.s32.totalorder %v185, 0
    %v3455 = vand.u32 %v185, 2139095040
    %v3456 = vshrl.u32 %v3455, 23
    %v3457 = vsub.s32 %v3456, 127
    %v3458 = vand.u32 2147483647, %v185
    %v3459 = vand.u32 %v3458, 8388607
    %v3460 = vor.u32 %v3459, 8388608
    %v3461 = vsub.s32 0, %v3460
    %v3462 = vadd.s32 %v3457, 1
    %vm3463 = vcmp.gt.s32.totalorder %v3462, 0
    %v3464 = vsel %vm3463, %v3462, 0
    %v3465 = vshrl.u32 %v3464, 5
    %v3466 = vand.u32 %v3464, 31
    %v3467 = vsub.s32 32, %v3466
    %v3468 = vshrl.u32 683565275, %v3467
    %v3469 = vshll.u32 683565275, %v3466
    %v3470 = vshrl.u32 2475754826, %v3467
    %v3471 = vor.u32 %v3469, %v3470
    %v3472 = vshll.u32 2475754826, %v3466
    %v3473 = vshrl.u32 2131351028, %v3467
    %v3474 = vor.u32 %v3472, %v3473
    %v3475 = vshll.u32 2131351028, %v3466
    %v3476 = vshrl.u32 2102212464, %v3467
    %v3477 = vor.u32 %v3475, %v3476
    %v3478 = vshll.u32 2102212464, %v3466
    %v3479 = vshrl.u32 920167782, %v3467
    %v3480 = vor.u32 %v3478, %v3479
    %v3481 = vshll.u32 920167782, %v3466
    %v3482 = vshrl.u32 1326507024, %v3467
    %v3483 = vor.u32 %v3481, %v3482
    %vm3484 = vcmp.lt.s32.totalorder %v3465, 1
    %vm3485 = vcmp.lt.s32.totalorder %v3465, 2
    %vm3486 = vcmp.lt.s32.totalorder %v3465, 3
    %vm3487 = vcmp.lt.s32.totalorder %v3465, 4
    %v3488 = vsel %vm3484, %v3468, %v3471
    %v3489 = vsel %vm3487, %v3477, 2102212464
    %v3490 = vsel %vm3486, %v3474, %v3489
    %v3491 = vsel %vm3485, %v3488, %v3490
    %v3492 = vsel %vm3484, %v3471, %v3474
    %v3493 = vsel %vm3487, %v3480, 920167782
    %v3494 = vsel %vm3486, %v3477, %v3493
    %v3495 = vsel %vm3485, %v3492, %v3494
    %v3496 = vsel %vm3484, %v3474, %v3477
    %v3497 = vsel %vm3487, %v3483, 1326507024
    %v3498 = vsel %vm3486, %v3480, %v3497
    %v3499 = vsel %vm3485, %v3496, %v3498
    %v3500 = vshll.u32 %v3460, 8
    %v3501 = vand.u32 %v3500, 65535
    %v3502 = vshrl.u32 %v3500, 16
    %v3503 = vand.u32 %v3499, 65535
    %v3504 = vshrl.u32 %v3499, 16
    %v3505 = vmul.u32 %v3501, %v3503
    %v3506 = vmul.u32 %v3501, %v3504
    %v3507 = vmul.u32 %v3502, %v3503
    %v3508 = vmul.u32 %v3502, %v3504
    %v3509 = vshll.u32 %v3506, 16
    %v3510 = vshrl.u32 %v3506, 16
    %v3511 = vshll.u32 %v3507, 16
    %v3512 = vshrl.u32 %v3507, 16
    %vm3513 = vc.u32 %v3505, %v3509
    %v3514 = vsel %vm3513, 1, 0
    %v3515 = vadd.s32 %v3505, %v3509
    %v3516 = vadd.s32 %v3508, %v3514
    %vm3517 = vc.u32 %v3515, %v3511
    %v3518 = vsel %vm3517, 1, 0
    %v3519 = vadd.s32 %v3515, %v3511
    %v3520 = vadd.s32 %v3516, %v3518
    %v3521 = vadd.s32 %v3520, %v3510
    %v3522 = vadd.s32 %v3521, %v3512
    %v3523 = vand.u32 %v3500, 65535
    %v3524 = vshrl.u32 %v3500, 16
    %v3525 = vand.u32 %v3495, 65535
    %v3526 = vshrl.u32 %v3495, 16
    %v3527 = vmul.u32 %v3523, %v3525
    %v3528 = vmul.u32 %v3523, %v3526
    %v3529 = vmul.u32 %v3524, %v3525
    %v3530 = vmul.u32 %v3524, %v3526
    %v3531 = vshll.u32 %v3528, 16
    %v3532 = vshrl.u32 %v3528, 16
    %v3533 = vshll.u32 %v3529, 16
    %v3534 = vshrl.u32 %v3529, 16
    %vm3535 = vc.u32 %v3527, %v3531
    %v3536 = vsel %vm3535, 1, 0
    %v3537 = vadd.s32 %v3527, %v3531
    %v3538 = vadd.s32 %v3530, %v3536
    %vm3539 = vc.u32 %v3537, %v3533
    %v3540 = vsel %vm3539, 1, 0
    %v3541 = vadd.s32 %v3537, %v3533
    %v3542 = vadd.s32 %v3538, %v3540
    %v3543 = vadd.s32 %v3542, %v3532
    %v3544 = vadd.s32 %v3543, %v3534
    %v3545 = vmul.u32 %v3500, %v3491
    %v3546 = vadd.s32 %v3522, %v3541
    %vm3547 = vc.u32 %v3522, %v3541
    %v3548 = vadd.s32 %v3544, 1
    %v3549 = vsel %vm3547, %v3548, %v3544
    %v3550 = vadd.s32 %v3545, %v3549
    %v3551 = vadd.s32 %v3550, 536870912
    %v3552 = vshrl.u32 %v3551, 30
    %v3553 = vshll.u32 %v3552, 30
    %v3554 = vsub.s32 %v3550, %v3553
    %vm3555 = vcmp.lt.s32.totalorder %v3554, 0
    %v3556 = vsub.s32 0, %v3554
    %v3557 = vsel %vm3555, %v3556, %v3554
    %v3558 = vclz %v3557
    %v3559 = vsub.s32 %v3558, 2
    %vm3560 = vcmp.gt.s32.totalorder 0, %v3559
    %v3561 = vsel %vm3560, 0, %v3559
    %v3562 = vsub.s32 32, %v3561
    %v3563 = vshll.u32 %v3554, %v3561
    %v3564 = vshrl.u32 %v3546, %v3562
    %v3565 = vor.u32 %v3563, %v3564
    %v3566 = vsub.s32 4294967266, %v3561
    %v3567 = vadd.s32 %v3566, 127
    %v3568 = vshll.u32 %v3567, 23
    %v3569 = vor.u32 4788187, %v3568
    %v3570 = vand.u32 2147483647, %v3569
    %v3572 = vcvt.s32.f32 %v3565
    %v3573 = vmul.f32 %v3572, %v3570
    %v3574 = vxor.u32 %v3573, 2147483648
    %v3575 = vsel %vm3454, %v3574, %v3573
    %v3576 = vsub.s32 4, %v3552
    %v3577 = vsel %vm3454, %v3576, %v3552
    %v3578 = vsel %vm3453, %v185, %v3575
    %v3579 = vsel %vm3453, 0, %v3577
    %v3580 = vmul.f32 %v3578, %v3578
    %v3581 = vmul.f32 %v3580, -0.001358992
    %v3582 = vadd.f32 %v3581, 0.041655596
    %v3583 = vmul.f32 %v3580, %v3582
    %v3584 = vadd.f32 %v3583, -0.4999988
    %v3585 = vmul.f32 %v3580, %v3584
    %v3586 = vadd.f32 1.0, %v3585
    %v3587 = vmul.f32 %v3578, %v3578
    %v3588 = vmul.f32 %v3587, -0.00019511016
    %v3589 = vadd.f32 %v3588, 0.008332121
    %v3590 = vmul.f32 %v3587, %v3589
    %v3591 = vadd.f32 %v3590, -0.16666654
    %v3592 = vmul.f32 %v3587, %v3591
    %v3593 = vadd.f32 %v3592, 1.0
    %v3594 = vmul.f32 %v3593, %v3578
    %vm3595 = vweird.f32 %v185
    %v3596 = vadd.s32 %v3579, 3
    %v3597 = vand.u32 %v3596, 3
    %vm3598 = vcmp.lt.s32.totalorder %v3597, 2
    %vm3599 = vcmp.eq.s32.totalorder %v3597, 0
    %v3600 = vxor.u32 %v3594, 2147483648
    %v3601 = vsel %vm3599, %v3586, %v3600
    %vm3602 = vcmp.eq.s32.totalorder %v3597, 2
    %v3603 = vxor.u32 %v3586, 2147483648
    %v3604 = vsel %vm3602, %v3603, %v3594
    %v3605 = vsel %vm3598, %v3601, %v3604
    %v3606 = vsel %vm3595, nan, %v3605
    %v3607 = vand.u32 2147483647, %v186
    %vm3608 = vcmp.le.f32.partialorder %v3607, 0.7853982
    %vm3609 = vcmp.lt.s32.totalorder %v186, 0
    %v3610 = vand.u32 %v186, 2139095040
    %v3611 = vshrl.u32 %v3610, 23
    %v3612 = vsub.s32 %v3611, 127
    %v3613 = vand.u32 2147483647, %v186
    %v3614 = vand.u32 %v3613, 8388607
    %v3615 = vor.u32 %v3614, 8388608
    %v3616 = vsub.s32 0, %v3615
    %v3617 = vadd.s32 %v3612, 1
    %vm3618 = vcmp.gt.s32.totalorder %v3617, 0
    %v3619 = vsel %vm3618, %v3617, 0
    %v3620 = vshrl.u32 %v3619, 5
    %v3621 = vand.u32 %v3619, 31
    %v3622 = vsub.s32 32, %v3621
    %v3623 = vshrl.u32 683565275, %v3622
    %v3624 = vshll.u32 683565275, %v3621
    %v3625 = vshrl.u32 2475754826, %v3622
    %v3626 = vor.u32 %v3624, %v3625
    %v3627 = vshll.u32 2475754826, %v3621
    %v3628 = vshrl.u32 2131351028, %v3622
    %v3629 = vor.u32 %v3627, %v3628
    %v3630 = vshll.u32 2131351028, %v3621
    %v3631 = vshrl.u32 2102212464, %v3622
    %v3632 = vor.u32 %v3630, %v3631
    %v3633 = vshll.u32 2102212464, %v3621
    %v3634 = vshrl.u32 920167782, %v3622
    %v3635 = vor.u32 %v3633, %v3634
    %v3636 = vshll.u32 920167782, %v3621
    %v3637 = vshrl.u32 1326507024, %v3622
    %v3638 = vor.u32 %v3636, %v3637
    %vm3639 = vcmp.lt.s32.totalorder %v3620, 1
    %vm3640 = vcmp.lt.s32.totalorder %v3620, 2
    %vm3641 = vcmp.lt.s32.totalorder %v3620, 3
    %vm3642 = vcmp.lt.s32.totalorder %v3620, 4
    %v3643 = vsel %vm3639, %v3623, %v3626
    %v3644 = vsel %vm3642, %v3632, 2102212464
    %v3645 = vsel %vm3641, %v3629, %v3644
    %v3646 = vsel %vm3640, %v3643, %v3645
    %v3647 = vsel %vm3639, %v3626, %v3629
    %v3648 = vsel %vm3642, %v3635, 920167782
    %v3649 = vsel %vm3641, %v3632, %v3648
    %v3650 = vsel %vm3640, %v3647, %v3649
    %v3651 = vsel %vm3639, %v3629, %v3632
    %v3652 = vsel %vm3642, %v3638, 1326507024
    %v3653 = vsel %vm3641, %v3635, %v3652
    %v3654 = vsel %vm3640, %v3651, %v3653
    %v3655 = vshll.u32 %v3615, 8
    %v3656 = vand.u32 %v3655, 65535
    %v3657 = vshrl.u32 %v3655, 16
    %v3658 = vand.u32 %v3654, 65535
    %v3659 = vshrl.u32 %v3654, 16
    %v3660 = vmul.u32 %v3656, %v3658
    %v3661 = vmul.u32 %v3656, %v3659
    %v3662 = vmul.u32 %v3657, %v3658
    %v3663 = vmul.u32 %v3657, %v3659
    %v3664 = vshll.u32 %v3661, 16
    %v3665 = vshrl.u32 %v3661, 16
    %v3666 = vshll.u32 %v3662, 16
    %v3667 = vshrl.u32 %v3662, 16
    %vm3668 = vc.u32 %v3660, %v3664
    %v3669 = vsel %vm3668, 1, 0
    %v3670 = vadd.s32 %v3660, %v3664
    %v3671 = vadd.s32 %v3663, %v3669
    %vm3672 = vc.u32 %v3670, %v3666
    %v3673 = vsel %vm3672, 1, 0
    %v3674 = vadd.s32 %v3670, %v3666
    %v3675 = vadd.s32 %v3671, %v3673
    %v3676 = vadd.s32 %v3675, %v3665
    %v3677 = vadd.s32 %v3676, %v3667
    %v3678 = vand.u32 %v3655, 65535
    %v3679 = vshrl.u32 %v3655, 16
    %v3680 = vand.u32 %v3650, 65535
    %v3681 = vshrl.u32 %v3650, 16
    %v3682 = vmul.u32 %v3678, %v3680
    %v3683 = vmul.u32 %v3678, %v3681
    %v3684 = vmul.u32 %v3679, %v3680
    %v3685 = vmul.u32 %v3679, %v3681
    %v3686 = vshll.u32 %v3683, 16
    %v3687 = vshrl.u32 %v3683, 16
    %v3688 = vshll.u32 %v3684, 16
    %v3689 = vshrl.u32 %v3684, 16
    %vm3690 = vc.u32 %v3682, %v3686
    %v3691 = vsel %vm3690, 1, 0
    %v3692 = vadd.s32 %v3682, %v3686
    %v3693 = vadd.s32 %v3685, %v3691
    %vm3694 = vc.u32 %v3692, %v3688
    %v3695 = vsel %vm3694, 1, 0
    %v3696 = vadd.s32 %v3692, %v3688
    %v3697 = vadd.s32 %v3693, %v3695
    %v3698 = vadd.s32 %v3697, %v3687
    %v3699 = vadd.s32 %v3698, %v3689
    %v3700 = vmul.u32 %v3655, %v3646
    %v3701 = vadd.s32 %v3677, %v3696
    %vm3702 = vc.u32 %v3677, %v3696
    %v3703 = vadd.s32 %v3699, 1
    %v3704 = vsel %vm3702, %v3703, %v3699
    %v3705 = vadd.s32 %v3700, %v3704
    %v3706 = vadd.s32 %v3705, 536870912
    %v3707 = vshrl.u32 %v3706, 30
    %v3708 = vshll.u32 %v3707, 30
    %v3709 = vsub.s32 %v3705, %v3708
    %vm3710 = vcmp.lt.s32.totalorder %v3709, 0
    %v3711 = vsub.s32 0, %v3709
    %v3712 = vsel %vm3710, %v3711, %v3709
    %v3713 = vclz %v3712
    %v3714 = vsub.s32 %v3713, 2
    %vm3715 = vcmp.gt.s32.totalorder 0, %v3714
    %v3716 = vsel %vm3715, 0, %v3714
    %v3717 = vsub.s32 32, %v3716
    %v3718 = vshll.u32 %v3709, %v3716
    %v3719 = vshrl.u32 %v3701, %v3717
    %v3720 = vor.u32 %v3718, %v3719
    %v3721 = vsub.s32 4294967266, %v3716
    %v3722 = vadd.s32 %v3721, 127
    %v3723 = vshll.u32 %v3722, 23
    %v3724 = vor.u32 4788187, %v3723
    %v3725 = vand.u32 2147483647, %v3724
    %v3727 = vcvt.s32.f32 %v3720
    %v3728 = vmul.f32 %v3727, %v3725
    %v3729 = vxor.u32 %v3728, 2147483648
    %v3730 = vsel %vm3609, %v3729, %v3728
    %v3731 = vsub.s32 4, %v3707
    %v3732 = vsel %vm3609, %v3731, %v3707
    %v3733 = vsel %vm3608, %v186, %v3730
    %v3734 = vsel %vm3608, 0, %v3732
    %v3735 = vmul.f32 %v3733, %v3733
    %v3736 = vmul.f32 %v3735, -0.001358992
    %v3737 = vadd.f32 %v3736, 0.041655596
    %v3738 = vmul.f32 %v3735, %v3737
    %v3739 = vadd.f32 %v3738, -0.4999988
    %v3740 = vmul.f32 %v3735, %v3739
    %v3741 = vadd.f32 1.0, %v3740
    %v3742 = vmul.f32 %v3733, %v3733
    %v3743 = vmul.f32 %v3742, -0.00019511016
    %v3744 = vadd.f32 %v3743, 0.008332121
    %v3745 = vmul.f32 %v3742, %v3744
    %v3746 = vadd.f32 %v3745, -0.16666654
    %v3747 = vmul.f32 %v3742, %v3746
    %v3748 = vadd.f32 %v3747, 1.0
    %v3749 = vmul.f32 %v3748, %v3733
    %vm3750 = vweird.f32 %v186
    %v3751 = vadd.s32 %v3734, 3
    %v3752 = vand.u32 %v3751, 3
    %vm3753 = vcmp.lt.s32.totalorder %v3752, 2
    %vm3754 = vcmp.eq.s32.totalorder %v3752, 0
    %v3755 = vxor.u32 %v3749, 2147483648
    %v3756 = vsel %vm3754, %v3741, %v3755
    %vm3757 = vcmp.eq.s32.totalorder %v3752, 2
    %v3758 = vxor.u32 %v3741, 2147483648
    %v3759 = vsel %vm3757, %v3758, %v3749
    %v3760 = vsel %vm3753, %v3756, %v3759
    %v3761 = vsel %vm3750, nan, %v3760
    %v3762 = vand.u32 2147483647, %v187
    %vm3763 = vcmp.le.f32.partialorder %v3762, 0.7853982
    %vm3764 = vcmp.lt.s32.totalorder %v187, 0
    %v3765 = vand.u32 %v187, 2139095040
    %v3766 = vshrl.u32 %v3765, 23
    %v3767 = vsub.s32 %v3766, 127
    %v3768 = vand.u32 2147483647, %v187
    %v3769 = vand.u32 %v3768, 8388607
    %v3770 = vor.u32 %v3769, 8388608
    %v3771 = vsub.s32 0, %v3770
    %v3772 = vadd.s32 %v3767, 1
    %vm3773 = vcmp.gt.s32.totalorder %v3772, 0
    %v3774 = vsel %vm3773, %v3772, 0
    %v3775 = vshrl.u32 %v3774, 5
    %v3776 = vand.u32 %v3774, 31
    %v3777 = vsub.s32 32, %v3776
    %v3778 = vshrl.u32 683565275, %v3777
    %v3779 = vshll.u32 683565275, %v3776
    %v3780 = vshrl.u32 2475754826, %v3777
    %v3781 = vor.u32 %v3779, %v3780
    %v3782 = vshll.u32 2475754826, %v3776
    %v3783 = vshrl.u32 2131351028, %v3777
    %v3784 = vor.u32 %v3782, %v3783
    %v3785 = vshll.u32 2131351028, %v3776
    %v3786 = vshrl.u32 2102212464, %v3777
    %v3787 = vor.u32 %v3785, %v3786
    %v3788 = vshll.u32 2102212464, %v3776
    %v3789 = vshrl.u32 920167782, %v3777
    %v3790 = vor.u32 %v3788, %v3789
    %v3791 = vshll.u32 920167782, %v3776
    %v3792 = vshrl.u32 1326507024, %v3777
    %v3793 = vor.u32 %v3791, %v3792
    %vm3794 = vcmp.lt.s32.totalorder %v3775, 1
    %vm3795 = vcmp.lt.s32.totalorder %v3775, 2
    %vm3796 = vcmp.lt.s32.totalorder %v3775, 3
    %vm3797 = vcmp.lt.s32.totalorder %v3775, 4
    %v3798 = vsel %vm3794, %v3778, %v3781
    %v3799 = vsel %vm3797, %v3787, 2102212464
    %v3800 = vsel %vm3796, %v3784, %v3799
    %v3801 = vsel %vm3795, %v3798, %v3800
    %v3802 = vsel %vm3794, %v3781, %v3784
    %v3803 = vsel %vm3797, %v3790, 920167782
    %v3804 = vsel %vm3796, %v3787, %v3803
    %v3805 = vsel %vm3795, %v3802, %v3804
    %v3806 = vsel %vm3794, %v3784, %v3787
    %v3807 = vsel %vm3797, %v3793, 1326507024
    %v3808 = vsel %vm3796, %v3790, %v3807
    %v3809 = vsel %vm3795, %v3806, %v3808
    %v3810 = vshll.u32 %v3770, 8
    %v3811 = vand.u32 %v3810, 65535
    %v3812 = vshrl.u32 %v3810, 16
    %v3813 = vand.u32 %v3809, 65535
    %v3814 = vshrl.u32 %v3809, 16
    %v3815 = vmul.u32 %v3811, %v3813
    %v3816 = vmul.u32 %v3811, %v3814
    %v3817 = vmul.u32 %v3812, %v3813
    %v3818 = vmul.u32 %v3812, %v3814
    %v3819 = vshll.u32 %v3816, 16
    %v3820 = vshrl.u32 %v3816, 16
    %v3821 = vshll.u32 %v3817, 16
    %v3822 = vshrl.u32 %v3817, 16
    %vm3823 = vc.u32 %v3815, %v3819
    %v3824 = vsel %vm3823, 1, 0
    %v3825 = vadd.s32 %v3815, %v3819
    %v3826 = vadd.s32 %v3818, %v3824
    %vm3827 = vc.u32 %v3825, %v3821
    %v3828 = vsel %vm3827, 1, 0
    %v3829 = vadd.s32 %v3825, %v3821
    %v3830 = vadd.s32 %v3826, %v3828
    %v3831 = vadd.s32 %v3830, %v3820
    %v3832 = vadd.s32 %v3831, %v3822
    %v3833 = vand.u32 %v3810, 65535
    %v3834 = vshrl.u32 %v3810, 16
    %v3835 = vand.u32 %v3805, 65535
    %v3836 = vshrl.u32 %v3805, 16
    %v3837 = vmul.u32 %v3833, %v3835
    %v3838 = vmul.u32 %v3833, %v3836
    %v3839 = vmul.u32 %v3834, %v3835
    %v3840 = vmul.u32 %v3834, %v3836
    %v3841 = vshll.u32 %v3838, 16
    %v3842 = vshrl.u32 %v3838, 16
    %v3843 = vshll.u32 %v3839, 16
    %v3844 = vshrl.u32 %v3839, 16
    %vm3845 = vc.u32 %v3837, %v3841
    %v3846 = vsel %vm3845, 1, 0
    %v3847 = vadd.s32 %v3837, %v3841
    %v3848 = vadd.s32 %v3840, %v3846
    %vm3849 = vc.u32 %v3847, %v3843
    %v3850 = vsel %vm3849, 1, 0
    %v3851 = vadd.s32 %v3847, %v3843
    %v3852 = vadd.s32 %v3848, %v3850
    %v3853 = vadd.s32 %v3852, %v3842
    %v3854 = vadd.s32 %v3853, %v3844
    %v3855 = vmul.u32 %v3810, %v3801
    %v3856 = vadd.s32 %v3832, %v3851
    %vm3857 = vc.u32 %v3832, %v3851
    %v3858 = vadd.s32 %v3854, 1
    %v3859 = vsel %vm3857, %v3858, %v3854
    %v3860 = vadd.s32 %v3855, %v3859
    %v3861 = vadd.s32 %v3860, 536870912
    %v3862 = vshrl.u32 %v3861, 30
    %v3863 = vshll.u32 %v3862, 30
    %v3864 = vsub.s32 %v3860, %v3863
    %vm3865 = vcmp.lt.s32.totalorder %v3864, 0
    %v3866 = vsub.s32 0, %v3864
    %v3867 = vsel %vm3865, %v3866, %v3864
    %v3868 = vclz %v3867
    %v3869 = vsub.s32 %v3868, 2
    %vm3870 = vcmp.gt.s32.totalorder 0, %v3869
    %v3871 = vsel %vm3870, 0, %v3869
    %v3872 = vsub.s32 32, %v3871
    %v3873 = vshll.u32 %v3864, %v3871
    %v3874 = vshrl.u32 %v3856, %v3872
    %v3875 = vor.u32 %v3873, %v3874
    %v3876 = vsub.s32 4294967266, %v3871
    %v3877 = vadd.s32 %v3876, 127
    %v3878 = vshll.u32 %v3877, 23
    %v3879 = vor.u32 4788187, %v3878
    %v3880 = vand.u32 2147483647, %v3879
    %v3882 = vcvt.s32.f32 %v3875
    %v3883 = vmul.f32 %v3882, %v3880
    %v3884 = vxor.u32 %v3883, 2147483648
    %v3885 = vsel %vm3764, %v3884, %v3883
    %v3886 = vsub.s32 4, %v3862
    %v3887 = vsel %vm3764, %v3886, %v3862
    %v3888 = vsel %vm3763, %v187, %v3885
    %v3889 = vsel %vm3763, 0, %v3887
    %v3890 = vmul.f32 %v3888, %v3888
    %v3891 = vmul.f32 %v3890, -0.001358992
    %v3892 = vadd.f32 %v3891, 0.041655596
    %v3893 = vmul.f32 %v3890, %v3892
    %v3894 = vadd.f32 %v3893, -0.4999988
    %v3895 = vmul.f32 %v3890, %v3894
    %v3896 = vadd.f32 1.0, %v3895
    %v3897 = vmul.f32 %v3888, %v3888
    %v3898 = vmul.f32 %v3897, -0.00019511016
    %v3899 = vadd.f32 %v3898, 0.008332121
    %v3900 = vmul.f32 %v3897, %v3899
    %v3901 = vadd.f32 %v3900, -0.16666654
    %v3902 = vmul.f32 %v3897, %v3901
    %v3903 = vadd.f32 %v3902, 1.0
    %v3904 = vmul.f32 %v3903, %v3888
    %vm3905 = vweird.f32 %v187
    %v3906 = vadd.s32 %v3889, 3
    %v3907 = vand.u32 %v3906, 3
    %vm3908 = vcmp.lt.s32.totalorder %v3907, 2
    %vm3909 = vcmp.eq.s32.totalorder %v3907, 0
    %v3910 = vxor.u32 %v3904, 2147483648
    %v3911 = vsel %vm3909, %v3896, %v3910
    %vm3912 = vcmp.eq.s32.totalorder %v3907, 2
    %v3913 = vxor.u32 %v3896, 2147483648
    %v3914 = vsel %vm3912, %v3913, %v3904
    %v3915 = vsel %vm3908, %v3911, %v3914
    %v3916 = vsel %vm3905, nan, %v3915
    %v3917 = vand.u32 2147483647, %v188
    %vm3918 = vcmp.le.f32.partialorder %v3917, 0.7853982
    %vm3919 = vcmp.lt.s32.totalorder %v188, 0
    %v3920 = vand.u32 %v188, 2139095040
    %v3921 = vshrl.u32 %v3920, 23
    %v3922 = vsub.s32 %v3921, 127
    %v3923 = vand.u32 2147483647, %v188
    %v3924 = vand.u32 %v3923, 8388607
    %v3925 = vor.u32 %v3924, 8388608
    %v3926 = vsub.s32 0, %v3925
    %v3927 = vadd.s32 %v3922, 1
    %vm3928 = vcmp.gt.s32.totalorder %v3927, 0
    %v3929 = vsel %vm3928, %v3927, 0
    %v3930 = vshrl.u32 %v3929, 5
    %v3931 = vand.u32 %v3929, 31
    %v3932 = vsub.s32 32, %v3931
    %v3933 = vshrl.u32 683565275, %v3932
    %v3934 = vshll.u32 683565275, %v3931
    %v3935 = vshrl.u32 2475754826, %v3932
    %v3936 = vor.u32 %v3934, %v3935
    %v3937 = vshll.u32 2475754826, %v3931
    %v3938 = vshrl.u32 2131351028, %v3932
    %v3939 = vor.u32 %v3937, %v3938
    %v3940 = vshll.u32 2131351028, %v3931
    %v3941 = vshrl.u32 2102212464, %v3932
    %v3942 = vor.u32 %v3940, %v3941
    %v3943 = vshll.u32 2102212464, %v3931
    %v3944 = vshrl.u32 920167782, %v3932
    %v3945 = vor.u32 %v3943, %v3944
    %v3946 = vshll.u32 920167782, %v3931
    %v3947 = vshrl.u32 1326507024, %v3932
    %v3948 = vor.u32 %v3946, %v3947
    %vm3949 = vcmp.lt.s32.totalorder %v3930, 1
    %vm3950 = vcmp.lt.s32.totalorder %v3930, 2
    %vm3951 = vcmp.lt.s32.totalorder %v3930, 3
    %vm3952 = vcmp.lt.s32.totalorder %v3930, 4
    %v3953 = vsel %vm3949, %v3933, %v3936
    %v3954 = vsel %vm3952, %v3942, 2102212464
    %v3955 = vsel %vm3951, %v3939, %v3954
    %v3956 = vsel %vm3950, %v3953, %v3955
    %v3957 = vsel %vm3949, %v3936, %v3939
    %v3958 = vsel %vm3952, %v3945, 920167782
    %v3959 = vsel %vm3951, %v3942, %v3958
    %v3960 = vsel %vm3950, %v3957, %v3959
    %v3961 = vsel %vm3949, %v3939, %v3942
    %v3962 = vsel %vm3952, %v3948, 1326507024
    %v3963 = vsel %vm3951, %v3945, %v3962
    %v3964 = vsel %vm3950, %v3961, %v3963
    %v3965 = vshll.u32 %v3925, 8
    %v3966 = vand.u32 %v3965, 65535
    %v3967 = vshrl.u32 %v3965, 16
    %v3968 = vand.u32 %v3964, 65535
    %v3969 = vshrl.u32 %v3964, 16
    %v3970 = vmul.u32 %v3966, %v3968
    %v3971 = vmul.u32 %v3966, %v3969
    %v3972 = vmul.u32 %v3967, %v3968
    %v3973 = vmul.u32 %v3967, %v3969
    %v3974 = vshll.u32 %v3971, 16
    %v3975 = vshrl.u32 %v3971, 16
    %v3976 = vshll.u32 %v3972, 16
    %v3977 = vshrl.u32 %v3972, 16
    %vm3978 = vc.u32 %v3970, %v3974
    %v3979 = vsel %vm3978, 1, 0
    %v3980 = vadd.s32 %v3970, %v3974
    %v3981 = vadd.s32 %v3973, %v3979
    %vm3982 = vc.u32 %v3980, %v3976
    %v3983 = vsel %vm3982, 1, 0
    %v3984 = vadd.s32 %v3980, %v3976
    %v3985 = vadd.s32 %v3981, %v3983
    %v3986 = vadd.s32 %v3985, %v3975
    %v3987 = vadd.s32 %v3986, %v3977
    %v3988 = vand.u32 %v3965, 65535
    %v3989 = vshrl.u32 %v3965, 16
    %v3990 = vand.u32 %v3960, 65535
    %v3991 = vshrl.u32 %v3960, 16
    %v3992 = vmul.u32 %v3988, %v3990
    %v3993 = vmul.u32 %v3988, %v3991
    %v3994 = vmul.u32 %v3989, %v3990
    %v3995 = vmul.u32 %v3989, %v3991
    %v3996 = vshll.u32 %v3993, 16
    %v3997 = vshrl.u32 %v3993, 16
    %v3998 = vshll.u32 %v3994, 16
    %v3999 = vshrl.u32 %v3994, 16
    %vm4000 = vc.u32 %v3992, %v3996
    %v4001 = vsel %vm4000, 1, 0
    %v4002 = vadd.s32 %v3992, %v3996
    %v4003 = vadd.s32 %v3995, %v4001
    %vm4004 = vc.u32 %v4002, %v3998
    %v4005 = vsel %vm4004, 1, 0
    %v4006 = vadd.s32 %v4002, %v3998
    %v4007 = vadd.s32 %v4003, %v4005
    %v4008 = vadd.s32 %v4007, %v3997
    %v4009 = vadd.s32 %v4008, %v3999
    %v4010 = vmul.u32 %v3965, %v3956
    %v4011 = vadd.s32 %v3987, %v4006
    %vm4012 = vc.u32 %v3987, %v4006
    %v4013 = vadd.s32 %v4009, 1
    %v4014 = vsel %vm4012, %v4013, %v4009
    %v4015 = vadd.s32 %v4010, %v4014
    %v4016 = vadd.s32 %v4015, 536870912
    %v4017 = vshrl.u32 %v4016, 30
    %v4018 = vshll.u32 %v4017, 30
    %v4019 = vsub.s32 %v4015, %v4018
    %vm4020 = vcmp.lt.s32.totalorder %v4019, 0
    %v4021 = vsub.s32 0, %v4019
    %v4022 = vsel %vm4020, %v4021, %v4019
    %v4023 = vclz %v4022
    %v4024 = vsub.s32 %v4023, 2
    %vm4025 = vcmp.gt.s32.totalorder 0, %v4024
    %v4026 = vsel %vm4025, 0, %v4024
    %v4027 = vsub.s32 32, %v4026
    %v4028 = vshll.u32 %v4019, %v4026
    %v4029 = vshrl.u32 %v4011, %v4027
    %v4030 = vor.u32 %v4028, %v4029
    %v4031 = vsub.s32 4294967266, %v4026
    %v4032 = vadd.s32 %v4031, 127
    %v4033 = vshll.u32 %v4032, 23
    %v4034 = vor.u32 4788187, %v4033
    %v4035 = vand.u32 2147483647, %v4034
    %v4037 = vcvt.s32.f32 %v4030
    %v4038 = vmul.f32 %v4037, %v4035
    %v4039 = vxor.u32 %v4038, 2147483648
    %v4040 = vsel %vm3919, %v4039, %v4038
    %v4041 = vsub.s32 4, %v4017
    %v4042 = vsel %vm3919, %v4041, %v4017
    %v4043 = vsel %vm3918, %v188, %v4040
    %v4044 = vsel %vm3918, 0, %v4042
    %v4045 = vmul.f32 %v4043, %v4043
    %v4046 = vmul.f32 %v4045, -0.001358992
    %v4047 = vadd.f32 %v4046, 0.041655596
    %v4048 = vmul.f32 %v4045, %v4047
    %v4049 = vadd.f32 %v4048, -0.4999988
    %v4050 = vmul.f32 %v4045, %v4049
    %v4051 = vadd.f32 1.0, %v4050
    %v4052 = vmul.f32 %v4043, %v4043
    %v4053 = vmul.f32 %v4052, -0.00019511016
    %v4054 = vadd.f32 %v4053, 0.008332121
    %v4055 = vmul.f32 %v4052, %v4054
    %v4056 = vadd.f32 %v4055, -0.16666654
    %v4057 = vmul.f32 %v4052, %v4056
    %v4058 = vadd.f32 %v4057, 1.0
    %v4059 = vmul.f32 %v4058, %v4043
    %vm4060 = vweird.f32 %v188
    %v4061 = vadd.s32 %v4044, 3
    %v4062 = vand.u32 %v4061, 3
    %vm4063 = vcmp.lt.s32.totalorder %v4062, 2
    %vm4064 = vcmp.eq.s32.totalorder %v4062, 0
    %v4065 = vxor.u32 %v4059, 2147483648
    %v4066 = vsel %vm4064, %v4051, %v4065
    %vm4067 = vcmp.eq.s32.totalorder %v4062, 2
    %v4068 = vxor.u32 %v4051, 2147483648
    %v4069 = vsel %vm4067, %v4068, %v4059
    %v4070 = vsel %vm4063, %v4066, %v4069
    %v4071 = vsel %vm4060, nan, %v4070
    %v4072 = vand.u32 2147483647, %v189
    %vm4073 = vcmp.le.f32.partialorder %v4072, 0.7853982
    %vm4074 = vcmp.lt.s32.totalorder %v189, 0
    %v4075 = vand.u32 %v189, 2139095040
    %v4076 = vshrl.u32 %v4075, 23
    %v4077 = vsub.s32 %v4076, 127
    %v4078 = vand.u32 2147483647, %v189
    %v4079 = vand.u32 %v4078, 8388607
    %v4080 = vor.u32 %v4079, 8388608
    %v4081 = vsub.s32 0, %v4080
    %v4082 = vadd.s32 %v4077, 1
    %vm4083 = vcmp.gt.s32.totalorder %v4082, 0
    %v4084 = vsel %vm4083, %v4082, 0
    %v4085 = vshrl.u32 %v4084, 5
    %v4086 = vand.u32 %v4084, 31
    %v4087 = vsub.s32 32, %v4086
    %v4088 = vshrl.u32 683565275, %v4087
    %v4089 = vshll.u32 683565275, %v4086
    %v4090 = vshrl.u32 2475754826, %v4087
    %v4091 = vor.u32 %v4089, %v4090
    %v4092 = vshll.u32 2475754826, %v4086
    %v4093 = vshrl.u32 2131351028, %v4087
    %v4094 = vor.u32 %v4092, %v4093
    %v4095 = vshll.u32 2131351028, %v4086
    %v4096 = vshrl.u32 2102212464, %v4087
    %v4097 = vor.u32 %v4095, %v4096
    %v4098 = vshll.u32 2102212464, %v4086
    %v4099 = vshrl.u32 920167782, %v4087
    %v4100 = vor.u32 %v4098, %v4099
    %v4101 = vshll.u32 920167782, %v4086
    %v4102 = vshrl.u32 1326507024, %v4087
    %v4103 = vor.u32 %v4101, %v4102
    %vm4104 = vcmp.lt.s32.totalorder %v4085, 1
    %vm4105 = vcmp.lt.s32.totalorder %v4085, 2
    %vm4106 = vcmp.lt.s32.totalorder %v4085, 3
    %vm4107 = vcmp.lt.s32.totalorder %v4085, 4
    %v4108 = vsel %vm4104, %v4088, %v4091
    %v4109 = vsel %vm4107, %v4097, 2102212464
    %v4110 = vsel %vm4106, %v4094, %v4109
    %v4111 = vsel %vm4105, %v4108, %v4110
    %v4112 = vsel %vm4104, %v4091, %v4094
    %v4113 = vsel %vm4107, %v4100, 920167782
    %v4114 = vsel %vm4106, %v4097, %v4113
    %v4115 = vsel %vm4105, %v4112, %v4114
    %v4116 = vsel %vm4104, %v4094, %v4097
    %v4117 = vsel %vm4107, %v4103, 1326507024
    %v4118 = vsel %vm4106, %v4100, %v4117
    %v4119 = vsel %vm4105, %v4116, %v4118
    %v4120 = vshll.u32 %v4080, 8
    %v4121 = vand.u32 %v4120, 65535
    %v4122 = vshrl.u32 %v4120, 16
    %v4123 = vand.u32 %v4119, 65535
    %v4124 = vshrl.u32 %v4119, 16
    %v4125 = vmul.u32 %v4121, %v4123
    %v4126 = vmul.u32 %v4121, %v4124
    %v4127 = vmul.u32 %v4122, %v4123
    %v4128 = vmul.u32 %v4122, %v4124
    %v4129 = vshll.u32 %v4126, 16
    %v4130 = vshrl.u32 %v4126, 16
    %v4131 = vshll.u32 %v4127, 16
    %v4132 = vshrl.u32 %v4127, 16
    %vm4133 = vc.u32 %v4125, %v4129
    %v4134 = vsel %vm4133, 1, 0
    %v4135 = vadd.s32 %v4125, %v4129
    %v4136 = vadd.s32 %v4128, %v4134
    %vm4137 = vc.u32 %v4135, %v4131
    %v4138 = vsel %vm4137, 1, 0
    %v4139 = vadd.s32 %v4135, %v4131
    %v4140 = vadd.s32 %v4136, %v4138
    %v4141 = vadd.s32 %v4140, %v4130
    %v4142 = vadd.s32 %v4141, %v4132
    %v4143 = vand.u32 %v4120, 65535
    %v4144 = vshrl.u32 %v4120, 16
    %v4145 = vand.u32 %v4115, 65535
    %v4146 = vshrl.u32 %v4115, 16
    %v4147 = vmul.u32 %v4143, %v4145
    %v4148 = vmul.u32 %v4143, %v4146
    %v4149 = vmul.u32 %v4144, %v4145
    %v4150 = vmul.u32 %v4144, %v4146
    %v4151 = vshll.u32 %v4148, 16
    %v4152 = vshrl.u32 %v4148, 16
    %v4153 = vshll.u32 %v4149, 16
    %v4154 = vshrl.u32 %v4149, 16
    %vm4155 = vc.u32 %v4147, %v4151
    %v4156 = vsel %vm4155, 1, 0
    %v4157 = vadd.s32 %v4147, %v4151
    %v4158 = vadd.s32 %v4150, %v4156
    %vm4159 = vc.u32 %v4157, %v4153
    %v4160 = vsel %vm4159, 1, 0
    %v4161 = vadd.s32 %v4157, %v4153
    %v4162 = vadd.s32 %v4158, %v4160
    %v4163 = vadd.s32 %v4162, %v4152
    %v4164 = vadd.s32 %v4163, %v4154
    %v4165 = vmul.u32 %v4120, %v4111
    %v4166 = vadd.s32 %v4142, %v4161
    %vm4167 = vc.u32 %v4142, %v4161
    %v4168 = vadd.s32 %v4164, 1
    %v4169 = vsel %vm4167, %v4168, %v4164
    %v4170 = vadd.s32 %v4165, %v4169
    %v4171 = vadd.s32 %v4170, 536870912
    %v4172 = vshrl.u32 %v4171, 30
    %v4173 = vshll.u32 %v4172, 30
    %v4174 = vsub.s32 %v4170, %v4173
    %vm4175 = vcmp.lt.s32.totalorder %v4174, 0
    %v4176 = vsub.s32 0, %v4174
    %v4177 = vsel %vm4175, %v4176, %v4174
    %v4178 = vclz %v4177
    %v4179 = vsub.s32 %v4178, 2
    %vm4180 = vcmp.gt.s32.totalorder 0, %v4179
    %v4181 = vsel %vm4180, 0, %v4179
    %v4182 = vsub.s32 32, %v4181
    %v4183 = vshll.u32 %v4174, %v4181
    %v4184 = vshrl.u32 %v4166, %v4182
    %v4185 = vor.u32 %v4183, %v4184
    %v4186 = vsub.s32 4294967266, %v4181
    %v4187 = vadd.s32 %v4186, 127
    %v4188 = vshll.u32 %v4187, 23
    %v4189 = vor.u32 4788187, %v4188
    %v4190 = vand.u32 2147483647, %v4189
    %v4192 = vcvt.s32.f32 %v4185
    %v4193 = vmul.f32 %v4192, %v4190
    %v4194 = vxor.u32 %v4193, 2147483648
    %v4195 = vsel %vm4074, %v4194, %v4193
    %v4196 = vsub.s32 4, %v4172
    %v4197 = vsel %vm4074, %v4196, %v4172
    %v4198 = vsel %vm4073, %v189, %v4195
    %v4199 = vsel %vm4073, 0, %v4197
    %v4200 = vmul.f32 %v4198, %v4198
    %v4201 = vmul.f32 %v4200, -0.001358992
    %v4202 = vadd.f32 %v4201, 0.041655596
    %v4203 = vmul.f32 %v4200, %v4202
    %v4204 = vadd.f32 %v4203, -0.4999988
    %v4205 = vmul.f32 %v4200, %v4204
    %v4206 = vadd.f32 1.0, %v4205
    %v4207 = vmul.f32 %v4198, %v4198
    %v4208 = vmul.f32 %v4207, -0.00019511016
    %v4209 = vadd.f32 %v4208, 0.008332121
    %v4210 = vmul.f32 %v4207, %v4209
    %v4211 = vadd.f32 %v4210, -0.16666654
    %v4212 = vmul.f32 %v4207, %v4211
    %v4213 = vadd.f32 %v4212, 1.0
    %v4214 = vmul.f32 %v4213, %v4198
    %vm4215 = vweird.f32 %v189
    %v4216 = vadd.s32 %v4199, 3
    %v4217 = vand.u32 %v4216, 3
    %vm4218 = vcmp.lt.s32.totalorder %v4217, 2
    %vm4219 = vcmp.eq.s32.totalorder %v4217, 0
    %v4220 = vxor.u32 %v4214, 2147483648
    %v4221 = vsel %vm4219, %v4206, %v4220
    %vm4222 = vcmp.eq.s32.totalorder %v4217, 2
    %v4223 = vxor.u32 %v4206, 2147483648
    %v4224 = vsel %vm4222, %v4223, %v4214
    %v4225 = vsel %vm4218, %v4221, %v4224
    %v4226 = vsel %vm4215, nan, %v4225
    %v4227 = vand.u32 2147483647, %v190
    %vm4228 = vcmp.le.f32.partialorder %v4227, 0.7853982
    %vm4229 = vcmp.lt.s32.totalorder %v190, 0
    %v4230 = vand.u32 %v190, 2139095040
    %v4231 = vshrl.u32 %v4230, 23
    %v4232 = vsub.s32 %v4231, 127
    %v4233 = vand.u32 2147483647, %v190
    %v4234 = vand.u32 %v4233, 8388607
    %v4235 = vor.u32 %v4234, 8388608
    %v4236 = vsub.s32 0, %v4235
    %v4237 = vadd.s32 %v4232, 1
    %vm4238 = vcmp.gt.s32.totalorder %v4237, 0
    %v4239 = vsel %vm4238, %v4237, 0
    %v4240 = vshrl.u32 %v4239, 5
    %v4241 = vand.u32 %v4239, 31
    %v4242 = vsub.s32 32, %v4241
    %v4243 = vshrl.u32 683565275, %v4242
    %v4244 = vshll.u32 683565275, %v4241
    %v4245 = vshrl.u32 2475754826, %v4242
    %v4246 = vor.u32 %v4244, %v4245
    %v4247 = vshll.u32 2475754826, %v4241
    %v4248 = vshrl.u32 2131351028, %v4242
    %v4249 = vor.u32 %v4247, %v4248
    %v4250 = vshll.u32 2131351028, %v4241
    %v4251 = vshrl.u32 2102212464, %v4242
    %v4252 = vor.u32 %v4250, %v4251
    %v4253 = vshll.u32 2102212464, %v4241
    %v4254 = vshrl.u32 920167782, %v4242
    %v4255 = vor.u32 %v4253, %v4254
    %v4256 = vshll.u32 920167782, %v4241
    %v4257 = vshrl.u32 1326507024, %v4242
    %v4258 = vor.u32 %v4256, %v4257
    %vm4259 = vcmp.lt.s32.totalorder %v4240, 1
    %vm4260 = vcmp.lt.s32.totalorder %v4240, 2
    %vm4261 = vcmp.lt.s32.totalorder %v4240, 3
    %vm4262 = vcmp.lt.s32.totalorder %v4240, 4
    %v4263 = vsel %vm4259, %v4243, %v4246
    %v4264 = vsel %vm4262, %v4252, 2102212464
    %v4265 = vsel %vm4261, %v4249, %v4264
    %v4266 = vsel %vm4260, %v4263, %v4265
    %v4267 = vsel %vm4259, %v4246, %v4249
    %v4268 = vsel %vm4262, %v4255, 920167782
    %v4269 = vsel %vm4261, %v4252, %v4268
    %v4270 = vsel %vm4260, %v4267, %v4269
    %v4271 = vsel %vm4259, %v4249, %v4252
    %v4272 = vsel %vm4262, %v4258, 1326507024
    %v4273 = vsel %vm4261, %v4255, %v4272
    %v4274 = vsel %vm4260, %v4271, %v4273
    %v4275 = vshll.u32 %v4235, 8
    %v4276 = vand.u32 %v4275, 65535
    %v4277 = vshrl.u32 %v4275, 16
    %v4278 = vand.u32 %v4274, 65535
    %v4279 = vshrl.u32 %v4274, 16
    %v4280 = vmul.u32 %v4276, %v4278
    %v4281 = vmul.u32 %v4276, %v4279
    %v4282 = vmul.u32 %v4277, %v4278
    %v4283 = vmul.u32 %v4277, %v4279
    %v4284 = vshll.u32 %v4281, 16
    %v4285 = vshrl.u32 %v4281, 16
    %v4286 = vshll.u32 %v4282, 16
    %v4287 = vshrl.u32 %v4282, 16
    %vm4288 = vc.u32 %v4280, %v4284
    %v4289 = vsel %vm4288, 1, 0
    %v4290 = vadd.s32 %v4280, %v4284
    %v4291 = vadd.s32 %v4283, %v4289
    %vm4292 = vc.u32 %v4290, %v4286
    %v4293 = vsel %vm4292, 1, 0
    %v4294 = vadd.s32 %v4290, %v4286
    %v4295 = vadd.s32 %v4291, %v4293
    %v4296 = vadd.s32 %v4295, %v4285
    %v4297 = vadd.s32 %v4296, %v4287
    %v4298 = vand.u32 %v4275, 65535
    %v4299 = vshrl.u32 %v4275, 16
    %v4300 = vand.u32 %v4270, 65535
    %v4301 = vshrl.u32 %v4270, 16
    %v4302 = vmul.u32 %v4298, %v4300
    %v4303 = vmul.u32 %v4298, %v4301
    %v4304 = vmul.u32 %v4299, %v4300
    %v4305 = vmul.u32 %v4299, %v4301
    %v4306 = vshll.u32 %v4303, 16
    %v4307 = vshrl.u32 %v4303, 16
    %v4308 = vshll.u32 %v4304, 16
    %v4309 = vshrl.u32 %v4304, 16
    %vm4310 = vc.u32 %v4302, %v4306
    %v4311 = vsel %vm4310, 1, 0
    %v4312 = vadd.s32 %v4302, %v4306
    %v4313 = vadd.s32 %v4305, %v4311
    %vm4314 = vc.u32 %v4312, %v4308
    %v4315 = vsel %vm4314, 1, 0
    %v4316 = vadd.s32 %v4312, %v4308
    %v4317 = vadd.s32 %v4313, %v4315
    %v4318 = vadd.s32 %v4317, %v4307
    %v4319 = vadd.s32 %v4318, %v4309
    %v4320 = vmul.u32 %v4275, %v4266
    %v4321 = vadd.s32 %v4297, %v4316
    %vm4322 = vc.u32 %v4297, %v4316
    %v4323 = vadd.s32 %v4319, 1
    %v4324 = vsel %vm4322, %v4323, %v4319
    %v4325 = vadd.s32 %v4320, %v4324
    %v4326 = vadd.s32 %v4325, 536870912
    %v4327 = vshrl.u32 %v4326, 30
    %v4328 = vshll.u32 %v4327, 30
    %v4329 = vsub.s32 %v4325, %v4328
    %vm4330 = vcmp.lt.s32.totalorder %v4329, 0
    %v4331 = vsub.s32 0, %v4329
    %v4332 = vsel %vm4330, %v4331, %v4329
    %v4333 = vclz %v4332
    %v4334 = vsub.s32 %v4333, 2
    %vm4335 = vcmp.gt.s32.totalorder 0, %v4334
    %v4336 = vsel %vm4335, 0, %v4334
    %v4337 = vsub.s32 32, %v4336
    %v4338 = vshll.u32 %v4329, %v4336
    %v4339 = vshrl.u32 %v4321, %v4337
    %v4340 = vor.u32 %v4338, %v4339
    %v4341 = vsub.s32 4294967266, %v4336
    %v4342 = vadd.s32 %v4341, 127
    %v4343 = vshll.u32 %v4342, 23
    %v4344 = vor.u32 4788187, %v4343
    %v4345 = vand.u32 2147483647, %v4344
    %v4347 = vcvt.s32.f32 %v4340
    %v4348 = vmul.f32 %v4347, %v4345
    %v4349 = vxor.u32 %v4348, 2147483648
    %v4350 = vsel %vm4229, %v4349, %v4348
    %v4351 = vsub.s32 4, %v4327
    %v4352 = vsel %vm4229, %v4351, %v4327
    %v4353 = vsel %vm4228, %v190, %v4350
    %v4354 = vsel %vm4228, 0, %v4352
    %v4355 = vmul.f32 %v4353, %v4353
    %v4356 = vmul.f32 %v4355, -0.001358992
    %v4357 = vadd.f32 %v4356, 0.041655596
    %v4358 = vmul.f32 %v4355, %v4357
    %v4359 = vadd.f32 %v4358, -0.4999988
    %v4360 = vmul.f32 %v4355, %v4359
    %v4361 = vadd.f32 1.0, %v4360
    %v4362 = vmul.f32 %v4353, %v4353
    %v4363 = vmul.f32 %v4362, -0.00019511016
    %v4364 = vadd.f32 %v4363, 0.008332121
    %v4365 = vmul.f32 %v4362, %v4364
    %v4366 = vadd.f32 %v4365, -0.16666654
    %v4367 = vmul.f32 %v4362, %v4366
    %v4368 = vadd.f32 %v4367, 1.0
    %v4369 = vmul.f32 %v4368, %v4353
    %vm4370 = vweird.f32 %v190
    %v4371 = vadd.s32 %v4354, 3
    %v4372 = vand.u32 %v4371, 3
    %vm4373 = vcmp.lt.s32.totalorder %v4372, 2
    %vm4374 = vcmp.eq.s32.totalorder %v4372, 0
    %v4375 = vxor.u32 %v4369, 2147483648
    %v4376 = vsel %vm4374, %v4361, %v4375
    %vm4377 = vcmp.eq.s32.totalorder %v4372, 2
    %v4378 = vxor.u32 %v4361, 2147483648
    %v4379 = vsel %vm4377, %v4378, %v4369
    %v4380 = vsel %vm4373, %v4376, %v4379
    %v4381 = vsel %vm4370, nan, %v4380
    %v4382 = vand.u32 2147483647, %v191
    %vm4383 = vcmp.le.f32.partialorder %v4382, 0.7853982
    %vm4384 = vcmp.lt.s32.totalorder %v191, 0
    %v4385 = vand.u32 %v191, 2139095040
    %v4386 = vshrl.u32 %v4385, 23
    %v4387 = vsub.s32 %v4386, 127
    %v4388 = vand.u32 2147483647, %v191
    %v4389 = vand.u32 %v4388, 8388607
    %v4390 = vor.u32 %v4389, 8388608
    %v4391 = vsub.s32 0, %v4390
    %v4392 = vadd.s32 %v4387, 1
    %vm4393 = vcmp.gt.s32.totalorder %v4392, 0
    %v4394 = vsel %vm4393, %v4392, 0
    %v4395 = vshrl.u32 %v4394, 5
    %v4396 = vand.u32 %v4394, 31
    %v4397 = vsub.s32 32, %v4396
    %v4398 = vshrl.u32 683565275, %v4397
    %v4399 = vshll.u32 683565275, %v4396
    %v4400 = vshrl.u32 2475754826, %v4397
    %v4401 = vor.u32 %v4399, %v4400
    %v4402 = vshll.u32 2475754826, %v4396
    %v4403 = vshrl.u32 2131351028, %v4397
    %v4404 = vor.u32 %v4402, %v4403
    %v4405 = vshll.u32 2131351028, %v4396
    %v4406 = vshrl.u32 2102212464, %v4397
    %v4407 = vor.u32 %v4405, %v4406
    %v4408 = vshll.u32 2102212464, %v4396
    %v4409 = vshrl.u32 920167782, %v4397
    %v4410 = vor.u32 %v4408, %v4409
    %v4411 = vshll.u32 920167782, %v4396
    %v4412 = vshrl.u32 1326507024, %v4397
    %v4413 = vor.u32 %v4411, %v4412
    %vm4414 = vcmp.lt.s32.totalorder %v4395, 1
    %vm4415 = vcmp.lt.s32.totalorder %v4395, 2
    %vm4416 = vcmp.lt.s32.totalorder %v4395, 3
    %vm4417 = vcmp.lt.s32.totalorder %v4395, 4
    %v4418 = vsel %vm4414, %v4398, %v4401
    %v4419 = vsel %vm4417, %v4407, 2102212464
    %v4420 = vsel %vm4416, %v4404, %v4419
    %v4421 = vsel %vm4415, %v4418, %v4420
    %v4422 = vsel %vm4414, %v4401, %v4404
    %v4423 = vsel %vm4417, %v4410, 920167782
    %v4424 = vsel %vm4416, %v4407, %v4423
    %v4425 = vsel %vm4415, %v4422, %v4424
    %v4426 = vsel %vm4414, %v4404, %v4407
    %v4427 = vsel %vm4417, %v4413, 1326507024
    %v4428 = vsel %vm4416, %v4410, %v4427
    %v4429 = vsel %vm4415, %v4426, %v4428
    %v4430 = vshll.u32 %v4390, 8
    %v4431 = vand.u32 %v4430, 65535
    %v4432 = vshrl.u32 %v4430, 16
    %v4433 = vand.u32 %v4429, 65535
    %v4434 = vshrl.u32 %v4429, 16
    %v4435 = vmul.u32 %v4431, %v4433
    %v4436 = vmul.u32 %v4431, %v4434
    %v4437 = vmul.u32 %v4432, %v4433
    %v4438 = vmul.u32 %v4432, %v4434
    %v4439 = vshll.u32 %v4436, 16
    %v4440 = vshrl.u32 %v4436, 16
    %v4441 = vshll.u32 %v4437, 16
    %v4442 = vshrl.u32 %v4437, 16
    %vm4443 = vc.u32 %v4435, %v4439
    %v4444 = vsel %vm4443, 1, 0
    %v4445 = vadd.s32 %v4435, %v4439
    %v4446 = vadd.s32 %v4438, %v4444
    %vm4447 = vc.u32 %v4445, %v4441
    %v4448 = vsel %vm4447, 1, 0
    %v4449 = vadd.s32 %v4445, %v4441
    %v4450 = vadd.s32 %v4446, %v4448
    %v4451 = vadd.s32 %v4450, %v4440
    %v4452 = vadd.s32 %v4451, %v4442
    %v4453 = vand.u32 %v4430, 65535
    %v4454 = vshrl.u32 %v4430, 16
    %v4455 = vand.u32 %v4425, 65535
    %v4456 = vshrl.u32 %v4425, 16
    %v4457 = vmul.u32 %v4453, %v4455
    %v4458 = vmul.u32 %v4453, %v4456
    %v4459 = vmul.u32 %v4454, %v4455
    %v4460 = vmul.u32 %v4454, %v4456
    %v4461 = vshll.u32 %v4458, 16
    %v4462 = vshrl.u32 %v4458, 16
    %v4463 = vshll.u32 %v4459, 16
    %v4464 = vshrl.u32 %v4459, 16
    %vm4465 = vc.u32 %v4457, %v4461
    %v4466 = vsel %vm4465, 1, 0
    %v4467 = vadd.s32 %v4457, %v4461
    %v4468 = vadd.s32 %v4460, %v4466
    %vm4469 = vc.u32 %v4467, %v4463
    %v4470 = vsel %vm4469, 1, 0
    %v4471 = vadd.s32 %v4467, %v4463
    %v4472 = vadd.s32 %v4468, %v4470
    %v4473 = vadd.s32 %v4472, %v4462
    %v4474 = vadd.s32 %v4473, %v4464
    %v4475 = vmul.u32 %v4430, %v4421
    %v4476 = vadd.s32 %v4452, %v4471
    %vm4477 = vc.u32 %v4452, %v4471
    %v4478 = vadd.s32 %v4474, 1
    %v4479 = vsel %vm4477, %v4478, %v4474
    %v4480 = vadd.s32 %v4475, %v4479
    %v4481 = vadd.s32 %v4480, 536870912
    %v4482 = vshrl.u32 %v4481, 30
    %v4483 = vshll.u32 %v4482, 30
    %v4484 = vsub.s32 %v4480, %v4483
    %vm4485 = vcmp.lt.s32.totalorder %v4484, 0
    %v4486 = vsub.s32 0, %v4484
    %v4487 = vsel %vm4485, %v4486, %v4484
    %v4488 = vclz %v4487
    %v4489 = vsub.s32 %v4488, 2
    %vm4490 = vcmp.gt.s32.totalorder 0, %v4489
    %v4491 = vsel %vm4490, 0, %v4489
    %v4492 = vsub.s32 32, %v4491
    %v4493 = vshll.u32 %v4484, %v4491
    %v4494 = vshrl.u32 %v4476, %v4492
    %v4495 = vor.u32 %v4493, %v4494
    %v4496 = vsub.s32 4294967266, %v4491
    %v4497 = vadd.s32 %v4496, 127
    %v4498 = vshll.u32 %v4497, 23
    %v4499 = vor.u32 4788187, %v4498
    %v4500 = vand.u32 2147483647, %v4499
    %v4502 = vcvt.s32.f32 %v4495
    %v4503 = vmul.f32 %v4502, %v4500
    %v4504 = vxor.u32 %v4503, 2147483648
    %v4505 = vsel %vm4384, %v4504, %v4503
    %v4506 = vsub.s32 4, %v4482
    %v4507 = vsel %vm4384, %v4506, %v4482
    %v4508 = vsel %vm4383, %v191, %v4505
    %v4509 = vsel %vm4383, 0, %v4507
    %v4510 = vmul.f32 %v4508, %v4508
    %v4511 = vmul.f32 %v4510, -0.001358992
    %v4512 = vadd.f32 %v4511, 0.041655596
    %v4513 = vmul.f32 %v4510, %v4512
    %v4514 = vadd.f32 %v4513, -0.4999988
    %v4515 = vmul.f32 %v4510, %v4514
    %v4516 = vadd.f32 1.0, %v4515
    %v4517 = vmul.f32 %v4508, %v4508
    %v4518 = vmul.f32 %v4517, -0.00019511016
    %v4519 = vadd.f32 %v4518, 0.008332121
    %v4520 = vmul.f32 %v4517, %v4519
    %v4521 = vadd.f32 %v4520, -0.16666654
    %v4522 = vmul.f32 %v4517, %v4521
    %v4523 = vadd.f32 %v4522, 1.0
    %v4524 = vmul.f32 %v4523, %v4508
    %vm4525 = vweird.f32 %v191
    %v4526 = vadd.s32 %v4509, 3
    %v4527 = vand.u32 %v4526, 3
    %vm4528 = vcmp.lt.s32.totalorder %v4527, 2
    %vm4529 = vcmp.eq.s32.totalorder %v4527, 0
    %v4530 = vxor.u32 %v4524, 2147483648
    %v4531 = vsel %vm4529, %v4516, %v4530
    %vm4532 = vcmp.eq.s32.totalorder %v4527, 2
    %v4533 = vxor.u32 %v4516, 2147483648
    %v4534 = vsel %vm4532, %v4533, %v4524
    %v4535 = vsel %vm4528, %v4531, %v4534
    %v4536 = vsel %vm4525, nan, %v4535
    %v4537 = vand.u32 2147483647, %v192
    %vm4538 = vcmp.le.f32.partialorder %v4537, 0.7853982
    %vm4539 = vcmp.lt.s32.totalorder %v192, 0
    %v4540 = vand.u32 %v192, 2139095040
    %v4541 = vshrl.u32 %v4540, 23
    %v4542 = vsub.s32 %v4541, 127
    %v4543 = vand.u32 2147483647, %v192
    %v4544 = vand.u32 %v4543, 8388607
    %v4545 = vor.u32 %v4544, 8388608
    %v4546 = vsub.s32 0, %v4545
    %v4547 = vadd.s32 %v4542, 1
    %vm4548 = vcmp.gt.s32.totalorder %v4547, 0
    %v4549 = vsel %vm4548, %v4547, 0
    %v4550 = vshrl.u32 %v4549, 5
    %v4551 = vand.u32 %v4549, 31
    %v4552 = vsub.s32 32, %v4551
    %v4553 = vshrl.u32 683565275, %v4552
    %v4554 = vshll.u32 683565275, %v4551
    %v4555 = vshrl.u32 2475754826, %v4552
    %v4556 = vor.u32 %v4554, %v4555
    %v4557 = vshll.u32 2475754826, %v4551
    %v4558 = vshrl.u32 2131351028, %v4552
    %v4559 = vor.u32 %v4557, %v4558
    %v4560 = vshll.u32 2131351028, %v4551
    %v4561 = vshrl.u32 2102212464, %v4552
    %v4562 = vor.u32 %v4560, %v4561
    %v4563 = vshll.u32 2102212464, %v4551
    %v4564 = vshrl.u32 920167782, %v4552
    %v4565 = vor.u32 %v4563, %v4564
    %v4566 = vshll.u32 920167782, %v4551
    %v4567 = vshrl.u32 1326507024, %v4552
    %v4568 = vor.u32 %v4566, %v4567
    %vm4569 = vcmp.lt.s32.totalorder %v4550, 1
    %vm4570 = vcmp.lt.s32.totalorder %v4550, 2
    %vm4571 = vcmp.lt.s32.totalorder %v4550, 3
    %vm4572 = vcmp.lt.s32.totalorder %v4550, 4
    %v4573 = vsel %vm4569, %v4553, %v4556
    %v4574 = vsel %vm4572, %v4562, 2102212464
    %v4575 = vsel %vm4571, %v4559, %v4574
    %v4576 = vsel %vm4570, %v4573, %v4575
    %v4577 = vsel %vm4569, %v4556, %v4559
    %v4578 = vsel %vm4572, %v4565, 920167782
    %v4579 = vsel %vm4571, %v4562, %v4578
    %v4580 = vsel %vm4570, %v4577, %v4579
    %v4581 = vsel %vm4569, %v4559, %v4562
    %v4582 = vsel %vm4572, %v4568, 1326507024
    %v4583 = vsel %vm4571, %v4565, %v4582
    %v4584 = vsel %vm4570, %v4581, %v4583
    %v4585 = vshll.u32 %v4545, 8
    %v4586 = vand.u32 %v4585, 65535
    %v4587 = vshrl.u32 %v4585, 16
    %v4588 = vand.u32 %v4584, 65535
    %v4589 = vshrl.u32 %v4584, 16
    %v4590 = vmul.u32 %v4586, %v4588
    %v4591 = vmul.u32 %v4586, %v4589
    %v4592 = vmul.u32 %v4587, %v4588
    %v4593 = vmul.u32 %v4587, %v4589
    %v4594 = vshll.u32 %v4591, 16
    %v4595 = vshrl.u32 %v4591, 16
    %v4596 = vshll.u32 %v4592, 16
    %v4597 = vshrl.u32 %v4592, 16
    %vm4598 = vc.u32 %v4590, %v4594
    %v4599 = vsel %vm4598, 1, 0
    %v4600 = vadd.s32 %v4590, %v4594
    %v4601 = vadd.s32 %v4593, %v4599
    %vm4602 = vc.u32 %v4600, %v4596
    %v4603 = vsel %vm4602, 1, 0
    %v4604 = vadd.s32 %v4600, %v4596
    %v4605 = vadd.s32 %v4601, %v4603
    %v4606 = vadd.s32 %v4605, %v4595
    %v4607 = vadd.s32 %v4606, %v4597
    %v4608 = vand.u32 %v4585, 65535
    %v4609 = vshrl.u32 %v4585, 16
    %v4610 = vand.u32 %v4580, 65535
    %v4611 = vshrl.u32 %v4580, 16
    %v4612 = vmul.u32 %v4608, %v4610
    %v4613 = vmul.u32 %v4608, %v4611
    %v4614 = vmul.u32 %v4609, %v4610
    %v4615 = vmul.u32 %v4609, %v4611
    %v4616 = vshll.u32 %v4613, 16
    %v4617 = vshrl.u32 %v4613, 16
    %v4618 = vshll.u32 %v4614, 16
    %v4619 = vshrl.u32 %v4614, 16
    %vm4620 = vc.u32 %v4612, %v4616
    %v4621 = vsel %vm4620, 1, 0
    %v4622 = vadd.s32 %v4612, %v4616
    %v4623 = vadd.s32 %v4615, %v4621
    %vm4624 = vc.u32 %v4622, %v4618
    %v4625 = vsel %vm4624, 1, 0
    %v4626 = vadd.s32 %v4622, %v4618
    %v4627 = vadd.s32 %v4623, %v4625
    %v4628 = vadd.s32 %v4627, %v4617
    %v4629 = vadd.s32 %v4628, %v4619
    %v4630 = vmul.u32 %v4585, %v4576
    %v4631 = vadd.s32 %v4607, %v4626
    %vm4632 = vc.u32 %v4607, %v4626
    %v4633 = vadd.s32 %v4629, 1
    %v4634 = vsel %vm4632, %v4633, %v4629
    %v4635 = vadd.s32 %v4630, %v4634
    %v4636 = vadd.s32 %v4635, 536870912
    %v4637 = vshrl.u32 %v4636, 30
    %v4638 = vshll.u32 %v4637, 30
    %v4639 = vsub.s32 %v4635, %v4638
    %vm4640 = vcmp.lt.s32.totalorder %v4639, 0
    %v4641 = vsub.s32 0, %v4639
    %v4642 = vsel %vm4640, %v4641, %v4639
    %v4643 = vclz %v4642
    %v4644 = vsub.s32 %v4643, 2
    %vm4645 = vcmp.gt.s32.totalorder 0, %v4644
    %v4646 = vsel %vm4645, 0, %v4644
    %v4647 = vsub.s32 32, %v4646
    %v4648 = vshll.u32 %v4639, %v4646
    %v4649 = vshrl.u32 %v4631, %v4647
    %v4650 = vor.u32 %v4648, %v4649
    %v4651 = vsub.s32 4294967266, %v4646
    %v4652 = vadd.s32 %v4651, 127
    %v4653 = vshll.u32 %v4652, 23
    %v4654 = vor.u32 4788187, %v4653
    %v4655 = vand.u32 2147483647, %v4654
    %v4657 = vcvt.s32.f32 %v4650
    %v4658 = vmul.f32 %v4657, %v4655
    %v4659 = vxor.u32 %v4658, 2147483648
    %v4660 = vsel %vm4539, %v4659, %v4658
    %v4661 = vsub.s32 4, %v4637
    %v4662 = vsel %vm4539, %v4661, %v4637
    %v4663 = vsel %vm4538, %v192, %v4660
    %v4664 = vsel %vm4538, 0, %v4662
    %v4665 = vmul.f32 %v4663, %v4663
    %v4666 = vmul.f32 %v4665, -0.001358992
    %v4667 = vadd.f32 %v4666, 0.041655596
    %v4668 = vmul.f32 %v4665, %v4667
    %v4669 = vadd.f32 %v4668, -0.4999988
    %v4670 = vmul.f32 %v4665, %v4669
    %v4671 = vadd.f32 1.0, %v4670
    %v4672 = vmul.f32 %v4663, %v4663
    %v4673 = vmul.f32 %v4672, -0.00019511016
    %v4674 = vadd.f32 %v4673, 0.008332121
    %v4675 = vmul.f32 %v4672, %v4674
    %v4676 = vadd.f32 %v4675, -0.16666654
    %v4677 = vmul.f32 %v4672, %v4676
    %v4678 = vadd.f32 %v4677, 1.0
    %v4679 = vmul.f32 %v4678, %v4663
    %vm4680 = vweird.f32 %v192
    %v4681 = vadd.s32 %v4664, 3
    %v4682 = vand.u32 %v4681, 3
    %vm4683 = vcmp.lt.s32.totalorder %v4682, 2
    %vm4684 = vcmp.eq.s32.totalorder %v4682, 0
    %v4685 = vxor.u32 %v4679, 2147483648
    %v4686 = vsel %vm4684, %v4671, %v4685
    %vm4687 = vcmp.eq.s32.totalorder %v4682, 2
    %v4688 = vxor.u32 %v4671, 2147483648
    %v4689 = vsel %vm4687, %v4688, %v4679
    %v4690 = vsel %vm4683, %v4686, %v4689
    %v4691 = vsel %vm4680, nan, %v4690
    %v4692 = vand.u32 2147483647, %v193
    %vm4693 = vcmp.le.f32.partialorder %v4692, 0.7853982
    %vm4694 = vcmp.lt.s32.totalorder %v193, 0
    %v4695 = vand.u32 %v193, 2139095040
    %v4696 = vshrl.u32 %v4695, 23
    %v4697 = vsub.s32 %v4696, 127
    %v4698 = vand.u32 2147483647, %v193
    %v4699 = vand.u32 %v4698, 8388607
    %v4700 = vor.u32 %v4699, 8388608
    %v4701 = vsub.s32 0, %v4700
    %v4702 = vadd.s32 %v4697, 1
    %vm4703 = vcmp.gt.s32.totalorder %v4702, 0
    %v4704 = vsel %vm4703, %v4702, 0
    %v4705 = vshrl.u32 %v4704, 5
    %v4706 = vand.u32 %v4704, 31
    %v4707 = vsub.s32 32, %v4706
    %v4708 = vshrl.u32 683565275, %v4707
    %v4709 = vshll.u32 683565275, %v4706
    %v4710 = vshrl.u32 2475754826, %v4707
    %v4711 = vor.u32 %v4709, %v4710
    %v4712 = vshll.u32 2475754826, %v4706
    %v4713 = vshrl.u32 2131351028, %v4707
    %v4714 = vor.u32 %v4712, %v4713
    %v4715 = vshll.u32 2131351028, %v4706
    %v4716 = vshrl.u32 2102212464, %v4707
    %v4717 = vor.u32 %v4715, %v4716
    %v4718 = vshll.u32 2102212464, %v4706
    %v4719 = vshrl.u32 920167782, %v4707
    %v4720 = vor.u32 %v4718, %v4719
    %v4721 = vshll.u32 920167782, %v4706
    %v4722 = vshrl.u32 1326507024, %v4707
    %v4723 = vor.u32 %v4721, %v4722
    %vm4724 = vcmp.lt.s32.totalorder %v4705, 1
    %vm4725 = vcmp.lt.s32.totalorder %v4705, 2
    %vm4726 = vcmp.lt.s32.totalorder %v4705, 3
    %vm4727 = vcmp.lt.s32.totalorder %v4705, 4
    %v4728 = vsel %vm4724, %v4708, %v4711
    %v4729 = vsel %vm4727, %v4717, 2102212464
    %v4730 = vsel %vm4726, %v4714, %v4729
    %v4731 = vsel %vm4725, %v4728, %v4730
    %v4732 = vsel %vm4724, %v4711, %v4714
    %v4733 = vsel %vm4727, %v4720, 920167782
    %v4734 = vsel %vm4726, %v4717, %v4733
    %v4735 = vsel %vm4725, %v4732, %v4734
    %v4736 = vsel %vm4724, %v4714, %v4717
    %v4737 = vsel %vm4727, %v4723, 1326507024
    %v4738 = vsel %vm4726, %v4720, %v4737
    %v4739 = vsel %vm4725, %v4736, %v4738
    %v4740 = vshll.u32 %v4700, 8
    %v4741 = vand.u32 %v4740, 65535
    %v4742 = vshrl.u32 %v4740, 16
    %v4743 = vand.u32 %v4739, 65535
    %v4744 = vshrl.u32 %v4739, 16
    %v4745 = vmul.u32 %v4741, %v4743
    %v4746 = vmul.u32 %v4741, %v4744
    %v4747 = vmul.u32 %v4742, %v4743
    %v4748 = vmul.u32 %v4742, %v4744
    %v4749 = vshll.u32 %v4746, 16
    %v4750 = vshrl.u32 %v4746, 16
    %v4751 = vshll.u32 %v4747, 16
    %v4752 = vshrl.u32 %v4747, 16
    %vm4753 = vc.u32 %v4745, %v4749
    %v4754 = vsel %vm4753, 1, 0
    %v4755 = vadd.s32 %v4745, %v4749
    %v4756 = vadd.s32 %v4748, %v4754
    %vm4757 = vc.u32 %v4755, %v4751
    %v4758 = vsel %vm4757, 1, 0
    %v4759 = vadd.s32 %v4755, %v4751
    %v4760 = vadd.s32 %v4756, %v4758
    %v4761 = vadd.s32 %v4760, %v4750
    %v4762 = vadd.s32 %v4761, %v4752
    %v4763 = vand.u32 %v4740, 65535
    %v4764 = vshrl.u32 %v4740, 16
    %v4765 = vand.u32 %v4735, 65535
    %v4766 = vshrl.u32 %v4735, 16
    %v4767 = vmul.u32 %v4763, %v4765
    %v4768 = vmul.u32 %v4763, %v4766
    %v4769 = vmul.u32 %v4764, %v4765
    %v4770 = vmul.u32 %v4764, %v4766
    %v4771 = vshll.u32 %v4768, 16
    %v4772 = vshrl.u32 %v4768, 16
    %v4773 = vshll.u32 %v4769, 16
    %v4774 = vshrl.u32 %v4769, 16
    %vm4775 = vc.u32 %v4767, %v4771
    %v4776 = vsel %vm4775, 1, 0
    %v4777 = vadd.s32 %v4767, %v4771
    %v4778 = vadd.s32 %v4770, %v4776
    %vm4779 = vc.u32 %v4777, %v4773
    %v4780 = vsel %vm4779, 1, 0
    %v4781 = vadd.s32 %v4777, %v4773
    %v4782 = vadd.s32 %v4778, %v4780
    %v4783 = vadd.s32 %v4782, %v4772
    %v4784 = vadd.s32 %v4783, %v4774
    %v4785 = vmul.u32 %v4740, %v4731
    %v4786 = vadd.s32 %v4762, %v4781
    %vm4787 = vc.u32 %v4762, %v4781
    %v4788 = vadd.s32 %v4784, 1
    %v4789 = vsel %vm4787, %v4788, %v4784
    %v4790 = vadd.s32 %v4785, %v4789
    %v4791 = vadd.s32 %v4790, 536870912
    %v4792 = vshrl.u32 %v4791, 30
    %v4793 = vshll.u32 %v4792, 30
    %v4794 = vsub.s32 %v4790, %v4793
    %vm4795 = vcmp.lt.s32.totalorder %v4794, 0
    %v4796 = vsub.s32 0, %v4794
    %v4797 = vsel %vm4795, %v4796, %v4794
    %v4798 = vclz %v4797
    %v4799 = vsub.s32 %v4798, 2
    %vm4800 = vcmp.gt.s32.totalorder 0, %v4799
    %v4801 = vsel %vm4800, 0, %v4799
    %v4802 = vsub.s32 32, %v4801
    %v4803 = vshll.u32 %v4794, %v4801
    %v4804 = vshrl.u32 %v4786, %v4802
    %v4805 = vor.u32 %v4803, %v4804
    %v4806 = vsub.s32 4294967266, %v4801
    %v4807 = vadd.s32 %v4806, 127
    %v4808 = vshll.u32 %v4807, 23
    %v4809 = vor.u32 4788187, %v4808
    %v4810 = vand.u32 2147483647, %v4809
    %v4812 = vcvt.s32.f32 %v4805
    %v4813 = vmul.f32 %v4812, %v4810
    %v4814 = vxor.u32 %v4813, 2147483648
    %v4815 = vsel %vm4694, %v4814, %v4813
    %v4816 = vsub.s32 4, %v4792
    %v4817 = vsel %vm4694, %v4816, %v4792
    %v4818 = vsel %vm4693, %v193, %v4815
    %v4819 = vsel %vm4693, 0, %v4817
    %v4820 = vmul.f32 %v4818, %v4818
    %v4821 = vmul.f32 %v4820, -0.001358992
    %v4822 = vadd.f32 %v4821, 0.041655596
    %v4823 = vmul.f32 %v4820, %v4822
    %v4824 = vadd.f32 %v4823, -0.4999988
    %v4825 = vmul.f32 %v4820, %v4824
    %v4826 = vadd.f32 1.0, %v4825
    %v4827 = vmul.f32 %v4818, %v4818
    %v4828 = vmul.f32 %v4827, -0.00019511016
    %v4829 = vadd.f32 %v4828, 0.008332121
    %v4830 = vmul.f32 %v4827, %v4829
    %v4831 = vadd.f32 %v4830, -0.16666654
    %v4832 = vmul.f32 %v4827, %v4831
    %v4833 = vadd.f32 %v4832, 1.0
    %v4834 = vmul.f32 %v4833, %v4818
    %vm4835 = vweird.f32 %v193
    %v4836 = vadd.s32 %v4819, 3
    %v4837 = vand.u32 %v4836, 3
    %vm4838 = vcmp.lt.s32.totalorder %v4837, 2
    %vm4839 = vcmp.eq.s32.totalorder %v4837, 0
    %v4840 = vxor.u32 %v4834, 2147483648
    %v4841 = vsel %vm4839, %v4826, %v4840
    %vm4842 = vcmp.eq.s32.totalorder %v4837, 2
    %v4843 = vxor.u32 %v4826, 2147483648
    %v4844 = vsel %vm4842, %v4843, %v4834
    %v4845 = vsel %vm4838, %v4841, %v4844
    %v4846 = vsel %vm4835, nan, %v4845
    %v4847 = vand.u32 2147483647, %v194
    %vm4848 = vcmp.le.f32.partialorder %v4847, 0.7853982
    %vm4849 = vcmp.lt.s32.totalorder %v194, 0
    %v4850 = vand.u32 %v194, 2139095040
    %v4851 = vshrl.u32 %v4850, 23
    %v4852 = vsub.s32 %v4851, 127
    %v4853 = vand.u32 2147483647, %v194
    %v4854 = vand.u32 %v4853, 8388607
    %v4855 = vor.u32 %v4854, 8388608
    %v4856 = vsub.s32 0, %v4855
    %v4857 = vadd.s32 %v4852, 1
    %vm4858 = vcmp.gt.s32.totalorder %v4857, 0
    %v4859 = vsel %vm4858, %v4857, 0
    %v4860 = vshrl.u32 %v4859, 5
    %v4861 = vand.u32 %v4859, 31
    %v4862 = vsub.s32 32, %v4861
    %v4863 = vshrl.u32 683565275, %v4862
    %v4864 = vshll.u32 683565275, %v4861
    %v4865 = vshrl.u32 2475754826, %v4862
    %v4866 = vor.u32 %v4864, %v4865
    %v4867 = vshll.u32 2475754826, %v4861
    %v4868 = vshrl.u32 2131351028, %v4862
    %v4869 = vor.u32 %v4867, %v4868
    %v4870 = vshll.u32 2131351028, %v4861
    %v4871 = vshrl.u32 2102212464, %v4862
    %v4872 = vor.u32 %v4870, %v4871
    %v4873 = vshll.u32 2102212464, %v4861
    %v4874 = vshrl.u32 920167782, %v4862
    %v4875 = vor.u32 %v4873, %v4874
    %v4876 = vshll.u32 920167782, %v4861
    %v4877 = vshrl.u32 1326507024, %v4862
    %v4878 = vor.u32 %v4876, %v4877
    %vm4879 = vcmp.lt.s32.totalorder %v4860, 1
    %vm4880 = vcmp.lt.s32.totalorder %v4860, 2
    %vm4881 = vcmp.lt.s32.totalorder %v4860, 3
    %vm4882 = vcmp.lt.s32.totalorder %v4860, 4
    %v4883 = vsel %vm4879, %v4863, %v4866
    %v4884 = vsel %vm4882, %v4872, 2102212464
    %v4885 = vsel %vm4881, %v4869, %v4884
    %v4886 = vsel %vm4880, %v4883, %v4885
    %v4887 = vsel %vm4879, %v4866, %v4869
    %v4888 = vsel %vm4882, %v4875, 920167782
    %v4889 = vsel %vm4881, %v4872, %v4888
    %v4890 = vsel %vm4880, %v4887, %v4889
    %v4891 = vsel %vm4879, %v4869, %v4872
    %v4892 = vsel %vm4882, %v4878, 1326507024
    %v4893 = vsel %vm4881, %v4875, %v4892
    %v4894 = vsel %vm4880, %v4891, %v4893
    %v4895 = vshll.u32 %v4855, 8
    %v4896 = vand.u32 %v4895, 65535
    %v4897 = vshrl.u32 %v4895, 16
    %v4898 = vand.u32 %v4894, 65535
    %v4899 = vshrl.u32 %v4894, 16
    %v4900 = vmul.u32 %v4896, %v4898
    %v4901 = vmul.u32 %v4896, %v4899
    %v4902 = vmul.u32 %v4897, %v4898
    %v4903 = vmul.u32 %v4897, %v4899
    %v4904 = vshll.u32 %v4901, 16
    %v4905 = vshrl.u32 %v4901, 16
    %v4906 = vshll.u32 %v4902, 16
    %v4907 = vshrl.u32 %v4902, 16
    %vm4908 = vc.u32 %v4900, %v4904
    %v4909 = vsel %vm4908, 1, 0
    %v4910 = vadd.s32 %v4900, %v4904
    %v4911 = vadd.s32 %v4903, %v4909
    %vm4912 = vc.u32 %v4910, %v4906
    %v4913 = vsel %vm4912, 1, 0
    %v4914 = vadd.s32 %v4910, %v4906
    %v4915 = vadd.s32 %v4911, %v4913
    %v4916 = vadd.s32 %v4915, %v4905
    %v4917 = vadd.s32 %v4916, %v4907
    %v4918 = vand.u32 %v4895, 65535
    %v4919 = vshrl.u32 %v4895, 16
    %v4920 = vand.u32 %v4890, 65535
    %v4921 = vshrl.u32 %v4890, 16
    %v4922 = vmul.u32 %v4918, %v4920
    %v4923 = vmul.u32 %v4918, %v4921
    %v4924 = vmul.u32 %v4919, %v4920
    %v4925 = vmul.u32 %v4919, %v4921
    %v4926 = vshll.u32 %v4923, 16
    %v4927 = vshrl.u32 %v4923, 16
    %v4928 = vshll.u32 %v4924, 16
    %v4929 = vshrl.u32 %v4924, 16
    %vm4930 = vc.u32 %v4922, %v4926
    %v4931 = vsel %vm4930, 1, 0
    %v4932 = vadd.s32 %v4922, %v4926
    %v4933 = vadd.s32 %v4925, %v4931
    %vm4934 = vc.u32 %v4932, %v4928
    %v4935 = vsel %vm4934, 1, 0
    %v4936 = vadd.s32 %v4932, %v4928
    %v4937 = vadd.s32 %v4933, %v4935
    %v4938 = vadd.s32 %v4937, %v4927
    %v4939 = vadd.s32 %v4938, %v4929
    %v4940 = vmul.u32 %v4895, %v4886
    %v4941 = vadd.s32 %v4917, %v4936
    %vm4942 = vc.u32 %v4917, %v4936
    %v4943 = vadd.s32 %v4939, 1
    %v4944 = vsel %vm4942, %v4943, %v4939
    %v4945 = vadd.s32 %v4940, %v4944
    %v4946 = vadd.s32 %v4945, 536870912
    %v4947 = vshrl.u32 %v4946, 30
    %v4948 = vshll.u32 %v4947, 30
    %v4949 = vsub.s32 %v4945, %v4948
    %vm4950 = vcmp.lt.s32.totalorder %v4949, 0
    %v4951 = vsub.s32 0, %v4949
    %v4952 = vsel %vm4950, %v4951, %v4949
    %v4953 = vclz %v4952
    %v4954 = vsub.s32 %v4953, 2
    %vm4955 = vcmp.gt.s32.totalorder 0, %v4954
    %v4956 = vsel %vm4955, 0, %v4954
    %v4957 = vsub.s32 32, %v4956
    %v4958 = vshll.u32 %v4949, %v4956
    %v4959 = vshrl.u32 %v4941, %v4957
    %v4960 = vor.u32 %v4958, %v4959
    %v4961 = vsub.s32 4294967266, %v4956
    %v4962 = vadd.s32 %v4961, 127
    %v4963 = vshll.u32 %v4962, 23
    %v4964 = vor.u32 4788187, %v4963
    %v4965 = vand.u32 2147483647, %v4964
    %v4967 = vcvt.s32.f32 %v4960
    %v4968 = vmul.f32 %v4967, %v4965
    %v4969 = vxor.u32 %v4968, 2147483648
    %v4970 = vsel %vm4849, %v4969, %v4968
    %v4971 = vsub.s32 4, %v4947
    %v4972 = vsel %vm4849, %v4971, %v4947
    %v4973 = vsel %vm4848, %v194, %v4970
    %v4974 = vsel %vm4848, 0, %v4972
    %v4975 = vmul.f32 %v4973, %v4973
    %v4976 = vmul.f32 %v4975, -0.001358992
    %v4977 = vadd.f32 %v4976, 0.041655596
    %v4978 = vmul.f32 %v4975, %v4977
    %v4979 = vadd.f32 %v4978, -0.4999988
    %v4980 = vmul.f32 %v4975, %v4979
    %v4981 = vadd.f32 1.0, %v4980
    %v4982 = vmul.f32 %v4973, %v4973
    %v4983 = vmul.f32 %v4982, -0.00019511016
    %v4984 = vadd.f32 %v4983, 0.008332121
    %v4985 = vmul.f32 %v4982, %v4984
    %v4986 = vadd.f32 %v4985, -0.16666654
    %v4987 = vmul.f32 %v4982, %v4986
    %v4988 = vadd.f32 %v4987, 1.0
    %v4989 = vmul.f32 %v4988, %v4973
    %vm4990 = vweird.f32 %v194
    %v4991 = vadd.s32 %v4974, 3
    %v4992 = vand.u32 %v4991, 3
    %vm4993 = vcmp.lt.s32.totalorder %v4992, 2
    %vm4994 = vcmp.eq.s32.totalorder %v4992, 0
    %v4995 = vxor.u32 %v4989, 2147483648
    %v4996 = vsel %vm4994, %v4981, %v4995
    %vm4997 = vcmp.eq.s32.totalorder %v4992, 2
    %v4998 = vxor.u32 %v4981, 2147483648
    %v4999 = vsel %vm4997, %v4998, %v4989
    %v5000 = vsel %vm4993, %v4996, %v4999
    %v5001 = vsel %vm4990, nan, %v5000
    %v5002 = vand.u32 2147483647, %v195
    %vm5003 = vcmp.le.f32.partialorder %v5002, 0.7853982
    %vm5004 = vcmp.lt.s32.totalorder %v195, 0
    %v5005 = vand.u32 %v195, 2139095040
    %v5006 = vshrl.u32 %v5005, 23
    %v5007 = vsub.s32 %v5006, 127
    %v5008 = vand.u32 2147483647, %v195
    %v5009 = vand.u32 %v5008, 8388607
    %v5010 = vor.u32 %v5009, 8388608
    %v5011 = vsub.s32 0, %v5010
    %v5012 = vadd.s32 %v5007, 1
    %vm5013 = vcmp.gt.s32.totalorder %v5012, 0
    %v5014 = vsel %vm5013, %v5012, 0
    %v5015 = vshrl.u32 %v5014, 5
    %v5016 = vand.u32 %v5014, 31
    %v5017 = vsub.s32 32, %v5016
    %v5018 = vshrl.u32 683565275, %v5017
    %v5019 = vshll.u32 683565275, %v5016
    %v5020 = vshrl.u32 2475754826, %v5017
    %v5021 = vor.u32 %v5019, %v5020
    %v5022 = vshll.u32 2475754826, %v5016
    %v5023 = vshrl.u32 2131351028, %v5017
    %v5024 = vor.u32 %v5022, %v5023
    %v5025 = vshll.u32 2131351028, %v5016
    %v5026 = vshrl.u32 2102212464, %v5017
    %v5027 = vor.u32 %v5025, %v5026
    %v5028 = vshll.u32 2102212464, %v5016
    %v5029 = vshrl.u32 920167782, %v5017
    %v5030 = vor.u32 %v5028, %v5029
    %v5031 = vshll.u32 920167782, %v5016
    %v5032 = vshrl.u32 1326507024, %v5017
    %v5033 = vor.u32 %v5031, %v5032
    %vm5034 = vcmp.lt.s32.totalorder %v5015, 1
    %vm5035 = vcmp.lt.s32.totalorder %v5015, 2
    %vm5036 = vcmp.lt.s32.totalorder %v5015, 3
    %vm5037 = vcmp.lt.s32.totalorder %v5015, 4
    %v5038 = vsel %vm5034, %v5018, %v5021
    %v5039 = vsel %vm5037, %v5027, 2102212464
    %v5040 = vsel %vm5036, %v5024, %v5039
    %v5041 = vsel %vm5035, %v5038, %v5040
    %v5042 = vsel %vm5034, %v5021, %v5024
    %v5043 = vsel %vm5037, %v5030, 920167782
    %v5044 = vsel %vm5036, %v5027, %v5043
    %v5045 = vsel %vm5035, %v5042, %v5044
    %v5046 = vsel %vm5034, %v5024, %v5027
    %v5047 = vsel %vm5037, %v5033, 1326507024
    %v5048 = vsel %vm5036, %v5030, %v5047
    %v5049 = vsel %vm5035, %v5046, %v5048
    %v5050 = vshll.u32 %v5010, 8
    %v5051 = vand.u32 %v5050, 65535
    %v5052 = vshrl.u32 %v5050, 16
    %v5053 = vand.u32 %v5049, 65535
    %v5054 = vshrl.u32 %v5049, 16
    %v5055 = vmul.u32 %v5051, %v5053
    %v5056 = vmul.u32 %v5051, %v5054
    %v5057 = vmul.u32 %v5052, %v5053
    %v5058 = vmul.u32 %v5052, %v5054
    %v5059 = vshll.u32 %v5056, 16
    %v5060 = vshrl.u32 %v5056, 16
    %v5061 = vshll.u32 %v5057, 16
    %v5062 = vshrl.u32 %v5057, 16
    %vm5063 = vc.u32 %v5055, %v5059
    %v5064 = vsel %vm5063, 1, 0
    %v5065 = vadd.s32 %v5055, %v5059
    %v5066 = vadd.s32 %v5058, %v5064
    %vm5067 = vc.u32 %v5065, %v5061
    %v5068 = vsel %vm5067, 1, 0
    %v5069 = vadd.s32 %v5065, %v5061
    %v5070 = vadd.s32 %v5066, %v5068
    %v5071 = vadd.s32 %v5070, %v5060
    %v5072 = vadd.s32 %v5071, %v5062
    %v5073 = vand.u32 %v5050, 65535
    %v5074 = vshrl.u32 %v5050, 16
    %v5075 = vand.u32 %v5045, 65535
    %v5076 = vshrl.u32 %v5045, 16
    %v5077 = vmul.u32 %v5073, %v5075
    %v5078 = vmul.u32 %v5073, %v5076
    %v5079 = vmul.u32 %v5074, %v5075
    %v5080 = vmul.u32 %v5074, %v5076
    %v5081 = vshll.u32 %v5078, 16
    %v5082 = vshrl.u32 %v5078, 16
    %v5083 = vshll.u32 %v5079, 16
    %v5084 = vshrl.u32 %v5079, 16
    %vm5085 = vc.u32 %v5077, %v5081
    %v5086 = vsel %vm5085, 1, 0
    %v5087 = vadd.s32 %v5077, %v5081
    %v5088 = vadd.s32 %v5080, %v5086
    %vm5089 = vc.u32 %v5087, %v5083
    %v5090 = vsel %vm5089, 1, 0
    %v5091 = vadd.s32 %v5087, %v5083
    %v5092 = vadd.s32 %v5088, %v5090
    %v5093 = vadd.s32 %v5092, %v5082
    %v5094 = vadd.s32 %v5093, %v5084
    %v5095 = vmul.u32 %v5050, %v5041
    %v5096 = vadd.s32 %v5072, %v5091
    %vm5097 = vc.u32 %v5072, %v5091
    %v5098 = vadd.s32 %v5094, 1
    %v5099 = vsel %vm5097, %v5098, %v5094
    %v5100 = vadd.s32 %v5095, %v5099
    %v5101 = vadd.s32 %v5100, 536870912
    %v5102 = vshrl.u32 %v5101, 30
    %v5103 = vshll.u32 %v5102, 30
    %v5104 = vsub.s32 %v5100, %v5103
    %vm5105 = vcmp.lt.s32.totalorder %v5104, 0
    %v5106 = vsub.s32 0, %v5104
    %v5107 = vsel %vm5105, %v5106, %v5104
    %v5108 = vclz %v5107
    %v5109 = vsub.s32 %v5108, 2
    %vm5110 = vcmp.gt.s32.totalorder 0, %v5109
    %v5111 = vsel %vm5110, 0, %v5109
    %v5112 = vsub.s32 32, %v5111
    %v5113 = vshll.u32 %v5104, %v5111
    %v5114 = vshrl.u32 %v5096, %v5112
    %v5115 = vor.u32 %v5113, %v5114
    %v5116 = vsub.s32 4294967266, %v5111
    %v5117 = vadd.s32 %v5116, 127
    %v5118 = vshll.u32 %v5117, 23
    %v5119 = vor.u32 4788187, %v5118
    %v5120 = vand.u32 2147483647, %v5119
    %v5122 = vcvt.s32.f32 %v5115
    %v5123 = vmul.f32 %v5122, %v5120
    %v5124 = vxor.u32 %v5123, 2147483648
    %v5125 = vsel %vm5004, %v5124, %v5123
    %v5126 = vsub.s32 4, %v5102
    %v5127 = vsel %vm5004, %v5126, %v5102
    %v5128 = vsel %vm5003, %v195, %v5125
    %v5129 = vsel %vm5003, 0, %v5127
    %v5130 = vmul.f32 %v5128, %v5128
    %v5131 = vmul.f32 %v5130, -0.001358992
    %v5132 = vadd.f32 %v5131, 0.041655596
    %v5133 = vmul.f32 %v5130, %v5132
    %v5134 = vadd.f32 %v5133, -0.4999988
    %v5135 = vmul.f32 %v5130, %v5134
    %v5136 = vadd.f32 1.0, %v5135
    %v5137 = vmul.f32 %v5128, %v5128
    %v5138 = vmul.f32 %v5137, -0.00019511016
    %v5139 = vadd.f32 %v5138, 0.008332121
    %v5140 = vmul.f32 %v5137, %v5139
    %v5141 = vadd.f32 %v5140, -0.16666654
    %v5142 = vmul.f32 %v5137, %v5141
    %v5143 = vadd.f32 %v5142, 1.0
    %v5144 = vmul.f32 %v5143, %v5128
    %vm5145 = vweird.f32 %v195
    %v5146 = vadd.s32 %v5129, 3
    %v5147 = vand.u32 %v5146, 3
    %vm5148 = vcmp.lt.s32.totalorder %v5147, 2
    %vm5149 = vcmp.eq.s32.totalorder %v5147, 0
    %v5150 = vxor.u32 %v5144, 2147483648
    %v5151 = vsel %vm5149, %v5136, %v5150
    %vm5152 = vcmp.eq.s32.totalorder %v5147, 2
    %v5153 = vxor.u32 %v5136, 2147483648
    %v5154 = vsel %vm5152, %v5153, %v5144
    %v5155 = vsel %vm5148, %v5151, %v5154
    %v5156 = vsel %vm5145, nan, %v5155
    %v5157 = vand.u32 2147483647, %v164
    %vm5158 = vcmp.le.f32.partialorder %v5157, 0.7853982
    %vm5159 = vcmp.lt.s32.totalorder %v164, 0
    %v5160 = vand.u32 %v164, 2139095040
    %v5161 = vshrl.u32 %v5160, 23
    %v5162 = vsub.s32 %v5161, 127
    %v5163 = vand.u32 2147483647, %v164
    %v5164 = vand.u32 %v5163, 8388607
    %v5165 = vor.u32 %v5164, 8388608
    %v5166 = vsub.s32 0, %v5165
    %v5167 = vadd.s32 %v5162, 1
    %vm5168 = vcmp.gt.s32.totalorder %v5167, 0
    %v5169 = vsel %vm5168, %v5167, 0
    %v5170 = vshrl.u32 %v5169, 5
    %v5171 = vand.u32 %v5169, 31
    %v5172 = vsub.s32 32, %v5171
    %v5173 = vshrl.u32 683565275, %v5172
    %v5174 = vshll.u32 683565275, %v5171
    %v5175 = vshrl.u32 2475754826, %v5172
    %v5176 = vor.u32 %v5174, %v5175
    %v5177 = vshll.u32 2475754826, %v5171
    %v5178 = vshrl.u32 2131351028, %v5172
    %v5179 = vor.u32 %v5177, %v5178
    %v5180 = vshll.u32 2131351028, %v5171
    %v5181 = vshrl.u32 2102212464, %v5172
    %v5182 = vor.u32 %v5180, %v5181
    %v5183 = vshll.u32 2102212464, %v5171
    %v5184 = vshrl.u32 920167782, %v5172
    %v5185 = vor.u32 %v5183, %v5184
    %v5186 = vshll.u32 920167782, %v5171
    %v5187 = vshrl.u32 1326507024, %v5172
    %v5188 = vor.u32 %v5186, %v5187
    %vm5189 = vcmp.lt.s32.totalorder %v5170, 1
    %vm5190 = vcmp.lt.s32.totalorder %v5170, 2
    %vm5191 = vcmp.lt.s32.totalorder %v5170, 3
    %vm5192 = vcmp.lt.s32.totalorder %v5170, 4
    %v5193 = vsel %vm5189, %v5173, %v5176
    %v5194 = vsel %vm5192, %v5182, 2102212464
    %v5195 = vsel %vm5191, %v5179, %v5194
    %v5196 = vsel %vm5190, %v5193, %v5195
    %v5197 = vsel %vm5189, %v5176, %v5179
    %v5198 = vsel %vm5192, %v5185, 920167782
    %v5199 = vsel %vm5191, %v5182, %v5198
    %v5200 = vsel %vm5190, %v5197, %v5199
    %v5201 = vsel %vm5189, %v5179, %v5182
    %v5202 = vsel %vm5192, %v5188, 1326507024
    %v5203 = vsel %vm5191, %v5185, %v5202
    %v5204 = vsel %vm5190, %v5201, %v5203
    %v5205 = vshll.u32 %v5165, 8
    %v5206 = vand.u32 %v5205, 65535
    %v5207 = vshrl.u32 %v5205, 16
    %v5208 = vand.u32 %v5204, 65535
    %v5209 = vshrl.u32 %v5204, 16
    %v5210 = vmul.u32 %v5206, %v5208
    %v5211 = vmul.u32 %v5206, %v5209
    %v5212 = vmul.u32 %v5207, %v5208
    %v5213 = vmul.u32 %v5207, %v5209
    %v5214 = vshll.u32 %v5211, 16
    %v5215 = vshrl.u32 %v5211, 16
    %v5216 = vshll.u32 %v5212, 16
    %v5217 = vshrl.u32 %v5212, 16
    %vm5218 = vc.u32 %v5210, %v5214
    %v5219 = vsel %vm5218, 1, 0
    %v5220 = vadd.s32 %v5210, %v5214
    %v5221 = vadd.s32 %v5213, %v5219
    %vm5222 = vc.u32 %v5220, %v5216
    %v5223 = vsel %vm5222, 1, 0
    %v5224 = vadd.s32 %v5220, %v5216
    %v5225 = vadd.s32 %v5221, %v5223
    %v5226 = vadd.s32 %v5225, %v5215
    %v5227 = vadd.s32 %v5226, %v5217
    %v5228 = vand.u32 %v5205, 65535
    %v5229 = vshrl.u32 %v5205, 16
    %v5230 = vand.u32 %v5200, 65535
    %v5231 = vshrl.u32 %v5200, 16
    %v5232 = vmul.u32 %v5228, %v5230
    %v5233 = vmul.u32 %v5228, %v5231
    %v5234 = vmul.u32 %v5229, %v5230
    %v5235 = vmul.u32 %v5229, %v5231
    %v5236 = vshll.u32 %v5233, 16
    %v5237 = vshrl.u32 %v5233, 16
    %v5238 = vshll.u32 %v5234, 16
    %v5239 = vshrl.u32 %v5234, 16
    %vm5240 = vc.u32 %v5232, %v5236
    %v5241 = vsel %vm5240, 1, 0
    %v5242 = vadd.s32 %v5232, %v5236
    %v5243 = vadd.s32 %v5235, %v5241
    %vm5244 = vc.u32 %v5242, %v5238
    %v5245 = vsel %vm5244, 1, 0
    %v5246 = vadd.s32 %v5242, %v5238
    %v5247 = vadd.s32 %v5243, %v5245
    %v5248 = vadd.s32 %v5247, %v5237
    %v5249 = vadd.s32 %v5248, %v5239
    %v5250 = vmul.u32 %v5205, %v5196
    %v5251 = vadd.s32 %v5227, %v5246
    %vm5252 = vc.u32 %v5227, %v5246
    %v5253 = vadd.s32 %v5249, 1
    %v5254 = vsel %vm5252, %v5253, %v5249
    %v5255 = vadd.s32 %v5250, %v5254
    %v5256 = vadd.s32 %v5255, 536870912
    %v5257 = vshrl.u32 %v5256, 30
    %v5258 = vshll.u32 %v5257, 30
    %v5259 = vsub.s32 %v5255, %v5258
    %vm5260 = vcmp.lt.s32.totalorder %v5259, 0
    %v5261 = vsub.s32 0, %v5259
    %v5262 = vsel %vm5260, %v5261, %v5259
    %v5263 = vclz %v5262
    %v5264 = vsub.s32 %v5263, 2
    %vm5265 = vcmp.gt.s32.totalorder 0, %v5264
    %v5266 = vsel %vm5265, 0, %v5264
    %v5267 = vsub.s32 32, %v5266
    %v5268 = vshll.u32 %v5259, %v5266
    %v5269 = vshrl.u32 %v5251, %v5267
    %v5270 = vor.u32 %v5268, %v5269
    %v5271 = vsub.s32 4294967266, %v5266
    %v5272 = vadd.s32 %v5271, 127
    %v5273 = vshll.u32 %v5272, 23
    %v5274 = vor.u32 4788187, %v5273
    %v5275 = vand.u32 2147483647, %v5274
    %v5277 = vcvt.s32.f32 %v5270
    %v5278 = vmul.f32 %v5277, %v5275
    %v5279 = vxor.u32 %v5278, 2147483648
    %v5280 = vsel %vm5159, %v5279, %v5278
    %v5281 = vsub.s32 4, %v5257
    %v5282 = vsel %vm5159, %v5281, %v5257
    %v5283 = vsel %vm5158, %v164, %v5280
    %v5284 = vsel %vm5158, 0, %v5282
    %v5285 = vmul.f32 %v5283, %v5283
    %v5286 = vmul.f32 %v5285, -0.001358992
    %v5287 = vadd.f32 %v5286, 0.041655596
    %v5288 = vmul.f32 %v5285, %v5287
    %v5289 = vadd.f32 %v5288, -0.4999988
    %v5290 = vmul.f32 %v5285, %v5289
    %v5291 = vadd.f32 1.0, %v5290
    %v5292 = vmul.f32 %v5283, %v5283
    %v5293 = vmul.f32 %v5292, -0.00019511016
    %v5294 = vadd.f32 %v5293, 0.008332121
    %v5295 = vmul.f32 %v5292, %v5294
    %v5296 = vadd.f32 %v5295, -0.16666654
    %v5297 = vmul.f32 %v5292, %v5296
    %v5298 = vadd.f32 %v5297, 1.0
    %v5299 = vmul.f32 %v5298, %v5283
    %vm5300 = vweird.f32 %v164
    %v5301 = vand.u32 %v5284, 3
    %vm5302 = vcmp.lt.s32.totalorder %v5301, 2
    %vm5303 = vcmp.eq.s32.totalorder %v5301, 0
    %v5304 = vxor.u32 %v5299, 2147483648
    %v5305 = vsel %vm5303, %v5291, %v5304
    %vm5306 = vcmp.eq.s32.totalorder %v5301, 2
    %v5307 = vxor.u32 %v5291, 2147483648
    %v5308 = vsel %vm5306, %v5307, %v5299
    %v5309 = vsel %vm5302, %v5305, %v5308
    %v5310 = vsel %vm5300, nan, %v5309
    %v5311 = vand.u32 2147483647, %v165
    %vm5312 = vcmp.le.f32.partialorder %v5311, 0.7853982
    %vm5313 = vcmp.lt.s32.totalorder %v165, 0
    %v5314 = vand.u32 %v165, 2139095040
    %v5315 = vshrl.u32 %v5314, 23
    %v5316 = vsub.s32 %v5315, 127
    %v5317 = vand.u32 2147483647, %v165
    %v5318 = vand.u32 %v5317, 8388607
    %v5319 = vor.u32 %v5318, 8388608
    %v5320 = vsub.s32 0, %v5319
    %v5321 = vadd.s32 %v5316, 1
    %vm5322 = vcmp.gt.s32.totalorder %v5321, 0
    %v5323 = vsel %vm5322, %v5321, 0
    %v5324 = vshrl.u32 %v5323, 5
    %v5325 = vand.u32 %v5323, 31
    %v5326 = vsub.s32 32, %v5325
    %v5327 = vshrl.u32 683565275, %v5326
    %v5328 = vshll.u32 683565275, %v5325
    %v5329 = vshrl.u32 2475754826, %v5326
    %v5330 = vor.u32 %v5328, %v5329
    %v5331 = vshll.u32 2475754826, %v5325
    %v5332 = vshrl.u32 2131351028, %v5326
    %v5333 = vor.u32 %v5331, %v5332
    %v5334 = vshll.u32 2131351028, %v5325
    %v5335 = vshrl.u32 2102212464, %v5326
    %v5336 = vor.u32 %v5334, %v5335
    %v5337 = vshll.u32 2102212464, %v5325
    %v5338 = vshrl.u32 920167782, %v5326
    %v5339 = vor.u32 %v5337, %v5338
    %v5340 = vshll.u32 920167782, %v5325
    %v5341 = vshrl.u32 1326507024, %v5326
    %v5342 = vor.u32 %v5340, %v5341
    %vm5343 = vcmp.lt.s32.totalorder %v5324, 1
    %vm5344 = vcmp.lt.s32.totalorder %v5324, 2
    %vm5345 = vcmp.lt.s32.totalorder %v5324, 3
    %vm5346 = vcmp.lt.s32.totalorder %v5324, 4
    %v5347 = vsel %vm5343, %v5327, %v5330
    %v5348 = vsel %vm5346, %v5336, 2102212464
    %v5349 = vsel %vm5345, %v5333, %v5348
    %v5350 = vsel %vm5344, %v5347, %v5349
    %v5351 = vsel %vm5343, %v5330, %v5333
    %v5352 = vsel %vm5346, %v5339, 920167782
    %v5353 = vsel %vm5345, %v5336, %v5352
    %v5354 = vsel %vm5344, %v5351, %v5353
    %v5355 = vsel %vm5343, %v5333, %v5336
    %v5356 = vsel %vm5346, %v5342, 1326507024
    %v5357 = vsel %vm5345, %v5339, %v5356
    %v5358 = vsel %vm5344, %v5355, %v5357
    %v5359 = vshll.u32 %v5319, 8
    %v5360 = vand.u32 %v5359, 65535
    %v5361 = vshrl.u32 %v5359, 16
    %v5362 = vand.u32 %v5358, 65535
    %v5363 = vshrl.u32 %v5358, 16
    %v5364 = vmul.u32 %v5360, %v5362
    %v5365 = vmul.u32 %v5360, %v5363
    %v5366 = vmul.u32 %v5361, %v5362
    %v5367 = vmul.u32 %v5361, %v5363
    %v5368 = vshll.u32 %v5365, 16
    %v5369 = vshrl.u32 %v5365, 16
    %v5370 = vshll.u32 %v5366, 16
    %v5371 = vshrl.u32 %v5366, 16
    %vm5372 = vc.u32 %v5364, %v5368
    %v5373 = vsel %vm5372, 1, 0
    %v5374 = vadd.s32 %v5364, %v5368
    %v5375 = vadd.s32 %v5367, %v5373
    %vm5376 = vc.u32 %v5374, %v5370
    %v5377 = vsel %vm5376, 1, 0
    %v5378 = vadd.s32 %v5374, %v5370
    %v5379 = vadd.s32 %v5375, %v5377
    %v5380 = vadd.s32 %v5379, %v5369
    %v5381 = vadd.s32 %v5380, %v5371
    %v5382 = vand.u32 %v5359, 65535
    %v5383 = vshrl.u32 %v5359, 16
    %v5384 = vand.u32 %v5354, 65535
    %v5385 = vshrl.u32 %v5354, 16
    %v5386 = vmul.u32 %v5382, %v5384
    %v5387 = vmul.u32 %v5382, %v5385
    %v5388 = vmul.u32 %v5383, %v5384
    %v5389 = vmul.u32 %v5383, %v5385
    %v5390 = vshll.u32 %v5387, 16
    %v5391 = vshrl.u32 %v5387, 16
    %v5392 = vshll.u32 %v5388, 16
    %v5393 = vshrl.u32 %v5388, 16
    %vm5394 = vc.u32 %v5386, %v5390
    %v5395 = vsel %vm5394, 1, 0
    %v5396 = vadd.s32 %v5386, %v5390
    %v5397 = vadd.s32 %v5389, %v5395
    %vm5398 = vc.u32 %v5396, %v5392
    %v5399 = vsel %vm5398, 1, 0
    %v5400 = vadd.s32 %v5396, %v5392
    %v5401 = vadd.s32 %v5397, %v5399
    %v5402 = vadd.s32 %v5401, %v5391
    %v5403 = vadd.s32 %v5402, %v5393
    %v5404 = vmul.u32 %v5359, %v5350
    %v5405 = vadd.s32 %v5381, %v5400
    %vm5406 = vc.u32 %v5381, %v5400
    %v5407 = vadd.s32 %v5403, 1
    %v5408 = vsel %vm5406, %v5407, %v5403
    %v5409 = vadd.s32 %v5404, %v5408
    %v5410 = vadd.s32 %v5409, 536870912
    %v5411 = vshrl.u32 %v5410, 30
    %v5412 = vshll.u32 %v5411, 30
    %v5413 = vsub.s32 %v5409, %v5412
    %vm5414 = vcmp.lt.s32.totalorder %v5413, 0
    %v5415 = vsub.s32 0, %v5413
    %v5416 = vsel %vm5414, %v5415, %v5413
    %v5417 = vclz %v5416
    %v5418 = vsub.s32 %v5417, 2
    %vm5419 = vcmp.gt.s32.totalorder 0, %v5418
    %v5420 = vsel %vm5419, 0, %v5418
    %v5421 = vsub.s32 32, %v5420
    %v5422 = vshll.u32 %v5413, %v5420
    %v5423 = vshrl.u32 %v5405, %v5421
    %v5424 = vor.u32 %v5422, %v5423
    %v5425 = vsub.s32 4294967266, %v5420
    %v5426 = vadd.s32 %v5425, 127
    %v5427 = vshll.u32 %v5426, 23
    %v5428 = vor.u32 4788187, %v5427
    %v5429 = vand.u32 2147483647, %v5428
    %v5431 = vcvt.s32.f32 %v5424
    %v5432 = vmul.f32 %v5431, %v5429
    %v5433 = vxor.u32 %v5432, 2147483648
    %v5434 = vsel %vm5313, %v5433, %v5432
    %v5435 = vsub.s32 4, %v5411
    %v5436 = vsel %vm5313, %v5435, %v5411
    %v5437 = vsel %vm5312, %v165, %v5434
    %v5438 = vsel %vm5312, 0, %v5436
    %v5439 = vmul.f32 %v5437, %v5437
    %v5440 = vmul.f32 %v5439, -0.001358992
    %v5441 = vadd.f32 %v5440, 0.041655596
    %v5442 = vmul.f32 %v5439, %v5441
    %v5443 = vadd.f32 %v5442, -0.4999988
    %v5444 = vmul.f32 %v5439, %v5443
    %v5445 = vadd.f32 1.0, %v5444
    %v5446 = vmul.f32 %v5437, %v5437
    %v5447 = vmul.f32 %v5446, -0.00019511016
    %v5448 = vadd.f32 %v5447, 0.008332121
    %v5449 = vmul.f32 %v5446, %v5448
    %v5450 = vadd.f32 %v5449, -0.16666654
    %v5451 = vmul.f32 %v5446, %v5450
    %v5452 = vadd.f32 %v5451, 1.0
    %v5453 = vmul.f32 %v5452, %v5437
    %vm5454 = vweird.f32 %v165
    %v5455 = vand.u32 %v5438, 3
    %vm5456 = vcmp.lt.s32.totalorder %v5455, 2
    %vm5457 = vcmp.eq.s32.totalorder %v5455, 0
    %v5458 = vxor.u32 %v5453, 2147483648
    %v5459 = vsel %vm5457, %v5445, %v5458
    %vm5460 = vcmp.eq.s32.totalorder %v5455, 2
    %v5461 = vxor.u32 %v5445, 2147483648
    %v5462 = vsel %vm5460, %v5461, %v5453
    %v5463 = vsel %vm5456, %v5459, %v5462
    %v5464 = vsel %vm5454, nan, %v5463
    %v5465 = vand.u32 2147483647, %v166
    %vm5466 = vcmp.le.f32.partialorder %v5465, 0.7853982
    %vm5467 = vcmp.lt.s32.totalorder %v166, 0
    %v5468 = vand.u32 %v166, 2139095040
    %v5469 = vshrl.u32 %v5468, 23
    %v5470 = vsub.s32 %v5469, 127
    %v5471 = vand.u32 2147483647, %v166
    %v5472 = vand.u32 %v5471, 8388607
    %v5473 = vor.u32 %v5472, 8388608
    %v5474 = vsub.s32 0, %v5473
    %v5475 = vadd.s32 %v5470, 1
    %vm5476 = vcmp.gt.s32.totalorder %v5475, 0
    %v5477 = vsel %vm5476, %v5475, 0
    %v5478 = vshrl.u32 %v5477, 5
    %v5479 = vand.u32 %v5477, 31
    %v5480 = vsub.s32 32, %v5479
    %v5481 = vshrl.u32 683565275, %v5480
    %v5482 = vshll.u32 683565275, %v5479
    %v5483 = vshrl.u32 2475754826, %v5480
    %v5484 = vor.u32 %v5482, %v5483
    %v5485 = vshll.u32 2475754826, %v5479
    %v5486 = vshrl.u32 2131351028, %v5480
    %v5487 = vor.u32 %v5485, %v5486
    %v5488 = vshll.u32 2131351028, %v5479
    %v5489 = vshrl.u32 2102212464, %v5480
    %v5490 = vor.u32 %v5488, %v5489
    %v5491 = vshll.u32 2102212464, %v5479
    %v5492 = vshrl.u32 920167782, %v5480
    %v5493 = vor.u32 %v5491, %v5492
    %v5494 = vshll.u32 920167782, %v5479
    %v5495 = vshrl.u32 1326507024, %v5480
    %v5496 = vor.u32 %v5494, %v5495
    %vm5497 = vcmp.lt.s32.totalorder %v5478, 1
    %vm5498 = vcmp.lt.s32.totalorder %v5478, 2
    %vm5499 = vcmp.lt.s32.totalorder %v5478, 3
    %vm5500 = vcmp.lt.s32.totalorder %v5478, 4
    %v5501 = vsel %vm5497, %v5481, %v5484
    %v5502 = vsel %vm5500, %v5490, 2102212464
    %v5503 = vsel %vm5499, %v5487, %v5502
    %v5504 = vsel %vm5498, %v5501, %v5503
    %v5505 = vsel %vm5497, %v5484, %v5487
    %v5506 = vsel %vm5500, %v5493, 920167782
    %v5507 = vsel %vm5499, %v5490, %v5506
    %v5508 = vsel %vm5498, %v5505, %v5507
    %v5509 = vsel %vm5497, %v5487, %v5490
    %v5510 = vsel %vm5500, %v5496, 1326507024
    %v5511 = vsel %vm5499, %v5493, %v5510
    %v5512 = vsel %vm5498, %v5509, %v5511
    %v5513 = vshll.u32 %v5473, 8
    %v5514 = vand.u32 %v5513, 65535
    %v5515 = vshrl.u32 %v5513, 16
    %v5516 = vand.u32 %v5512, 65535
    %v5517 = vshrl.u32 %v5512, 16
    %v5518 = vmul.u32 %v5514, %v5516
    %v5519 = vmul.u32 %v5514, %v5517
    %v5520 = vmul.u32 %v5515, %v5516
    %v5521 = vmul.u32 %v5515, %v5517
    %v5522 = vshll.u32 %v5519, 16
    %v5523 = vshrl.u32 %v5519, 16
    %v5524 = vshll.u32 %v5520, 16
    %v5525 = vshrl.u32 %v5520, 16
    %vm5526 = vc.u32 %v5518, %v5522
    %v5527 = vsel %vm5526, 1, 0
    %v5528 = vadd.s32 %v5518, %v5522
    %v5529 = vadd.s32 %v5521, %v5527
    %vm5530 = vc.u32 %v5528, %v5524
    %v5531 = vsel %vm5530, 1, 0
    %v5532 = vadd.s32 %v5528, %v5524
    %v5533 = vadd.s32 %v5529, %v5531
    %v5534 = vadd.s32 %v5533, %v5523
    %v5535 = vadd.s32 %v5534, %v5525
    %v5536 = vand.u32 %v5513, 65535
    %v5537 = vshrl.u32 %v5513, 16
    %v5538 = vand.u32 %v5508, 65535
    %v5539 = vshrl.u32 %v5508, 16
    %v5540 = vmul.u32 %v5536, %v5538
    %v5541 = vmul.u32 %v5536, %v5539
    %v5542 = vmul.u32 %v5537, %v5538
    %v5543 = vmul.u32 %v5537, %v5539
    %v5544 = vshll.u32 %v5541, 16
    %v5545 = vshrl.u32 %v5541, 16
    %v5546 = vshll.u32 %v5542, 16
    %v5547 = vshrl.u32 %v5542, 16
    %vm5548 = vc.u32 %v5540, %v5544
    %v5549 = vsel %vm5548, 1, 0
    %v5550 = vadd.s32 %v5540, %v5544
    %v5551 = vadd.s32 %v5543, %v5549
    %vm5552 = vc.u32 %v5550, %v5546
    %v5553 = vsel %vm5552, 1, 0
    %v5554 = vadd.s32 %v5550, %v5546
    %v5555 = vadd.s32 %v5551, %v5553
    %v5556 = vadd.s32 %v5555, %v5545
    %v5557 = vadd.s32 %v5556, %v5547
    %v5558 = vmul.u32 %v5513, %v5504
    %v5559 = vadd.s32 %v5535, %v5554
    %vm5560 = vc.u32 %v5535, %v5554
    %v5561 = vadd.s32 %v5557, 1
    %v5562 = vsel %vm5560, %v5561, %v5557
    %v5563 = vadd.s32 %v5558, %v5562
    %v5564 = vadd.s32 %v5563, 536870912
    %v5565 = vshrl.u32 %v5564, 30
    %v5566 = vshll.u32 %v5565, 30
    %v5567 = vsub.s32 %v5563, %v5566
    %vm5568 = vcmp.lt.s32.totalorder %v5567, 0
    %v5569 = vsub.s32 0, %v5567
    %v5570 = vsel %vm5568, %v5569, %v5567
    %v5571 = vclz %v5570
    %v5572 = vsub.s32 %v5571, 2
    %vm5573 = vcmp.gt.s32.totalorder 0, %v5572
    %v5574 = vsel %vm5573, 0, %v5572
    %v5575 = vsub.s32 32, %v5574
    %v5576 = vshll.u32 %v5567, %v5574
    %v5577 = vshrl.u32 %v5559, %v5575
    %v5578 = vor.u32 %v5576, %v5577
    %v5579 = vsub.s32 4294967266, %v5574
    %v5580 = vadd.s32 %v5579, 127
    %v5581 = vshll.u32 %v5580, 23
    %v5582 = vor.u32 4788187, %v5581
    %v5583 = vand.u32 2147483647, %v5582
    %v5585 = vcvt.s32.f32 %v5578
    %v5586 = vmul.f32 %v5585, %v5583
    %v5587 = vxor.u32 %v5586, 2147483648
    %v5588 = vsel %vm5467, %v5587, %v5586
    %v5589 = vsub.s32 4, %v5565
    %v5590 = vsel %vm5467, %v5589, %v5565
    %v5591 = vsel %vm5466, %v166, %v5588
    %v5592 = vsel %vm5466, 0, %v5590
    %v5593 = vmul.f32 %v5591, %v5591
    %v5594 = vmul.f32 %v5593, -0.001358992
    %v5595 = vadd.f32 %v5594, 0.041655596
    %v5596 = vmul.f32 %v5593, %v5595
    %v5597 = vadd.f32 %v5596, -0.4999988
    %v5598 = vmul.f32 %v5593, %v5597
    %v5599 = vadd.f32 1.0, %v5598
    %v5600 = vmul.f32 %v5591, %v5591
    %v5601 = vmul.f32 %v5600, -0.00019511016
    %v5602 = vadd.f32 %v5601, 0.008332121
    %v5603 = vmul.f32 %v5600, %v5602
    %v5604 = vadd.f32 %v5603, -0.16666654
    %v5605 = vmul.f32 %v5600, %v5604
    %v5606 = vadd.f32 %v5605, 1.0
    %v5607 = vmul.f32 %v5606, %v5591
    %vm5608 = vweird.f32 %v166
    %v5609 = vand.u32 %v5592, 3
    %vm5610 = vcmp.lt.s32.totalorder %v5609, 2
    %vm5611 = vcmp.eq.s32.totalorder %v5609, 0
    %v5612 = vxor.u32 %v5607, 2147483648
    %v5613 = vsel %vm5611, %v5599, %v5612
    %vm5614 = vcmp.eq.s32.totalorder %v5609, 2
    %v5615 = vxor.u32 %v5599, 2147483648
    %v5616 = vsel %vm5614, %v5615, %v5607
    %v5617 = vsel %vm5610, %v5613, %v5616
    %v5618 = vsel %vm5608, nan, %v5617
    %v5619 = vand.u32 2147483647, %v167
    %vm5620 = vcmp.le.f32.partialorder %v5619, 0.7853982
    %vm5621 = vcmp.lt.s32.totalorder %v167, 0
    %v5622 = vand.u32 %v167, 2139095040
    %v5623 = vshrl.u32 %v5622, 23
    %v5624 = vsub.s32 %v5623, 127
    %v5625 = vand.u32 2147483647, %v167
    %v5626 = vand.u32 %v5625, 8388607
    %v5627 = vor.u32 %v5626, 8388608
    %v5628 = vsub.s32 0, %v5627
    %v5629 = vadd.s32 %v5624, 1
    %vm5630 = vcmp.gt.s32.totalorder %v5629, 0
    %v5631 = vsel %vm5630, %v5629, 0
    %v5632 = vshrl.u32 %v5631, 5
    %v5633 = vand.u32 %v5631, 31
    %v5634 = vsub.s32 32, %v5633
    %v5635 = vshrl.u32 683565275, %v5634
    %v5636 = vshll.u32 683565275, %v5633
    %v5637 = vshrl.u32 2475754826, %v5634
    %v5638 = vor.u32 %v5636, %v5637
    %v5639 = vshll.u32 2475754826, %v5633
    %v5640 = vshrl.u32 2131351028, %v5634
    %v5641 = vor.u32 %v5639, %v5640
    %v5642 = vshll.u32 2131351028, %v5633
    %v5643 = vshrl.u32 2102212464, %v5634
    %v5644 = vor.u32 %v5642, %v5643
    %v5645 = vshll.u32 2102212464, %v5633
    %v5646 = vshrl.u32 920167782, %v5634
    %v5647 = vor.u32 %v5645, %v5646
    %v5648 = vshll.u32 920167782, %v5633
    %v5649 = vshrl.u32 1326507024, %v5634
    %v5650 = vor.u32 %v5648, %v5649
    %vm5651 = vcmp.lt.s32.totalorder %v5632, 1
    %vm5652 = vcmp.lt.s32.totalorder %v5632, 2
    %vm5653 = vcmp.lt.s32.totalorder %v5632, 3
    %vm5654 = vcmp.lt.s32.totalorder %v5632, 4
    %v5655 = vsel %vm5651, %v5635, %v5638
    %v5656 = vsel %vm5654, %v5644, 2102212464
    %v5657 = vsel %vm5653, %v5641, %v5656
    %v5658 = vsel %vm5652, %v5655, %v5657
    %v5659 = vsel %vm5651, %v5638, %v5641
    %v5660 = vsel %vm5654, %v5647, 920167782
    %v5661 = vsel %vm5653, %v5644, %v5660
    %v5662 = vsel %vm5652, %v5659, %v5661
    %v5663 = vsel %vm5651, %v5641, %v5644
    %v5664 = vsel %vm5654, %v5650, 1326507024
    %v5665 = vsel %vm5653, %v5647, %v5664
    %v5666 = vsel %vm5652, %v5663, %v5665
    %v5667 = vshll.u32 %v5627, 8
    %v5668 = vand.u32 %v5667, 65535
    %v5669 = vshrl.u32 %v5667, 16
    %v5670 = vand.u32 %v5666, 65535
    %v5671 = vshrl.u32 %v5666, 16
    %v5672 = vmul.u32 %v5668, %v5670
    %v5673 = vmul.u32 %v5668, %v5671
    %v5674 = vmul.u32 %v5669, %v5670
    %v5675 = vmul.u32 %v5669, %v5671
    %v5676 = vshll.u32 %v5673, 16
    %v5677 = vshrl.u32 %v5673, 16
    %v5678 = vshll.u32 %v5674, 16
    %v5679 = vshrl.u32 %v5674, 16
    %vm5680 = vc.u32 %v5672, %v5676
    %v5681 = vsel %vm5680, 1, 0
    %v5682 = vadd.s32 %v5672, %v5676
    %v5683 = vadd.s32 %v5675, %v5681
    %vm5684 = vc.u32 %v5682, %v5678
    %v5685 = vsel %vm5684, 1, 0
    %v5686 = vadd.s32 %v5682, %v5678
    %v5687 = vadd.s32 %v5683, %v5685
    %v5688 = vadd.s32 %v5687, %v5677
    %v5689 = vadd.s32 %v5688, %v5679
    %v5690 = vand.u32 %v5667, 65535
    %v5691 = vshrl.u32 %v5667, 16
    %v5692 = vand.u32 %v5662, 65535
    %v5693 = vshrl.u32 %v5662, 16
    %v5694 = vmul.u32 %v5690, %v5692
    %v5695 = vmul.u32 %v5690, %v5693
    %v5696 = vmul.u32 %v5691, %v5692
    %v5697 = vmul.u32 %v5691, %v5693
    %v5698 = vshll.u32 %v5695, 16
    %v5699 = vshrl.u32 %v5695, 16
    %v5700 = vshll.u32 %v5696, 16
    %v5701 = vshrl.u32 %v5696, 16
    %vm5702 = vc.u32 %v5694, %v5698
    %v5703 = vsel %vm5702, 1, 0
    %v5704 = vadd.s32 %v5694, %v5698
    %v5705 = vadd.s32 %v5697, %v5703
    %vm5706 = vc.u32 %v5704, %v5700
    %v5707 = vsel %vm5706, 1, 0
    %v5708 = vadd.s32 %v5704, %v5700
    %v5709 = vadd.s32 %v5705, %v5707
    %v5710 = vadd.s32 %v5709, %v5699
    %v5711 = vadd.s32 %v5710, %v5701
    %v5712 = vmul.u32 %v5667, %v5658
    %v5713 = vadd.s32 %v5689, %v5708
    %vm5714 = vc.u32 %v5689, %v5708
    %v5715 = vadd.s32 %v5711, 1
    %v5716 = vsel %vm5714, %v5715, %v5711
    %v5717 = vadd.s32 %v5712, %v5716
    %v5718 = vadd.s32 %v5717, 536870912
    %v5719 = vshrl.u32 %v5718, 30
    %v5720 = vshll.u32 %v5719, 30
    %v5721 = vsub.s32 %v5717, %v5720
    %vm5722 = vcmp.lt.s32.totalorder %v5721, 0
    %v5723 = vsub.s32 0, %v5721
    %v5724 = vsel %vm5722, %v5723, %v5721
    %v5725 = vclz %v5724
    %v5726 = vsub.s32 %v5725, 2
    %vm5727 = vcmp.gt.s32.totalorder 0, %v5726
    %v5728 = vsel %vm5727, 0, %v5726
    %v5729 = vsub.s32 32, %v5728
    %v5730 = vshll.u32 %v5721, %v5728
    %v5731 = vshrl.u32 %v5713, %v5729
    %v5732 = vor.u32 %v5730, %v5731
    %v5733 = vsub.s32 4294967266, %v5728
    %v5734 = vadd.s32 %v5733, 127
    %v5735 = vshll.u32 %v5734, 23
    %v5736 = vor.u32 4788187, %v5735
    %v5737 = vand.u32 2147483647, %v5736
    %v5739 = vcvt.s32.f32 %v5732
    %v5740 = vmul.f32 %v5739, %v5737
    %v5741 = vxor.u32 %v5740, 2147483648
    %v5742 = vsel %vm5621, %v5741, %v5740
    %v5743 = vsub.s32 4, %v5719
    %v5744 = vsel %vm5621, %v5743, %v5719
    %v5745 = vsel %vm5620, %v167, %v5742
    %v5746 = vsel %vm5620, 0, %v5744
    %v5747 = vmul.f32 %v5745, %v5745
    %v5748 = vmul.f32 %v5747, -0.001358992
    %v5749 = vadd.f32 %v5748, 0.041655596
    %v5750 = vmul.f32 %v5747, %v5749
    %v5751 = vadd.f32 %v5750, -0.4999988
    %v5752 = vmul.f32 %v5747, %v5751
    %v5753 = vadd.f32 1.0, %v5752
    %v5754 = vmul.f32 %v5745, %v5745
    %v5755 = vmul.f32 %v5754, -0.00019511016
    %v5756 = vadd.f32 %v5755, 0.008332121
    %v5757 = vmul.f32 %v5754, %v5756
    %v5758 = vadd.f32 %v5757, -0.16666654
    %v5759 = vmul.f32 %v5754, %v5758
    %v5760 = vadd.f32 %v5759, 1.0
    %v5761 = vmul.f32 %v5760, %v5745
    %vm5762 = vweird.f32 %v167
    %v5763 = vand.u32 %v5746, 3
    %vm5764 = vcmp.lt.s32.totalorder %v5763, 2
    %vm5765 = vcmp.eq.s32.totalorder %v5763, 0
    %v5766 = vxor.u32 %v5761, 2147483648
    %v5767 = vsel %vm5765, %v5753, %v5766
    %vm5768 = vcmp.eq.s32.totalorder %v5763, 2
    %v5769 = vxor.u32 %v5753, 2147483648
    %v5770 = vsel %vm5768, %v5769, %v5761
    %v5771 = vsel %vm5764, %v5767, %v5770
    %v5772 = vsel %vm5762, nan, %v5771
    %v5773 = vand.u32 2147483647, %v168
    %vm5774 = vcmp.le.f32.partialorder %v5773, 0.7853982
    %vm5775 = vcmp.lt.s32.totalorder %v168, 0
    %v5776 = vand.u32 %v168, 2139095040
    %v5777 = vshrl.u32 %v5776, 23
    %v5778 = vsub.s32 %v5777, 127
    %v5779 = vand.u32 2147483647, %v168
    %v5780 = vand.u32 %v5779, 8388607
    %v5781 = vor.u32 %v5780, 8388608
    %v5782 = vsub.s32 0, %v5781
    %v5783 = vadd.s32 %v5778, 1
    %vm5784 = vcmp.gt.s32.totalorder %v5783, 0
    %v5785 = vsel %vm5784, %v5783, 0
    %v5786 = vshrl.u32 %v5785, 5
    %v5787 = vand.u32 %v5785, 31
    %v5788 = vsub.s32 32, %v5787
    %v5789 = vshrl.u32 683565275, %v5788
    %v5790 = vshll.u32 683565275, %v5787
    %v5791 = vshrl.u32 2475754826, %v5788
    %v5792 = vor.u32 %v5790, %v5791
    %v5793 = vshll.u32 2475754826, %v5787
    %v5794 = vshrl.u32 2131351028, %v5788
    %v5795 = vor.u32 %v5793, %v5794
    %v5796 = vshll.u32 2131351028, %v5787
    %v5797 = vshrl.u32 2102212464, %v5788
    %v5798 = vor.u32 %v5796, %v5797
    %v5799 = vshll.u32 2102212464, %v5787
    %v5800 = vshrl.u32 920167782, %v5788
    %v5801 = vor.u32 %v5799, %v5800
    %v5802 = vshll.u32 920167782, %v5787
    %v5803 = vshrl.u32 1326507024, %v5788
    %v5804 = vor.u32 %v5802, %v5803
    %vm5805 = vcmp.lt.s32.totalorder %v5786, 1
    %vm5806 = vcmp.lt.s32.totalorder %v5786, 2
    %vm5807 = vcmp.lt.s32.totalorder %v5786, 3
    %vm5808 = vcmp.lt.s32.totalorder %v5786, 4
    %v5809 = vsel %vm5805, %v5789, %v5792
    %v5810 = vsel %vm5808, %v5798, 2102212464
    %v5811 = vsel %vm5807, %v5795, %v5810
    %v5812 = vsel %vm5806, %v5809, %v5811
    %v5813 = vsel %vm5805, %v5792, %v5795
    %v5814 = vsel %vm5808, %v5801, 920167782
    %v5815 = vsel %vm5807, %v5798, %v5814
    %v5816 = vsel %vm5806, %v5813, %v5815
    %v5817 = vsel %vm5805, %v5795, %v5798
    %v5818 = vsel %vm5808, %v5804, 1326507024
    %v5819 = vsel %vm5807, %v5801, %v5818
    %v5820 = vsel %vm5806, %v5817, %v5819
    %v5821 = vshll.u32 %v5781, 8
    %v5822 = vand.u32 %v5821, 65535
    %v5823 = vshrl.u32 %v5821, 16
    %v5824 = vand.u32 %v5820, 65535
    %v5825 = vshrl.u32 %v5820, 16
    %v5826 = vmul.u32 %v5822, %v5824
    %v5827 = vmul.u32 %v5822, %v5825
    %v5828 = vmul.u32 %v5823, %v5824
    %v5829 = vmul.u32 %v5823, %v5825
    %v5830 = vshll.u32 %v5827, 16
    %v5831 = vshrl.u32 %v5827, 16
    %v5832 = vshll.u32 %v5828, 16
    %v5833 = vshrl.u32 %v5828, 16
    %vm5834 = vc.u32 %v5826, %v5830
    %v5835 = vsel %vm5834, 1, 0
    %v5836 = vadd.s32 %v5826, %v5830
    %v5837 = vadd.s32 %v5829, %v5835
    %vm5838 = vc.u32 %v5836, %v5832
    %v5839 = vsel %vm5838, 1, 0
    %v5840 = vadd.s32 %v5836, %v5832
    %v5841 = vadd.s32 %v5837, %v5839
    %v5842 = vadd.s32 %v5841, %v5831
    %v5843 = vadd.s32 %v5842, %v5833
    %v5844 = vand.u32 %v5821, 65535
    %v5845 = vshrl.u32 %v5821, 16
    %v5846 = vand.u32 %v5816, 65535
    %v5847 = vshrl.u32 %v5816, 16
    %v5848 = vmul.u32 %v5844, %v5846
    %v5849 = vmul.u32 %v5844, %v5847
    %v5850 = vmul.u32 %v5845, %v5846
    %v5851 = vmul.u32 %v5845, %v5847
    %v5852 = vshll.u32 %v5849, 16
    %v5853 = vshrl.u32 %v5849, 16
    %v5854 = vshll.u32 %v5850, 16
    %v5855 = vshrl.u32 %v5850, 16
    %vm5856 = vc.u32 %v5848, %v5852
    %v5857 = vsel %vm5856, 1, 0
    %v5858 = vadd.s32 %v5848, %v5852
    %v5859 = vadd.s32 %v5851, %v5857
    %vm5860 = vc.u32 %v5858, %v5854
    %v5861 = vsel %vm5860, 1, 0
    %v5862 = vadd.s32 %v5858, %v5854
    %v5863 = vadd.s32 %v5859, %v5861
    %v5864 = vadd.s32 %v5863, %v5853
    %v5865 = vadd.s32 %v5864, %v5855
    %v5866 = vmul.u32 %v5821, %v5812
    %v5867 = vadd.s32 %v5843, %v5862
    %vm5868 = vc.u32 %v5843, %v5862
    %v5869 = vadd.s32 %v5865, 1
    %v5870 = vsel %vm5868, %v5869, %v5865
    %v5871 = vadd.s32 %v5866, %v5870
    %v5872 = vadd.s32 %v5871, 536870912
    %v5873 = vshrl.u32 %v5872, 30
    %v5874 = vshll.u32 %v5873, 30
    %v5875 = vsub.s32 %v5871, %v5874
    %vm5876 = vcmp.lt.s32.totalorder %v5875, 0
    %v5877 = vsub.s32 0, %v5875
    %v5878 = vsel %vm5876, %v5877, %v5875
    %v5879 = vclz %v5878
    %v5880 = vsub.s32 %v5879, 2
    %vm5881 = vcmp.gt.s32.totalorder 0, %v5880
    %v5882 = vsel %vm5881, 0, %v5880
    %v5883 = vsub.s32 32, %v5882
    %v5884 = vshll.u32 %v5875, %v5882
    %v5885 = vshrl.u32 %v5867, %v5883
    %v5886 = vor.u32 %v5884, %v5885
    %v5887 = vsub.s32 4294967266, %v5882
    %v5888 = vadd.s32 %v5887, 127
    %v5889 = vshll.u32 %v5888, 23
    %v5890 = vor.u32 4788187, %v5889
    %v5891 = vand.u32 2147483647, %v5890
    %v5893 = vcvt.s32.f32 %v5886
    %v5894 = vmul.f32 %v5893, %v5891
    %v5895 = vxor.u32 %v5894, 2147483648
    %v5896 = vsel %vm5775, %v5895, %v5894
    %v5897 = vsub.s32 4, %v5873
    %v5898 = vsel %vm5775, %v5897, %v5873
    %v5899 = vsel %vm5774, %v168, %v5896
    %v5900 = vsel %vm5774, 0, %v5898
    %v5901 = vmul.f32 %v5899, %v5899
    %v5902 = vmul.f32 %v5901, -0.001358992
    %v5903 = vadd.f32 %v5902, 0.041655596
    %v5904 = vmul.f32 %v5901, %v5903
    %v5905 = vadd.f32 %v5904, -0.4999988
    %v5906 = vmul.f32 %v5901, %v5905
    %v5907 = vadd.f32 1.0, %v5906
    %v5908 = vmul.f32 %v5899, %v5899
    %v5909 = vmul.f32 %v5908, -0.00019511016
    %v5910 = vadd.f32 %v5909, 0.008332121
    %v5911 = vmul.f32 %v5908, %v5910
    %v5912 = vadd.f32 %v5911, -0.16666654
    %v5913 = vmul.f32 %v5908, %v5912
    %v5914 = vadd.f32 %v5913, 1.0
    %v5915 = vmul.f32 %v5914, %v5899
    %vm5916 = vweird.f32 %v168
    %v5917 = vand.u32 %v5900, 3
    %vm5918 = vcmp.lt.s32.totalorder %v5917, 2
    %vm5919 = vcmp.eq.s32.totalorder %v5917, 0
    %v5920 = vxor.u32 %v5915, 2147483648
    %v5921 = vsel %vm5919, %v5907, %v5920
    %vm5922 = vcmp.eq.s32.totalorder %v5917, 2
    %v5923 = vxor.u32 %v5907, 2147483648
    %v5924 = vsel %vm5922, %v5923, %v5915
    %v5925 = vsel %vm5918, %v5921, %v5924
    %v5926 = vsel %vm5916, nan, %v5925
    %v5927 = vand.u32 2147483647, %v169
    %vm5928 = vcmp.le.f32.partialorder %v5927, 0.7853982
    %vm5929 = vcmp.lt.s32.totalorder %v169, 0
    %v5930 = vand.u32 %v169, 2139095040
    %v5931 = vshrl.u32 %v5930, 23
    %v5932 = vsub.s32 %v5931, 127
    %v5933 = vand.u32 2147483647, %v169
    %v5934 = vand.u32 %v5933, 8388607
    %v5935 = vor.u32 %v5934, 8388608
    %v5936 = vsub.s32 0, %v5935
    %v5937 = vadd.s32 %v5932, 1
    %vm5938 = vcmp.gt.s32.totalorder %v5937, 0
    %v5939 = vsel %vm5938, %v5937, 0
    %v5940 = vshrl.u32 %v5939, 5
    %v5941 = vand.u32 %v5939, 31
    %v5942 = vsub.s32 32, %v5941
    %v5943 = vshrl.u32 683565275, %v5942
    %v5944 = vshll.u32 683565275, %v5941
    %v5945 = vshrl.u32 2475754826, %v5942
    %v5946 = vor.u32 %v5944, %v5945
    %v5947 = vshll.u32 2475754826, %v5941
    %v5948 = vshrl.u32 2131351028, %v5942
    %v5949 = vor.u32 %v5947, %v5948
    %v5950 = vshll.u32 2131351028, %v5941
    %v5951 = vshrl.u32 2102212464, %v5942
    %v5952 = vor.u32 %v5950, %v5951
    %v5953 = vshll.u32 2102212464, %v5941
    %v5954 = vshrl.u32 920167782, %v5942
    %v5955 = vor.u32 %v5953, %v5954
    %v5956 = vshll.u32 920167782, %v5941
    %v5957 = vshrl.u32 1326507024, %v5942
    %v5958 = vor.u32 %v5956, %v5957
    %vm5959 = vcmp.lt.s32.totalorder %v5940, 1
    %vm5960 = vcmp.lt.s32.totalorder %v5940, 2
    %vm5961 = vcmp.lt.s32.totalorder %v5940, 3
    %vm5962 = vcmp.lt.s32.totalorder %v5940, 4
    %v5963 = vsel %vm5959, %v5943, %v5946
    %v5964 = vsel %vm5962, %v5952, 2102212464
    %v5965 = vsel %vm5961, %v5949, %v5964
    %v5966 = vsel %vm5960, %v5963, %v5965
    %v5967 = vsel %vm5959, %v5946, %v5949
    %v5968 = vsel %vm5962, %v5955, 920167782
    %v5969 = vsel %vm5961, %v5952, %v5968
    %v5970 = vsel %vm5960, %v5967, %v5969
    %v5971 = vsel %vm5959, %v5949, %v5952
    %v5972 = vsel %vm5962, %v5958, 1326507024
    %v5973 = vsel %vm5961, %v5955, %v5972
    %v5974 = vsel %vm5960, %v5971, %v5973
    %v5975 = vshll.u32 %v5935, 8
    %v5976 = vand.u32 %v5975, 65535
    %v5977 = vshrl.u32 %v5975, 16
    %v5978 = vand.u32 %v5974, 65535
    %v5979 = vshrl.u32 %v5974, 16
    %v5980 = vmul.u32 %v5976, %v5978
    %v5981 = vmul.u32 %v5976, %v5979
    %v5982 = vmul.u32 %v5977, %v5978
    %v5983 = vmul.u32 %v5977, %v5979
    %v5984 = vshll.u32 %v5981, 16
    %v5985 = vshrl.u32 %v5981, 16
    %v5986 = vshll.u32 %v5982, 16
    %v5987 = vshrl.u32 %v5982, 16
    %vm5988 = vc.u32 %v5980, %v5984
    %v5989 = vsel %vm5988, 1, 0
    %v5990 = vadd.s32 %v5980, %v5984
    %v5991 = vadd.s32 %v5983, %v5989
    %vm5992 = vc.u32 %v5990, %v5986
    %v5993 = vsel %vm5992, 1, 0
    %v5994 = vadd.s32 %v5990, %v5986
    %v5995 = vadd.s32 %v5991, %v5993
    %v5996 = vadd.s32 %v5995, %v5985
    %v5997 = vadd.s32 %v5996, %v5987
    %v5998 = vand.u32 %v5975, 65535
    %v5999 = vshrl.u32 %v5975, 16
    %v6000 = vand.u32 %v5970, 65535
    %v6001 = vshrl.u32 %v5970, 16
    %v6002 = vmul.u32 %v5998, %v6000
    %v6003 = vmul.u32 %v5998, %v6001
    %v6004 = vmul.u32 %v5999, %v6000
    %v6005 = vmul.u32 %v5999, %v6001
    %v6006 = vshll.u32 %v6003, 16
    %v6007 = vshrl.u32 %v6003, 16
    %v6008 = vshll.u32 %v6004, 16
    %v6009 = vshrl.u32 %v6004, 16
    %vm6010 = vc.u32 %v6002, %v6006
    %v6011 = vsel %vm6010, 1, 0
    %v6012 = vadd.s32 %v6002, %v6006
    %v6013 = vadd.s32 %v6005, %v6011
    %vm6014 = vc.u32 %v6012, %v6008
    %v6015 = vsel %vm6014, 1, 0
    %v6016 = vadd.s32 %v6012, %v6008
    %v6017 = vadd.s32 %v6013, %v6015
    %v6018 = vadd.s32 %v6017, %v6007
    %v6019 = vadd.s32 %v6018, %v6009
    %v6020 = vmul.u32 %v5975, %v5966
    %v6021 = vadd.s32 %v5997, %v6016
    %vm6022 = vc.u32 %v5997, %v6016
    %v6023 = vadd.s32 %v6019, 1
    %v6024 = vsel %vm6022, %v6023, %v6019
    %v6025 = vadd.s32 %v6020, %v6024
    %v6026 = vadd.s32 %v6025, 536870912
    %v6027 = vshrl.u32 %v6026, 30
    %v6028 = vshll.u32 %v6027, 30
    %v6029 = vsub.s32 %v6025, %v6028
    %vm6030 = vcmp.lt.s32.totalorder %v6029, 0
    %v6031 = vsub.s32 0, %v6029
    %v6032 = vsel %vm6030, %v6031, %v6029
    %v6033 = vclz %v6032
    %v6034 = vsub.s32 %v6033, 2
    %vm6035 = vcmp.gt.s32.totalorder 0, %v6034
    %v6036 = vsel %vm6035, 0, %v6034
    %v6037 = vsub.s32 32, %v6036
    %v6038 = vshll.u32 %v6029, %v6036
    %v6039 = vshrl.u32 %v6021, %v6037
    %v6040 = vor.u32 %v6038, %v6039
    %v6041 = vsub.s32 4294967266, %v6036
    %v6042 = vadd.s32 %v6041, 127
    %v6043 = vshll.u32 %v6042, 23
    %v6044 = vor.u32 4788187, %v6043
    %v6045 = vand.u32 2147483647, %v6044
    %v6047 = vcvt.s32.f32 %v6040
    %v6048 = vmul.f32 %v6047, %v6045
    %v6049 = vxor.u32 %v6048, 2147483648
    %v6050 = vsel %vm5929, %v6049, %v6048
    %v6051 = vsub.s32 4, %v6027
    %v6052 = vsel %vm5929, %v6051, %v6027
    %v6053 = vsel %vm5928, %v169, %v6050
    %v6054 = vsel %vm5928, 0, %v6052
    %v6055 = vmul.f32 %v6053, %v6053
    %v6056 = vmul.f32 %v6055, -0.001358992
    %v6057 = vadd.f32 %v6056, 0.041655596
    %v6058 = vmul.f32 %v6055, %v6057
    %v6059 = vadd.f32 %v6058, -0.4999988
    %v6060 = vmul.f32 %v6055, %v6059
    %v6061 = vadd.f32 1.0, %v6060
    %v6062 = vmul.f32 %v6053, %v6053
    %v6063 = vmul.f32 %v6062, -0.00019511016
    %v6064 = vadd.f32 %v6063, 0.008332121
    %v6065 = vmul.f32 %v6062, %v6064
    %v6066 = vadd.f32 %v6065, -0.16666654
    %v6067 = vmul.f32 %v6062, %v6066
    %v6068 = vadd.f32 %v6067, 1.0
    %v6069 = vmul.f32 %v6068, %v6053
    %vm6070 = vweird.f32 %v169
    %v6071 = vand.u32 %v6054, 3
    %vm6072 = vcmp.lt.s32.totalorder %v6071, 2
    %vm6073 = vcmp.eq.s32.totalorder %v6071, 0
    %v6074 = vxor.u32 %v6069, 2147483648
    %v6075 = vsel %vm6073, %v6061, %v6074
    %vm6076 = vcmp.eq.s32.totalorder %v6071, 2
    %v6077 = vxor.u32 %v6061, 2147483648
    %v6078 = vsel %vm6076, %v6077, %v6069
    %v6079 = vsel %vm6072, %v6075, %v6078
    %v6080 = vsel %vm6070, nan, %v6079
    %v6081 = vand.u32 2147483647, %v170
    %vm6082 = vcmp.le.f32.partialorder %v6081, 0.7853982
    %vm6083 = vcmp.lt.s32.totalorder %v170, 0
    %v6084 = vand.u32 %v170, 2139095040
    %v6085 = vshrl.u32 %v6084, 23
    %v6086 = vsub.s32 %v6085, 127
    %v6087 = vand.u32 2147483647, %v170
    %v6088 = vand.u32 %v6087, 8388607
    %v6089 = vor.u32 %v6088, 8388608
    %v6090 = vsub.s32 0, %v6089
    %v6091 = vadd.s32 %v6086, 1
    %vm6092 = vcmp.gt.s32.totalorder %v6091, 0
    %v6093 = vsel %vm6092, %v6091, 0
    %v6094 = vshrl.u32 %v6093, 5
    %v6095 = vand.u32 %v6093, 31
    %v6096 = vsub.s32 32, %v6095
    %v6097 = vshrl.u32 683565275, %v6096
    %v6098 = vshll.u32 683565275, %v6095
    %v6099 = vshrl.u32 2475754826, %v6096
    %v6100 = vor.u32 %v6098, %v6099
    %v6101 = vshll.u32 2475754826, %v6095
    %v6102 = vshrl.u32 2131351028, %v6096
    %v6103 = vor.u32 %v6101, %v6102
    %v6104 = vshll.u32 2131351028, %v6095
    %v6105 = vshrl.u32 2102212464, %v6096
    %v6106 = vor.u32 %v6104, %v6105
    %v6107 = vshll.u32 2102212464, %v6095
    %v6108 = vshrl.u32 920167782, %v6096
    %v6109 = vor.u32 %v6107, %v6108
    %v6110 = vshll.u32 920167782, %v6095
    %v6111 = vshrl.u32 1326507024, %v6096
    %v6112 = vor.u32 %v6110, %v6111
    %vm6113 = vcmp.lt.s32.totalorder %v6094, 1
    %vm6114 = vcmp.lt.s32.totalorder %v6094, 2
    %vm6115 = vcmp.lt.s32.totalorder %v6094, 3
    %vm6116 = vcmp.lt.s32.totalorder %v6094, 4
    %v6117 = vsel %vm6113, %v6097, %v6100
    %v6118 = vsel %vm6116, %v6106, 2102212464
    %v6119 = vsel %vm6115, %v6103, %v6118
    %v6120 = vsel %vm6114, %v6117, %v6119
    %v6121 = vsel %vm6113, %v6100, %v6103
    %v6122 = vsel %vm6116, %v6109, 920167782
    %v6123 = vsel %vm6115, %v6106, %v6122
    %v6124 = vsel %vm6114, %v6121, %v6123
    %v6125 = vsel %vm6113, %v6103, %v6106
    %v6126 = vsel %vm6116, %v6112, 1326507024
    %v6127 = vsel %vm6115, %v6109, %v6126
    %v6128 = vsel %vm6114, %v6125, %v6127
    %v6129 = vshll.u32 %v6089, 8
    %v6130 = vand.u32 %v6129, 65535
    %v6131 = vshrl.u32 %v6129, 16
    %v6132 = vand.u32 %v6128, 65535
    %v6133 = vshrl.u32 %v6128, 16
    %v6134 = vmul.u32 %v6130, %v6132
    %v6135 = vmul.u32 %v6130, %v6133
    %v6136 = vmul.u32 %v6131, %v6132
    %v6137 = vmul.u32 %v6131, %v6133
    %v6138 = vshll.u32 %v6135, 16
    %v6139 = vshrl.u32 %v6135, 16
    %v6140 = vshll.u32 %v6136, 16
    %v6141 = vshrl.u32 %v6136, 16
    %vm6142 = vc.u32 %v6134, %v6138
    %v6143 = vsel %vm6142, 1, 0
    %v6144 = vadd.s32 %v6134, %v6138
    %v6145 = vadd.s32 %v6137, %v6143
    %vm6146 = vc.u32 %v6144, %v6140
    %v6147 = vsel %vm6146, 1, 0
    %v6148 = vadd.s32 %v6144, %v6140
    %v6149 = vadd.s32 %v6145, %v6147
    %v6150 = vadd.s32 %v6149, %v6139
    %v6151 = vadd.s32 %v6150, %v6141
    %v6152 = vand.u32 %v6129, 65535
    %v6153 = vshrl.u32 %v6129, 16
    %v6154 = vand.u32 %v6124, 65535
    %v6155 = vshrl.u32 %v6124, 16
    %v6156 = vmul.u32 %v6152, %v6154
    %v6157 = vmul.u32 %v6152, %v6155
    %v6158 = vmul.u32 %v6153, %v6154
    %v6159 = vmul.u32 %v6153, %v6155
    %v6160 = vshll.u32 %v6157, 16
    %v6161 = vshrl.u32 %v6157, 16
    %v6162 = vshll.u32 %v6158, 16
    %v6163 = vshrl.u32 %v6158, 16
    %vm6164 = vc.u32 %v6156, %v6160
    %v6165 = vsel %vm6164, 1, 0
    %v6166 = vadd.s32 %v6156, %v6160
    %v6167 = vadd.s32 %v6159, %v6165
    %vm6168 = vc.u32 %v6166, %v6162
    %v6169 = vsel %vm6168, 1, 0
    %v6170 = vadd.s32 %v6166, %v6162
    %v6171 = vadd.s32 %v6167, %v6169
    %v6172 = vadd.s32 %v6171, %v6161
    %v6173 = vadd.s32 %v6172, %v6163
    %v6174 = vmul.u32 %v6129, %v6120
    %v6175 = vadd.s32 %v6151, %v6170
    %vm6176 = vc.u32 %v6151, %v6170
    %v6177 = vadd.s32 %v6173, 1
    %v6178 = vsel %vm6176, %v6177, %v6173
    %v6179 = vadd.s32 %v6174, %v6178
    %v6180 = vadd.s32 %v6179, 536870912
    %v6181 = vshrl.u32 %v6180, 30
    %v6182 = vshll.u32 %v6181, 30
    %v6183 = vsub.s32 %v6179, %v6182
    %vm6184 = vcmp.lt.s32.totalorder %v6183, 0
    %v6185 = vsub.s32 0, %v6183
    %v6186 = vsel %vm6184, %v6185, %v6183
    %v6187 = vclz %v6186
    %v6188 = vsub.s32 %v6187, 2
    %vm6189 = vcmp.gt.s32.totalorder 0, %v6188
    %v6190 = vsel %vm6189, 0, %v6188
    %v6191 = vsub.s32 32, %v6190
    %v6192 = vshll.u32 %v6183, %v6190
    %v6193 = vshrl.u32 %v6175, %v6191
    %v6194 = vor.u32 %v6192, %v6193
    %v6195 = vsub.s32 4294967266, %v6190
    %v6196 = vadd.s32 %v6195, 127
    %v6197 = vshll.u32 %v6196, 23
    %v6198 = vor.u32 4788187, %v6197
    %v6199 = vand.u32 2147483647, %v6198
    %v6201 = vcvt.s32.f32 %v6194
    %v6202 = vmul.f32 %v6201, %v6199
    %v6203 = vxor.u32 %v6202, 2147483648
    %v6204 = vsel %vm6083, %v6203, %v6202
    %v6205 = vsub.s32 4, %v6181
    %v6206 = vsel %vm6083, %v6205, %v6181
    %v6207 = vsel %vm6082, %v170, %v6204
    %v6208 = vsel %vm6082, 0, %v6206
    %v6209 = vmul.f32 %v6207, %v6207
    %v6210 = vmul.f32 %v6209, -0.001358992
    %v6211 = vadd.f32 %v6210, 0.041655596
    %v6212 = vmul.f32 %v6209, %v6211
    %v6213 = vadd.f32 %v6212, -0.4999988
    %v6214 = vmul.f32 %v6209, %v6213
    %v6215 = vadd.f32 1.0, %v6214
    %v6216 = vmul.f32 %v6207, %v6207
    %v6217 = vmul.f32 %v6216, -0.00019511016
    %v6218 = vadd.f32 %v6217, 0.008332121
    %v6219 = vmul.f32 %v6216, %v6218
    %v6220 = vadd.f32 %v6219, -0.16666654
    %v6221 = vmul.f32 %v6216, %v6220
    %v6222 = vadd.f32 %v6221, 1.0
    %v6223 = vmul.f32 %v6222, %v6207
    %vm6224 = vweird.f32 %v170
    %v6225 = vand.u32 %v6208, 3
    %vm6226 = vcmp.lt.s32.totalorder %v6225, 2
    %vm6227 = vcmp.eq.s32.totalorder %v6225, 0
    %v6228 = vxor.u32 %v6223, 2147483648
    %v6229 = vsel %vm6227, %v6215, %v6228
    %vm6230 = vcmp.eq.s32.totalorder %v6225, 2
    %v6231 = vxor.u32 %v6215, 2147483648
    %v6232 = vsel %vm6230, %v6231, %v6223
    %v6233 = vsel %vm6226, %v6229, %v6232
    %v6234 = vsel %vm6224, nan, %v6233
    %v6235 = vand.u32 2147483647, %v171
    %vm6236 = vcmp.le.f32.partialorder %v6235, 0.7853982
    %vm6237 = vcmp.lt.s32.totalorder %v171, 0
    %v6238 = vand.u32 %v171, 2139095040
    %v6239 = vshrl.u32 %v6238, 23
    %v6240 = vsub.s32 %v6239, 127
    %v6241 = vand.u32 2147483647, %v171
    %v6242 = vand.u32 %v6241, 8388607
    %v6243 = vor.u32 %v6242, 8388608
    %v6244 = vsub.s32 0, %v6243
    %v6245 = vadd.s32 %v6240, 1
    %vm6246 = vcmp.gt.s32.totalorder %v6245, 0
    %v6247 = vsel %vm6246, %v6245, 0
    %v6248 = vshrl.u32 %v6247, 5
    %v6249 = vand.u32 %v6247, 31
    %v6250 = vsub.s32 32, %v6249
    %v6251 = vshrl.u32 683565275, %v6250
    %v6252 = vshll.u32 683565275, %v6249
    %v6253 = vshrl.u32 2475754826, %v6250
    %v6254 = vor.u32 %v6252, %v6253
    %v6255 = vshll.u32 2475754826, %v6249
    %v6256 = vshrl.u32 2131351028, %v6250
    %v6257 = vor.u32 %v6255, %v6256
    %v6258 = vshll.u32 2131351028, %v6249
    %v6259 = vshrl.u32 2102212464, %v6250
    %v6260 = vor.u32 %v6258, %v6259
    %v6261 = vshll.u32 2102212464, %v6249
    %v6262 = vshrl.u32 920167782, %v6250
    %v6263 = vor.u32 %v6261, %v6262
    %v6264 = vshll.u32 920167782, %v6249
    %v6265 = vshrl.u32 1326507024, %v6250
    %v6266 = vor.u32 %v6264, %v6265
    %vm6267 = vcmp.lt.s32.totalorder %v6248, 1
    %vm6268 = vcmp.lt.s32.totalorder %v6248, 2
    %vm6269 = vcmp.lt.s32.totalorder %v6248, 3
    %vm6270 = vcmp.lt.s32.totalorder %v6248, 4
    %v6271 = vsel %vm6267, %v6251, %v6254
    %v6272 = vsel %vm6270, %v6260, 2102212464
    %v6273 = vsel %vm6269, %v6257, %v6272
    %v6274 = vsel %vm6268, %v6271, %v6273
    %v6275 = vsel %vm6267, %v6254, %v6257
    %v6276 = vsel %vm6270, %v6263, 920167782
    %v6277 = vsel %vm6269, %v6260, %v6276
    %v6278 = vsel %vm6268, %v6275, %v6277
    %v6279 = vsel %vm6267, %v6257, %v6260
    %v6280 = vsel %vm6270, %v6266, 1326507024
    %v6281 = vsel %vm6269, %v6263, %v6280
    %v6282 = vsel %vm6268, %v6279, %v6281
    %v6283 = vshll.u32 %v6243, 8
    %v6284 = vand.u32 %v6283, 65535
    %v6285 = vshrl.u32 %v6283, 16
    %v6286 = vand.u32 %v6282, 65535
    %v6287 = vshrl.u32 %v6282, 16
    %v6288 = vmul.u32 %v6284, %v6286
    %v6289 = vmul.u32 %v6284, %v6287
    %v6290 = vmul.u32 %v6285, %v6286
    %v6291 = vmul.u32 %v6285, %v6287
    %v6292 = vshll.u32 %v6289, 16
    %v6293 = vshrl.u32 %v6289, 16
    %v6294 = vshll.u32 %v6290, 16
    %v6295 = vshrl.u32 %v6290, 16
    %vm6296 = vc.u32 %v6288, %v6292
    %v6297 = vsel %vm6296, 1, 0
    %v6298 = vadd.s32 %v6288, %v6292
    %v6299 = vadd.s32 %v6291, %v6297
    %vm6300 = vc.u32 %v6298, %v6294
    %v6301 = vsel %vm6300, 1, 0
    %v6302 = vadd.s32 %v6298, %v6294
    %v6303 = vadd.s32 %v6299, %v6301
    %v6304 = vadd.s32 %v6303, %v6293
    %v6305 = vadd.s32 %v6304, %v6295
    %v6306 = vand.u32 %v6283, 65535
    %v6307 = vshrl.u32 %v6283, 16
    %v6308 = vand.u32 %v6278, 65535
    %v6309 = vshrl.u32 %v6278, 16
    %v6310 = vmul.u32 %v6306, %v6308
    %v6311 = vmul.u32 %v6306, %v6309
    %v6312 = vmul.u32 %v6307, %v6308
    %v6313 = vmul.u32 %v6307, %v6309
    %v6314 = vshll.u32 %v6311, 16
    %v6315 = vshrl.u32 %v6311, 16
    %v6316 = vshll.u32 %v6312, 16
    %v6317 = vshrl.u32 %v6312, 16
    %vm6318 = vc.u32 %v6310, %v6314
    %v6319 = vsel %vm6318, 1, 0
    %v6320 = vadd.s32 %v6310, %v6314
    %v6321 = vadd.s32 %v6313, %v6319
    %vm6322 = vc.u32 %v6320, %v6316
    %v6323 = vsel %vm6322, 1, 0
    %v6324 = vadd.s32 %v6320, %v6316
    %v6325 = vadd.s32 %v6321, %v6323
    %v6326 = vadd.s32 %v6325, %v6315
    %v6327 = vadd.s32 %v6326, %v6317
    %v6328 = vmul.u32 %v6283, %v6274
    %v6329 = vadd.s32 %v6305, %v6324
    %vm6330 = vc.u32 %v6305, %v6324
    %v6331 = vadd.s32 %v6327, 1
    %v6332 = vsel %vm6330, %v6331, %v6327
    %v6333 = vadd.s32 %v6328, %v6332
    %v6334 = vadd.s32 %v6333, 536870912
    %v6335 = vshrl.u32 %v6334, 30
    %v6336 = vshll.u32 %v6335, 30
    %v6337 = vsub.s32 %v6333, %v6336
    %vm6338 = vcmp.lt.s32.totalorder %v6337, 0
    %v6339 = vsub.s32 0, %v6337
    %v6340 = vsel %vm6338, %v6339, %v6337
    %v6341 = vclz %v6340
    %v6342 = vsub.s32 %v6341, 2
    %vm6343 = vcmp.gt.s32.totalorder 0, %v6342
    %v6344 = vsel %vm6343, 0, %v6342
    %v6345 = vsub.s32 32, %v6344
    %v6346 = vshll.u32 %v6337, %v6344
    %v6347 = vshrl.u32 %v6329, %v6345
    %v6348 = vor.u32 %v6346, %v6347
    %v6349 = vsub.s32 4294967266, %v6344
    %v6350 = vadd.s32 %v6349, 127
    %v6351 = vshll.u32 %v6350, 23
    %v6352 = vor.u32 4788187, %v6351
    %v6353 = vand.u32 2147483647, %v6352
    %v6355 = vcvt.s32.f32 %v6348
    %v6356 = vmul.f32 %v6355, %v6353
    %v6357 = vxor.u32 %v6356, 2147483648
    %v6358 = vsel %vm6237, %v6357, %v6356
    %v6359 = vsub.s32 4, %v6335
    %v6360 = vsel %vm6237, %v6359, %v6335
    %v6361 = vsel %vm6236, %v171, %v6358
    %v6362 = vsel %vm6236, 0, %v6360
    %v6363 = vmul.f32 %v6361, %v6361
    %v6364 = vmul.f32 %v6363, -0.001358992
    %v6365 = vadd.f32 %v6364, 0.041655596
    %v6366 = vmul.f32 %v6363, %v6365
    %v6367 = vadd.f32 %v6366, -0.4999988
    %v6368 = vmul.f32 %v6363, %v6367
    %v6369 = vadd.f32 1.0, %v6368
    %v6370 = vmul.f32 %v6361, %v6361
    %v6371 = vmul.f32 %v6370, -0.00019511016
    %v6372 = vadd.f32 %v6371, 0.008332121
    %v6373 = vmul.f32 %v6370, %v6372
    %v6374 = vadd.f32 %v6373, -0.16666654
    %v6375 = vmul.f32 %v6370, %v6374
    %v6376 = vadd.f32 %v6375, 1.0
    %v6377 = vmul.f32 %v6376, %v6361
    %vm6378 = vweird.f32 %v171
    %v6379 = vand.u32 %v6362, 3
    %vm6380 = vcmp.lt.s32.totalorder %v6379, 2
    %vm6381 = vcmp.eq.s32.totalorder %v6379, 0
    %v6382 = vxor.u32 %v6377, 2147483648
    %v6383 = vsel %vm6381, %v6369, %v6382
    %vm6384 = vcmp.eq.s32.totalorder %v6379, 2
    %v6385 = vxor.u32 %v6369, 2147483648
    %v6386 = vsel %vm6384, %v6385, %v6377
    %v6387 = vsel %vm6380, %v6383, %v6386
    %v6388 = vsel %vm6378, nan, %v6387
    %v6389 = vand.u32 2147483647, %v172
    %vm6390 = vcmp.le.f32.partialorder %v6389, 0.7853982
    %vm6391 = vcmp.lt.s32.totalorder %v172, 0
    %v6392 = vand.u32 %v172, 2139095040
    %v6393 = vshrl.u32 %v6392, 23
    %v6394 = vsub.s32 %v6393, 127
    %v6395 = vand.u32 2147483647, %v172
    %v6396 = vand.u32 %v6395, 8388607
    %v6397 = vor.u32 %v6396, 8388608
    %v6398 = vsub.s32 0, %v6397
    %v6399 = vadd.s32 %v6394, 1
    %vm6400 = vcmp.gt.s32.totalorder %v6399, 0
    %v6401 = vsel %vm6400, %v6399, 0
    %v6402 = vshrl.u32 %v6401, 5
    %v6403 = vand.u32 %v6401, 31
    %v6404 = vsub.s32 32, %v6403
    %v6405 = vshrl.u32 683565275, %v6404
    %v6406 = vshll.u32 683565275, %v6403
    %v6407 = vshrl.u32 2475754826, %v6404
    %v6408 = vor.u32 %v6406, %v6407
    %v6409 = vshll.u32 2475754826, %v6403
    %v6410 = vshrl.u32 2131351028, %v6404
    %v6411 = vor.u32 %v6409, %v6410
    %v6412 = vshll.u32 2131351028, %v6403
    %v6413 = vshrl.u32 2102212464, %v6404
    %v6414 = vor.u32 %v6412, %v6413
    %v6415 = vshll.u32 2102212464, %v6403
    %v6416 = vshrl.u32 920167782, %v6404
    %v6417 = vor.u32 %v6415, %v6416
    %v6418 = vshll.u32 920167782, %v6403
    %v6419 = vshrl.u32 1326507024, %v6404
    %v6420 = vor.u32 %v6418, %v6419
    %vm6421 = vcmp.lt.s32.totalorder %v6402, 1
    %vm6422 = vcmp.lt.s32.totalorder %v6402, 2
    %vm6423 = vcmp.lt.s32.totalorder %v6402, 3
    %vm6424 = vcmp.lt.s32.totalorder %v6402, 4
    %v6425 = vsel %vm6421, %v6405, %v6408
    %v6426 = vsel %vm6424, %v6414, 2102212464
    %v6427 = vsel %vm6423, %v6411, %v6426
    %v6428 = vsel %vm6422, %v6425, %v6427
    %v6429 = vsel %vm6421, %v6408, %v6411
    %v6430 = vsel %vm6424, %v6417, 920167782
    %v6431 = vsel %vm6423, %v6414, %v6430
    %v6432 = vsel %vm6422, %v6429, %v6431
    %v6433 = vsel %vm6421, %v6411, %v6414
    %v6434 = vsel %vm6424, %v6420, 1326507024
    %v6435 = vsel %vm6423, %v6417, %v6434
    %v6436 = vsel %vm6422, %v6433, %v6435
    %v6437 = vshll.u32 %v6397, 8
    %v6438 = vand.u32 %v6437, 65535
    %v6439 = vshrl.u32 %v6437, 16
    %v6440 = vand.u32 %v6436, 65535
    %v6441 = vshrl.u32 %v6436, 16
    %v6442 = vmul.u32 %v6438, %v6440
    %v6443 = vmul.u32 %v6438, %v6441
    %v6444 = vmul.u32 %v6439, %v6440
    %v6445 = vmul.u32 %v6439, %v6441
    %v6446 = vshll.u32 %v6443, 16
    %v6447 = vshrl.u32 %v6443, 16
    %v6448 = vshll.u32 %v6444, 16
    %v6449 = vshrl.u32 %v6444, 16
    %vm6450 = vc.u32 %v6442, %v6446
    %v6451 = vsel %vm6450, 1, 0
    %v6452 = vadd.s32 %v6442, %v6446
    %v6453 = vadd.s32 %v6445, %v6451
    %vm6454 = vc.u32 %v6452, %v6448
    %v6455 = vsel %vm6454, 1, 0
    %v6456 = vadd.s32 %v6452, %v6448
    %v6457 = vadd.s32 %v6453, %v6455
    %v6458 = vadd.s32 %v6457, %v6447
    %v6459 = vadd.s32 %v6458, %v6449
    %v6460 = vand.u32 %v6437, 65535
    %v6461 = vshrl.u32 %v6437, 16
    %v6462 = vand.u32 %v6432, 65535
    %v6463 = vshrl.u32 %v6432, 16
    %v6464 = vmul.u32 %v6460, %v6462
    %v6465 = vmul.u32 %v6460, %v6463
    %v6466 = vmul.u32 %v6461, %v6462
    %v6467 = vmul.u32 %v6461, %v6463
    %v6468 = vshll.u32 %v6465, 16
    %v6469 = vshrl.u32 %v6465, 16
    %v6470 = vshll.u32 %v6466, 16
    %v6471 = vshrl.u32 %v6466, 16
    %vm6472 = vc.u32 %v6464, %v6468
    %v6473 = vsel %vm6472, 1, 0
    %v6474 = vadd.s32 %v6464, %v6468
    %v6475 = vadd.s32 %v6467, %v6473
    %vm6476 = vc.u32 %v6474, %v6470
    %v6477 = vsel %vm6476, 1, 0
    %v6478 = vadd.s32 %v6474, %v6470
    %v6479 = vadd.s32 %v6475, %v6477
    %v6480 = vadd.s32 %v6479, %v6469
    %v6481 = vadd.s32 %v6480, %v6471
    %v6482 = vmul.u32 %v6437, %v6428
    %v6483 = vadd.s32 %v6459, %v6478
    %vm6484 = vc.u32 %v6459, %v6478
    %v6485 = vadd.s32 %v6481, 1
    %v6486 = vsel %vm6484, %v6485, %v6481
    %v6487 = vadd.s32 %v6482, %v6486
    %v6488 = vadd.s32 %v6487, 536870912
    %v6489 = vshrl.u32 %v6488, 30
    %v6490 = vshll.u32 %v6489, 30
    %v6491 = vsub.s32 %v6487, %v6490
    %vm6492 = vcmp.lt.s32.totalorder %v6491, 0
    %v6493 = vsub.s32 0, %v6491
    %v6494 = vsel %vm6492, %v6493, %v6491
    %v6495 = vclz %v6494
    %v6496 = vsub.s32 %v6495, 2
    %vm6497 = vcmp.gt.s32.totalorder 0, %v6496
    %v6498 = vsel %vm6497, 0, %v6496
    %v6499 = vsub.s32 32, %v6498
    %v6500 = vshll.u32 %v6491, %v6498
    %v6501 = vshrl.u32 %v6483, %v6499
    %v6502 = vor.u32 %v6500, %v6501
    %v6503 = vsub.s32 4294967266, %v6498
    %v6504 = vadd.s32 %v6503, 127
    %v6505 = vshll.u32 %v6504, 23
    %v6506 = vor.u32 4788187, %v6505
    %v6507 = vand.u32 2147483647, %v6506
    %v6509 = vcvt.s32.f32 %v6502
    %v6510 = vmul.f32 %v6509, %v6507
    %v6511 = vxor.u32 %v6510, 2147483648
    %v6512 = vsel %vm6391, %v6511, %v6510
    %v6513 = vsub.s32 4, %v6489
    %v6514 = vsel %vm6391, %v6513, %v6489
    %v6515 = vsel %vm6390, %v172, %v6512
    %v6516 = vsel %vm6390, 0, %v6514
    %v6517 = vmul.f32 %v6515, %v6515
    %v6518 = vmul.f32 %v6517, -0.001358992
    %v6519 = vadd.f32 %v6518, 0.041655596
    %v6520 = vmul.f32 %v6517, %v6519
    %v6521 = vadd.f32 %v6520, -0.4999988
    %v6522 = vmul.f32 %v6517, %v6521
    %v6523 = vadd.f32 1.0, %v6522
    %v6524 = vmul.f32 %v6515, %v6515
    %v6525 = vmul.f32 %v6524, -0.00019511016
    %v6526 = vadd.f32 %v6525, 0.008332121
    %v6527 = vmul.f32 %v6524, %v6526
    %v6528 = vadd.f32 %v6527, -0.16666654
    %v6529 = vmul.f32 %v6524, %v6528
    %v6530 = vadd.f32 %v6529, 1.0
    %v6531 = vmul.f32 %v6530, %v6515
    %vm6532 = vweird.f32 %v172
    %v6533 = vand.u32 %v6516, 3
    %vm6534 = vcmp.lt.s32.totalorder %v6533, 2
    %vm6535 = vcmp.eq.s32.totalorder %v6533, 0
    %v6536 = vxor.u32 %v6531, 2147483648
    %v6537 = vsel %vm6535, %v6523, %v6536
    %vm6538 = vcmp.eq.s32.totalorder %v6533, 2
    %v6539 = vxor.u32 %v6523, 2147483648
    %v6540 = vsel %vm6538, %v6539, %v6531
    %v6541 = vsel %vm6534, %v6537, %v6540
    %v6542 = vsel %vm6532, nan, %v6541
    %v6543 = vand.u32 2147483647, %v173
    %vm6544 = vcmp.le.f32.partialorder %v6543, 0.7853982
    %vm6545 = vcmp.lt.s32.totalorder %v173, 0
    %v6546 = vand.u32 %v173, 2139095040
    %v6547 = vshrl.u32 %v6546, 23
    %v6548 = vsub.s32 %v6547, 127
    %v6549 = vand.u32 2147483647, %v173
    %v6550 = vand.u32 %v6549, 8388607
    %v6551 = vor.u32 %v6550, 8388608
    %v6552 = vsub.s32 0, %v6551
    %v6553 = vadd.s32 %v6548, 1
    %vm6554 = vcmp.gt.s32.totalorder %v6553, 0
    %v6555 = vsel %vm6554, %v6553, 0
    %v6556 = vshrl.u32 %v6555, 5
    %v6557 = vand.u32 %v6555, 31
    %v6558 = vsub.s32 32, %v6557
    %v6559 = vshrl.u32 683565275, %v6558
    %v6560 = vshll.u32 683565275, %v6557
    %v6561 = vshrl.u32 2475754826, %v6558
    %v6562 = vor.u32 %v6560, %v6561
    %v6563 = vshll.u32 2475754826, %v6557
    %v6564 = vshrl.u32 2131351028, %v6558
    %v6565 = vor.u32 %v6563, %v6564
    %v6566 = vshll.u32 2131351028, %v6557
    %v6567 = vshrl.u32 2102212464, %v6558
    %v6568 = vor.u32 %v6566, %v6567
    %v6569 = vshll.u32 2102212464, %v6557
    %v6570 = vshrl.u32 920167782, %v6558
    %v6571 = vor.u32 %v6569, %v6570
    %v6572 = vshll.u32 920167782, %v6557
    %v6573 = vshrl.u32 1326507024, %v6558
    %v6574 = vor.u32 %v6572, %v6573
    %vm6575 = vcmp.lt.s32.totalorder %v6556, 1
    %vm6576 = vcmp.lt.s32.totalorder %v6556, 2
    %vm6577 = vcmp.lt.s32.totalorder %v6556, 3
    %vm6578 = vcmp.lt.s32.totalorder %v6556, 4
    %v6579 = vsel %vm6575, %v6559, %v6562
    %v6580 = vsel %vm6578, %v6568, 2102212464
    %v6581 = vsel %vm6577, %v6565, %v6580
    %v6582 = vsel %vm6576, %v6579, %v6581
    %v6583 = vsel %vm6575, %v6562, %v6565
    %v6584 = vsel %vm6578, %v6571, 920167782
    %v6585 = vsel %vm6577, %v6568, %v6584
    %v6586 = vsel %vm6576, %v6583, %v6585
    %v6587 = vsel %vm6575, %v6565, %v6568
    %v6588 = vsel %vm6578, %v6574, 1326507024
    %v6589 = vsel %vm6577, %v6571, %v6588
    %v6590 = vsel %vm6576, %v6587, %v6589
    %v6591 = vshll.u32 %v6551, 8
    %v6592 = vand.u32 %v6591, 65535
    %v6593 = vshrl.u32 %v6591, 16
    %v6594 = vand.u32 %v6590, 65535
    %v6595 = vshrl.u32 %v6590, 16
    %v6596 = vmul.u32 %v6592, %v6594
    %v6597 = vmul.u32 %v6592, %v6595
    %v6598 = vmul.u32 %v6593, %v6594
    %v6599 = vmul.u32 %v6593, %v6595
    %v6600 = vshll.u32 %v6597, 16
    %v6601 = vshrl.u32 %v6597, 16
    %v6602 = vshll.u32 %v6598, 16
    %v6603 = vshrl.u32 %v6598, 16
    %vm6604 = vc.u32 %v6596, %v6600
    %v6605 = vsel %vm6604, 1, 0
    %v6606 = vadd.s32 %v6596, %v6600
    %v6607 = vadd.s32 %v6599, %v6605
    %vm6608 = vc.u32 %v6606, %v6602
    %v6609 = vsel %vm6608, 1, 0
    %v6610 = vadd.s32 %v6606, %v6602
    %v6611 = vadd.s32 %v6607, %v6609
    %v6612 = vadd.s32 %v6611, %v6601
    %v6613 = vadd.s32 %v6612, %v6603
    %v6614 = vand.u32 %v6591, 65535
    %v6615 = vshrl.u32 %v6591, 16
    %v6616 = vand.u32 %v6586, 65535
    %v6617 = vshrl.u32 %v6586, 16
    %v6618 = vmul.u32 %v6614, %v6616
    %v6619 = vmul.u32 %v6614, %v6617
    %v6620 = vmul.u32 %v6615, %v6616
    %v6621 = vmul.u32 %v6615, %v6617
    %v6622 = vshll.u32 %v6619, 16
    %v6623 = vshrl.u32 %v6619, 16
    %v6624 = vshll.u32 %v6620, 16
    %v6625 = vshrl.u32 %v6620, 16
    %vm6626 = vc.u32 %v6618, %v6622
    %v6627 = vsel %vm6626, 1, 0
    %v6628 = vadd.s32 %v6618, %v6622
    %v6629 = vadd.s32 %v6621, %v6627
    %vm6630 = vc.u32 %v6628, %v6624
    %v6631 = vsel %vm6630, 1, 0
    %v6632 = vadd.s32 %v6628, %v6624
    %v6633 = vadd.s32 %v6629, %v6631
    %v6634 = vadd.s32 %v6633, %v6623
    %v6635 = vadd.s32 %v6634, %v6625
    %v6636 = vmul.u32 %v6591, %v6582
    %v6637 = vadd.s32 %v6613, %v6632
    %vm6638 = vc.u32 %v6613, %v6632
    %v6639 = vadd.s32 %v6635, 1
    %v6640 = vsel %vm6638, %v6639, %v6635
    %v6641 = vadd.s32 %v6636, %v6640
    %v6642 = vadd.s32 %v6641, 536870912
    %v6643 = vshrl.u32 %v6642, 30
    %v6644 = vshll.u32 %v6643, 30
    %v6645 = vsub.s32 %v6641, %v6644
    %vm6646 = vcmp.lt.s32.totalorder %v6645, 0
    %v6647 = vsub.s32 0, %v6645
    %v6648 = vsel %vm6646, %v6647, %v6645
    %v6649 = vclz %v6648
    %v6650 = vsub.s32 %v6649, 2
    %vm6651 = vcmp.gt.s32.totalorder 0, %v6650
    %v6652 = vsel %vm6651, 0, %v6650
    %v6653 = vsub.s32 32, %v6652
    %v6654 = vshll.u32 %v6645, %v6652
    %v6655 = vshrl.u32 %v6637, %v6653
    %v6656 = vor.u32 %v6654, %v6655
    %v6657 = vsub.s32 4294967266, %v6652
    %v6658 = vadd.s32 %v6657, 127
    %v6659 = vshll.u32 %v6658, 23
    %v6660 = vor.u32 4788187, %v6659
    %v6661 = vand.u32 2147483647, %v6660
    %v6663 = vcvt.s32.f32 %v6656
    %v6664 = vmul.f32 %v6663, %v6661
    %v6665 = vxor.u32 %v6664, 2147483648
    %v6666 = vsel %vm6545, %v6665, %v6664
    %v6667 = vsub.s32 4, %v6643
    %v6668 = vsel %vm6545, %v6667, %v6643
    %v6669 = vsel %vm6544, %v173, %v6666
    %v6670 = vsel %vm6544, 0, %v6668
    %v6671 = vmul.f32 %v6669, %v6669
    %v6672 = vmul.f32 %v6671, -0.001358992
    %v6673 = vadd.f32 %v6672, 0.041655596
    %v6674 = vmul.f32 %v6671, %v6673
    %v6675 = vadd.f32 %v6674, -0.4999988
    %v6676 = vmul.f32 %v6671, %v6675
    %v6677 = vadd.f32 1.0, %v6676
    %v6678 = vmul.f32 %v6669, %v6669
    %v6679 = vmul.f32 %v6678, -0.00019511016
    %v6680 = vadd.f32 %v6679, 0.008332121
    %v6681 = vmul.f32 %v6678, %v6680
    %v6682 = vadd.f32 %v6681, -0.16666654
    %v6683 = vmul.f32 %v6678, %v6682
    %v6684 = vadd.f32 %v6683, 1.0
    %v6685 = vmul.f32 %v6684, %v6669
    %vm6686 = vweird.f32 %v173
    %v6687 = vand.u32 %v6670, 3
    %vm6688 = vcmp.lt.s32.totalorder %v6687, 2
    %vm6689 = vcmp.eq.s32.totalorder %v6687, 0
    %v6690 = vxor.u32 %v6685, 2147483648
    %v6691 = vsel %vm6689, %v6677, %v6690
    %vm6692 = vcmp.eq.s32.totalorder %v6687, 2
    %v6693 = vxor.u32 %v6677, 2147483648
    %v6694 = vsel %vm6692, %v6693, %v6685
    %v6695 = vsel %vm6688, %v6691, %v6694
    %v6696 = vsel %vm6686, nan, %v6695
    %v6697 = vand.u32 2147483647, %v174
    %vm6698 = vcmp.le.f32.partialorder %v6697, 0.7853982
    %vm6699 = vcmp.lt.s32.totalorder %v174, 0
    %v6700 = vand.u32 %v174, 2139095040
    %v6701 = vshrl.u32 %v6700, 23
    %v6702 = vsub.s32 %v6701, 127
    %v6703 = vand.u32 2147483647, %v174
    %v6704 = vand.u32 %v6703, 8388607
    %v6705 = vor.u32 %v6704, 8388608
    %v6706 = vsub.s32 0, %v6705
    %v6707 = vadd.s32 %v6702, 1
    %vm6708 = vcmp.gt.s32.totalorder %v6707, 0
    %v6709 = vsel %vm6708, %v6707, 0
    %v6710 = vshrl.u32 %v6709, 5
    %v6711 = vand.u32 %v6709, 31
    %v6712 = vsub.s32 32, %v6711
    %v6713 = vshrl.u32 683565275, %v6712
    %v6714 = vshll.u32 683565275, %v6711
    %v6715 = vshrl.u32 2475754826, %v6712
    %v6716 = vor.u32 %v6714, %v6715
    %v6717 = vshll.u32 2475754826, %v6711
    %v6718 = vshrl.u32 2131351028, %v6712
    %v6719 = vor.u32 %v6717, %v6718
    %v6720 = vshll.u32 2131351028, %v6711
    %v6721 = vshrl.u32 2102212464, %v6712
    %v6722 = vor.u32 %v6720, %v6721
    %v6723 = vshll.u32 2102212464, %v6711
    %v6724 = vshrl.u32 920167782, %v6712
    %v6725 = vor.u32 %v6723, %v6724
    %v6726 = vshll.u32 920167782, %v6711
    %v6727 = vshrl.u32 1326507024, %v6712
    %v6728 = vor.u32 %v6726, %v6727
    %vm6729 = vcmp.lt.s32.totalorder %v6710, 1
    %vm6730 = vcmp.lt.s32.totalorder %v6710, 2
    %vm6731 = vcmp.lt.s32.totalorder %v6710, 3
    %vm6732 = vcmp.lt.s32.totalorder %v6710, 4
    %v6733 = vsel %vm6729, %v6713, %v6716
    %v6734 = vsel %vm6732, %v6722, 2102212464
    %v6735 = vsel %vm6731, %v6719, %v6734
    %v6736 = vsel %vm6730, %v6733, %v6735
    %v6737 = vsel %vm6729, %v6716, %v6719
    %v6738 = vsel %vm6732, %v6725, 920167782
    %v6739 = vsel %vm6731, %v6722, %v6738
    %v6740 = vsel %vm6730, %v6737, %v6739
    %v6741 = vsel %vm6729, %v6719, %v6722
    %v6742 = vsel %vm6732, %v6728, 1326507024
    %v6743 = vsel %vm6731, %v6725, %v6742
    %v6744 = vsel %vm6730, %v6741, %v6743
    %v6745 = vshll.u32 %v6705, 8
    %v6746 = vand.u32 %v6745, 65535
    %v6747 = vshrl.u32 %v6745, 16
    %v6748 = vand.u32 %v6744, 65535
    %v6749 = vshrl.u32 %v6744, 16
    %v6750 = vmul.u32 %v6746, %v6748
    %v6751 = vmul.u32 %v6746, %v6749
    %v6752 = vmul.u32 %v6747, %v6748
    %v6753 = vmul.u32 %v6747, %v6749
    %v6754 = vshll.u32 %v6751, 16
    %v6755 = vshrl.u32 %v6751, 16
    %v6756 = vshll.u32 %v6752, 16
    %v6757 = vshrl.u32 %v6752, 16
    %vm6758 = vc.u32 %v6750, %v6754
    %v6759 = vsel %vm6758, 1, 0
    %v6760 = vadd.s32 %v6750, %v6754
    %v6761 = vadd.s32 %v6753, %v6759
    %vm6762 = vc.u32 %v6760, %v6756
    %v6763 = vsel %vm6762, 1, 0
    %v6764 = vadd.s32 %v6760, %v6756
    %v6765 = vadd.s32 %v6761, %v6763
    %v6766 = vadd.s32 %v6765, %v6755
    %v6767 = vadd.s32 %v6766, %v6757
    %v6768 = vand.u32 %v6745, 65535
    %v6769 = vshrl.u32 %v6745, 16
    %v6770 = vand.u32 %v6740, 65535
    %v6771 = vshrl.u32 %v6740, 16
    %v6772 = vmul.u32 %v6768, %v6770
    %v6773 = vmul.u32 %v6768, %v6771
    %v6774 = vmul.u32 %v6769, %v6770
    %v6775 = vmul.u32 %v6769, %v6771
    %v6776 = vshll.u32 %v6773, 16
    %v6777 = vshrl.u32 %v6773, 16
    %v6778 = vshll.u32 %v6774, 16
    %v6779 = vshrl.u32 %v6774, 16
    %vm6780 = vc.u32 %v6772, %v6776
    %v6781 = vsel %vm6780, 1, 0
    %v6782 = vadd.s32 %v6772, %v6776
    %v6783 = vadd.s32 %v6775, %v6781
    %vm6784 = vc.u32 %v6782, %v6778
    %v6785 = vsel %vm6784, 1, 0
    %v6786 = vadd.s32 %v6782, %v6778
    %v6787 = vadd.s32 %v6783, %v6785
    %v6788 = vadd.s32 %v6787, %v6777
    %v6789 = vadd.s32 %v6788, %v6779
    %v6790 = vmul.u32 %v6745, %v6736
    %v6791 = vadd.s32 %v6767, %v6786
    %vm6792 = vc.u32 %v6767, %v6786
    %v6793 = vadd.s32 %v6789, 1
    %v6794 = vsel %vm6792, %v6793, %v6789
    %v6795 = vadd.s32 %v6790, %v6794
    %v6796 = vadd.s32 %v6795, 536870912
    %v6797 = vshrl.u32 %v6796, 30
    %v6798 = vshll.u32 %v6797, 30
    %v6799 = vsub.s32 %v6795, %v6798
    %vm6800 = vcmp.lt.s32.totalorder %v6799, 0
    %v6801 = vsub.s32 0, %v6799
    %v6802 = vsel %vm6800, %v6801, %v6799
    %v6803 = vclz %v6802
    %v6804 = vsub.s32 %v6803, 2
    %vm6805 = vcmp.gt.s32.totalorder 0, %v6804
    %v6806 = vsel %vm6805, 0, %v6804
    %v6807 = vsub.s32 32, %v6806
    %v6808 = vshll.u32 %v6799, %v6806
    %v6809 = vshrl.u32 %v6791, %v6807
    %v6810 = vor.u32 %v6808, %v6809
    %v6811 = vsub.s32 4294967266, %v6806
    %v6812 = vadd.s32 %v6811, 127
    %v6813 = vshll.u32 %v6812, 23
    %v6814 = vor.u32 4788187, %v6813
    %v6815 = vand.u32 2147483647, %v6814
    %v6817 = vcvt.s32.f32 %v6810
    %v6818 = vmul.f32 %v6817, %v6815
    %v6819 = vxor.u32 %v6818, 2147483648
    %v6820 = vsel %vm6699, %v6819, %v6818
    %v6821 = vsub.s32 4, %v6797
    %v6822 = vsel %vm6699, %v6821, %v6797
    %v6823 = vsel %vm6698, %v174, %v6820
    %v6824 = vsel %vm6698, 0, %v6822
    %v6825 = vmul.f32 %v6823, %v6823
    %v6826 = vmul.f32 %v6825, -0.001358992
    %v6827 = vadd.f32 %v6826, 0.041655596
    %v6828 = vmul.f32 %v6825, %v6827
    %v6829 = vadd.f32 %v6828, -0.4999988
    %v6830 = vmul.f32 %v6825, %v6829
    %v6831 = vadd.f32 1.0, %v6830
    %v6832 = vmul.f32 %v6823, %v6823
    %v6833 = vmul.f32 %v6832, -0.00019511016
    %v6834 = vadd.f32 %v6833, 0.008332121
    %v6835 = vmul.f32 %v6832, %v6834
    %v6836 = vadd.f32 %v6835, -0.16666654
    %v6837 = vmul.f32 %v6832, %v6836
    %v6838 = vadd.f32 %v6837, 1.0
    %v6839 = vmul.f32 %v6838, %v6823
    %vm6840 = vweird.f32 %v174
    %v6841 = vand.u32 %v6824, 3
    %vm6842 = vcmp.lt.s32.totalorder %v6841, 2
    %vm6843 = vcmp.eq.s32.totalorder %v6841, 0
    %v6844 = vxor.u32 %v6839, 2147483648
    %v6845 = vsel %vm6843, %v6831, %v6844
    %vm6846 = vcmp.eq.s32.totalorder %v6841, 2
    %v6847 = vxor.u32 %v6831, 2147483648
    %v6848 = vsel %vm6846, %v6847, %v6839
    %v6849 = vsel %vm6842, %v6845, %v6848
    %v6850 = vsel %vm6840, nan, %v6849
    %v6851 = vand.u32 2147483647, %v175
    %vm6852 = vcmp.le.f32.partialorder %v6851, 0.7853982
    %vm6853 = vcmp.lt.s32.totalorder %v175, 0
    %v6854 = vand.u32 %v175, 2139095040
    %v6855 = vshrl.u32 %v6854, 23
    %v6856 = vsub.s32 %v6855, 127
    %v6857 = vand.u32 2147483647, %v175
    %v6858 = vand.u32 %v6857, 8388607
    %v6859 = vor.u32 %v6858, 8388608
    %v6860 = vsub.s32 0, %v6859
    %v6861 = vadd.s32 %v6856, 1
    %vm6862 = vcmp.gt.s32.totalorder %v6861, 0
    %v6863 = vsel %vm6862, %v6861, 0
    %v6864 = vshrl.u32 %v6863, 5
    %v6865 = vand.u32 %v6863, 31
    %v6866 = vsub.s32 32, %v6865
    %v6867 = vshrl.u32 683565275, %v6866
    %v6868 = vshll.u32 683565275, %v6865
    %v6869 = vshrl.u32 2475754826, %v6866
    %v6870 = vor.u32 %v6868, %v6869
    %v6871 = vshll.u32 2475754826, %v6865
    %v6872 = vshrl.u32 2131351028, %v6866
    %v6873 = vor.u32 %v6871, %v6872
    %v6874 = vshll.u32 2131351028, %v6865
    %v6875 = vshrl.u32 2102212464, %v6866
    %v6876 = vor.u32 %v6874, %v6875
    %v6877 = vshll.u32 2102212464, %v6865
    %v6878 = vshrl.u32 920167782, %v6866
    %v6879 = vor.u32 %v6877, %v6878
    %v6880 = vshll.u32 920167782, %v6865
    %v6881 = vshrl.u32 1326507024, %v6866
    %v6882 = vor.u32 %v6880, %v6881
    %vm6883 = vcmp.lt.s32.totalorder %v6864, 1
    %vm6884 = vcmp.lt.s32.totalorder %v6864, 2
    %vm6885 = vcmp.lt.s32.totalorder %v6864, 3
    %vm6886 = vcmp.lt.s32.totalorder %v6864, 4
    %v6887 = vsel %vm6883, %v6867, %v6870
    %v6888 = vsel %vm6886, %v6876, 2102212464
    %v6889 = vsel %vm6885, %v6873, %v6888
    %v6890 = vsel %vm6884, %v6887, %v6889
    %v6891 = vsel %vm6883, %v6870, %v6873
    %v6892 = vsel %vm6886, %v6879, 920167782
    %v6893 = vsel %vm6885, %v6876, %v6892
    %v6894 = vsel %vm6884, %v6891, %v6893
    %v6895 = vsel %vm6883, %v6873, %v6876
    %v6896 = vsel %vm6886, %v6882, 1326507024
    %v6897 = vsel %vm6885, %v6879, %v6896
    %v6898 = vsel %vm6884, %v6895, %v6897
    %v6899 = vshll.u32 %v6859, 8
    %v6900 = vand.u32 %v6899, 65535
    %v6901 = vshrl.u32 %v6899, 16
    %v6902 = vand.u32 %v6898, 65535
    %v6903 = vshrl.u32 %v6898, 16
    %v6904 = vmul.u32 %v6900, %v6902
    %v6905 = vmul.u32 %v6900, %v6903
    %v6906 = vmul.u32 %v6901, %v6902
    %v6907 = vmul.u32 %v6901, %v6903
    %v6908 = vshll.u32 %v6905, 16
    %v6909 = vshrl.u32 %v6905, 16
    %v6910 = vshll.u32 %v6906, 16
    %v6911 = vshrl.u32 %v6906, 16
    %vm6912 = vc.u32 %v6904, %v6908
    %v6913 = vsel %vm6912, 1, 0
    %v6914 = vadd.s32 %v6904, %v6908
    %v6915 = vadd.s32 %v6907, %v6913
    %vm6916 = vc.u32 %v6914, %v6910
    %v6917 = vsel %vm6916, 1, 0
    %v6918 = vadd.s32 %v6914, %v6910
    %v6919 = vadd.s32 %v6915, %v6917
    %v6920 = vadd.s32 %v6919, %v6909
    %v6921 = vadd.s32 %v6920, %v6911
    %v6922 = vand.u32 %v6899, 65535
    %v6923 = vshrl.u32 %v6899, 16
    %v6924 = vand.u32 %v6894, 65535
    %v6925 = vshrl.u32 %v6894, 16
    %v6926 = vmul.u32 %v6922, %v6924
    %v6927 = vmul.u32 %v6922, %v6925
    %v6928 = vmul.u32 %v6923, %v6924
    %v6929 = vmul.u32 %v6923, %v6925
    %v6930 = vshll.u32 %v6927, 16
    %v6931 = vshrl.u32 %v6927, 16
    %v6932 = vshll.u32 %v6928, 16
    %v6933 = vshrl.u32 %v6928, 16
    %vm6934 = vc.u32 %v6926, %v6930
    %v6935 = vsel %vm6934, 1, 0
    %v6936 = vadd.s32 %v6926, %v6930
    %v6937 = vadd.s32 %v6929, %v6935
    %vm6938 = vc.u32 %v6936, %v6932
    %v6939 = vsel %vm6938, 1, 0
    %v6940 = vadd.s32 %v6936, %v6932
    %v6941 = vadd.s32 %v6937, %v6939
    %v6942 = vadd.s32 %v6941, %v6931
    %v6943 = vadd.s32 %v6942, %v6933
    %v6944 = vmul.u32 %v6899, %v6890
    %v6945 = vadd.s32 %v6921, %v6940
    %vm6946 = vc.u32 %v6921, %v6940
    %v6947 = vadd.s32 %v6943, 1
    %v6948 = vsel %vm6946, %v6947, %v6943
    %v6949 = vadd.s32 %v6944, %v6948
    %v6950 = vadd.s32 %v6949, 536870912
    %v6951 = vshrl.u32 %v6950, 30
    %v6952 = vshll.u32 %v6951, 30
    %v6953 = vsub.s32 %v6949, %v6952
    %vm6954 = vcmp.lt.s32.totalorder %v6953, 0
    %v6955 = vsub.s32 0, %v6953
    %v6956 = vsel %vm6954, %v6955, %v6953
    %v6957 = vclz %v6956
    %v6958 = vsub.s32 %v6957, 2
    %vm6959 = vcmp.gt.s32.totalorder 0, %v6958
    %v6960 = vsel %vm6959, 0, %v6958
    %v6961 = vsub.s32 32, %v6960
    %v6962 = vshll.u32 %v6953, %v6960
    %v6963 = vshrl.u32 %v6945, %v6961
    %v6964 = vor.u32 %v6962, %v6963
    %v6965 = vsub.s32 4294967266, %v6960
    %v6966 = vadd.s32 %v6965, 127
    %v6967 = vshll.u32 %v6966, 23
    %v6968 = vor.u32 4788187, %v6967
    %v6969 = vand.u32 2147483647, %v6968
    %v6971 = vcvt.s32.f32 %v6964
    %v6972 = vmul.f32 %v6971, %v6969
    %v6973 = vxor.u32 %v6972, 2147483648
    %v6974 = vsel %vm6853, %v6973, %v6972
    %v6975 = vsub.s32 4, %v6951
    %v6976 = vsel %vm6853, %v6975, %v6951
    %v6977 = vsel %vm6852, %v175, %v6974
    %v6978 = vsel %vm6852, 0, %v6976
    %v6979 = vmul.f32 %v6977, %v6977
    %v6980 = vmul.f32 %v6979, -0.001358992
    %v6981 = vadd.f32 %v6980, 0.041655596
    %v6982 = vmul.f32 %v6979, %v6981
    %v6983 = vadd.f32 %v6982, -0.4999988
    %v6984 = vmul.f32 %v6979, %v6983
    %v6985 = vadd.f32 1.0, %v6984
    %v6986 = vmul.f32 %v6977, %v6977
    %v6987 = vmul.f32 %v6986, -0.00019511016
    %v6988 = vadd.f32 %v6987, 0.008332121
    %v6989 = vmul.f32 %v6986, %v6988
    %v6990 = vadd.f32 %v6989, -0.16666654
    %v6991 = vmul.f32 %v6986, %v6990
    %v6992 = vadd.f32 %v6991, 1.0
    %v6993 = vmul.f32 %v6992, %v6977
    %vm6994 = vweird.f32 %v175
    %v6995 = vand.u32 %v6978, 3
    %vm6996 = vcmp.lt.s32.totalorder %v6995, 2
    %vm6997 = vcmp.eq.s32.totalorder %v6995, 0
    %v6998 = vxor.u32 %v6993, 2147483648
    %v6999 = vsel %vm6997, %v6985, %v6998
    %vm7000 = vcmp.eq.s32.totalorder %v6995, 2
    %v7001 = vxor.u32 %v6985, 2147483648
    %v7002 = vsel %vm7000, %v7001, %v6993
    %v7003 = vsel %vm6996, %v6999, %v7002
    %v7004 = vsel %vm6994, nan, %v7003
    %v7005 = vand.u32 2147483647, %v176
    %vm7006 = vcmp.le.f32.partialorder %v7005, 0.7853982
    %vm7007 = vcmp.lt.s32.totalorder %v176, 0
    %v7008 = vand.u32 %v176, 2139095040
    %v7009 = vshrl.u32 %v7008, 23
    %v7010 = vsub.s32 %v7009, 127
    %v7011 = vand.u32 2147483647, %v176
    %v7012 = vand.u32 %v7011, 8388607
    %v7013 = vor.u32 %v7012, 8388608
    %v7014 = vsub.s32 0, %v7013
    %v7015 = vadd.s32 %v7010, 1
    %vm7016 = vcmp.gt.s32.totalorder %v7015, 0
    %v7017 = vsel %vm7016, %v7015, 0
    %v7018 = vshrl.u32 %v7017, 5
    %v7019 = vand.u32 %v7017, 31
    %v7020 = vsub.s32 32, %v7019
    %v7021 = vshrl.u32 683565275, %v7020
    %v7022 = vshll.u32 683565275, %v7019
    %v7023 = vshrl.u32 2475754826, %v7020
    %v7024 = vor.u32 %v7022, %v7023
    %v7025 = vshll.u32 2475754826, %v7019
    %v7026 = vshrl.u32 2131351028, %v7020
    %v7027 = vor.u32 %v7025, %v7026
    %v7028 = vshll.u32 2131351028, %v7019
    %v7029 = vshrl.u32 2102212464, %v7020
    %v7030 = vor.u32 %v7028, %v7029
    %v7031 = vshll.u32 2102212464, %v7019
    %v7032 = vshrl.u32 920167782, %v7020
    %v7033 = vor.u32 %v7031, %v7032
    %v7034 = vshll.u32 920167782, %v7019
    %v7035 = vshrl.u32 1326507024, %v7020
    %v7036 = vor.u32 %v7034, %v7035
    %vm7037 = vcmp.lt.s32.totalorder %v7018, 1
    %vm7038 = vcmp.lt.s32.totalorder %v7018, 2
    %vm7039 = vcmp.lt.s32.totalorder %v7018, 3
    %vm7040 = vcmp.lt.s32.totalorder %v7018, 4
    %v7041 = vsel %vm7037, %v7021, %v7024
    %v7042 = vsel %vm7040, %v7030, 2102212464
    %v7043 = vsel %vm7039, %v7027, %v7042
    %v7044 = vsel %vm7038, %v7041, %v7043
    %v7045 = vsel %vm7037, %v7024, %v7027
    %v7046 = vsel %vm7040, %v7033, 920167782
    %v7047 = vsel %vm7039, %v7030, %v7046
    %v7048 = vsel %vm7038, %v7045, %v7047
    %v7049 = vsel %vm7037, %v7027, %v7030
    %v7050 = vsel %vm7040, %v7036, 1326507024
    %v7051 = vsel %vm7039, %v7033, %v7050
    %v7052 = vsel %vm7038, %v7049, %v7051
    %v7053 = vshll.u32 %v7013, 8
    %v7054 = vand.u32 %v7053, 65535
    %v7055 = vshrl.u32 %v7053, 16
    %v7056 = vand.u32 %v7052, 65535
    %v7057 = vshrl.u32 %v7052, 16
    %v7058 = vmul.u32 %v7054, %v7056
    %v7059 = vmul.u32 %v7054, %v7057
    %v7060 = vmul.u32 %v7055, %v7056
    %v7061 = vmul.u32 %v7055, %v7057
    %v7062 = vshll.u32 %v7059, 16
    %v7063 = vshrl.u32 %v7059, 16
    %v7064 = vshll.u32 %v7060, 16
    %v7065 = vshrl.u32 %v7060, 16
    %vm7066 = vc.u32 %v7058, %v7062
    %v7067 = vsel %vm7066, 1, 0
    %v7068 = vadd.s32 %v7058, %v7062
    %v7069 = vadd.s32 %v7061, %v7067
    %vm7070 = vc.u32 %v7068, %v7064
    %v7071 = vsel %vm7070, 1, 0
    %v7072 = vadd.s32 %v7068, %v7064
    %v7073 = vadd.s32 %v7069, %v7071
    %v7074 = vadd.s32 %v7073, %v7063
    %v7075 = vadd.s32 %v7074, %v7065
    %v7076 = vand.u32 %v7053, 65535
    %v7077 = vshrl.u32 %v7053, 16
    %v7078 = vand.u32 %v7048, 65535
    %v7079 = vshrl.u32 %v7048, 16
    %v7080 = vmul.u32 %v7076, %v7078
    %v7081 = vmul.u32 %v7076, %v7079
    %v7082 = vmul.u32 %v7077, %v7078
    %v7083 = vmul.u32 %v7077, %v7079
    %v7084 = vshll.u32 %v7081, 16
    %v7085 = vshrl.u32 %v7081, 16
    %v7086 = vshll.u32 %v7082, 16
    %v7087 = vshrl.u32 %v7082, 16
    %vm7088 = vc.u32 %v7080, %v7084
    %v7089 = vsel %vm7088, 1, 0
    %v7090 = vadd.s32 %v7080, %v7084
    %v7091 = vadd.s32 %v7083, %v7089
    %vm7092 = vc.u32 %v7090, %v7086
    %v7093 = vsel %vm7092, 1, 0
    %v7094 = vadd.s32 %v7090, %v7086
    %v7095 = vadd.s32 %v7091, %v7093
    %v7096 = vadd.s32 %v7095, %v7085
    %v7097 = vadd.s32 %v7096, %v7087
    %v7098 = vmul.u32 %v7053, %v7044
    %v7099 = vadd.s32 %v7075, %v7094
    %vm7100 = vc.u32 %v7075, %v7094
    %v7101 = vadd.s32 %v7097, 1
    %v7102 = vsel %vm7100, %v7101, %v7097
    %v7103 = vadd.s32 %v7098, %v7102
    %v7104 = vadd.s32 %v7103, 536870912
    %v7105 = vshrl.u32 %v7104, 30
    %v7106 = vshll.u32 %v7105, 30
    %v7107 = vsub.s32 %v7103, %v7106
    %vm7108 = vcmp.lt.s32.totalorder %v7107, 0
    %v7109 = vsub.s32 0, %v7107
    %v7110 = vsel %vm7108, %v7109, %v7107
    %v7111 = vclz %v7110
    %v7112 = vsub.s32 %v7111, 2
    %vm7113 = vcmp.gt.s32.totalorder 0, %v7112
    %v7114 = vsel %vm7113, 0, %v7112
    %v7115 = vsub.s32 32, %v7114
    %v7116 = vshll.u32 %v7107, %v7114
    %v7117 = vshrl.u32 %v7099, %v7115
    %v7118 = vor.u32 %v7116, %v7117
    %v7119 = vsub.s32 4294967266, %v7114
    %v7120 = vadd.s32 %v7119, 127
    %v7121 = vshll.u32 %v7120, 23
    %v7122 = vor.u32 4788187, %v7121
    %v7123 = vand.u32 2147483647, %v7122
    %v7125 = vcvt.s32.f32 %v7118
    %v7126 = vmul.f32 %v7125, %v7123
    %v7127 = vxor.u32 %v7126, 2147483648
    %v7128 = vsel %vm7007, %v7127, %v7126
    %v7129 = vsub.s32 4, %v7105
    %v7130 = vsel %vm7007, %v7129, %v7105
    %v7131 = vsel %vm7006, %v176, %v7128
    %v7132 = vsel %vm7006, 0, %v7130
    %v7133 = vmul.f32 %v7131, %v7131
    %v7134 = vmul.f32 %v7133, -0.001358992
    %v7135 = vadd.f32 %v7134, 0.041655596
    %v7136 = vmul.f32 %v7133, %v7135
    %v7137 = vadd.f32 %v7136, -0.4999988
    %v7138 = vmul.f32 %v7133, %v7137
    %v7139 = vadd.f32 1.0, %v7138
    %v7140 = vmul.f32 %v7131, %v7131
    %v7141 = vmul.f32 %v7140, -0.00019511016
    %v7142 = vadd.f32 %v7141, 0.008332121
    %v7143 = vmul.f32 %v7140, %v7142
    %v7144 = vadd.f32 %v7143, -0.16666654
    %v7145 = vmul.f32 %v7140, %v7144
    %v7146 = vadd.f32 %v7145, 1.0
    %v7147 = vmul.f32 %v7146, %v7131
    %vm7148 = vweird.f32 %v176
    %v7149 = vand.u32 %v7132, 3
    %vm7150 = vcmp.lt.s32.totalorder %v7149, 2
    %vm7151 = vcmp.eq.s32.totalorder %v7149, 0
    %v7152 = vxor.u32 %v7147, 2147483648
    %v7153 = vsel %vm7151, %v7139, %v7152
    %vm7154 = vcmp.eq.s32.totalorder %v7149, 2
    %v7155 = vxor.u32 %v7139, 2147483648
    %v7156 = vsel %vm7154, %v7155, %v7147
    %v7157 = vsel %vm7150, %v7153, %v7156
    %v7158 = vsel %vm7148, nan, %v7157
    %v7159 = vand.u32 2147483647, %v177
    %vm7160 = vcmp.le.f32.partialorder %v7159, 0.7853982
    %vm7161 = vcmp.lt.s32.totalorder %v177, 0
    %v7162 = vand.u32 %v177, 2139095040
    %v7163 = vshrl.u32 %v7162, 23
    %v7164 = vsub.s32 %v7163, 127
    %v7165 = vand.u32 2147483647, %v177
    %v7166 = vand.u32 %v7165, 8388607
    %v7167 = vor.u32 %v7166, 8388608
    %v7168 = vsub.s32 0, %v7167
    %v7169 = vadd.s32 %v7164, 1
    %vm7170 = vcmp.gt.s32.totalorder %v7169, 0
    %v7171 = vsel %vm7170, %v7169, 0
    %v7172 = vshrl.u32 %v7171, 5
    %v7173 = vand.u32 %v7171, 31
    %v7174 = vsub.s32 32, %v7173
    %v7175 = vshrl.u32 683565275, %v7174
    %v7176 = vshll.u32 683565275, %v7173
    %v7177 = vshrl.u32 2475754826, %v7174
    %v7178 = vor.u32 %v7176, %v7177
    %v7179 = vshll.u32 2475754826, %v7173
    %v7180 = vshrl.u32 2131351028, %v7174
    %v7181 = vor.u32 %v7179, %v7180
    %v7182 = vshll.u32 2131351028, %v7173
    %v7183 = vshrl.u32 2102212464, %v7174
    %v7184 = vor.u32 %v7182, %v7183
    %v7185 = vshll.u32 2102212464, %v7173
    %v7186 = vshrl.u32 920167782, %v7174
    %v7187 = vor.u32 %v7185, %v7186
    %v7188 = vshll.u32 920167782, %v7173
    %v7189 = vshrl.u32 1326507024, %v7174
    %v7190 = vor.u32 %v7188, %v7189
    %vm7191 = vcmp.lt.s32.totalorder %v7172, 1
    %vm7192 = vcmp.lt.s32.totalorder %v7172, 2
    %vm7193 = vcmp.lt.s32.totalorder %v7172, 3
    %vm7194 = vcmp.lt.s32.totalorder %v7172, 4
    %v7195 = vsel %vm7191, %v7175, %v7178
    %v7196 = vsel %vm7194, %v7184, 2102212464
    %v7197 = vsel %vm7193, %v7181, %v7196
    %v7198 = vsel %vm7192, %v7195, %v7197
    %v7199 = vsel %vm7191, %v7178, %v7181
    %v7200 = vsel %vm7194, %v7187, 920167782
    %v7201 = vsel %vm7193, %v7184, %v7200
    %v7202 = vsel %vm7192, %v7199, %v7201
    %v7203 = vsel %vm7191, %v7181, %v7184
    %v7204 = vsel %vm7194, %v7190, 1326507024
    %v7205 = vsel %vm7193, %v7187, %v7204
    %v7206 = vsel %vm7192, %v7203, %v7205
    %v7207 = vshll.u32 %v7167, 8
    %v7208 = vand.u32 %v7207, 65535
    %v7209 = vshrl.u32 %v7207, 16
    %v7210 = vand.u32 %v7206, 65535
    %v7211 = vshrl.u32 %v7206, 16
    %v7212 = vmul.u32 %v7208, %v7210
    %v7213 = vmul.u32 %v7208, %v7211
    %v7214 = vmul.u32 %v7209, %v7210
    %v7215 = vmul.u32 %v7209, %v7211
    %v7216 = vshll.u32 %v7213, 16
    %v7217 = vshrl.u32 %v7213, 16
    %v7218 = vshll.u32 %v7214, 16
    %v7219 = vshrl.u32 %v7214, 16
    %vm7220 = vc.u32 %v7212, %v7216
    %v7221 = vsel %vm7220, 1, 0
    %v7222 = vadd.s32 %v7212, %v7216
    %v7223 = vadd.s32 %v7215, %v7221
    %vm7224 = vc.u32 %v7222, %v7218
    %v7225 = vsel %vm7224, 1, 0
    %v7226 = vadd.s32 %v7222, %v7218
    %v7227 = vadd.s32 %v7223, %v7225
    %v7228 = vadd.s32 %v7227, %v7217
    %v7229 = vadd.s32 %v7228, %v7219
    %v7230 = vand.u32 %v7207, 65535
    %v7231 = vshrl.u32 %v7207, 16
    %v7232 = vand.u32 %v7202, 65535
    %v7233 = vshrl.u32 %v7202, 16
    %v7234 = vmul.u32 %v7230, %v7232
    %v7235 = vmul.u32 %v7230, %v7233
    %v7236 = vmul.u32 %v7231, %v7232
    %v7237 = vmul.u32 %v7231, %v7233
    %v7238 = vshll.u32 %v7235, 16
    %v7239 = vshrl.u32 %v7235, 16
    %v7240 = vshll.u32 %v7236, 16
    %v7241 = vshrl.u32 %v7236, 16
    %vm7242 = vc.u32 %v7234, %v7238
    %v7243 = vsel %vm7242, 1, 0
    %v7244 = vadd.s32 %v7234, %v7238
    %v7245 = vadd.s32 %v7237, %v7243
    %vm7246 = vc.u32 %v7244, %v7240
    %v7247 = vsel %vm7246, 1, 0
    %v7248 = vadd.s32 %v7244, %v7240
    %v7249 = vadd.s32 %v7245, %v7247
    %v7250 = vadd.s32 %v7249, %v7239
    %v7251 = vadd.s32 %v7250, %v7241
    %v7252 = vmul.u32 %v7207, %v7198
    %v7253 = vadd.s32 %v7229, %v7248
    %vm7254 = vc.u32 %v7229, %v7248
    %v7255 = vadd.s32 %v7251, 1
    %v7256 = vsel %vm7254, %v7255, %v7251
    %v7257 = vadd.s32 %v7252, %v7256
    %v7258 = vadd.s32 %v7257, 536870912
    %v7259 = vshrl.u32 %v7258, 30
    %v7260 = vshll.u32 %v7259, 30
    %v7261 = vsub.s32 %v7257, %v7260
    %vm7262 = vcmp.lt.s32.totalorder %v7261, 0
    %v7263 = vsub.s32 0, %v7261
    %v7264 = vsel %vm7262, %v7263, %v7261
    %v7265 = vclz %v7264
    %v7266 = vsub.s32 %v7265, 2
    %vm7267 = vcmp.gt.s32.totalorder 0, %v7266
    %v7268 = vsel %vm7267, 0, %v7266
    %v7269 = vsub.s32 32, %v7268
    %v7270 = vshll.u32 %v7261, %v7268
    %v7271 = vshrl.u32 %v7253, %v7269
    %v7272 = vor.u32 %v7270, %v7271
    %v7273 = vsub.s32 4294967266, %v7268
    %v7274 = vadd.s32 %v7273, 127
    %v7275 = vshll.u32 %v7274, 23
    %v7276 = vor.u32 4788187, %v7275
    %v7277 = vand.u32 2147483647, %v7276
    %v7279 = vcvt.s32.f32 %v7272
    %v7280 = vmul.f32 %v7279, %v7277
    %v7281 = vxor.u32 %v7280, 2147483648
    %v7282 = vsel %vm7161, %v7281, %v7280
    %v7283 = vsub.s32 4, %v7259
    %v7284 = vsel %vm7161, %v7283, %v7259
    %v7285 = vsel %vm7160, %v177, %v7282
    %v7286 = vsel %vm7160, 0, %v7284
    %v7287 = vmul.f32 %v7285, %v7285
    %v7288 = vmul.f32 %v7287, -0.001358992
    %v7289 = vadd.f32 %v7288, 0.041655596
    %v7290 = vmul.f32 %v7287, %v7289
    %v7291 = vadd.f32 %v7290, -0.4999988
    %v7292 = vmul.f32 %v7287, %v7291
    %v7293 = vadd.f32 1.0, %v7292
    %v7294 = vmul.f32 %v7285, %v7285
    %v7295 = vmul.f32 %v7294, -0.00019511016
    %v7296 = vadd.f32 %v7295, 0.008332121
    %v7297 = vmul.f32 %v7294, %v7296
    %v7298 = vadd.f32 %v7297, -0.16666654
    %v7299 = vmul.f32 %v7294, %v7298
    %v7300 = vadd.f32 %v7299, 1.0
    %v7301 = vmul.f32 %v7300, %v7285
    %vm7302 = vweird.f32 %v177
    %v7303 = vand.u32 %v7286, 3
    %vm7304 = vcmp.lt.s32.totalorder %v7303, 2
    %vm7305 = vcmp.eq.s32.totalorder %v7303, 0
    %v7306 = vxor.u32 %v7301, 2147483648
    %v7307 = vsel %vm7305, %v7293, %v7306
    %vm7308 = vcmp.eq.s32.totalorder %v7303, 2
    %v7309 = vxor.u32 %v7293, 2147483648
    %v7310 = vsel %vm7308, %v7309, %v7301
    %v7311 = vsel %vm7304, %v7307, %v7310
    %v7312 = vsel %vm7302, nan, %v7311
    %v7313 = vand.u32 2147483647, %v178
    %vm7314 = vcmp.le.f32.partialorder %v7313, 0.7853982
    %vm7315 = vcmp.lt.s32.totalorder %v178, 0
    %v7316 = vand.u32 %v178, 2139095040
    %v7317 = vshrl.u32 %v7316, 23
    %v7318 = vsub.s32 %v7317, 127
    %v7319 = vand.u32 2147483647, %v178
    %v7320 = vand.u32 %v7319, 8388607
    %v7321 = vor.u32 %v7320, 8388608
    %v7322 = vsub.s32 0, %v7321
    %v7323 = vadd.s32 %v7318, 1
    %vm7324 = vcmp.gt.s32.totalorder %v7323, 0
    %v7325 = vsel %vm7324, %v7323, 0
    %v7326 = vshrl.u32 %v7325, 5
    %v7327 = vand.u32 %v7325, 31
    %v7328 = vsub.s32 32, %v7327
    %v7329 = vshrl.u32 683565275, %v7328
    %v7330 = vshll.u32 683565275, %v7327
    %v7331 = vshrl.u32 2475754826, %v7328
    %v7332 = vor.u32 %v7330, %v7331
    %v7333 = vshll.u32 2475754826, %v7327
    %v7334 = vshrl.u32 2131351028, %v7328
    %v7335 = vor.u32 %v7333, %v7334
    %v7336 = vshll.u32 2131351028, %v7327
    %v7337 = vshrl.u32 2102212464, %v7328
    %v7338 = vor.u32 %v7336, %v7337
    %v7339 = vshll.u32 2102212464, %v7327
    %v7340 = vshrl.u32 920167782, %v7328
    %v7341 = vor.u32 %v7339, %v7340
    %v7342 = vshll.u32 920167782, %v7327
    %v7343 = vshrl.u32 1326507024, %v7328
    %v7344 = vor.u32 %v7342, %v7343
    %vm7345 = vcmp.lt.s32.totalorder %v7326, 1
    %vm7346 = vcmp.lt.s32.totalorder %v7326, 2
    %vm7347 = vcmp.lt.s32.totalorder %v7326, 3
    %vm7348 = vcmp.lt.s32.totalorder %v7326, 4
    %v7349 = vsel %vm7345, %v7329, %v7332
    %v7350 = vsel %vm7348, %v7338, 2102212464
    %v7351 = vsel %vm7347, %v7335, %v7350
    %v7352 = vsel %vm7346, %v7349, %v7351
    %v7353 = vsel %vm7345, %v7332, %v7335
    %v7354 = vsel %vm7348, %v7341, 920167782
    %v7355 = vsel %vm7347, %v7338, %v7354
    %v7356 = vsel %vm7346, %v7353, %v7355
    %v7357 = vsel %vm7345, %v7335, %v7338
    %v7358 = vsel %vm7348, %v7344, 1326507024
    %v7359 = vsel %vm7347, %v7341, %v7358
    %v7360 = vsel %vm7346, %v7357, %v7359
    %v7361 = vshll.u32 %v7321, 8
    %v7362 = vand.u32 %v7361, 65535
    %v7363 = vshrl.u32 %v7361, 16
    %v7364 = vand.u32 %v7360, 65535
    %v7365 = vshrl.u32 %v7360, 16
    %v7366 = vmul.u32 %v7362, %v7364
    %v7367 = vmul.u32 %v7362, %v7365
    %v7368 = vmul.u32 %v7363, %v7364
    %v7369 = vmul.u32 %v7363, %v7365
    %v7370 = vshll.u32 %v7367, 16
    %v7371 = vshrl.u32 %v7367, 16
    %v7372 = vshll.u32 %v7368, 16
    %v7373 = vshrl.u32 %v7368, 16
    %vm7374 = vc.u32 %v7366, %v7370
    %v7375 = vsel %vm7374, 1, 0
    %v7376 = vadd.s32 %v7366, %v7370
    %v7377 = vadd.s32 %v7369, %v7375
    %vm7378 = vc.u32 %v7376, %v7372
    %v7379 = vsel %vm7378, 1, 0
    %v7380 = vadd.s32 %v7376, %v7372
    %v7381 = vadd.s32 %v7377, %v7379
    %v7382 = vadd.s32 %v7381, %v7371
    %v7383 = vadd.s32 %v7382, %v7373
    %v7384 = vand.u32 %v7361, 65535
    %v7385 = vshrl.u32 %v7361, 16
    %v7386 = vand.u32 %v7356, 65535
    %v7387 = vshrl.u32 %v7356, 16
    %v7388 = vmul.u32 %v7384, %v7386
    %v7389 = vmul.u32 %v7384, %v7387
    %v7390 = vmul.u32 %v7385, %v7386
    %v7391 = vmul.u32 %v7385, %v7387
    %v7392 = vshll.u32 %v7389, 16
    %v7393 = vshrl.u32 %v7389, 16
    %v7394 = vshll.u32 %v7390, 16
    %v7395 = vshrl.u32 %v7390, 16
    %vm7396 = vc.u32 %v7388, %v7392
    %v7397 = vsel %vm7396, 1, 0
    %v7398 = vadd.s32 %v7388, %v7392
    %v7399 = vadd.s32 %v7391, %v7397
    %vm7400 = vc.u32 %v7398, %v7394
    %v7401 = vsel %vm7400, 1, 0
    %v7402 = vadd.s32 %v7398, %v7394
    %v7403 = vadd.s32 %v7399, %v7401
    %v7404 = vadd.s32 %v7403, %v7393
    %v7405 = vadd.s32 %v7404, %v7395
    %v7406 = vmul.u32 %v7361, %v7352
    %v7407 = vadd.s32 %v7383, %v7402
    %vm7408 = vc.u32 %v7383, %v7402
    %v7409 = vadd.s32 %v7405, 1
    %v7410 = vsel %vm7408, %v7409, %v7405
    %v7411 = vadd.s32 %v7406, %v7410
    %v7412 = vadd.s32 %v7411, 536870912
    %v7413 = vshrl.u32 %v7412, 30
    %v7414 = vshll.u32 %v7413, 30
    %v7415 = vsub.s32 %v7411, %v7414
    %vm7416 = vcmp.lt.s32.totalorder %v7415, 0
    %v7417 = vsub.s32 0, %v7415
    %v7418 = vsel %vm7416, %v7417, %v7415
    %v7419 = vclz %v7418
    %v7420 = vsub.s32 %v7419, 2
    %vm7421 = vcmp.gt.s32.totalorder 0, %v7420
    %v7422 = vsel %vm7421, 0, %v7420
    %v7423 = vsub.s32 32, %v7422
    %v7424 = vshll.u32 %v7415, %v7422
    %v7425 = vshrl.u32 %v7407, %v7423
    %v7426 = vor.u32 %v7424, %v7425
    %v7427 = vsub.s32 4294967266, %v7422
    %v7428 = vadd.s32 %v7427, 127
    %v7429 = vshll.u32 %v7428, 23
    %v7430 = vor.u32 4788187, %v7429
    %v7431 = vand.u32 2147483647, %v7430
    %v7433 = vcvt.s32.f32 %v7426
    %v7434 = vmul.f32 %v7433, %v7431
    %v7435 = vxor.u32 %v7434, 2147483648
    %v7436 = vsel %vm7315, %v7435, %v7434
    %v7437 = vsub.s32 4, %v7413
    %v7438 = vsel %vm7315, %v7437, %v7413
    %v7439 = vsel %vm7314, %v178, %v7436
    %v7440 = vsel %vm7314, 0, %v7438
    %v7441 = vmul.f32 %v7439, %v7439
    %v7442 = vmul.f32 %v7441, -0.001358992
    %v7443 = vadd.f32 %v7442, 0.041655596
    %v7444 = vmul.f32 %v7441, %v7443
    %v7445 = vadd.f32 %v7444, -0.4999988
    %v7446 = vmul.f32 %v7441, %v7445
    %v7447 = vadd.f32 1.0, %v7446
    %v7448 = vmul.f32 %v7439, %v7439
    %v7449 = vmul.f32 %v7448, -0.00019511016
    %v7450 = vadd.f32 %v7449, 0.008332121
    %v7451 = vmul.f32 %v7448, %v7450
    %v7452 = vadd.f32 %v7451, -0.16666654
    %v7453 = vmul.f32 %v7448, %v7452
    %v7454 = vadd.f32 %v7453, 1.0
    %v7455 = vmul.f32 %v7454, %v7439
    %vm7456 = vweird.f32 %v178
    %v7457 = vand.u32 %v7440, 3
    %vm7458 = vcmp.lt.s32.totalorder %v7457, 2
    %vm7459 = vcmp.eq.s32.totalorder %v7457, 0
    %v7460 = vxor.u32 %v7455, 2147483648
    %v7461 = vsel %vm7459, %v7447, %v7460
    %vm7462 = vcmp.eq.s32.totalorder %v7457, 2
    %v7463 = vxor.u32 %v7447, 2147483648
    %v7464 = vsel %vm7462, %v7463, %v7455
    %v7465 = vsel %vm7458, %v7461, %v7464
    %v7466 = vsel %vm7456, nan, %v7465
    %v7467 = vand.u32 2147483647, %v179
    %vm7468 = vcmp.le.f32.partialorder %v7467, 0.7853982
    %vm7469 = vcmp.lt.s32.totalorder %v179, 0
    %v7470 = vand.u32 %v179, 2139095040
    %v7471 = vshrl.u32 %v7470, 23
    %v7472 = vsub.s32 %v7471, 127
    %v7473 = vand.u32 2147483647, %v179
    %v7474 = vand.u32 %v7473, 8388607
    %v7475 = vor.u32 %v7474, 8388608
    %v7476 = vsub.s32 0, %v7475
    %v7477 = vadd.s32 %v7472, 1
    %vm7478 = vcmp.gt.s32.totalorder %v7477, 0
    %v7479 = vsel %vm7478, %v7477, 0
    %v7480 = vshrl.u32 %v7479, 5
    %v7481 = vand.u32 %v7479, 31
    %v7482 = vsub.s32 32, %v7481
    %v7483 = vshrl.u32 683565275, %v7482
    %v7484 = vshll.u32 683565275, %v7481
    %v7485 = vshrl.u32 2475754826, %v7482
    %v7486 = vor.u32 %v7484, %v7485
    %v7487 = vshll.u32 2475754826, %v7481
    %v7488 = vshrl.u32 2131351028, %v7482
    %v7489 = vor.u32 %v7487, %v7488
    %v7490 = vshll.u32 2131351028, %v7481
    %v7491 = vshrl.u32 2102212464, %v7482
    %v7492 = vor.u32 %v7490, %v7491
    %v7493 = vshll.u32 2102212464, %v7481
    %v7494 = vshrl.u32 920167782, %v7482
    %v7495 = vor.u32 %v7493, %v7494
    %v7496 = vshll.u32 920167782, %v7481
    %v7497 = vshrl.u32 1326507024, %v7482
    %v7498 = vor.u32 %v7496, %v7497
    %vm7499 = vcmp.lt.s32.totalorder %v7480, 1
    %vm7500 = vcmp.lt.s32.totalorder %v7480, 2
    %vm7501 = vcmp.lt.s32.totalorder %v7480, 3
    %vm7502 = vcmp.lt.s32.totalorder %v7480, 4
    %v7503 = vsel %vm7499, %v7483, %v7486
    %v7504 = vsel %vm7502, %v7492, 2102212464
    %v7505 = vsel %vm7501, %v7489, %v7504
    %v7506 = vsel %vm7500, %v7503, %v7505
    %v7507 = vsel %vm7499, %v7486, %v7489
    %v7508 = vsel %vm7502, %v7495, 920167782
    %v7509 = vsel %vm7501, %v7492, %v7508
    %v7510 = vsel %vm7500, %v7507, %v7509
    %v7511 = vsel %vm7499, %v7489, %v7492
    %v7512 = vsel %vm7502, %v7498, 1326507024
    %v7513 = vsel %vm7501, %v7495, %v7512
    %v7514 = vsel %vm7500, %v7511, %v7513
    %v7515 = vshll.u32 %v7475, 8
    %v7516 = vand.u32 %v7515, 65535
    %v7517 = vshrl.u32 %v7515, 16
    %v7518 = vand.u32 %v7514, 65535
    %v7519 = vshrl.u32 %v7514, 16
    %v7520 = vmul.u32 %v7516, %v7518
    %v7521 = vmul.u32 %v7516, %v7519
    %v7522 = vmul.u32 %v7517, %v7518
    %v7523 = vmul.u32 %v7517, %v7519
    %v7524 = vshll.u32 %v7521, 16
    %v7525 = vshrl.u32 %v7521, 16
    %v7526 = vshll.u32 %v7522, 16
    %v7527 = vshrl.u32 %v7522, 16
    %vm7528 = vc.u32 %v7520, %v7524
    %v7529 = vsel %vm7528, 1, 0
    %v7530 = vadd.s32 %v7520, %v7524
    %v7531 = vadd.s32 %v7523, %v7529
    %vm7532 = vc.u32 %v7530, %v7526
    %v7533 = vsel %vm7532, 1, 0
    %v7534 = vadd.s32 %v7530, %v7526
    %v7535 = vadd.s32 %v7531, %v7533
    %v7536 = vadd.s32 %v7535, %v7525
    %v7537 = vadd.s32 %v7536, %v7527
    %v7538 = vand.u32 %v7515, 65535
    %v7539 = vshrl.u32 %v7515, 16
    %v7540 = vand.u32 %v7510, 65535
    %v7541 = vshrl.u32 %v7510, 16
    %v7542 = vmul.u32 %v7538, %v7540
    %v7543 = vmul.u32 %v7538, %v7541
    %v7544 = vmul.u32 %v7539, %v7540
    %v7545 = vmul.u32 %v7539, %v7541
    %v7546 = vshll.u32 %v7543, 16
    %v7547 = vshrl.u32 %v7543, 16
    %v7548 = vshll.u32 %v7544, 16
    %v7549 = vshrl.u32 %v7544, 16
    %vm7550 = vc.u32 %v7542, %v7546
    %v7551 = vsel %vm7550, 1, 0
    %v7552 = vadd.s32 %v7542, %v7546
    %v7553 = vadd.s32 %v7545, %v7551
    %vm7554 = vc.u32 %v7552, %v7548
    %v7555 = vsel %vm7554, 1, 0
    %v7556 = vadd.s32 %v7552, %v7548
    %v7557 = vadd.s32 %v7553, %v7555
    %v7558 = vadd.s32 %v7557, %v7547
    %v7559 = vadd.s32 %v7558, %v7549
    %v7560 = vmul.u32 %v7515, %v7506
    %v7561 = vadd.s32 %v7537, %v7556
    %vm7562 = vc.u32 %v7537, %v7556
    %v7563 = vadd.s32 %v7559, 1
    %v7564 = vsel %vm7562, %v7563, %v7559
    %v7565 = vadd.s32 %v7560, %v7564
    %v7566 = vadd.s32 %v7565, 536870912
    %v7567 = vshrl.u32 %v7566, 30
    %v7568 = vshll.u32 %v7567, 30
    %v7569 = vsub.s32 %v7565, %v7568
    %vm7570 = vcmp.lt.s32.totalorder %v7569, 0
    %v7571 = vsub.s32 0, %v7569
    %v7572 = vsel %vm7570, %v7571, %v7569
    %v7573 = vclz %v7572
    %v7574 = vsub.s32 %v7573, 2
    %vm7575 = vcmp.gt.s32.totalorder 0, %v7574
    %v7576 = vsel %vm7575, 0, %v7574
    %v7577 = vsub.s32 32, %v7576
    %v7578 = vshll.u32 %v7569, %v7576
    %v7579 = vshrl.u32 %v7561, %v7577
    %v7580 = vor.u32 %v7578, %v7579
    %v7581 = vsub.s32 4294967266, %v7576
    %v7582 = vadd.s32 %v7581, 127
    %v7583 = vshll.u32 %v7582, 23
    %v7584 = vor.u32 4788187, %v7583
    %v7585 = vand.u32 2147483647, %v7584
    %v7587 = vcvt.s32.f32 %v7580
    %v7588 = vmul.f32 %v7587, %v7585
    %v7589 = vxor.u32 %v7588, 2147483648
    %v7590 = vsel %vm7469, %v7589, %v7588
    %v7591 = vsub.s32 4, %v7567
    %v7592 = vsel %vm7469, %v7591, %v7567
    %v7593 = vsel %vm7468, %v179, %v7590
    %v7594 = vsel %vm7468, 0, %v7592
    %v7595 = vmul.f32 %v7593, %v7593
    %v7596 = vmul.f32 %v7595, -0.001358992
    %v7597 = vadd.f32 %v7596, 0.041655596
    %v7598 = vmul.f32 %v7595, %v7597
    %v7599 = vadd.f32 %v7598, -0.4999988
    %v7600 = vmul.f32 %v7595, %v7599
    %v7601 = vadd.f32 1.0, %v7600
    %v7602 = vmul.f32 %v7593, %v7593
    %v7603 = vmul.f32 %v7602, -0.00019511016
    %v7604 = vadd.f32 %v7603, 0.008332121
    %v7605 = vmul.f32 %v7602, %v7604
    %v7606 = vadd.f32 %v7605, -0.16666654
    %v7607 = vmul.f32 %v7602, %v7606
    %v7608 = vadd.f32 %v7607, 1.0
    %v7609 = vmul.f32 %v7608, %v7593
    %vm7610 = vweird.f32 %v179
    %v7611 = vand.u32 %v7594, 3
    %vm7612 = vcmp.lt.s32.totalorder %v7611, 2
    %vm7613 = vcmp.eq.s32.totalorder %v7611, 0
    %v7614 = vxor.u32 %v7609, 2147483648
    %v7615 = vsel %vm7613, %v7601, %v7614
    %vm7616 = vcmp.eq.s32.totalorder %v7611, 2
    %v7617 = vxor.u32 %v7601, 2147483648
    %v7618 = vsel %vm7616, %v7617, %v7609
    %v7619 = vsel %vm7612, %v7615, %v7618
    %v7620 = vsel %vm7610, nan, %v7619
    %v7621 = vand.u32 2147483647, %v180
    %vm7622 = vcmp.le.f32.partialorder %v7621, 0.7853982
    %vm7623 = vcmp.lt.s32.totalorder %v180, 0
    %v7624 = vand.u32 %v180, 2139095040
    %v7625 = vshrl.u32 %v7624, 23
    %v7626 = vsub.s32 %v7625, 127
    %v7627 = vand.u32 2147483647, %v180
    %v7628 = vand.u32 %v7627, 8388607
    %v7629 = vor.u32 %v7628, 8388608
    %v7630 = vsub.s32 0, %v7629
    %v7631 = vadd.s32 %v7626, 1
    %vm7632 = vcmp.gt.s32.totalorder %v7631, 0
    %v7633 = vsel %vm7632, %v7631, 0
    %v7634 = vshrl.u32 %v7633, 5
    %v7635 = vand.u32 %v7633, 31
    %v7636 = vsub.s32 32, %v7635
    %v7637 = vshrl.u32 683565275, %v7636
    %v7638 = vshll.u32 683565275, %v7635
    %v7639 = vshrl.u32 2475754826, %v7636
    %v7640 = vor.u32 %v7638, %v7639
    %v7641 = vshll.u32 2475754826, %v7635
    %v7642 = vshrl.u32 2131351028, %v7636
    %v7643 = vor.u32 %v7641, %v7642
    %v7644 = vshll.u32 2131351028, %v7635
    %v7645 = vshrl.u32 2102212464, %v7636
    %v7646 = vor.u32 %v7644, %v7645
    %v7647 = vshll.u32 2102212464, %v7635
    %v7648 = vshrl.u32 920167782, %v7636
    %v7649 = vor.u32 %v7647, %v7648
    %v7650 = vshll.u32 920167782, %v7635
    %v7651 = vshrl.u32 1326507024, %v7636
    %v7652 = vor.u32 %v7650, %v7651
    %vm7653 = vcmp.lt.s32.totalorder %v7634, 1
    %vm7654 = vcmp.lt.s32.totalorder %v7634, 2
    %vm7655 = vcmp.lt.s32.totalorder %v7634, 3
    %vm7656 = vcmp.lt.s32.totalorder %v7634, 4
    %v7657 = vsel %vm7653, %v7637, %v7640
    %v7658 = vsel %vm7656, %v7646, 2102212464
    %v7659 = vsel %vm7655, %v7643, %v7658
    %v7660 = vsel %vm7654, %v7657, %v7659
    %v7661 = vsel %vm7653, %v7640, %v7643
    %v7662 = vsel %vm7656, %v7649, 920167782
    %v7663 = vsel %vm7655, %v7646, %v7662
    %v7664 = vsel %vm7654, %v7661, %v7663
    %v7665 = vsel %vm7653, %v7643, %v7646
    %v7666 = vsel %vm7656, %v7652, 1326507024
    %v7667 = vsel %vm7655, %v7649, %v7666
    %v7668 = vsel %vm7654, %v7665, %v7667
    %v7669 = vshll.u32 %v7629, 8
    %v7670 = vand.u32 %v7669, 65535
    %v7671 = vshrl.u32 %v7669, 16
    %v7672 = vand.u32 %v7668, 65535
    %v7673 = vshrl.u32 %v7668, 16
    %v7674 = vmul.u32 %v7670, %v7672
    %v7675 = vmul.u32 %v7670, %v7673
    %v7676 = vmul.u32 %v7671, %v7672
    %v7677 = vmul.u32 %v7671, %v7673
    %v7678 = vshll.u32 %v7675, 16
    %v7679 = vshrl.u32 %v7675, 16
    %v7680 = vshll.u32 %v7676, 16
    %v7681 = vshrl.u32 %v7676, 16
    %vm7682 = vc.u32 %v7674, %v7678
    %v7683 = vsel %vm7682, 1, 0
    %v7684 = vadd.s32 %v7674, %v7678
    %v7685 = vadd.s32 %v7677, %v7683
    %vm7686 = vc.u32 %v7684, %v7680
    %v7687 = vsel %vm7686, 1, 0
    %v7688 = vadd.s32 %v7684, %v7680
    %v7689 = vadd.s32 %v7685, %v7687
    %v7690 = vadd.s32 %v7689, %v7679
    %v7691 = vadd.s32 %v7690, %v7681
    %v7692 = vand.u32 %v7669, 65535
    %v7693 = vshrl.u32 %v7669, 16
    %v7694 = vand.u32 %v7664, 65535
    %v7695 = vshrl.u32 %v7664, 16
    %v7696 = vmul.u32 %v7692, %v7694
    %v7697 = vmul.u32 %v7692, %v7695
    %v7698 = vmul.u32 %v7693, %v7694
    %v7699 = vmul.u32 %v7693, %v7695
    %v7700 = vshll.u32 %v7697, 16
    %v7701 = vshrl.u32 %v7697, 16
    %v7702 = vshll.u32 %v7698, 16
    %v7703 = vshrl.u32 %v7698, 16
    %vm7704 = vc.u32 %v7696, %v7700
    %v7705 = vsel %vm7704, 1, 0
    %v7706 = vadd.s32 %v7696, %v7700
    %v7707 = vadd.s32 %v7699, %v7705
    %vm7708 = vc.u32 %v7706, %v7702
    %v7709 = vsel %vm7708, 1, 0
    %v7710 = vadd.s32 %v7706, %v7702
    %v7711 = vadd.s32 %v7707, %v7709
    %v7712 = vadd.s32 %v7711, %v7701
    %v7713 = vadd.s32 %v7712, %v7703
    %v7714 = vmul.u32 %v7669, %v7660
    %v7715 = vadd.s32 %v7691, %v7710
    %vm7716 = vc.u32 %v7691, %v7710
    %v7717 = vadd.s32 %v7713, 1
    %v7718 = vsel %vm7716, %v7717, %v7713
    %v7719 = vadd.s32 %v7714, %v7718
    %v7720 = vadd.s32 %v7719, 536870912
    %v7721 = vshrl.u32 %v7720, 30
    %v7722 = vshll.u32 %v7721, 30
    %v7723 = vsub.s32 %v7719, %v7722
    %vm7724 = vcmp.lt.s32.totalorder %v7723, 0
    %v7725 = vsub.s32 0, %v7723
    %v7726 = vsel %vm7724, %v7725, %v7723
    %v7727 = vclz %v7726
    %v7728 = vsub.s32 %v7727, 2
    %vm7729 = vcmp.gt.s32.totalorder 0, %v7728
    %v7730 = vsel %vm7729, 0, %v7728
    %v7731 = vsub.s32 32, %v7730
    %v7732 = vshll.u32 %v7723, %v7730
    %v7733 = vshrl.u32 %v7715, %v7731
    %v7734 = vor.u32 %v7732, %v7733
    %v7735 = vsub.s32 4294967266, %v7730
    %v7736 = vadd.s32 %v7735, 127
    %v7737 = vshll.u32 %v7736, 23
    %v7738 = vor.u32 4788187, %v7737
    %v7739 = vand.u32 2147483647, %v7738
    %v7741 = vcvt.s32.f32 %v7734
    %v7742 = vmul.f32 %v7741, %v7739
    %v7743 = vxor.u32 %v7742, 2147483648
    %v7744 = vsel %vm7623, %v7743, %v7742
    %v7745 = vsub.s32 4, %v7721
    %v7746 = vsel %vm7623, %v7745, %v7721
    %v7747 = vsel %vm7622, %v180, %v7744
    %v7748 = vsel %vm7622, 0, %v7746
    %v7749 = vmul.f32 %v7747, %v7747
    %v7750 = vmul.f32 %v7749, -0.001358992
    %v7751 = vadd.f32 %v7750, 0.041655596
    %v7752 = vmul.f32 %v7749, %v7751
    %v7753 = vadd.f32 %v7752, -0.4999988
    %v7754 = vmul.f32 %v7749, %v7753
    %v7755 = vadd.f32 1.0, %v7754
    %v7756 = vmul.f32 %v7747, %v7747
    %v7757 = vmul.f32 %v7756, -0.00019511016
    %v7758 = vadd.f32 %v7757, 0.008332121
    %v7759 = vmul.f32 %v7756, %v7758
    %v7760 = vadd.f32 %v7759, -0.16666654
    %v7761 = vmul.f32 %v7756, %v7760
    %v7762 = vadd.f32 %v7761, 1.0
    %v7763 = vmul.f32 %v7762, %v7747
    %vm7764 = vweird.f32 %v180
    %v7765 = vand.u32 %v7748, 3
    %vm7766 = vcmp.lt.s32.totalorder %v7765, 2
    %vm7767 = vcmp.eq.s32.totalorder %v7765, 0
    %v7768 = vxor.u32 %v7763, 2147483648
    %v7769 = vsel %vm7767, %v7755, %v7768
    %vm7770 = vcmp.eq.s32.totalorder %v7765, 2
    %v7771 = vxor.u32 %v7755, 2147483648
    %v7772 = vsel %vm7770, %v7771, %v7763
    %v7773 = vsel %vm7766, %v7769, %v7772
    %v7774 = vsel %vm7764, nan, %v7773
    %v7775 = vand.u32 2147483647, %v181
    %vm7776 = vcmp.le.f32.partialorder %v7775, 0.7853982
    %vm7777 = vcmp.lt.s32.totalorder %v181, 0
    %v7778 = vand.u32 %v181, 2139095040
    %v7779 = vshrl.u32 %v7778, 23
    %v7780 = vsub.s32 %v7779, 127
    %v7781 = vand.u32 2147483647, %v181
    %v7782 = vand.u32 %v7781, 8388607
    %v7783 = vor.u32 %v7782, 8388608
    %v7784 = vsub.s32 0, %v7783
    %v7785 = vadd.s32 %v7780, 1
    %vm7786 = vcmp.gt.s32.totalorder %v7785, 0
    %v7787 = vsel %vm7786, %v7785, 0
    %v7788 = vshrl.u32 %v7787, 5
    %v7789 = vand.u32 %v7787, 31
    %v7790 = vsub.s32 32, %v7789
    %v7791 = vshrl.u32 683565275, %v7790
    %v7792 = vshll.u32 683565275, %v7789
    %v7793 = vshrl.u32 2475754826, %v7790
    %v7794 = vor.u32 %v7792, %v7793
    %v7795 = vshll.u32 2475754826, %v7789
    %v7796 = vshrl.u32 2131351028, %v7790
    %v7797 = vor.u32 %v7795, %v7796
    %v7798 = vshll.u32 2131351028, %v7789
    %v7799 = vshrl.u32 2102212464, %v7790
    %v7800 = vor.u32 %v7798, %v7799
    %v7801 = vshll.u32 2102212464, %v7789
    %v7802 = vshrl.u32 920167782, %v7790
    %v7803 = vor.u32 %v7801, %v7802
    %v7804 = vshll.u32 920167782, %v7789
    %v7805 = vshrl.u32 1326507024, %v7790
    %v7806 = vor.u32 %v7804, %v7805
    %vm7807 = vcmp.lt.s32.totalorder %v7788, 1
    %vm7808 = vcmp.lt.s32.totalorder %v7788, 2
    %vm7809 = vcmp.lt.s32.totalorder %v7788, 3
    %vm7810 = vcmp.lt.s32.totalorder %v7788, 4
    %v7811 = vsel %vm7807, %v7791, %v7794
    %v7812 = vsel %vm7810, %v7800, 2102212464
    %v7813 = vsel %vm7809, %v7797, %v7812
    %v7814 = vsel %vm7808, %v7811, %v7813
    %v7815 = vsel %vm7807, %v7794, %v7797
    %v7816 = vsel %vm7810, %v7803, 920167782
    %v7817 = vsel %vm7809, %v7800, %v7816
    %v7818 = vsel %vm7808, %v7815, %v7817
    %v7819 = vsel %vm7807, %v7797, %v7800
    %v7820 = vsel %vm7810, %v7806, 1326507024
    %v7821 = vsel %vm7809, %v7803, %v7820
    %v7822 = vsel %vm7808, %v7819, %v7821
    %v7823 = vshll.u32 %v7783, 8
    %v7824 = vand.u32 %v7823, 65535
    %v7825 = vshrl.u32 %v7823, 16
    %v7826 = vand.u32 %v7822, 65535
    %v7827 = vshrl.u32 %v7822, 16
    %v7828 = vmul.u32 %v7824, %v7826
    %v7829 = vmul.u32 %v7824, %v7827
    %v7830 = vmul.u32 %v7825, %v7826
    %v7831 = vmul.u32 %v7825, %v7827
    %v7832 = vshll.u32 %v7829, 16
    %v7833 = vshrl.u32 %v7829, 16
    %v7834 = vshll.u32 %v7830, 16
    %v7835 = vshrl.u32 %v7830, 16
    %vm7836 = vc.u32 %v7828, %v7832
    %v7837 = vsel %vm7836, 1, 0
    %v7838 = vadd.s32 %v7828, %v7832
    %v7839 = vadd.s32 %v7831, %v7837
    %vm7840 = vc.u32 %v7838, %v7834
    %v7841 = vsel %vm7840, 1, 0
    %v7842 = vadd.s32 %v7838, %v7834
    %v7843 = vadd.s32 %v7839, %v7841
    %v7844 = vadd.s32 %v7843, %v7833
    %v7845 = vadd.s32 %v7844, %v7835
    %v7846 = vand.u32 %v7823, 65535
    %v7847 = vshrl.u32 %v7823, 16
    %v7848 = vand.u32 %v7818, 65535
    %v7849 = vshrl.u32 %v7818, 16
    %v7850 = vmul.u32 %v7846, %v7848
    %v7851 = vmul.u32 %v7846, %v7849
    %v7852 = vmul.u32 %v7847, %v7848
    %v7853 = vmul.u32 %v7847, %v7849
    %v7854 = vshll.u32 %v7851, 16
    %v7855 = vshrl.u32 %v7851, 16
    %v7856 = vshll.u32 %v7852, 16
    %v7857 = vshrl.u32 %v7852, 16
    %vm7858 = vc.u32 %v7850, %v7854
    %v7859 = vsel %vm7858, 1, 0
    %v7860 = vadd.s32 %v7850, %v7854
    %v7861 = vadd.s32 %v7853, %v7859
    %vm7862 = vc.u32 %v7860, %v7856
    %v7863 = vsel %vm7862, 1, 0
    %v7864 = vadd.s32 %v7860, %v7856
    %v7865 = vadd.s32 %v7861, %v7863
    %v7866 = vadd.s32 %v7865, %v7855
    %v7867 = vadd.s32 %v7866, %v7857
    %v7868 = vmul.u32 %v7823, %v7814
    %v7869 = vadd.s32 %v7845, %v7864
    %vm7870 = vc.u32 %v7845, %v7864
    %v7871 = vadd.s32 %v7867, 1
    %v7872 = vsel %vm7870, %v7871, %v7867
    %v7873 = vadd.s32 %v7868, %v7872
    %v7874 = vadd.s32 %v7873, 536870912
    %v7875 = vshrl.u32 %v7874, 30
    %v7876 = vshll.u32 %v7875, 30
    %v7877 = vsub.s32 %v7873, %v7876
    %vm7878 = vcmp.lt.s32.totalorder %v7877, 0
    %v7879 = vsub.s32 0, %v7877
    %v7880 = vsel %vm7878, %v7879, %v7877
    %v7881 = vclz %v7880
    %v7882 = vsub.s32 %v7881, 2
    %vm7883 = vcmp.gt.s32.totalorder 0, %v7882
    %v7884 = vsel %vm7883, 0, %v7882
    %v7885 = vsub.s32 32, %v7884
    %v7886 = vshll.u32 %v7877, %v7884
    %v7887 = vshrl.u32 %v7869, %v7885
    %v7888 = vor.u32 %v7886, %v7887
    %v7889 = vsub.s32 4294967266, %v7884
    %v7890 = vadd.s32 %v7889, 127
    %v7891 = vshll.u32 %v7890, 23
    %v7892 = vor.u32 4788187, %v7891
    %v7893 = vand.u32 2147483647, %v7892
    %v7895 = vcvt.s32.f32 %v7888
    %v7896 = vmul.f32 %v7895, %v7893
    %v7897 = vxor.u32 %v7896, 2147483648
    %v7898 = vsel %vm7777, %v7897, %v7896
    %v7899 = vsub.s32 4, %v7875
    %v7900 = vsel %vm7777, %v7899, %v7875
    %v7901 = vsel %vm7776, %v181, %v7898
    %v7902 = vsel %vm7776, 0, %v7900
    %v7903 = vmul.f32 %v7901, %v7901
    %v7904 = vmul.f32 %v7903, -0.001358992
    %v7905 = vadd.f32 %v7904, 0.041655596
    %v7906 = vmul.f32 %v7903, %v7905
    %v7907 = vadd.f32 %v7906, -0.4999988
    %v7908 = vmul.f32 %v7903, %v7907
    %v7909 = vadd.f32 1.0, %v7908
    %v7910 = vmul.f32 %v7901, %v7901
    %v7911 = vmul.f32 %v7910, -0.00019511016
    %v7912 = vadd.f32 %v7911, 0.008332121
    %v7913 = vmul.f32 %v7910, %v7912
    %v7914 = vadd.f32 %v7913, -0.16666654
    %v7915 = vmul.f32 %v7910, %v7914
    %v7916 = vadd.f32 %v7915, 1.0
    %v7917 = vmul.f32 %v7916, %v7901
    %vm7918 = vweird.f32 %v181
    %v7919 = vand.u32 %v7902, 3
    %vm7920 = vcmp.lt.s32.totalorder %v7919, 2
    %vm7921 = vcmp.eq.s32.totalorder %v7919, 0
    %v7922 = vxor.u32 %v7917, 2147483648
    %v7923 = vsel %vm7921, %v7909, %v7922
    %vm7924 = vcmp.eq.s32.totalorder %v7919, 2
    %v7925 = vxor.u32 %v7909, 2147483648
    %v7926 = vsel %vm7924, %v7925, %v7917
    %v7927 = vsel %vm7920, %v7923, %v7926
    %v7928 = vsel %vm7918, nan, %v7927
    %v7929 = vand.u32 2147483647, %v182
    %vm7930 = vcmp.le.f32.partialorder %v7929, 0.7853982
    %vm7931 = vcmp.lt.s32.totalorder %v182, 0
    %v7932 = vand.u32 %v182, 2139095040
    %v7933 = vshrl.u32 %v7932, 23
    %v7934 = vsub.s32 %v7933, 127
    %v7935 = vand.u32 2147483647, %v182
    %v7936 = vand.u32 %v7935, 8388607
    %v7937 = vor.u32 %v7936, 8388608
    %v7938 = vsub.s32 0, %v7937
    %v7939 = vadd.s32 %v7934, 1
    %vm7940 = vcmp.gt.s32.totalorder %v7939, 0
    %v7941 = vsel %vm7940, %v7939, 0
    %v7942 = vshrl.u32 %v7941, 5
    %v7943 = vand.u32 %v7941, 31
    %v7944 = vsub.s32 32, %v7943
    %v7945 = vshrl.u32 683565275, %v7944
    %v7946 = vshll.u32 683565275, %v7943
    %v7947 = vshrl.u32 2475754826, %v7944
    %v7948 = vor.u32 %v7946, %v7947
    %v7949 = vshll.u32 2475754826, %v7943
    %v7950 = vshrl.u32 2131351028, %v7944
    %v7951 = vor.u32 %v7949, %v7950
    %v7952 = vshll.u32 2131351028, %v7943
    %v7953 = vshrl.u32 2102212464, %v7944
    %v7954 = vor.u32 %v7952, %v7953
    %v7955 = vshll.u32 2102212464, %v7943
    %v7956 = vshrl.u32 920167782, %v7944
    %v7957 = vor.u32 %v7955, %v7956
    %v7958 = vshll.u32 920167782, %v7943
    %v7959 = vshrl.u32 1326507024, %v7944
    %v7960 = vor.u32 %v7958, %v7959
    %vm7961 = vcmp.lt.s32.totalorder %v7942, 1
    %vm7962 = vcmp.lt.s32.totalorder %v7942, 2
    %vm7963 = vcmp.lt.s32.totalorder %v7942, 3
    %vm7964 = vcmp.lt.s32.totalorder %v7942, 4
    %v7965 = vsel %vm7961, %v7945, %v7948
    %v7966 = vsel %vm7964, %v7954, 2102212464
    %v7967 = vsel %vm7963, %v7951, %v7966
    %v7968 = vsel %vm7962, %v7965, %v7967
    %v7969 = vsel %vm7961, %v7948, %v7951
    %v7970 = vsel %vm7964, %v7957, 920167782
    %v7971 = vsel %vm7963, %v7954, %v7970
    %v7972 = vsel %vm7962, %v7969, %v7971
    %v7973 = vsel %vm7961, %v7951, %v7954
    %v7974 = vsel %vm7964, %v7960, 1326507024
    %v7975 = vsel %vm7963, %v7957, %v7974
    %v7976 = vsel %vm7962, %v7973, %v7975
    %v7977 = vshll.u32 %v7937, 8
    %v7978 = vand.u32 %v7977, 65535
    %v7979 = vshrl.u32 %v7977, 16
    %v7980 = vand.u32 %v7976, 65535
    %v7981 = vshrl.u32 %v7976, 16
    %v7982 = vmul.u32 %v7978, %v7980
    %v7983 = vmul.u32 %v7978, %v7981
    %v7984 = vmul.u32 %v7979, %v7980
    %v7985 = vmul.u32 %v7979, %v7981
    %v7986 = vshll.u32 %v7983, 16
    %v7987 = vshrl.u32 %v7983, 16
    %v7988 = vshll.u32 %v7984, 16
    %v7989 = vshrl.u32 %v7984, 16
    %vm7990 = vc.u32 %v7982, %v7986
    %v7991 = vsel %vm7990, 1, 0
    %v7992 = vadd.s32 %v7982, %v7986
    %v7993 = vadd.s32 %v7985, %v7991
    %vm7994 = vc.u32 %v7992, %v7988
    %v7995 = vsel %vm7994, 1, 0
    %v7996 = vadd.s32 %v7992, %v7988
    %v7997 = vadd.s32 %v7993, %v7995
    %v7998 = vadd.s32 %v7997, %v7987
    %v7999 = vadd.s32 %v7998, %v7989
    %v8000 = vand.u32 %v7977, 65535
    %v8001 = vshrl.u32 %v7977, 16
    %v8002 = vand.u32 %v7972, 65535
    %v8003 = vshrl.u32 %v7972, 16
    %v8004 = vmul.u32 %v8000, %v8002
    %v8005 = vmul.u32 %v8000, %v8003
    %v8006 = vmul.u32 %v8001, %v8002
    %v8007 = vmul.u32 %v8001, %v8003
    %v8008 = vshll.u32 %v8005, 16
    %v8009 = vshrl.u32 %v8005, 16
    %v8010 = vshll.u32 %v8006, 16
    %v8011 = vshrl.u32 %v8006, 16
    %vm8012 = vc.u32 %v8004, %v8008
    %v8013 = vsel %vm8012, 1, 0
    %v8014 = vadd.s32 %v8004, %v8008
    %v8015 = vadd.s32 %v8007, %v8013
    %vm8016 = vc.u32 %v8014, %v8010
    %v8017 = vsel %vm8016, 1, 0
    %v8018 = vadd.s32 %v8014, %v8010
    %v8019 = vadd.s32 %v8015, %v8017
    %v8020 = vadd.s32 %v8019, %v8009
    %v8021 = vadd.s32 %v8020, %v8011
    %v8022 = vmul.u32 %v7977, %v7968
    %v8023 = vadd.s32 %v7999, %v8018
    %vm8024 = vc.u32 %v7999, %v8018
    %v8025 = vadd.s32 %v8021, 1
    %v8026 = vsel %vm8024, %v8025, %v8021
    %v8027 = vadd.s32 %v8022, %v8026
    %v8028 = vadd.s32 %v8027, 536870912
    %v8029 = vshrl.u32 %v8028, 30
    %v8030 = vshll.u32 %v8029, 30
    %v8031 = vsub.s32 %v8027, %v8030
    %vm8032 = vcmp.lt.s32.totalorder %v8031, 0
    %v8033 = vsub.s32 0, %v8031
    %v8034 = vsel %vm8032, %v8033, %v8031
    %v8035 = vclz %v8034
    %v8036 = vsub.s32 %v8035, 2
    %vm8037 = vcmp.gt.s32.totalorder 0, %v8036
    %v8038 = vsel %vm8037, 0, %v8036
    %v8039 = vsub.s32 32, %v8038
    %v8040 = vshll.u32 %v8031, %v8038
    %v8041 = vshrl.u32 %v8023, %v8039
    %v8042 = vor.u32 %v8040, %v8041
    %v8043 = vsub.s32 4294967266, %v8038
    %v8044 = vadd.s32 %v8043, 127
    %v8045 = vshll.u32 %v8044, 23
    %v8046 = vor.u32 4788187, %v8045
    %v8047 = vand.u32 2147483647, %v8046
    %v8049 = vcvt.s32.f32 %v8042
    %v8050 = vmul.f32 %v8049, %v8047
    %v8051 = vxor.u32 %v8050, 2147483648
    %v8052 = vsel %vm7931, %v8051, %v8050
    %v8053 = vsub.s32 4, %v8029
    %v8054 = vsel %vm7931, %v8053, %v8029
    %v8055 = vsel %vm7930, %v182, %v8052
    %v8056 = vsel %vm7930, 0, %v8054
    %v8057 = vmul.f32 %v8055, %v8055
    %v8058 = vmul.f32 %v8057, -0.001358992
    %v8059 = vadd.f32 %v8058, 0.041655596
    %v8060 = vmul.f32 %v8057, %v8059
    %v8061 = vadd.f32 %v8060, -0.4999988
    %v8062 = vmul.f32 %v8057, %v8061
    %v8063 = vadd.f32 1.0, %v8062
    %v8064 = vmul.f32 %v8055, %v8055
    %v8065 = vmul.f32 %v8064, -0.00019511016
    %v8066 = vadd.f32 %v8065, 0.008332121
    %v8067 = vmul.f32 %v8064, %v8066
    %v8068 = vadd.f32 %v8067, -0.16666654
    %v8069 = vmul.f32 %v8064, %v8068
    %v8070 = vadd.f32 %v8069, 1.0
    %v8071 = vmul.f32 %v8070, %v8055
    %vm8072 = vweird.f32 %v182
    %v8073 = vand.u32 %v8056, 3
    %vm8074 = vcmp.lt.s32.totalorder %v8073, 2
    %vm8075 = vcmp.eq.s32.totalorder %v8073, 0
    %v8076 = vxor.u32 %v8071, 2147483648
    %v8077 = vsel %vm8075, %v8063, %v8076
    %vm8078 = vcmp.eq.s32.totalorder %v8073, 2
    %v8079 = vxor.u32 %v8063, 2147483648
    %v8080 = vsel %vm8078, %v8079, %v8071
    %v8081 = vsel %vm8074, %v8077, %v8080
    %v8082 = vsel %vm8072, nan, %v8081
    %v8083 = vand.u32 2147483647, %v183
    %vm8084 = vcmp.le.f32.partialorder %v8083, 0.7853982
    %vm8085 = vcmp.lt.s32.totalorder %v183, 0
    %v8086 = vand.u32 %v183, 2139095040
    %v8087 = vshrl.u32 %v8086, 23
    %v8088 = vsub.s32 %v8087, 127
    %v8089 = vand.u32 2147483647, %v183
    %v8090 = vand.u32 %v8089, 8388607
    %v8091 = vor.u32 %v8090, 8388608
    %v8092 = vsub.s32 0, %v8091
    %v8093 = vadd.s32 %v8088, 1
    %vm8094 = vcmp.gt.s32.totalorder %v8093, 0
    %v8095 = vsel %vm8094, %v8093, 0
    %v8096 = vshrl.u32 %v8095, 5
    %v8097 = vand.u32 %v8095, 31
    %v8098 = vsub.s32 32, %v8097
    %v8099 = vshrl.u32 683565275, %v8098
    %v8100 = vshll.u32 683565275, %v8097
    %v8101 = vshrl.u32 2475754826, %v8098
    %v8102 = vor.u32 %v8100, %v8101
    %v8103 = vshll.u32 2475754826, %v8097
    %v8104 = vshrl.u32 2131351028, %v8098
    %v8105 = vor.u32 %v8103, %v8104
    %v8106 = vshll.u32 2131351028, %v8097
    %v8107 = vshrl.u32 2102212464, %v8098
    %v8108 = vor.u32 %v8106, %v8107
    %v8109 = vshll.u32 2102212464, %v8097
    %v8110 = vshrl.u32 920167782, %v8098
    %v8111 = vor.u32 %v8109, %v8110
    %v8112 = vshll.u32 920167782, %v8097
    %v8113 = vshrl.u32 1326507024, %v8098
    %v8114 = vor.u32 %v8112, %v8113
    %vm8115 = vcmp.lt.s32.totalorder %v8096, 1
    %vm8116 = vcmp.lt.s32.totalorder %v8096, 2
    %vm8117 = vcmp.lt.s32.totalorder %v8096, 3
    %vm8118 = vcmp.lt.s32.totalorder %v8096, 4
    %v8119 = vsel %vm8115, %v8099, %v8102
    %v8120 = vsel %vm8118, %v8108, 2102212464
    %v8121 = vsel %vm8117, %v8105, %v8120
    %v8122 = vsel %vm8116, %v8119, %v8121
    %v8123 = vsel %vm8115, %v8102, %v8105
    %v8124 = vsel %vm8118, %v8111, 920167782
    %v8125 = vsel %vm8117, %v8108, %v8124
    %v8126 = vsel %vm8116, %v8123, %v8125
    %v8127 = vsel %vm8115, %v8105, %v8108
    %v8128 = vsel %vm8118, %v8114, 1326507024
    %v8129 = vsel %vm8117, %v8111, %v8128
    %v8130 = vsel %vm8116, %v8127, %v8129
    %v8131 = vshll.u32 %v8091, 8
    %v8132 = vand.u32 %v8131, 65535
    %v8133 = vshrl.u32 %v8131, 16
    %v8134 = vand.u32 %v8130, 65535
    %v8135 = vshrl.u32 %v8130, 16
    %v8136 = vmul.u32 %v8132, %v8134
    %v8137 = vmul.u32 %v8132, %v8135
    %v8138 = vmul.u32 %v8133, %v8134
    %v8139 = vmul.u32 %v8133, %v8135
    %v8140 = vshll.u32 %v8137, 16
    %v8141 = vshrl.u32 %v8137, 16
    %v8142 = vshll.u32 %v8138, 16
    %v8143 = vshrl.u32 %v8138, 16
    %vm8144 = vc.u32 %v8136, %v8140
    %v8145 = vsel %vm8144, 1, 0
    %v8146 = vadd.s32 %v8136, %v8140
    %v8147 = vadd.s32 %v8139, %v8145
    %vm8148 = vc.u32 %v8146, %v8142
    %v8149 = vsel %vm8148, 1, 0
    %v8150 = vadd.s32 %v8146, %v8142
    %v8151 = vadd.s32 %v8147, %v8149
    %v8152 = vadd.s32 %v8151, %v8141
    %v8153 = vadd.s32 %v8152, %v8143
    %v8154 = vand.u32 %v8131, 65535
    %v8155 = vshrl.u32 %v8131, 16
    %v8156 = vand.u32 %v8126, 65535
    %v8157 = vshrl.u32 %v8126, 16
    %v8158 = vmul.u32 %v8154, %v8156
    %v8159 = vmul.u32 %v8154, %v8157
    %v8160 = vmul.u32 %v8155, %v8156
    %v8161 = vmul.u32 %v8155, %v8157
    %v8162 = vshll.u32 %v8159, 16
    %v8163 = vshrl.u32 %v8159, 16
    %v8164 = vshll.u32 %v8160, 16
    %v8165 = vshrl.u32 %v8160, 16
    %vm8166 = vc.u32 %v8158, %v8162
    %v8167 = vsel %vm8166, 1, 0
    %v8168 = vadd.s32 %v8158, %v8162
    %v8169 = vadd.s32 %v8161, %v8167
    %vm8170 = vc.u32 %v8168, %v8164
    %v8171 = vsel %vm8170, 1, 0
    %v8172 = vadd.s32 %v8168, %v8164
    %v8173 = vadd.s32 %v8169, %v8171
    %v8174 = vadd.s32 %v8173, %v8163
    %v8175 = vadd.s32 %v8174, %v8165
    %v8176 = vmul.u32 %v8131, %v8122
    %v8177 = vadd.s32 %v8153, %v8172
    %vm8178 = vc.u32 %v8153, %v8172
    %v8179 = vadd.s32 %v8175, 1
    %v8180 = vsel %vm8178, %v8179, %v8175
    %v8181 = vadd.s32 %v8176, %v8180
    %v8182 = vadd.s32 %v8181, 536870912
    %v8183 = vshrl.u32 %v8182, 30
    %v8184 = vshll.u32 %v8183, 30
    %v8185 = vsub.s32 %v8181, %v8184
    %vm8186 = vcmp.lt.s32.totalorder %v8185, 0
    %v8187 = vsub.s32 0, %v8185
    %v8188 = vsel %vm8186, %v8187, %v8185
    %v8189 = vclz %v8188
    %v8190 = vsub.s32 %v8189, 2
    %vm8191 = vcmp.gt.s32.totalorder 0, %v8190
    %v8192 = vsel %vm8191, 0, %v8190
    %v8193 = vsub.s32 32, %v8192
    %v8194 = vshll.u32 %v8185, %v8192
    %v8195 = vshrl.u32 %v8177, %v8193
    %v8196 = vor.u32 %v8194, %v8195
    %v8197 = vsub.s32 4294967266, %v8192
    %v8198 = vadd.s32 %v8197, 127
    %v8199 = vshll.u32 %v8198, 23
    %v8200 = vor.u32 4788187, %v8199
    %v8201 = vand.u32 2147483647, %v8200
    %v8203 = vcvt.s32.f32 %v8196
    %v8204 = vmul.f32 %v8203, %v8201
    %v8205 = vxor.u32 %v8204, 2147483648
    %v8206 = vsel %vm8085, %v8205, %v8204
    %v8207 = vsub.s32 4, %v8183
    %v8208 = vsel %vm8085, %v8207, %v8183
    %v8209 = vsel %vm8084, %v183, %v8206
    %v8210 = vsel %vm8084, 0, %v8208
    %v8211 = vmul.f32 %v8209, %v8209
    %v8212 = vmul.f32 %v8211, -0.001358992
    %v8213 = vadd.f32 %v8212, 0.041655596
    %v8214 = vmul.f32 %v8211, %v8213
    %v8215 = vadd.f32 %v8214, -0.4999988
    %v8216 = vmul.f32 %v8211, %v8215
    %v8217 = vadd.f32 1.0, %v8216
    %v8218 = vmul.f32 %v8209, %v8209
    %v8219 = vmul.f32 %v8218, -0.00019511016
    %v8220 = vadd.f32 %v8219, 0.008332121
    %v8221 = vmul.f32 %v8218, %v8220
    %v8222 = vadd.f32 %v8221, -0.16666654
    %v8223 = vmul.f32 %v8218, %v8222
    %v8224 = vadd.f32 %v8223, 1.0
    %v8225 = vmul.f32 %v8224, %v8209
    %vm8226 = vweird.f32 %v183
    %v8227 = vand.u32 %v8210, 3
    %vm8228 = vcmp.lt.s32.totalorder %v8227, 2
    %vm8229 = vcmp.eq.s32.totalorder %v8227, 0
    %v8230 = vxor.u32 %v8225, 2147483648
    %v8231 = vsel %vm8229, %v8217, %v8230
    %vm8232 = vcmp.eq.s32.totalorder %v8227, 2
    %v8233 = vxor.u32 %v8217, 2147483648
    %v8234 = vsel %vm8232, %v8233, %v8225
    %v8235 = vsel %vm8228, %v8231, %v8234
    %v8236 = vsel %vm8226, nan, %v8235
    %v8237 = vand.u32 2147483647, %v184
    %vm8238 = vcmp.le.f32.partialorder %v8237, 0.7853982
    %vm8239 = vcmp.lt.s32.totalorder %v184, 0
    %v8240 = vand.u32 %v184, 2139095040
    %v8241 = vshrl.u32 %v8240, 23
    %v8242 = vsub.s32 %v8241, 127
    %v8243 = vand.u32 2147483647, %v184
    %v8244 = vand.u32 %v8243, 8388607
    %v8245 = vor.u32 %v8244, 8388608
    %v8246 = vsub.s32 0, %v8245
    %v8247 = vadd.s32 %v8242, 1
    %vm8248 = vcmp.gt.s32.totalorder %v8247, 0
    %v8249 = vsel %vm8248, %v8247, 0
    %v8250 = vshrl.u32 %v8249, 5
    %v8251 = vand.u32 %v8249, 31
    %v8252 = vsub.s32 32, %v8251
    %v8253 = vshrl.u32 683565275, %v8252
    %v8254 = vshll.u32 683565275, %v8251
    %v8255 = vshrl.u32 2475754826, %v8252
    %v8256 = vor.u32 %v8254, %v8255
    %v8257 = vshll.u32 2475754826, %v8251
    %v8258 = vshrl.u32 2131351028, %v8252
    %v8259 = vor.u32 %v8257, %v8258
    %v8260 = vshll.u32 2131351028, %v8251
    %v8261 = vshrl.u32 2102212464, %v8252
    %v8262 = vor.u32 %v8260, %v8261
    %v8263 = vshll.u32 2102212464, %v8251
    %v8264 = vshrl.u32 920167782, %v8252
    %v8265 = vor.u32 %v8263, %v8264
    %v8266 = vshll.u32 920167782, %v8251
    %v8267 = vshrl.u32 1326507024, %v8252
    %v8268 = vor.u32 %v8266, %v8267
    %vm8269 = vcmp.lt.s32.totalorder %v8250, 1
    %vm8270 = vcmp.lt.s32.totalorder %v8250, 2
    %vm8271 = vcmp.lt.s32.totalorder %v8250, 3
    %vm8272 = vcmp.lt.s32.totalorder %v8250, 4
    %v8273 = vsel %vm8269, %v8253, %v8256
    %v8274 = vsel %vm8272, %v8262, 2102212464
    %v8275 = vsel %vm8271, %v8259, %v8274
    %v8276 = vsel %vm8270, %v8273, %v8275
    %v8277 = vsel %vm8269, %v8256, %v8259
    %v8278 = vsel %vm8272, %v8265, 920167782
    %v8279 = vsel %vm8271, %v8262, %v8278
    %v8280 = vsel %vm8270, %v8277, %v8279
    %v8281 = vsel %vm8269, %v8259, %v8262
    %v8282 = vsel %vm8272, %v8268, 1326507024
    %v8283 = vsel %vm8271, %v8265, %v8282
    %v8284 = vsel %vm8270, %v8281, %v8283
    %v8285 = vshll.u32 %v8245, 8
    %v8286 = vand.u32 %v8285, 65535
    %v8287 = vshrl.u32 %v8285, 16
    %v8288 = vand.u32 %v8284, 65535
    %v8289 = vshrl.u32 %v8284, 16
    %v8290 = vmul.u32 %v8286, %v8288
    %v8291 = vmul.u32 %v8286, %v8289
    %v8292 = vmul.u32 %v8287, %v8288
    %v8293 = vmul.u32 %v8287, %v8289
    %v8294 = vshll.u32 %v8291, 16
    %v8295 = vshrl.u32 %v8291, 16
    %v8296 = vshll.u32 %v8292, 16
    %v8297 = vshrl.u32 %v8292, 16
    %vm8298 = vc.u32 %v8290, %v8294
    %v8299 = vsel %vm8298, 1, 0
    %v8300 = vadd.s32 %v8290, %v8294
    %v8301 = vadd.s32 %v8293, %v8299
    %vm8302 = vc.u32 %v8300, %v8296
    %v8303 = vsel %vm8302, 1, 0
    %v8304 = vadd.s32 %v8300, %v8296
    %v8305 = vadd.s32 %v8301, %v8303
    %v8306 = vadd.s32 %v8305, %v8295
    %v8307 = vadd.s32 %v8306, %v8297
    %v8308 = vand.u32 %v8285, 65535
    %v8309 = vshrl.u32 %v8285, 16
    %v8310 = vand.u32 %v8280, 65535
    %v8311 = vshrl.u32 %v8280, 16
    %v8312 = vmul.u32 %v8308, %v8310
    %v8313 = vmul.u32 %v8308, %v8311
    %v8314 = vmul.u32 %v8309, %v8310
    %v8315 = vmul.u32 %v8309, %v8311
    %v8316 = vshll.u32 %v8313, 16
    %v8317 = vshrl.u32 %v8313, 16
    %v8318 = vshll.u32 %v8314, 16
    %v8319 = vshrl.u32 %v8314, 16
    %vm8320 = vc.u32 %v8312, %v8316
    %v8321 = vsel %vm8320, 1, 0
    %v8322 = vadd.s32 %v8312, %v8316
    %v8323 = vadd.s32 %v8315, %v8321
    %vm8324 = vc.u32 %v8322, %v8318
    %v8325 = vsel %vm8324, 1, 0
    %v8326 = vadd.s32 %v8322, %v8318
    %v8327 = vadd.s32 %v8323, %v8325
    %v8328 = vadd.s32 %v8327, %v8317
    %v8329 = vadd.s32 %v8328, %v8319
    %v8330 = vmul.u32 %v8285, %v8276
    %v8331 = vadd.s32 %v8307, %v8326
    %vm8332 = vc.u32 %v8307, %v8326
    %v8333 = vadd.s32 %v8329, 1
    %v8334 = vsel %vm8332, %v8333, %v8329
    %v8335 = vadd.s32 %v8330, %v8334
    %v8336 = vadd.s32 %v8335, 536870912
    %v8337 = vshrl.u32 %v8336, 30
    %v8338 = vshll.u32 %v8337, 30
    %v8339 = vsub.s32 %v8335, %v8338
    %vm8340 = vcmp.lt.s32.totalorder %v8339, 0
    %v8341 = vsub.s32 0, %v8339
    %v8342 = vsel %vm8340, %v8341, %v8339
    %v8343 = vclz %v8342
    %v8344 = vsub.s32 %v8343, 2
    %vm8345 = vcmp.gt.s32.totalorder 0, %v8344
    %v8346 = vsel %vm8345, 0, %v8344
    %v8347 = vsub.s32 32, %v8346
    %v8348 = vshll.u32 %v8339, %v8346
    %v8349 = vshrl.u32 %v8331, %v8347
    %v8350 = vor.u32 %v8348, %v8349
    %v8351 = vsub.s32 4294967266, %v8346
    %v8352 = vadd.s32 %v8351, 127
    %v8353 = vshll.u32 %v8352, 23
    %v8354 = vor.u32 4788187, %v8353
    %v8355 = vand.u32 2147483647, %v8354
    %v8357 = vcvt.s32.f32 %v8350
    %v8358 = vmul.f32 %v8357, %v8355
    %v8359 = vxor.u32 %v8358, 2147483648
    %v8360 = vsel %vm8239, %v8359, %v8358
    %v8361 = vsub.s32 4, %v8337
    %v8362 = vsel %vm8239, %v8361, %v8337
    %v8363 = vsel %vm8238, %v184, %v8360
    %v8364 = vsel %vm8238, 0, %v8362
    %v8365 = vmul.f32 %v8363, %v8363
    %v8366 = vmul.f32 %v8365, -0.001358992
    %v8367 = vadd.f32 %v8366, 0.041655596
    %v8368 = vmul.f32 %v8365, %v8367
    %v8369 = vadd.f32 %v8368, -0.4999988
    %v8370 = vmul.f32 %v8365, %v8369
    %v8371 = vadd.f32 1.0, %v8370
    %v8372 = vmul.f32 %v8363, %v8363
    %v8373 = vmul.f32 %v8372, -0.00019511016
    %v8374 = vadd.f32 %v8373, 0.008332121
    %v8375 = vmul.f32 %v8372, %v8374
    %v8376 = vadd.f32 %v8375, -0.16666654
    %v8377 = vmul.f32 %v8372, %v8376
    %v8378 = vadd.f32 %v8377, 1.0
    %v8379 = vmul.f32 %v8378, %v8363
    %vm8380 = vweird.f32 %v184
    %v8381 = vand.u32 %v8364, 3
    %vm8382 = vcmp.lt.s32.totalorder %v8381, 2
    %vm8383 = vcmp.eq.s32.totalorder %v8381, 0
    %v8384 = vxor.u32 %v8379, 2147483648
    %v8385 = vsel %vm8383, %v8371, %v8384
    %vm8386 = vcmp.eq.s32.totalorder %v8381, 2
    %v8387 = vxor.u32 %v8371, 2147483648
    %v8388 = vsel %vm8386, %v8387, %v8379
    %v8389 = vsel %vm8382, %v8385, %v8388
    %v8390 = vsel %vm8380, nan, %v8389
    %v8391 = vand.u32 2147483647, %v185
    %vm8392 = vcmp.le.f32.partialorder %v8391, 0.7853982
    %vm8393 = vcmp.lt.s32.totalorder %v185, 0
    %v8394 = vand.u32 %v185, 2139095040
    %v8395 = vshrl.u32 %v8394, 23
    %v8396 = vsub.s32 %v8395, 127
    %v8397 = vand.u32 2147483647, %v185
    %v8398 = vand.u32 %v8397, 8388607
    %v8399 = vor.u32 %v8398, 8388608
    %v8400 = vsub.s32 0, %v8399
    %v8401 = vadd.s32 %v8396, 1
    %vm8402 = vcmp.gt.s32.totalorder %v8401, 0
    %v8403 = vsel %vm8402, %v8401, 0
    %v8404 = vshrl.u32 %v8403, 5
    %v8405 = vand.u32 %v8403, 31
    %v8406 = vsub.s32 32, %v8405
    %v8407 = vshrl.u32 683565275, %v8406
    %v8408 = vshll.u32 683565275, %v8405
    %v8409 = vshrl.u32 2475754826, %v8406
    %v8410 = vor.u32 %v8408, %v8409
    %v8411 = vshll.u32 2475754826, %v8405
    %v8412 = vshrl.u32 2131351028, %v8406
    %v8413 = vor.u32 %v8411, %v8412
    %v8414 = vshll.u32 2131351028, %v8405
    %v8415 = vshrl.u32 2102212464, %v8406
    %v8416 = vor.u32 %v8414, %v8415
    %v8417 = vshll.u32 2102212464, %v8405
    %v8418 = vshrl.u32 920167782, %v8406
    %v8419 = vor.u32 %v8417, %v8418
    %v8420 = vshll.u32 920167782, %v8405
    %v8421 = vshrl.u32 1326507024, %v8406
    %v8422 = vor.u32 %v8420, %v8421
    %vm8423 = vcmp.lt.s32.totalorder %v8404, 1
    %vm8424 = vcmp.lt.s32.totalorder %v8404, 2
    %vm8425 = vcmp.lt.s32.totalorder %v8404, 3
    %vm8426 = vcmp.lt.s32.totalorder %v8404, 4
    %v8427 = vsel %vm8423, %v8407, %v8410
    %v8428 = vsel %vm8426, %v8416, 2102212464
    %v8429 = vsel %vm8425, %v8413, %v8428
    %v8430 = vsel %vm8424, %v8427, %v8429
    %v8431 = vsel %vm8423, %v8410, %v8413
    %v8432 = vsel %vm8426, %v8419, 920167782
    %v8433 = vsel %vm8425, %v8416, %v8432
    %v8434 = vsel %vm8424, %v8431, %v8433
    %v8435 = vsel %vm8423, %v8413, %v8416
    %v8436 = vsel %vm8426, %v8422, 1326507024
    %v8437 = vsel %vm8425, %v8419, %v8436
    %v8438 = vsel %vm8424, %v8435, %v8437
    %v8439 = vshll.u32 %v8399, 8
    %v8440 = vand.u32 %v8439, 65535
    %v8441 = vshrl.u32 %v8439, 16
    %v8442 = vand.u32 %v8438, 65535
    %v8443 = vshrl.u32 %v8438, 16
    %v8444 = vmul.u32 %v8440, %v8442
    %v8445 = vmul.u32 %v8440, %v8443
    %v8446 = vmul.u32 %v8441, %v8442
    %v8447 = vmul.u32 %v8441, %v8443
    %v8448 = vshll.u32 %v8445, 16
    %v8449 = vshrl.u32 %v8445, 16
    %v8450 = vshll.u32 %v8446, 16
    %v8451 = vshrl.u32 %v8446, 16
    %vm8452 = vc.u32 %v8444, %v8448
    %v8453 = vsel %vm8452, 1, 0
    %v8454 = vadd.s32 %v8444, %v8448
    %v8455 = vadd.s32 %v8447, %v8453
    %vm8456 = vc.u32 %v8454, %v8450
    %v8457 = vsel %vm8456, 1, 0
    %v8458 = vadd.s32 %v8454, %v8450
    %v8459 = vadd.s32 %v8455, %v8457
    %v8460 = vadd.s32 %v8459, %v8449
    %v8461 = vadd.s32 %v8460, %v8451
    %v8462 = vand.u32 %v8439, 65535
    %v8463 = vshrl.u32 %v8439, 16
    %v8464 = vand.u32 %v8434, 65535
    %v8465 = vshrl.u32 %v8434, 16
    %v8466 = vmul.u32 %v8462, %v8464
    %v8467 = vmul.u32 %v8462, %v8465
    %v8468 = vmul.u32 %v8463, %v8464
    %v8469 = vmul.u32 %v8463, %v8465
    %v8470 = vshll.u32 %v8467, 16
    %v8471 = vshrl.u32 %v8467, 16
    %v8472 = vshll.u32 %v8468, 16
    %v8473 = vshrl.u32 %v8468, 16
    %vm8474 = vc.u32 %v8466, %v8470
    %v8475 = vsel %vm8474, 1, 0
    %v8476 = vadd.s32 %v8466, %v8470
    %v8477 = vadd.s32 %v8469, %v8475
    %vm8478 = vc.u32 %v8476, %v8472
    %v8479 = vsel %vm8478, 1, 0
    %v8480 = vadd.s32 %v8476, %v8472
    %v8481 = vadd.s32 %v8477, %v8479
    %v8482 = vadd.s32 %v8481, %v8471
    %v8483 = vadd.s32 %v8482, %v8473
    %v8484 = vmul.u32 %v8439, %v8430
    %v8485 = vadd.s32 %v8461, %v8480
    %vm8486 = vc.u32 %v8461, %v8480
    %v8487 = vadd.s32 %v8483, 1
    %v8488 = vsel %vm8486, %v8487, %v8483
    %v8489 = vadd.s32 %v8484, %v8488
    %v8490 = vadd.s32 %v8489, 536870912
    %v8491 = vshrl.u32 %v8490, 30
    %v8492 = vshll.u32 %v8491, 30
    %v8493 = vsub.s32 %v8489, %v8492
    %vm8494 = vcmp.lt.s32.totalorder %v8493, 0
    %v8495 = vsub.s32 0, %v8493
    %v8496 = vsel %vm8494, %v8495, %v8493
    %v8497 = vclz %v8496
    %v8498 = vsub.s32 %v8497, 2
    %vm8499 = vcmp.gt.s32.totalorder 0, %v8498
    %v8500 = vsel %vm8499, 0, %v8498
    %v8501 = vsub.s32 32, %v8500
    %v8502 = vshll.u32 %v8493, %v8500
    %v8503 = vshrl.u32 %v8485, %v8501
    %v8504 = vor.u32 %v8502, %v8503
    %v8505 = vsub.s32 4294967266, %v8500
    %v8506 = vadd.s32 %v8505, 127
    %v8507 = vshll.u32 %v8506, 23
    %v8508 = vor.u32 4788187, %v8507
    %v8509 = vand.u32 2147483647, %v8508
    %v8511 = vcvt.s32.f32 %v8504
    %v8512 = vmul.f32 %v8511, %v8509
    %v8513 = vxor.u32 %v8512, 2147483648
    %v8514 = vsel %vm8393, %v8513, %v8512
    %v8515 = vsub.s32 4, %v8491
    %v8516 = vsel %vm8393, %v8515, %v8491
    %v8517 = vsel %vm8392, %v185, %v8514
    %v8518 = vsel %vm8392, 0, %v8516
    %v8519 = vmul.f32 %v8517, %v8517
    %v8520 = vmul.f32 %v8519, -0.001358992
    %v8521 = vadd.f32 %v8520, 0.041655596
    %v8522 = vmul.f32 %v8519, %v8521
    %v8523 = vadd.f32 %v8522, -0.4999988
    %v8524 = vmul.f32 %v8519, %v8523
    %v8525 = vadd.f32 1.0, %v8524
    %v8526 = vmul.f32 %v8517, %v8517
    %v8527 = vmul.f32 %v8526, -0.00019511016
    %v8528 = vadd.f32 %v8527, 0.008332121
    %v8529 = vmul.f32 %v8526, %v8528
    %v8530 = vadd.f32 %v8529, -0.16666654
    %v8531 = vmul.f32 %v8526, %v8530
    %v8532 = vadd.f32 %v8531, 1.0
    %v8533 = vmul.f32 %v8532, %v8517
    %vm8534 = vweird.f32 %v185
    %v8535 = vand.u32 %v8518, 3
    %vm8536 = vcmp.lt.s32.totalorder %v8535, 2
    %vm8537 = vcmp.eq.s32.totalorder %v8535, 0
    %v8538 = vxor.u32 %v8533, 2147483648
    %v8539 = vsel %vm8537, %v8525, %v8538
    %vm8540 = vcmp.eq.s32.totalorder %v8535, 2
    %v8541 = vxor.u32 %v8525, 2147483648
    %v8542 = vsel %vm8540, %v8541, %v8533
    %v8543 = vsel %vm8536, %v8539, %v8542
    %v8544 = vsel %vm8534, nan, %v8543
    %v8545 = vand.u32 2147483647, %v186
    %vm8546 = vcmp.le.f32.partialorder %v8545, 0.7853982
    %vm8547 = vcmp.lt.s32.totalorder %v186, 0
    %v8548 = vand.u32 %v186, 2139095040
    %v8549 = vshrl.u32 %v8548, 23
    %v8550 = vsub.s32 %v8549, 127
    %v8551 = vand.u32 2147483647, %v186
    %v8552 = vand.u32 %v8551, 8388607
    %v8553 = vor.u32 %v8552, 8388608
    %v8554 = vsub.s32 0, %v8553
    %v8555 = vadd.s32 %v8550, 1
    %vm8556 = vcmp.gt.s32.totalorder %v8555, 0
    %v8557 = vsel %vm8556, %v8555, 0
    %v8558 = vshrl.u32 %v8557, 5
    %v8559 = vand.u32 %v8557, 31
    %v8560 = vsub.s32 32, %v8559
    %v8561 = vshrl.u32 683565275, %v8560
    %v8562 = vshll.u32 683565275, %v8559
    %v8563 = vshrl.u32 2475754826, %v8560
    %v8564 = vor.u32 %v8562, %v8563
    %v8565 = vshll.u32 2475754826, %v8559
    %v8566 = vshrl.u32 2131351028, %v8560
    %v8567 = vor.u32 %v8565, %v8566
    %v8568 = vshll.u32 2131351028, %v8559
    %v8569 = vshrl.u32 2102212464, %v8560
    %v8570 = vor.u32 %v8568, %v8569
    %v8571 = vshll.u32 2102212464, %v8559
    %v8572 = vshrl.u32 920167782, %v8560
    %v8573 = vor.u32 %v8571, %v8572
    %v8574 = vshll.u32 920167782, %v8559
    %v8575 = vshrl.u32 1326507024, %v8560
    %v8576 = vor.u32 %v8574, %v8575
    %vm8577 = vcmp.lt.s32.totalorder %v8558, 1
    %vm8578 = vcmp.lt.s32.totalorder %v8558, 2
    %vm8579 = vcmp.lt.s32.totalorder %v8558, 3
    %vm8580 = vcmp.lt.s32.totalorder %v8558, 4
    %v8581 = vsel %vm8577, %v8561, %v8564
    %v8582 = vsel %vm8580, %v8570, 2102212464
    %v8583 = vsel %vm8579, %v8567, %v8582
    %v8584 = vsel %vm8578, %v8581, %v8583
    %v8585 = vsel %vm8577, %v8564, %v8567
    %v8586 = vsel %vm8580, %v8573, 920167782
    %v8587 = vsel %vm8579, %v8570, %v8586
    %v8588 = vsel %vm8578, %v8585, %v8587
    %v8589 = vsel %vm8577, %v8567, %v8570
    %v8590 = vsel %vm8580, %v8576, 1326507024
    %v8591 = vsel %vm8579, %v8573, %v8590
    %v8592 = vsel %vm8578, %v8589, %v8591
    %v8593 = vshll.u32 %v8553, 8
    %v8594 = vand.u32 %v8593, 65535
    %v8595 = vshrl.u32 %v8593, 16
    %v8596 = vand.u32 %v8592, 65535
    %v8597 = vshrl.u32 %v8592, 16
    %v8598 = vmul.u32 %v8594, %v8596
    %v8599 = vmul.u32 %v8594, %v8597
    %v8600 = vmul.u32 %v8595, %v8596
    %v8601 = vmul.u32 %v8595, %v8597
    %v8602 = vshll.u32 %v8599, 16
    %v8603 = vshrl.u32 %v8599, 16
    %v8604 = vshll.u32 %v8600, 16
    %v8605 = vshrl.u32 %v8600, 16
    %vm8606 = vc.u32 %v8598, %v8602
    %v8607 = vsel %vm8606, 1, 0
    %v8608 = vadd.s32 %v8598, %v8602
    %v8609 = vadd.s32 %v8601, %v8607
    %vm8610 = vc.u32 %v8608, %v8604
    %v8611 = vsel %vm8610, 1, 0
    %v8612 = vadd.s32 %v8608, %v8604
    %v8613 = vadd.s32 %v8609, %v8611
    %v8614 = vadd.s32 %v8613, %v8603
    %v8615 = vadd.s32 %v8614, %v8605
    %v8616 = vand.u32 %v8593, 65535
    %v8617 = vshrl.u32 %v8593, 16
    %v8618 = vand.u32 %v8588, 65535
    %v8619 = vshrl.u32 %v8588, 16
    %v8620 = vmul.u32 %v8616, %v8618
    %v8621 = vmul.u32 %v8616, %v8619
    %v8622 = vmul.u32 %v8617, %v8618
    %v8623 = vmul.u32 %v8617, %v8619
    %v8624 = vshll.u32 %v8621, 16
    %v8625 = vshrl.u32 %v8621, 16
    %v8626 = vshll.u32 %v8622, 16
    %v8627 = vshrl.u32 %v8622, 16
    %vm8628 = vc.u32 %v8620, %v8624
    %v8629 = vsel %vm8628, 1, 0
    %v8630 = vadd.s32 %v8620, %v8624
    %v8631 = vadd.s32 %v8623, %v8629
    %vm8632 = vc.u32 %v8630, %v8626
    %v8633 = vsel %vm8632, 1, 0
    %v8634 = vadd.s32 %v8630, %v8626
    %v8635 = vadd.s32 %v8631, %v8633
    %v8636 = vadd.s32 %v8635, %v8625
    %v8637 = vadd.s32 %v8636, %v8627
    %v8638 = vmul.u32 %v8593, %v8584
    %v8639 = vadd.s32 %v8615, %v8634
    %vm8640 = vc.u32 %v8615, %v8634
    %v8641 = vadd.s32 %v8637, 1
    %v8642 = vsel %vm8640, %v8641, %v8637
    %v8643 = vadd.s32 %v8638, %v8642
    %v8644 = vadd.s32 %v8643, 536870912
    %v8645 = vshrl.u32 %v8644, 30
    %v8646 = vshll.u32 %v8645, 30
    %v8647 = vsub.s32 %v8643, %v8646
    %vm8648 = vcmp.lt.s32.totalorder %v8647, 0
    %v8649 = vsub.s32 0, %v8647
    %v8650 = vsel %vm8648, %v8649, %v8647
    %v8651 = vclz %v8650
    %v8652 = vsub.s32 %v8651, 2
    %vm8653 = vcmp.gt.s32.totalorder 0, %v8652
    %v8654 = vsel %vm8653, 0, %v8652
    %v8655 = vsub.s32 32, %v8654
    %v8656 = vshll.u32 %v8647, %v8654
    %v8657 = vshrl.u32 %v8639, %v8655
    %v8658 = vor.u32 %v8656, %v8657
    %v8659 = vsub.s32 4294967266, %v8654
    %v8660 = vadd.s32 %v8659, 127
    %v8661 = vshll.u32 %v8660, 23
    %v8662 = vor.u32 4788187, %v8661
    %v8663 = vand.u32 2147483647, %v8662
    %v8665 = vcvt.s32.f32 %v8658
    %v8666 = vmul.f32 %v8665, %v8663
    %v8667 = vxor.u32 %v8666, 2147483648
    %v8668 = vsel %vm8547, %v8667, %v8666
    %v8669 = vsub.s32 4, %v8645
    %v8670 = vsel %vm8547, %v8669, %v8645
    %v8671 = vsel %vm8546, %v186, %v8668
    %v8672 = vsel %vm8546, 0, %v8670
    %v8673 = vmul.f32 %v8671, %v8671
    %v8674 = vmul.f32 %v8673, -0.001358992
    %v8675 = vadd.f32 %v8674, 0.041655596
    %v8676 = vmul.f32 %v8673, %v8675
    %v8677 = vadd.f32 %v8676, -0.4999988
    %v8678 = vmul.f32 %v8673, %v8677
    %v8679 = vadd.f32 1.0, %v8678
    %v8680 = vmul.f32 %v8671, %v8671
    %v8681 = vmul.f32 %v8680, -0.00019511016
    %v8682 = vadd.f32 %v8681, 0.008332121
    %v8683 = vmul.f32 %v8680, %v8682
    %v8684 = vadd.f32 %v8683, -0.16666654
    %v8685 = vmul.f32 %v8680, %v8684
    %v8686 = vadd.f32 %v8685, 1.0
    %v8687 = vmul.f32 %v8686, %v8671
    %vm8688 = vweird.f32 %v186
    %v8689 = vand.u32 %v8672, 3
    %vm8690 = vcmp.lt.s32.totalorder %v8689, 2
    %vm8691 = vcmp.eq.s32.totalorder %v8689, 0
    %v8692 = vxor.u32 %v8687, 2147483648
    %v8693 = vsel %vm8691, %v8679, %v8692
    %vm8694 = vcmp.eq.s32.totalorder %v8689, 2
    %v8695 = vxor.u32 %v8679, 2147483648
    %v8696 = vsel %vm8694, %v8695, %v8687
    %v8697 = vsel %vm8690, %v8693, %v8696
    %v8698 = vsel %vm8688, nan, %v8697
    %v8699 = vand.u32 2147483647, %v187
    %vm8700 = vcmp.le.f32.partialorder %v8699, 0.7853982
    %vm8701 = vcmp.lt.s32.totalorder %v187, 0
    %v8702 = vand.u32 %v187, 2139095040
    %v8703 = vshrl.u32 %v8702, 23
    %v8704 = vsub.s32 %v8703, 127
    %v8705 = vand.u32 2147483647, %v187
    %v8706 = vand.u32 %v8705, 8388607
    %v8707 = vor.u32 %v8706, 8388608
    %v8708 = vsub.s32 0, %v8707
    %v8709 = vadd.s32 %v8704, 1
    %vm8710 = vcmp.gt.s32.totalorder %v8709, 0
    %v8711 = vsel %vm8710, %v8709, 0
    %v8712 = vshrl.u32 %v8711, 5
    %v8713 = vand.u32 %v8711, 31
    %v8714 = vsub.s32 32, %v8713
    %v8715 = vshrl.u32 683565275, %v8714
    %v8716 = vshll.u32 683565275, %v8713
    %v8717 = vshrl.u32 2475754826, %v8714
    %v8718 = vor.u32 %v8716, %v8717
    %v8719 = vshll.u32 2475754826, %v8713
    %v8720 = vshrl.u32 2131351028, %v8714
    %v8721 = vor.u32 %v8719, %v8720
    %v8722 = vshll.u32 2131351028, %v8713
    %v8723 = vshrl.u32 2102212464, %v8714
    %v8724 = vor.u32 %v8722, %v8723
    %v8725 = vshll.u32 2102212464, %v8713
    %v8726 = vshrl.u32 920167782, %v8714
    %v8727 = vor.u32 %v8725, %v8726
    %v8728 = vshll.u32 920167782, %v8713
    %v8729 = vshrl.u32 1326507024, %v8714
    %v8730 = vor.u32 %v8728, %v8729
    %vm8731 = vcmp.lt.s32.totalorder %v8712, 1
    %vm8732 = vcmp.lt.s32.totalorder %v8712, 2
    %vm8733 = vcmp.lt.s32.totalorder %v8712, 3
    %vm8734 = vcmp.lt.s32.totalorder %v8712, 4
    %v8735 = vsel %vm8731, %v8715, %v8718
    %v8736 = vsel %vm8734, %v8724, 2102212464
    %v8737 = vsel %vm8733, %v8721, %v8736
    %v8738 = vsel %vm8732, %v8735, %v8737
    %v8739 = vsel %vm8731, %v8718, %v8721
    %v8740 = vsel %vm8734, %v8727, 920167782
    %v8741 = vsel %vm8733, %v8724, %v8740
    %v8742 = vsel %vm8732, %v8739, %v8741
    %v8743 = vsel %vm8731, %v8721, %v8724
    %v8744 = vsel %vm8734, %v8730, 1326507024
    %v8745 = vsel %vm8733, %v8727, %v8744
    %v8746 = vsel %vm8732, %v8743, %v8745
    %v8747 = vshll.u32 %v8707, 8
    %v8748 = vand.u32 %v8747, 65535
    %v8749 = vshrl.u32 %v8747, 16
    %v8750 = vand.u32 %v8746, 65535
    %v8751 = vshrl.u32 %v8746, 16
    %v8752 = vmul.u32 %v8748, %v8750
    %v8753 = vmul.u32 %v8748, %v8751
    %v8754 = vmul.u32 %v8749, %v8750
    %v8755 = vmul.u32 %v8749, %v8751
    %v8756 = vshll.u32 %v8753, 16
    %v8757 = vshrl.u32 %v8753, 16
    %v8758 = vshll.u32 %v8754, 16
    %v8759 = vshrl.u32 %v8754, 16
    %vm8760 = vc.u32 %v8752, %v8756
    %v8761 = vsel %vm8760, 1, 0
    %v8762 = vadd.s32 %v8752, %v8756
    %v8763 = vadd.s32 %v8755, %v8761
    %vm8764 = vc.u32 %v8762, %v8758
    %v8765 = vsel %vm8764, 1, 0
    %v8766 = vadd.s32 %v8762, %v8758
    %v8767 = vadd.s32 %v8763, %v8765
    %v8768 = vadd.s32 %v8767, %v8757
    %v8769 = vadd.s32 %v8768, %v8759
    %v8770 = vand.u32 %v8747, 65535
    %v8771 = vshrl.u32 %v8747, 16
    %v8772 = vand.u32 %v8742, 65535
    %v8773 = vshrl.u32 %v8742, 16
    %v8774 = vmul.u32 %v8770, %v8772
    %v8775 = vmul.u32 %v8770, %v8773
    %v8776 = vmul.u32 %v8771, %v8772
    %v8777 = vmul.u32 %v8771, %v8773
    %v8778 = vshll.u32 %v8775, 16
    %v8779 = vshrl.u32 %v8775, 16
    %v8780 = vshll.u32 %v8776, 16
    %v8781 = vshrl.u32 %v8776, 16
    %vm8782 = vc.u32 %v8774, %v8778
    %v8783 = vsel %vm8782, 1, 0
    %v8784 = vadd.s32 %v8774, %v8778
    %v8785 = vadd.s32 %v8777, %v8783
    %vm8786 = vc.u32 %v8784, %v8780
    %v8787 = vsel %vm8786, 1, 0
    %v8788 = vadd.s32 %v8784, %v8780
    %v8789 = vadd.s32 %v8785, %v8787
    %v8790 = vadd.s32 %v8789, %v8779
    %v8791 = vadd.s32 %v8790, %v8781
    %v8792 = vmul.u32 %v8747, %v8738
    %v8793 = vadd.s32 %v8769, %v8788
    %vm8794 = vc.u32 %v8769, %v8788
    %v8795 = vadd.s32 %v8791, 1
    %v8796 = vsel %vm8794, %v8795, %v8791
    %v8797 = vadd.s32 %v8792, %v8796
    %v8798 = vadd.s32 %v8797, 536870912
    %v8799 = vshrl.u32 %v8798, 30
    %v8800 = vshll.u32 %v8799, 30
    %v8801 = vsub.s32 %v8797, %v8800
    %vm8802 = vcmp.lt.s32.totalorder %v8801, 0
    %v8803 = vsub.s32 0, %v8801
    %v8804 = vsel %vm8802, %v8803, %v8801
    %v8805 = vclz %v8804
    %v8806 = vsub.s32 %v8805, 2
    %vm8807 = vcmp.gt.s32.totalorder 0, %v8806
    %v8808 = vsel %vm8807, 0, %v8806
    %v8809 = vsub.s32 32, %v8808
    %v8810 = vshll.u32 %v8801, %v8808
    %v8811 = vshrl.u32 %v8793, %v8809
    %v8812 = vor.u32 %v8810, %v8811
    %v8813 = vsub.s32 4294967266, %v8808
    %v8814 = vadd.s32 %v8813, 127
    %v8815 = vshll.u32 %v8814, 23
    %v8816 = vor.u32 4788187, %v8815
    %v8817 = vand.u32 2147483647, %v8816
    %v8819 = vcvt.s32.f32 %v8812
    %v8820 = vmul.f32 %v8819, %v8817
    %v8821 = vxor.u32 %v8820, 2147483648
    %v8822 = vsel %vm8701, %v8821, %v8820
    %v8823 = vsub.s32 4, %v8799
    %v8824 = vsel %vm8701, %v8823, %v8799
    %v8825 = vsel %vm8700, %v187, %v8822
    %v8826 = vsel %vm8700, 0, %v8824
    %v8827 = vmul.f32 %v8825, %v8825
    %v8828 = vmul.f32 %v8827, -0.001358992
    %v8829 = vadd.f32 %v8828, 0.041655596
    %v8830 = vmul.f32 %v8827, %v8829
    %v8831 = vadd.f32 %v8830, -0.4999988
    %v8832 = vmul.f32 %v8827, %v8831
    %v8833 = vadd.f32 1.0, %v8832
    %v8834 = vmul.f32 %v8825, %v8825
    %v8835 = vmul.f32 %v8834, -0.00019511016
    %v8836 = vadd.f32 %v8835, 0.008332121
    %v8837 = vmul.f32 %v8834, %v8836
    %v8838 = vadd.f32 %v8837, -0.16666654
    %v8839 = vmul.f32 %v8834, %v8838
    %v8840 = vadd.f32 %v8839, 1.0
    %v8841 = vmul.f32 %v8840, %v8825
    %vm8842 = vweird.f32 %v187
    %v8843 = vand.u32 %v8826, 3
    %vm8844 = vcmp.lt.s32.totalorder %v8843, 2
    %vm8845 = vcmp.eq.s32.totalorder %v8843, 0
    %v8846 = vxor.u32 %v8841, 2147483648
    %v8847 = vsel %vm8845, %v8833, %v8846
    %vm8848 = vcmp.eq.s32.totalorder %v8843, 2
    %v8849 = vxor.u32 %v8833, 2147483648
    %v8850 = vsel %vm8848, %v8849, %v8841
    %v8851 = vsel %vm8844, %v8847, %v8850
    %v8852 = vsel %vm8842, nan, %v8851
    %v8853 = vand.u32 2147483647, %v188
    %vm8854 = vcmp.le.f32.partialorder %v8853, 0.7853982
    %vm8855 = vcmp.lt.s32.totalorder %v188, 0
    %v8856 = vand.u32 %v188, 2139095040
    %v8857 = vshrl.u32 %v8856, 23
    %v8858 = vsub.s32 %v8857, 127
    %v8859 = vand.u32 2147483647, %v188
    %v8860 = vand.u32 %v8859, 8388607
    %v8861 = vor.u32 %v8860, 8388608
    %v8862 = vsub.s32 0, %v8861
    %v8863 = vadd.s32 %v8858, 1
    %vm8864 = vcmp.gt.s32.totalorder %v8863, 0
    %v8865 = vsel %vm8864, %v8863, 0
    %v8866 = vshrl.u32 %v8865, 5
    %v8867 = vand.u32 %v8865, 31
    %v8868 = vsub.s32 32, %v8867
    %v8869 = vshrl.u32 683565275, %v8868
    %v8870 = vshll.u32 683565275, %v8867
    %v8871 = vshrl.u32 2475754826, %v8868
    %v8872 = vor.u32 %v8870, %v8871
    %v8873 = vshll.u32 2475754826, %v8867
    %v8874 = vshrl.u32 2131351028, %v8868
    %v8875 = vor.u32 %v8873, %v8874
    %v8876 = vshll.u32 2131351028, %v8867
    %v8877 = vshrl.u32 2102212464, %v8868
    %v8878 = vor.u32 %v8876, %v8877
    %v8879 = vshll.u32 2102212464, %v8867
    %v8880 = vshrl.u32 920167782, %v8868
    %v8881 = vor.u32 %v8879, %v8880
    %v8882 = vshll.u32 920167782, %v8867
    %v8883 = vshrl.u32 1326507024, %v8868
    %v8884 = vor.u32 %v8882, %v8883
    %vm8885 = vcmp.lt.s32.totalorder %v8866, 1
    %vm8886 = vcmp.lt.s32.totalorder %v8866, 2
    %vm8887 = vcmp.lt.s32.totalorder %v8866, 3
    %vm8888 = vcmp.lt.s32.totalorder %v8866, 4
    %v8889 = vsel %vm8885, %v8869, %v8872
    %v8890 = vsel %vm8888, %v8878, 2102212464
    %v8891 = vsel %vm8887, %v8875, %v8890
    %v8892 = vsel %vm8886, %v8889, %v8891
    %v8893 = vsel %vm8885, %v8872, %v8875
    %v8894 = vsel %vm8888, %v8881, 920167782
    %v8895 = vsel %vm8887, %v8878, %v8894
    %v8896 = vsel %vm8886, %v8893, %v8895
    %v8897 = vsel %vm8885, %v8875, %v8878
    %v8898 = vsel %vm8888, %v8884, 1326507024
    %v8899 = vsel %vm8887, %v8881, %v8898
    %v8900 = vsel %vm8886, %v8897, %v8899
    %v8901 = vshll.u32 %v8861, 8
    %v8902 = vand.u32 %v8901, 65535
    %v8903 = vshrl.u32 %v8901, 16
    %v8904 = vand.u32 %v8900, 65535
    %v8905 = vshrl.u32 %v8900, 16
    %v8906 = vmul.u32 %v8902, %v8904
    %v8907 = vmul.u32 %v8902, %v8905
    %v8908 = vmul.u32 %v8903, %v8904
    %v8909 = vmul.u32 %v8903, %v8905
    %v8910 = vshll.u32 %v8907, 16
    %v8911 = vshrl.u32 %v8907, 16
    %v8912 = vshll.u32 %v8908, 16
    %v8913 = vshrl.u32 %v8908, 16
    %vm8914 = vc.u32 %v8906, %v8910
    %v8915 = vsel %vm8914, 1, 0
    %v8916 = vadd.s32 %v8906, %v8910
    %v8917 = vadd.s32 %v8909, %v8915
    %vm8918 = vc.u32 %v8916, %v8912
    %v8919 = vsel %vm8918, 1, 0
    %v8920 = vadd.s32 %v8916, %v8912
    %v8921 = vadd.s32 %v8917, %v8919
    %v8922 = vadd.s32 %v8921, %v8911
    %v8923 = vadd.s32 %v8922, %v8913
    %v8924 = vand.u32 %v8901, 65535
    %v8925 = vshrl.u32 %v8901, 16
    %v8926 = vand.u32 %v8896, 65535
    %v8927 = vshrl.u32 %v8896, 16
    %v8928 = vmul.u32 %v8924, %v8926
    %v8929 = vmul.u32 %v8924, %v8927
    %v8930 = vmul.u32 %v8925, %v8926
    %v8931 = vmul.u32 %v8925, %v8927
    %v8932 = vshll.u32 %v8929, 16
    %v8933 = vshrl.u32 %v8929, 16
    %v8934 = vshll.u32 %v8930, 16
    %v8935 = vshrl.u32 %v8930, 16
    %vm8936 = vc.u32 %v8928, %v8932
    %v8937 = vsel %vm8936, 1, 0
    %v8938 = vadd.s32 %v8928, %v8932
    %v8939 = vadd.s32 %v8931, %v8937
    %vm8940 = vc.u32 %v8938, %v8934
    %v8941 = vsel %vm8940, 1, 0
    %v8942 = vadd.s32 %v8938, %v8934
    %v8943 = vadd.s32 %v8939, %v8941
    %v8944 = vadd.s32 %v8943, %v8933
    %v8945 = vadd.s32 %v8944, %v8935
    %v8946 = vmul.u32 %v8901, %v8892
    %v8947 = vadd.s32 %v8923, %v8942
    %vm8948 = vc.u32 %v8923, %v8942
    %v8949 = vadd.s32 %v8945, 1
    %v8950 = vsel %vm8948, %v8949, %v8945
    %v8951 = vadd.s32 %v8946, %v8950
    %v8952 = vadd.s32 %v8951, 536870912
    %v8953 = vshrl.u32 %v8952, 30
    %v8954 = vshll.u32 %v8953, 30
    %v8955 = vsub.s32 %v8951, %v8954
    %vm8956 = vcmp.lt.s32.totalorder %v8955, 0
    %v8957 = vsub.s32 0, %v8955
    %v8958 = vsel %vm8956, %v8957, %v8955
    %v8959 = vclz %v8958
    %v8960 = vsub.s32 %v8959, 2
    %vm8961 = vcmp.gt.s32.totalorder 0, %v8960
    %v8962 = vsel %vm8961, 0, %v8960
    %v8963 = vsub.s32 32, %v8962
    %v8964 = vshll.u32 %v8955, %v8962
    %v8965 = vshrl.u32 %v8947, %v8963
    %v8966 = vor.u32 %v8964, %v8965
    %v8967 = vsub.s32 4294967266, %v8962
    %v8968 = vadd.s32 %v8967, 127
    %v8969 = vshll.u32 %v8968, 23
    %v8970 = vor.u32 4788187, %v8969
    %v8971 = vand.u32 2147483647, %v8970
    %v8973 = vcvt.s32.f32 %v8966
    %v8974 = vmul.f32 %v8973, %v8971
    %v8975 = vxor.u32 %v8974, 2147483648
    %v8976 = vsel %vm8855, %v8975, %v8974
    %v8977 = vsub.s32 4, %v8953
    %v8978 = vsel %vm8855, %v8977, %v8953
    %v8979 = vsel %vm8854, %v188, %v8976
    %v8980 = vsel %vm8854, 0, %v8978
    %v8981 = vmul.f32 %v8979, %v8979
    %v8982 = vmul.f32 %v8981, -0.001358992
    %v8983 = vadd.f32 %v8982, 0.041655596
    %v8984 = vmul.f32 %v8981, %v8983
    %v8985 = vadd.f32 %v8984, -0.4999988
    %v8986 = vmul.f32 %v8981, %v8985
    %v8987 = vadd.f32 1.0, %v8986
    %v8988 = vmul.f32 %v8979, %v8979
    %v8989 = vmul.f32 %v8988, -0.00019511016
    %v8990 = vadd.f32 %v8989, 0.008332121
    %v8991 = vmul.f32 %v8988, %v8990
    %v8992 = vadd.f32 %v8991, -0.16666654
    %v8993 = vmul.f32 %v8988, %v8992
    %v8994 = vadd.f32 %v8993, 1.0
    %v8995 = vmul.f32 %v8994, %v8979
    %vm8996 = vweird.f32 %v188
    %v8997 = vand.u32 %v8980, 3
    %vm8998 = vcmp.lt.s32.totalorder %v8997, 2
    %vm8999 = vcmp.eq.s32.totalorder %v8997, 0
    %v9000 = vxor.u32 %v8995, 2147483648
    %v9001 = vsel %vm8999, %v8987, %v9000
    %vm9002 = vcmp.eq.s32.totalorder %v8997, 2
    %v9003 = vxor.u32 %v8987, 2147483648
    %v9004 = vsel %vm9002, %v9003, %v8995
    %v9005 = vsel %vm8998, %v9001, %v9004
    %v9006 = vsel %vm8996, nan, %v9005
    %v9007 = vand.u32 2147483647, %v189
    %vm9008 = vcmp.le.f32.partialorder %v9007, 0.7853982
    %vm9009 = vcmp.lt.s32.totalorder %v189, 0
    %v9010 = vand.u32 %v189, 2139095040
    %v9011 = vshrl.u32 %v9010, 23
    %v9012 = vsub.s32 %v9011, 127
    %v9013 = vand.u32 2147483647, %v189
    %v9014 = vand.u32 %v9013, 8388607
    %v9015 = vor.u32 %v9014, 8388608
    %v9016 = vsub.s32 0, %v9015
    %v9017 = vadd.s32 %v9012, 1
    %vm9018 = vcmp.gt.s32.totalorder %v9017, 0
    %v9019 = vsel %vm9018, %v9017, 0
    %v9020 = vshrl.u32 %v9019, 5
    %v9021 = vand.u32 %v9019, 31
    %v9022 = vsub.s32 32, %v9021
    %v9023 = vshrl.u32 683565275, %v9022
    %v9024 = vshll.u32 683565275, %v9021
    %v9025 = vshrl.u32 2475754826, %v9022
    %v9026 = vor.u32 %v9024, %v9025
    %v9027 = vshll.u32 2475754826, %v9021
    %v9028 = vshrl.u32 2131351028, %v9022
    %v9029 = vor.u32 %v9027, %v9028
    %v9030 = vshll.u32 2131351028, %v9021
    %v9031 = vshrl.u32 2102212464, %v9022
    %v9032 = vor.u32 %v9030, %v9031
    %v9033 = vshll.u32 2102212464, %v9021
    %v9034 = vshrl.u32 920167782, %v9022
    %v9035 = vor.u32 %v9033, %v9034
    %v9036 = vshll.u32 920167782, %v9021
    %v9037 = vshrl.u32 1326507024, %v9022
    %v9038 = vor.u32 %v9036, %v9037
    %vm9039 = vcmp.lt.s32.totalorder %v9020, 1
    %vm9040 = vcmp.lt.s32.totalorder %v9020, 2
    %vm9041 = vcmp.lt.s32.totalorder %v9020, 3
    %vm9042 = vcmp.lt.s32.totalorder %v9020, 4
    %v9043 = vsel %vm9039, %v9023, %v9026
    %v9044 = vsel %vm9042, %v9032, 2102212464
    %v9045 = vsel %vm9041, %v9029, %v9044
    %v9046 = vsel %vm9040, %v9043, %v9045
    %v9047 = vsel %vm9039, %v9026, %v9029
    %v9048 = vsel %vm9042, %v9035, 920167782
    %v9049 = vsel %vm9041, %v9032, %v9048
    %v9050 = vsel %vm9040, %v9047, %v9049
    %v9051 = vsel %vm9039, %v9029, %v9032
    %v9052 = vsel %vm9042, %v9038, 1326507024
    %v9053 = vsel %vm9041, %v9035, %v9052
    %v9054 = vsel %vm9040, %v9051, %v9053
    %v9055 = vshll.u32 %v9015, 8
    %v9056 = vand.u32 %v9055, 65535
    %v9057 = vshrl.u32 %v9055, 16
    %v9058 = vand.u32 %v9054, 65535
    %v9059 = vshrl.u32 %v9054, 16
    %v9060 = vmul.u32 %v9056, %v9058
    %v9061 = vmul.u32 %v9056, %v9059
    %v9062 = vmul.u32 %v9057, %v9058
    %v9063 = vmul.u32 %v9057, %v9059
    %v9064 = vshll.u32 %v9061, 16
    %v9065 = vshrl.u32 %v9061, 16
    %v9066 = vshll.u32 %v9062, 16
    %v9067 = vshrl.u32 %v9062, 16
    %vm9068 = vc.u32 %v9060, %v9064
    %v9069 = vsel %vm9068, 1, 0
    %v9070 = vadd.s32 %v9060, %v9064
    %v9071 = vadd.s32 %v9063, %v9069
    %vm9072 = vc.u32 %v9070, %v9066
    %v9073 = vsel %vm9072, 1, 0
    %v9074 = vadd.s32 %v9070, %v9066
    %v9075 = vadd.s32 %v9071, %v9073
    %v9076 = vadd.s32 %v9075, %v9065
    %v9077 = vadd.s32 %v9076, %v9067
    %v9078 = vand.u32 %v9055, 65535
    %v9079 = vshrl.u32 %v9055, 16
    %v9080 = vand.u32 %v9050, 65535
    %v9081 = vshrl.u32 %v9050, 16
    %v9082 = vmul.u32 %v9078, %v9080
    %v9083 = vmul.u32 %v9078, %v9081
    %v9084 = vmul.u32 %v9079, %v9080
    %v9085 = vmul.u32 %v9079, %v9081
    %v9086 = vshll.u32 %v9083, 16
    %v9087 = vshrl.u32 %v9083, 16
    %v9088 = vshll.u32 %v9084, 16
    %v9089 = vshrl.u32 %v9084, 16
    %vm9090 = vc.u32 %v9082, %v9086
    %v9091 = vsel %vm9090, 1, 0
    %v9092 = vadd.s32 %v9082, %v9086
    %v9093 = vadd.s32 %v9085, %v9091
    %vm9094 = vc.u32 %v9092, %v9088
    %v9095 = vsel %vm9094, 1, 0
    %v9096 = vadd.s32 %v9092, %v9088
    %v9097 = vadd.s32 %v9093, %v9095
    %v9098 = vadd.s32 %v9097, %v9087
    %v9099 = vadd.s32 %v9098, %v9089
    %v9100 = vmul.u32 %v9055, %v9046
    %v9101 = vadd.s32 %v9077, %v9096
    %vm9102 = vc.u32 %v9077, %v9096
    %v9103 = vadd.s32 %v9099, 1
    %v9104 = vsel %vm9102, %v9103, %v9099
    %v9105 = vadd.s32 %v9100, %v9104
    %v9106 = vadd.s32 %v9105, 536870912
    %v9107 = vshrl.u32 %v9106, 30
    %v9108 = vshll.u32 %v9107, 30
    %v9109 = vsub.s32 %v9105, %v9108
    %vm9110 = vcmp.lt.s32.totalorder %v9109, 0
    %v9111 = vsub.s32 0, %v9109
    %v9112 = vsel %vm9110, %v9111, %v9109
    %v9113 = vclz %v9112
    %v9114 = vsub.s32 %v9113, 2
    %vm9115 = vcmp.gt.s32.totalorder 0, %v9114
    %v9116 = vsel %vm9115, 0, %v9114
    %v9117 = vsub.s32 32, %v9116
    %v9118 = vshll.u32 %v9109, %v9116
    %v9119 = vshrl.u32 %v9101, %v9117
    %v9120 = vor.u32 %v9118, %v9119
    %v9121 = vsub.s32 4294967266, %v9116
    %v9122 = vadd.s32 %v9121, 127
    %v9123 = vshll.u32 %v9122, 23
    %v9124 = vor.u32 4788187, %v9123
    %v9125 = vand.u32 2147483647, %v9124
    %v9127 = vcvt.s32.f32 %v9120
    %v9128 = vmul.f32 %v9127, %v9125
    %v9129 = vxor.u32 %v9128, 2147483648
    %v9130 = vsel %vm9009, %v9129, %v9128
    %v9131 = vsub.s32 4, %v9107
    %v9132 = vsel %vm9009, %v9131, %v9107
    %v9133 = vsel %vm9008, %v189, %v9130
    %v9134 = vsel %vm9008, 0, %v9132
    %v9135 = vmul.f32 %v9133, %v9133
    %v9136 = vmul.f32 %v9135, -0.001358992
    %v9137 = vadd.f32 %v9136, 0.041655596
    %v9138 = vmul.f32 %v9135, %v9137
    %v9139 = vadd.f32 %v9138, -0.4999988
    %v9140 = vmul.f32 %v9135, %v9139
    %v9141 = vadd.f32 1.0, %v9140
    %v9142 = vmul.f32 %v9133, %v9133
    %v9143 = vmul.f32 %v9142, -0.00019511016
    %v9144 = vadd.f32 %v9143, 0.008332121
    %v9145 = vmul.f32 %v9142, %v9144
    %v9146 = vadd.f32 %v9145, -0.16666654
    %v9147 = vmul.f32 %v9142, %v9146
    %v9148 = vadd.f32 %v9147, 1.0
    %v9149 = vmul.f32 %v9148, %v9133
    %vm9150 = vweird.f32 %v189
    %v9151 = vand.u32 %v9134, 3
    %vm9152 = vcmp.lt.s32.totalorder %v9151, 2
    %vm9153 = vcmp.eq.s32.totalorder %v9151, 0
    %v9154 = vxor.u32 %v9149, 2147483648
    %v9155 = vsel %vm9153, %v9141, %v9154
    %vm9156 = vcmp.eq.s32.totalorder %v9151, 2
    %v9157 = vxor.u32 %v9141, 2147483648
    %v9158 = vsel %vm9156, %v9157, %v9149
    %v9159 = vsel %vm9152, %v9155, %v9158
    %v9160 = vsel %vm9150, nan, %v9159
    %v9161 = vand.u32 2147483647, %v190
    %vm9162 = vcmp.le.f32.partialorder %v9161, 0.7853982
    %vm9163 = vcmp.lt.s32.totalorder %v190, 0
    %v9164 = vand.u32 %v190, 2139095040
    %v9165 = vshrl.u32 %v9164, 23
    %v9166 = vsub.s32 %v9165, 127
    %v9167 = vand.u32 2147483647, %v190
    %v9168 = vand.u32 %v9167, 8388607
    %v9169 = vor.u32 %v9168, 8388608
    %v9170 = vsub.s32 0, %v9169
    %v9171 = vadd.s32 %v9166, 1
    %vm9172 = vcmp.gt.s32.totalorder %v9171, 0
    %v9173 = vsel %vm9172, %v9171, 0
    %v9174 = vshrl.u32 %v9173, 5
    %v9175 = vand.u32 %v9173, 31
    %v9176 = vsub.s32 32, %v9175
    %v9177 = vshrl.u32 683565275, %v9176
    %v9178 = vshll.u32 683565275, %v9175
    %v9179 = vshrl.u32 2475754826, %v9176
    %v9180 = vor.u32 %v9178, %v9179
    %v9181 = vshll.u32 2475754826, %v9175
    %v9182 = vshrl.u32 2131351028, %v9176
    %v9183 = vor.u32 %v9181, %v9182
    %v9184 = vshll.u32 2131351028, %v9175
    %v9185 = vshrl.u32 2102212464, %v9176
    %v9186 = vor.u32 %v9184, %v9185
    %v9187 = vshll.u32 2102212464, %v9175
    %v9188 = vshrl.u32 920167782, %v9176
    %v9189 = vor.u32 %v9187, %v9188
    %v9190 = vshll.u32 920167782, %v9175
    %v9191 = vshrl.u32 1326507024, %v9176
    %v9192 = vor.u32 %v9190, %v9191
    %vm9193 = vcmp.lt.s32.totalorder %v9174, 1
    %vm9194 = vcmp.lt.s32.totalorder %v9174, 2
    %vm9195 = vcmp.lt.s32.totalorder %v9174, 3
    %vm9196 = vcmp.lt.s32.totalorder %v9174, 4
    %v9197 = vsel %vm9193, %v9177, %v9180
    %v9198 = vsel %vm9196, %v9186, 2102212464
    %v9199 = vsel %vm9195, %v9183, %v9198
    %v9200 = vsel %vm9194, %v9197, %v9199
    %v9201 = vsel %vm9193, %v9180, %v9183
    %v9202 = vsel %vm9196, %v9189, 920167782
    %v9203 = vsel %vm9195, %v9186, %v9202
    %v9204 = vsel %vm9194, %v9201, %v9203
    %v9205 = vsel %vm9193, %v9183, %v9186
    %v9206 = vsel %vm9196, %v9192, 1326507024
    %v9207 = vsel %vm9195, %v9189, %v9206
    %v9208 = vsel %vm9194, %v9205, %v9207
    %v9209 = vshll.u32 %v9169, 8
    %v9210 = vand.u32 %v9209, 65535
    %v9211 = vshrl.u32 %v9209, 16
    %v9212 = vand.u32 %v9208, 65535
    %v9213 = vshrl.u32 %v9208, 16
    %v9214 = vmul.u32 %v9210, %v9212
    %v9215 = vmul.u32 %v9210, %v9213
    %v9216 = vmul.u32 %v9211, %v9212
    %v9217 = vmul.u32 %v9211, %v9213
    %v9218 = vshll.u32 %v9215, 16
    %v9219 = vshrl.u32 %v9215, 16
    %v9220 = vshll.u32 %v9216, 16
    %v9221 = vshrl.u32 %v9216, 16
    %vm9222 = vc.u32 %v9214, %v9218
    %v9223 = vsel %vm9222, 1, 0
    %v9224 = vadd.s32 %v9214, %v9218
    %v9225 = vadd.s32 %v9217, %v9223
    %vm9226 = vc.u32 %v9224, %v9220
    %v9227 = vsel %vm9226, 1, 0
    %v9228 = vadd.s32 %v9224, %v9220
    %v9229 = vadd.s32 %v9225, %v9227
    %v9230 = vadd.s32 %v9229, %v9219
    %v9231 = vadd.s32 %v9230, %v9221
    %v9232 = vand.u32 %v9209, 65535
    %v9233 = vshrl.u32 %v9209, 16
    %v9234 = vand.u32 %v9204, 65535
    %v9235 = vshrl.u32 %v9204, 16
    %v9236 = vmul.u32 %v9232, %v9234
    %v9237 = vmul.u32 %v9232, %v9235
    %v9238 = vmul.u32 %v9233, %v9234
    %v9239 = vmul.u32 %v9233, %v9235
    %v9240 = vshll.u32 %v9237, 16
    %v9241 = vshrl.u32 %v9237, 16
    %v9242 = vshll.u32 %v9238, 16
    %v9243 = vshrl.u32 %v9238, 16
    %vm9244 = vc.u32 %v9236, %v9240
    %v9245 = vsel %vm9244, 1, 0
    %v9246 = vadd.s32 %v9236, %v9240
    %v9247 = vadd.s32 %v9239, %v9245
    %vm9248 = vc.u32 %v9246, %v9242
    %v9249 = vsel %vm9248, 1, 0
    %v9250 = vadd.s32 %v9246, %v9242
    %v9251 = vadd.s32 %v9247, %v9249
    %v9252 = vadd.s32 %v9251, %v9241
    %v9253 = vadd.s32 %v9252, %v9243
    %v9254 = vmul.u32 %v9209, %v9200
    %v9255 = vadd.s32 %v9231, %v9250
    %vm9256 = vc.u32 %v9231, %v9250
    %v9257 = vadd.s32 %v9253, 1
    %v9258 = vsel %vm9256, %v9257, %v9253
    %v9259 = vadd.s32 %v9254, %v9258
    %v9260 = vadd.s32 %v9259, 536870912
    %v9261 = vshrl.u32 %v9260, 30
    %v9262 = vshll.u32 %v9261, 30
    %v9263 = vsub.s32 %v9259, %v9262
    %vm9264 = vcmp.lt.s32.totalorder %v9263, 0
    %v9265 = vsub.s32 0, %v9263
    %v9266 = vsel %vm9264, %v9265, %v9263
    %v9267 = vclz %v9266
    %v9268 = vsub.s32 %v9267, 2
    %vm9269 = vcmp.gt.s32.totalorder 0, %v9268
    %v9270 = vsel %vm9269, 0, %v9268
    %v9271 = vsub.s32 32, %v9270
    %v9272 = vshll.u32 %v9263, %v9270
    %v9273 = vshrl.u32 %v9255, %v9271
    %v9274 = vor.u32 %v9272, %v9273
    %v9275 = vsub.s32 4294967266, %v9270
    %v9276 = vadd.s32 %v9275, 127
    %v9277 = vshll.u32 %v9276, 23
    %v9278 = vor.u32 4788187, %v9277
    %v9279 = vand.u32 2147483647, %v9278
    %v9281 = vcvt.s32.f32 %v9274
    %v9282 = vmul.f32 %v9281, %v9279
    %v9283 = vxor.u32 %v9282, 2147483648
    %v9284 = vsel %vm9163, %v9283, %v9282
    %v9285 = vsub.s32 4, %v9261
    %v9286 = vsel %vm9163, %v9285, %v9261
    %v9287 = vsel %vm9162, %v190, %v9284
    %v9288 = vsel %vm9162, 0, %v9286
    %v9289 = vmul.f32 %v9287, %v9287
    %v9290 = vmul.f32 %v9289, -0.001358992
    %v9291 = vadd.f32 %v9290, 0.041655596
    %v9292 = vmul.f32 %v9289, %v9291
    %v9293 = vadd.f32 %v9292, -0.4999988
    %v9294 = vmul.f32 %v9289, %v9293
    %v9295 = vadd.f32 1.0, %v9294
    %v9296 = vmul.f32 %v9287, %v9287
    %v9297 = vmul.f32 %v9296, -0.00019511016
    %v9298 = vadd.f32 %v9297, 0.008332121
    %v9299 = vmul.f32 %v9296, %v9298
    %v9300 = vadd.f32 %v9299, -0.16666654
    %v9301 = vmul.f32 %v9296, %v9300
    %v9302 = vadd.f32 %v9301, 1.0
    %v9303 = vmul.f32 %v9302, %v9287
    %vm9304 = vweird.f32 %v190
    %v9305 = vand.u32 %v9288, 3
    %vm9306 = vcmp.lt.s32.totalorder %v9305, 2
    %vm9307 = vcmp.eq.s32.totalorder %v9305, 0
    %v9308 = vxor.u32 %v9303, 2147483648
    %v9309 = vsel %vm9307, %v9295, %v9308
    %vm9310 = vcmp.eq.s32.totalorder %v9305, 2
    %v9311 = vxor.u32 %v9295, 2147483648
    %v9312 = vsel %vm9310, %v9311, %v9303
    %v9313 = vsel %vm9306, %v9309, %v9312
    %v9314 = vsel %vm9304, nan, %v9313
    %v9315 = vand.u32 2147483647, %v191
    %vm9316 = vcmp.le.f32.partialorder %v9315, 0.7853982
    %vm9317 = vcmp.lt.s32.totalorder %v191, 0
    %v9318 = vand.u32 %v191, 2139095040
    %v9319 = vshrl.u32 %v9318, 23
    %v9320 = vsub.s32 %v9319, 127
    %v9321 = vand.u32 2147483647, %v191
    %v9322 = vand.u32 %v9321, 8388607
    %v9323 = vor.u32 %v9322, 8388608
    %v9324 = vsub.s32 0, %v9323
    %v9325 = vadd.s32 %v9320, 1
    %vm9326 = vcmp.gt.s32.totalorder %v9325, 0
    %v9327 = vsel %vm9326, %v9325, 0
    %v9328 = vshrl.u32 %v9327, 5
    %v9329 = vand.u32 %v9327, 31
    %v9330 = vsub.s32 32, %v9329
    %v9331 = vshrl.u32 683565275, %v9330
    %v9332 = vshll.u32 683565275, %v9329
    %v9333 = vshrl.u32 2475754826, %v9330
    %v9334 = vor.u32 %v9332, %v9333
    %v9335 = vshll.u32 2475754826, %v9329
    %v9336 = vshrl.u32 2131351028, %v9330
    %v9337 = vor.u32 %v9335, %v9336
    %v9338 = vshll.u32 2131351028, %v9329
    %v9339 = vshrl.u32 2102212464, %v9330
    %v9340 = vor.u32 %v9338, %v9339
    %v9341 = vshll.u32 2102212464, %v9329
    %v9342 = vshrl.u32 920167782, %v9330
    %v9343 = vor.u32 %v9341, %v9342
    %v9344 = vshll.u32 920167782, %v9329
    %v9345 = vshrl.u32 1326507024, %v9330
    %v9346 = vor.u32 %v9344, %v9345
    %vm9347 = vcmp.lt.s32.totalorder %v9328, 1
    %vm9348 = vcmp.lt.s32.totalorder %v9328, 2
    %vm9349 = vcmp.lt.s32.totalorder %v9328, 3
    %vm9350 = vcmp.lt.s32.totalorder %v9328, 4
    %v9351 = vsel %vm9347, %v9331, %v9334
    %v9352 = vsel %vm9350, %v9340, 2102212464
    %v9353 = vsel %vm9349, %v9337, %v9352
    %v9354 = vsel %vm9348, %v9351, %v9353
    %v9355 = vsel %vm9347, %v9334, %v9337
    %v9356 = vsel %vm9350, %v9343, 920167782
    %v9357 = vsel %vm9349, %v9340, %v9356
    %v9358 = vsel %vm9348, %v9355, %v9357
    %v9359 = vsel %vm9347, %v9337, %v9340
    %v9360 = vsel %vm9350, %v9346, 1326507024
    %v9361 = vsel %vm9349, %v9343, %v9360
    %v9362 = vsel %vm9348, %v9359, %v9361
    %v9363 = vshll.u32 %v9323, 8
    %v9364 = vand.u32 %v9363, 65535
    %v9365 = vshrl.u32 %v9363, 16
    %v9366 = vand.u32 %v9362, 65535
    %v9367 = vshrl.u32 %v9362, 16
    %v9368 = vmul.u32 %v9364, %v9366
    %v9369 = vmul.u32 %v9364, %v9367
    %v9370 = vmul.u32 %v9365, %v9366
    %v9371 = vmul.u32 %v9365, %v9367
    %v9372 = vshll.u32 %v9369, 16
    %v9373 = vshrl.u32 %v9369, 16
    %v9374 = vshll.u32 %v9370, 16
    %v9375 = vshrl.u32 %v9370, 16
    %vm9376 = vc.u32 %v9368, %v9372
    %v9377 = vsel %vm9376, 1, 0
    %v9378 = vadd.s32 %v9368, %v9372
    %v9379 = vadd.s32 %v9371, %v9377
    %vm9380 = vc.u32 %v9378, %v9374
    %v9381 = vsel %vm9380, 1, 0
    %v9382 = vadd.s32 %v9378, %v9374
    %v9383 = vadd.s32 %v9379, %v9381
    %v9384 = vadd.s32 %v9383, %v9373
    %v9385 = vadd.s32 %v9384, %v9375
    %v9386 = vand.u32 %v9363, 65535
    %v9387 = vshrl.u32 %v9363, 16
    %v9388 = vand.u32 %v9358, 65535
    %v9389 = vshrl.u32 %v9358, 16
    %v9390 = vmul.u32 %v9386, %v9388
    %v9391 = vmul.u32 %v9386, %v9389
    %v9392 = vmul.u32 %v9387, %v9388
    %v9393 = vmul.u32 %v9387, %v9389
    %v9394 = vshll.u32 %v9391, 16
    %v9395 = vshrl.u32 %v9391, 16
    %v9396 = vshll.u32 %v9392, 16
    %v9397 = vshrl.u32 %v9392, 16
    %vm9398 = vc.u32 %v9390, %v9394
    %v9399 = vsel %vm9398, 1, 0
    %v9400 = vadd.s32 %v9390, %v9394
    %v9401 = vadd.s32 %v9393, %v9399
    %vm9402 = vc.u32 %v9400, %v9396
    %v9403 = vsel %vm9402, 1, 0
    %v9404 = vadd.s32 %v9400, %v9396
    %v9405 = vadd.s32 %v9401, %v9403
    %v9406 = vadd.s32 %v9405, %v9395
    %v9407 = vadd.s32 %v9406, %v9397
    %v9408 = vmul.u32 %v9363, %v9354
    %v9409 = vadd.s32 %v9385, %v9404
    %vm9410 = vc.u32 %v9385, %v9404
    %v9411 = vadd.s32 %v9407, 1
    %v9412 = vsel %vm9410, %v9411, %v9407
    %v9413 = vadd.s32 %v9408, %v9412
    %v9414 = vadd.s32 %v9413, 536870912
    %v9415 = vshrl.u32 %v9414, 30
    %v9416 = vshll.u32 %v9415, 30
    %v9417 = vsub.s32 %v9413, %v9416
    %vm9418 = vcmp.lt.s32.totalorder %v9417, 0
    %v9419 = vsub.s32 0, %v9417
    %v9420 = vsel %vm9418, %v9419, %v9417
    %v9421 = vclz %v9420
    %v9422 = vsub.s32 %v9421, 2
    %vm9423 = vcmp.gt.s32.totalorder 0, %v9422
    %v9424 = vsel %vm9423, 0, %v9422
    %v9425 = vsub.s32 32, %v9424
    %v9426 = vshll.u32 %v9417, %v9424
    %v9427 = vshrl.u32 %v9409, %v9425
    %v9428 = vor.u32 %v9426, %v9427
    %v9429 = vsub.s32 4294967266, %v9424
    %v9430 = vadd.s32 %v9429, 127
    %v9431 = vshll.u32 %v9430, 23
    %v9432 = vor.u32 4788187, %v9431
    %v9433 = vand.u32 2147483647, %v9432
    %v9435 = vcvt.s32.f32 %v9428
    %v9436 = vmul.f32 %v9435, %v9433
    %v9437 = vxor.u32 %v9436, 2147483648
    %v9438 = vsel %vm9317, %v9437, %v9436
    %v9439 = vsub.s32 4, %v9415
    %v9440 = vsel %vm9317, %v9439, %v9415
    %v9441 = vsel %vm9316, %v191, %v9438
    %v9442 = vsel %vm9316, 0, %v9440
    %v9443 = vmul.f32 %v9441, %v9441
    %v9444 = vmul.f32 %v9443, -0.001358992
    %v9445 = vadd.f32 %v9444, 0.041655596
    %v9446 = vmul.f32 %v9443, %v9445
    %v9447 = vadd.f32 %v9446, -0.4999988
    %v9448 = vmul.f32 %v9443, %v9447
    %v9449 = vadd.f32 1.0, %v9448
    %v9450 = vmul.f32 %v9441, %v9441
    %v9451 = vmul.f32 %v9450, -0.00019511016
    %v9452 = vadd.f32 %v9451, 0.008332121
    %v9453 = vmul.f32 %v9450, %v9452
    %v9454 = vadd.f32 %v9453, -0.16666654
    %v9455 = vmul.f32 %v9450, %v9454
    %v9456 = vadd.f32 %v9455, 1.0
    %v9457 = vmul.f32 %v9456, %v9441
    %vm9458 = vweird.f32 %v191
    %v9459 = vand.u32 %v9442, 3
    %vm9460 = vcmp.lt.s32.totalorder %v9459, 2
    %vm9461 = vcmp.eq.s32.totalorder %v9459, 0
    %v9462 = vxor.u32 %v9457, 2147483648
    %v9463 = vsel %vm9461, %v9449, %v9462
    %vm9464 = vcmp.eq.s32.totalorder %v9459, 2
    %v9465 = vxor.u32 %v9449, 2147483648
    %v9466 = vsel %vm9464, %v9465, %v9457
    %v9467 = vsel %vm9460, %v9463, %v9466
    %v9468 = vsel %vm9458, nan, %v9467
    %v9469 = vand.u32 2147483647, %v192
    %vm9470 = vcmp.le.f32.partialorder %v9469, 0.7853982
    %vm9471 = vcmp.lt.s32.totalorder %v192, 0
    %v9472 = vand.u32 %v192, 2139095040
    %v9473 = vshrl.u32 %v9472, 23
    %v9474 = vsub.s32 %v9473, 127
    %v9475 = vand.u32 2147483647, %v192
    %v9476 = vand.u32 %v9475, 8388607
    %v9477 = vor.u32 %v9476, 8388608
    %v9478 = vsub.s32 0, %v9477
    %v9479 = vadd.s32 %v9474, 1
    %vm9480 = vcmp.gt.s32.totalorder %v9479, 0
    %v9481 = vsel %vm9480, %v9479, 0
    %v9482 = vshrl.u32 %v9481, 5
    %v9483 = vand.u32 %v9481, 31
    %v9484 = vsub.s32 32, %v9483
    %v9485 = vshrl.u32 683565275, %v9484
    %v9486 = vshll.u32 683565275, %v9483
    %v9487 = vshrl.u32 2475754826, %v9484
    %v9488 = vor.u32 %v9486, %v9487
    %v9489 = vshll.u32 2475754826, %v9483
    %v9490 = vshrl.u32 2131351028, %v9484
    %v9491 = vor.u32 %v9489, %v9490
    %v9492 = vshll.u32 2131351028, %v9483
    %v9493 = vshrl.u32 2102212464, %v9484
    %v9494 = vor.u32 %v9492, %v9493
    %v9495 = vshll.u32 2102212464, %v9483
    %v9496 = vshrl.u32 920167782, %v9484
    %v9497 = vor.u32 %v9495, %v9496
    %v9498 = vshll.u32 920167782, %v9483
    %v9499 = vshrl.u32 1326507024, %v9484
    %v9500 = vor.u32 %v9498, %v9499
    %vm9501 = vcmp.lt.s32.totalorder %v9482, 1
    %vm9502 = vcmp.lt.s32.totalorder %v9482, 2
    %vm9503 = vcmp.lt.s32.totalorder %v9482, 3
    %vm9504 = vcmp.lt.s32.totalorder %v9482, 4
    %v9505 = vsel %vm9501, %v9485, %v9488
    %v9506 = vsel %vm9504, %v9494, 2102212464
    %v9507 = vsel %vm9503, %v9491, %v9506
    %v9508 = vsel %vm9502, %v9505, %v9507
    %v9509 = vsel %vm9501, %v9488, %v9491
    %v9510 = vsel %vm9504, %v9497, 920167782
    %v9511 = vsel %vm9503, %v9494, %v9510
    %v9512 = vsel %vm9502, %v9509, %v9511
    %v9513 = vsel %vm9501, %v9491, %v9494
    %v9514 = vsel %vm9504, %v9500, 1326507024
    %v9515 = vsel %vm9503, %v9497, %v9514
    %v9516 = vsel %vm9502, %v9513, %v9515
    %v9517 = vshll.u32 %v9477, 8
    %v9518 = vand.u32 %v9517, 65535
    %v9519 = vshrl.u32 %v9517, 16
    %v9520 = vand.u32 %v9516, 65535
    %v9521 = vshrl.u32 %v9516, 16
    %v9522 = vmul.u32 %v9518, %v9520
    %v9523 = vmul.u32 %v9518, %v9521
    %v9524 = vmul.u32 %v9519, %v9520
    %v9525 = vmul.u32 %v9519, %v9521
    %v9526 = vshll.u32 %v9523, 16
    %v9527 = vshrl.u32 %v9523, 16
    %v9528 = vshll.u32 %v9524, 16
    %v9529 = vshrl.u32 %v9524, 16
    %vm9530 = vc.u32 %v9522, %v9526
    %v9531 = vsel %vm9530, 1, 0
    %v9532 = vadd.s32 %v9522, %v9526
    %v9533 = vadd.s32 %v9525, %v9531
    %vm9534 = vc.u32 %v9532, %v9528
    %v9535 = vsel %vm9534, 1, 0
    %v9536 = vadd.s32 %v9532, %v9528
    %v9537 = vadd.s32 %v9533, %v9535
    %v9538 = vadd.s32 %v9537, %v9527
    %v9539 = vadd.s32 %v9538, %v9529
    %v9540 = vand.u32 %v9517, 65535
    %v9541 = vshrl.u32 %v9517, 16
    %v9542 = vand.u32 %v9512, 65535
    %v9543 = vshrl.u32 %v9512, 16
    %v9544 = vmul.u32 %v9540, %v9542
    %v9545 = vmul.u32 %v9540, %v9543
    %v9546 = vmul.u32 %v9541, %v9542
    %v9547 = vmul.u32 %v9541, %v9543
    %v9548 = vshll.u32 %v9545, 16
    %v9549 = vshrl.u32 %v9545, 16
    %v9550 = vshll.u32 %v9546, 16
    %v9551 = vshrl.u32 %v9546, 16
    %vm9552 = vc.u32 %v9544, %v9548
    %v9553 = vsel %vm9552, 1, 0
    %v9554 = vadd.s32 %v9544, %v9548
    %v9555 = vadd.s32 %v9547, %v9553
    %vm9556 = vc.u32 %v9554, %v9550
    %v9557 = vsel %vm9556, 1, 0
    %v9558 = vadd.s32 %v9554, %v9550
    %v9559 = vadd.s32 %v9555, %v9557
    %v9560 = vadd.s32 %v9559, %v9549
    %v9561 = vadd.s32 %v9560, %v9551
    %v9562 = vmul.u32 %v9517, %v9508
    %v9563 = vadd.s32 %v9539, %v9558
    %vm9564 = vc.u32 %v9539, %v9558
    %v9565 = vadd.s32 %v9561, 1
    %v9566 = vsel %vm9564, %v9565, %v9561
    %v9567 = vadd.s32 %v9562, %v9566
    %v9568 = vadd.s32 %v9567, 536870912
    %v9569 = vshrl.u32 %v9568, 30
    %v9570 = vshll.u32 %v9569, 30
    %v9571 = vsub.s32 %v9567, %v9570
    %vm9572 = vcmp.lt.s32.totalorder %v9571, 0
    %v9573 = vsub.s32 0, %v9571
    %v9574 = vsel %vm9572, %v9573, %v9571
    %v9575 = vclz %v9574
    %v9576 = vsub.s32 %v9575, 2
    %vm9577 = vcmp.gt.s32.totalorder 0, %v9576
    %v9578 = vsel %vm9577, 0, %v9576
    %v9579 = vsub.s32 32, %v9578
    %v9580 = vshll.u32 %v9571, %v9578
    %v9581 = vshrl.u32 %v9563, %v9579
    %v9582 = vor.u32 %v9580, %v9581
    %v9583 = vsub.s32 4294967266, %v9578
    %v9584 = vadd.s32 %v9583, 127
    %v9585 = vshll.u32 %v9584, 23
    %v9586 = vor.u32 4788187, %v9585
    %v9587 = vand.u32 2147483647, %v9586
    %v9589 = vcvt.s32.f32 %v9582
    %v9590 = vmul.f32 %v9589, %v9587
    %v9591 = vxor.u32 %v9590, 2147483648
    %v9592 = vsel %vm9471, %v9591, %v9590
    %v9593 = vsub.s32 4, %v9569
    %v9594 = vsel %vm9471, %v9593, %v9569
    %v9595 = vsel %vm9470, %v192, %v9592
    %v9596 = vsel %vm9470, 0, %v9594
    %v9597 = vmul.f32 %v9595, %v9595
    %v9598 = vmul.f32 %v9597, -0.001358992
    %v9599 = vadd.f32 %v9598, 0.041655596
    %v9600 = vmul.f32 %v9597, %v9599
    %v9601 = vadd.f32 %v9600, -0.4999988
    %v9602 = vmul.f32 %v9597, %v9601
    %v9603 = vadd.f32 1.0, %v9602
    %v9604 = vmul.f32 %v9595, %v9595
    %v9605 = vmul.f32 %v9604, -0.00019511016
    %v9606 = vadd.f32 %v9605, 0.008332121
    %v9607 = vmul.f32 %v9604, %v9606
    %v9608 = vadd.f32 %v9607, -0.16666654
    %v9609 = vmul.f32 %v9604, %v9608
    %v9610 = vadd.f32 %v9609, 1.0
    %v9611 = vmul.f32 %v9610, %v9595
    %vm9612 = vweird.f32 %v192
    %v9613 = vand.u32 %v9596, 3
    %vm9614 = vcmp.lt.s32.totalorder %v9613, 2
    %vm9615 = vcmp.eq.s32.totalorder %v9613, 0
    %v9616 = vxor.u32 %v9611, 2147483648
    %v9617 = vsel %vm9615, %v9603, %v9616
    %vm9618 = vcmp.eq.s32.totalorder %v9613, 2
    %v9619 = vxor.u32 %v9603, 2147483648
    %v9620 = vsel %vm9618, %v9619, %v9611
    %v9621 = vsel %vm9614, %v9617, %v9620
    %v9622 = vsel %vm9612, nan, %v9621
    %v9623 = vand.u32 2147483647, %v193
    %vm9624 = vcmp.le.f32.partialorder %v9623, 0.7853982
    %vm9625 = vcmp.lt.s32.totalorder %v193, 0
    %v9626 = vand.u32 %v193, 2139095040
    %v9627 = vshrl.u32 %v9626, 23
    %v9628 = vsub.s32 %v9627, 127
    %v9629 = vand.u32 2147483647, %v193
    %v9630 = vand.u32 %v9629, 8388607
    %v9631 = vor.u32 %v9630, 8388608
    %v9632 = vsub.s32 0, %v9631
    %v9633 = vadd.s32 %v9628, 1
    %vm9634 = vcmp.gt.s32.totalorder %v9633, 0
    %v9635 = vsel %vm9634, %v9633, 0
    %v9636 = vshrl.u32 %v9635, 5
    %v9637 = vand.u32 %v9635, 31
    %v9638 = vsub.s32 32, %v9637
    %v9639 = vshrl.u32 683565275, %v9638
    %v9640 = vshll.u32 683565275, %v9637
    %v9641 = vshrl.u32 2475754826, %v9638
    %v9642 = vor.u32 %v9640, %v9641
    %v9643 = vshll.u32 2475754826, %v9637
    %v9644 = vshrl.u32 2131351028, %v9638
    %v9645 = vor.u32 %v9643, %v9644
    %v9646 = vshll.u32 2131351028, %v9637
    %v9647 = vshrl.u32 2102212464, %v9638
    %v9648 = vor.u32 %v9646, %v9647
    %v9649 = vshll.u32 2102212464, %v9637
    %v9650 = vshrl.u32 920167782, %v9638
    %v9651 = vor.u32 %v9649, %v9650
    %v9652 = vshll.u32 920167782, %v9637
    %v9653 = vshrl.u32 1326507024, %v9638
    %v9654 = vor.u32 %v9652, %v9653
    %vm9655 = vcmp.lt.s32.totalorder %v9636, 1
    %vm9656 = vcmp.lt.s32.totalorder %v9636, 2
    %vm9657 = vcmp.lt.s32.totalorder %v9636, 3
    %vm9658 = vcmp.lt.s32.totalorder %v9636, 4
    %v9659 = vsel %vm9655, %v9639, %v9642
    %v9660 = vsel %vm9658, %v9648, 2102212464
    %v9661 = vsel %vm9657, %v9645, %v9660
    %v9662 = vsel %vm9656, %v9659, %v9661
    %v9663 = vsel %vm9655, %v9642, %v9645
    %v9664 = vsel %vm9658, %v9651, 920167782
    %v9665 = vsel %vm9657, %v9648, %v9664
    %v9666 = vsel %vm9656, %v9663, %v9665
    %v9667 = vsel %vm9655, %v9645, %v9648
    %v9668 = vsel %vm9658, %v9654, 1326507024
    %v9669 = vsel %vm9657, %v9651, %v9668
    %v9670 = vsel %vm9656, %v9667, %v9669
    %v9671 = vshll.u32 %v9631, 8
    %v9672 = vand.u32 %v9671, 65535
    %v9673 = vshrl.u32 %v9671, 16
    %v9674 = vand.u32 %v9670, 65535
    %v9675 = vshrl.u32 %v9670, 16
    %v9676 = vmul.u32 %v9672, %v9674
    %v9677 = vmul.u32 %v9672, %v9675
    %v9678 = vmul.u32 %v9673, %v9674
    %v9679 = vmul.u32 %v9673, %v9675
    %v9680 = vshll.u32 %v9677, 16
    %v9681 = vshrl.u32 %v9677, 16
    %v9682 = vshll.u32 %v9678, 16
    %v9683 = vshrl.u32 %v9678, 16
    %vm9684 = vc.u32 %v9676, %v9680
    %v9685 = vsel %vm9684, 1, 0
    %v9686 = vadd.s32 %v9676, %v9680
    %v9687 = vadd.s32 %v9679, %v9685
    %vm9688 = vc.u32 %v9686, %v9682
    %v9689 = vsel %vm9688, 1, 0
    %v9690 = vadd.s32 %v9686, %v9682
    %v9691 = vadd.s32 %v9687, %v9689
    %v9692 = vadd.s32 %v9691, %v9681
    %v9693 = vadd.s32 %v9692, %v9683
    %v9694 = vand.u32 %v9671, 65535
    %v9695 = vshrl.u32 %v9671, 16
    %v9696 = vand.u32 %v9666, 65535
    %v9697 = vshrl.u32 %v9666, 16
    %v9698 = vmul.u32 %v9694, %v9696
    %v9699 = vmul.u32 %v9694, %v9697
    %v9700 = vmul.u32 %v9695, %v9696
    %v9701 = vmul.u32 %v9695, %v9697
    %v9702 = vshll.u32 %v9699, 16
    %v9703 = vshrl.u32 %v9699, 16
    %v9704 = vshll.u32 %v9700, 16
    %v9705 = vshrl.u32 %v9700, 16
    %vm9706 = vc.u32 %v9698, %v9702
    %v9707 = vsel %vm9706, 1, 0
    %v9708 = vadd.s32 %v9698, %v9702
    %v9709 = vadd.s32 %v9701, %v9707
    %vm9710 = vc.u32 %v9708, %v9704
    %v9711 = vsel %vm9710, 1, 0
    %v9712 = vadd.s32 %v9708, %v9704
    %v9713 = vadd.s32 %v9709, %v9711
    %v9714 = vadd.s32 %v9713, %v9703
    %v9715 = vadd.s32 %v9714, %v9705
    %v9716 = vmul.u32 %v9671, %v9662
    %v9717 = vadd.s32 %v9693, %v9712
    %vm9718 = vc.u32 %v9693, %v9712
    %v9719 = vadd.s32 %v9715, 1
    %v9720 = vsel %vm9718, %v9719, %v9715
    %v9721 = vadd.s32 %v9716, %v9720
    %v9722 = vadd.s32 %v9721, 536870912
    %v9723 = vshrl.u32 %v9722, 30
    %v9724 = vshll.u32 %v9723, 30
    %v9725 = vsub.s32 %v9721, %v9724
    %vm9726 = vcmp.lt.s32.totalorder %v9725, 0
    %v9727 = vsub.s32 0, %v9725
    %v9728 = vsel %vm9726, %v9727, %v9725
    %v9729 = vclz %v9728
    %v9730 = vsub.s32 %v9729, 2
    %vm9731 = vcmp.gt.s32.totalorder 0, %v9730
    %v9732 = vsel %vm9731, 0, %v9730
    %v9733 = vsub.s32 32, %v9732
    %v9734 = vshll.u32 %v9725, %v9732
    %v9735 = vshrl.u32 %v9717, %v9733
    %v9736 = vor.u32 %v9734, %v9735
    %v9737 = vsub.s32 4294967266, %v9732
    %v9738 = vadd.s32 %v9737, 127
    %v9739 = vshll.u32 %v9738, 23
    %v9740 = vor.u32 4788187, %v9739
    %v9741 = vand.u32 2147483647, %v9740
    %v9743 = vcvt.s32.f32 %v9736
    %v9744 = vmul.f32 %v9743, %v9741
    %v9745 = vxor.u32 %v9744, 2147483648
    %v9746 = vsel %vm9625, %v9745, %v9744
    %v9747 = vsub.s32 4, %v9723
    %v9748 = vsel %vm9625, %v9747, %v9723
    %v9749 = vsel %vm9624, %v193, %v9746
    %v9750 = vsel %vm9624, 0, %v9748
    %v9751 = vmul.f32 %v9749, %v9749
    %v9752 = vmul.f32 %v9751, -0.001358992
    %v9753 = vadd.f32 %v9752, 0.041655596
    %v9754 = vmul.f32 %v9751, %v9753
    %v9755 = vadd.f32 %v9754, -0.4999988
    %v9756 = vmul.f32 %v9751, %v9755
    %v9757 = vadd.f32 1.0, %v9756
    %v9758 = vmul.f32 %v9749, %v9749
    %v9759 = vmul.f32 %v9758, -0.00019511016
    %v9760 = vadd.f32 %v9759, 0.008332121
    %v9761 = vmul.f32 %v9758, %v9760
    %v9762 = vadd.f32 %v9761, -0.16666654
    %v9763 = vmul.f32 %v9758, %v9762
    %v9764 = vadd.f32 %v9763, 1.0
    %v9765 = vmul.f32 %v9764, %v9749
    %vm9766 = vweird.f32 %v193
    %v9767 = vand.u32 %v9750, 3
    %vm9768 = vcmp.lt.s32.totalorder %v9767, 2
    %vm9769 = vcmp.eq.s32.totalorder %v9767, 0
    %v9770 = vxor.u32 %v9765, 2147483648
    %v9771 = vsel %vm9769, %v9757, %v9770
    %vm9772 = vcmp.eq.s32.totalorder %v9767, 2
    %v9773 = vxor.u32 %v9757, 2147483648
    %v9774 = vsel %vm9772, %v9773, %v9765
    %v9775 = vsel %vm9768, %v9771, %v9774
    %v9776 = vsel %vm9766, nan, %v9775
    %v9777 = vand.u32 2147483647, %v194
    %vm9778 = vcmp.le.f32.partialorder %v9777, 0.7853982
    %vm9779 = vcmp.lt.s32.totalorder %v194, 0
    %v9780 = vand.u32 %v194, 2139095040
    %v9781 = vshrl.u32 %v9780, 23
    %v9782 = vsub.s32 %v9781, 127
    %v9783 = vand.u32 2147483647, %v194
    %v9784 = vand.u32 %v9783, 8388607
    %v9785 = vor.u32 %v9784, 8388608
    %v9786 = vsub.s32 0, %v9785
    %v9787 = vadd.s32 %v9782, 1
    %vm9788 = vcmp.gt.s32.totalorder %v9787, 0
    %v9789 = vsel %vm9788, %v9787, 0
    %v9790 = vshrl.u32 %v9789, 5
    %v9791 = vand.u32 %v9789, 31
    %v9792 = vsub.s32 32, %v9791
    %v9793 = vshrl.u32 683565275, %v9792
    %v9794 = vshll.u32 683565275, %v9791
    %v9795 = vshrl.u32 2475754826, %v9792
    %v9796 = vor.u32 %v9794, %v9795
    %v9797 = vshll.u32 2475754826, %v9791
    %v9798 = vshrl.u32 2131351028, %v9792
    %v9799 = vor.u32 %v9797, %v9798
    %v9800 = vshll.u32 2131351028, %v9791
    %v9801 = vshrl.u32 2102212464, %v9792
    %v9802 = vor.u32 %v9800, %v9801
    %v9803 = vshll.u32 2102212464, %v9791
    %v9804 = vshrl.u32 920167782, %v9792
    %v9805 = vor.u32 %v9803, %v9804
    %v9806 = vshll.u32 920167782, %v9791
    %v9807 = vshrl.u32 1326507024, %v9792
    %v9808 = vor.u32 %v9806, %v9807
    %vm9809 = vcmp.lt.s32.totalorder %v9790, 1
    %vm9810 = vcmp.lt.s32.totalorder %v9790, 2
    %vm9811 = vcmp.lt.s32.totalorder %v9790, 3
    %vm9812 = vcmp.lt.s32.totalorder %v9790, 4
    %v9813 = vsel %vm9809, %v9793, %v9796
    %v9814 = vsel %vm9812, %v9802, 2102212464
    %v9815 = vsel %vm9811, %v9799, %v9814
    %v9816 = vsel %vm9810, %v9813, %v9815
    %v9817 = vsel %vm9809, %v9796, %v9799
    %v9818 = vsel %vm9812, %v9805, 920167782
    %v9819 = vsel %vm9811, %v9802, %v9818
    %v9820 = vsel %vm9810, %v9817, %v9819
    %v9821 = vsel %vm9809, %v9799, %v9802
    %v9822 = vsel %vm9812, %v9808, 1326507024
    %v9823 = vsel %vm9811, %v9805, %v9822
    %v9824 = vsel %vm9810, %v9821, %v9823
    %v9825 = vshll.u32 %v9785, 8
    %v9826 = vand.u32 %v9825, 65535
    %v9827 = vshrl.u32 %v9825, 16
    %v9828 = vand.u32 %v9824, 65535
    %v9829 = vshrl.u32 %v9824, 16
    %v9830 = vmul.u32 %v9826, %v9828
    %v9831 = vmul.u32 %v9826, %v9829
    %v9832 = vmul.u32 %v9827, %v9828
    %v9833 = vmul.u32 %v9827, %v9829
    %v9834 = vshll.u32 %v9831, 16
    %v9835 = vshrl.u32 %v9831, 16
    %v9836 = vshll.u32 %v9832, 16
    %v9837 = vshrl.u32 %v9832, 16
    %vm9838 = vc.u32 %v9830, %v9834
    %v9839 = vsel %vm9838, 1, 0
    %v9840 = vadd.s32 %v9830, %v9834
    %v9841 = vadd.s32 %v9833, %v9839
    %vm9842 = vc.u32 %v9840, %v9836
    %v9843 = vsel %vm9842, 1, 0
    %v9844 = vadd.s32 %v9840, %v9836
    %v9845 = vadd.s32 %v9841, %v9843
    %v9846 = vadd.s32 %v9845, %v9835
    %v9847 = vadd.s32 %v9846, %v9837
    %v9848 = vand.u32 %v9825, 65535
    %v9849 = vshrl.u32 %v9825, 16
    %v9850 = vand.u32 %v9820, 65535
    %v9851 = vshrl.u32 %v9820, 16
    %v9852 = vmul.u32 %v9848, %v9850
    %v9853 = vmul.u32 %v9848, %v9851
    %v9854 = vmul.u32 %v9849, %v9850
    %v9855 = vmul.u32 %v9849, %v9851
    %v9856 = vshll.u32 %v9853, 16
    %v9857 = vshrl.u32 %v9853, 16
    %v9858 = vshll.u32 %v9854, 16
    %v9859 = vshrl.u32 %v9854, 16
    %vm9860 = vc.u32 %v9852, %v9856
    %v9861 = vsel %vm9860, 1, 0
    %v9862 = vadd.s32 %v9852, %v9856
    %v9863 = vadd.s32 %v9855, %v9861
    %vm9864 = vc.u32 %v9862, %v9858
    %v9865 = vsel %vm9864, 1, 0
    %v9866 = vadd.s32 %v9862, %v9858
    %v9867 = vadd.s32 %v9863, %v9865
    %v9868 = vadd.s32 %v9867, %v9857
    %v9869 = vadd.s32 %v9868, %v9859
    %v9870 = vmul.u32 %v9825, %v9816
    %v9871 = vadd.s32 %v9847, %v9866
    %vm9872 = vc.u32 %v9847, %v9866
    %v9873 = vadd.s32 %v9869, 1
    %v9874 = vsel %vm9872, %v9873, %v9869
    %v9875 = vadd.s32 %v9870, %v9874
    %v9876 = vadd.s32 %v9875, 536870912
    %v9877 = vshrl.u32 %v9876, 30
    %v9878 = vshll.u32 %v9877, 30
    %v9879 = vsub.s32 %v9875, %v9878
    %vm9880 = vcmp.lt.s32.totalorder %v9879, 0
    %v9881 = vsub.s32 0, %v9879
    %v9882 = vsel %vm9880, %v9881, %v9879
    %v9883 = vclz %v9882
    %v9884 = vsub.s32 %v9883, 2
    %vm9885 = vcmp.gt.s32.totalorder 0, %v9884
    %v9886 = vsel %vm9885, 0, %v9884
    %v9887 = vsub.s32 32, %v9886
    %v9888 = vshll.u32 %v9879, %v9886
    %v9889 = vshrl.u32 %v9871, %v9887
    %v9890 = vor.u32 %v9888, %v9889
    %v9891 = vsub.s32 4294967266, %v9886
    %v9892 = vadd.s32 %v9891, 127
    %v9893 = vshll.u32 %v9892, 23
    %v9894 = vor.u32 4788187, %v9893
    %v9895 = vand.u32 2147483647, %v9894
    %v9897 = vcvt.s32.f32 %v9890
    %v9898 = vmul.f32 %v9897, %v9895
    %v9899 = vxor.u32 %v9898, 2147483648
    %v9900 = vsel %vm9779, %v9899, %v9898
    %v9901 = vsub.s32 4, %v9877
    %v9902 = vsel %vm9779, %v9901, %v9877
    %v9903 = vsel %vm9778, %v194, %v9900
    %v9904 = vsel %vm9778, 0, %v9902
    %v9905 = vmul.f32 %v9903, %v9903
    %v9906 = vmul.f32 %v9905, -0.001358992
    %v9907 = vadd.f32 %v9906, 0.041655596
    %v9908 = vmul.f32 %v9905, %v9907
    %v9909 = vadd.f32 %v9908, -0.4999988
    %v9910 = vmul.f32 %v9905, %v9909
    %v9911 = vadd.f32 1.0, %v9910
    %v9912 = vmul.f32 %v9903, %v9903
    %v9913 = vmul.f32 %v9912, -0.00019511016
    %v9914 = vadd.f32 %v9913, 0.008332121
    %v9915 = vmul.f32 %v9912, %v9914
    %v9916 = vadd.f32 %v9915, -0.16666654
    %v9917 = vmul.f32 %v9912, %v9916
    %v9918 = vadd.f32 %v9917, 1.0
    %v9919 = vmul.f32 %v9918, %v9903
    %vm9920 = vweird.f32 %v194
    %v9921 = vand.u32 %v9904, 3
    %vm9922 = vcmp.lt.s32.totalorder %v9921, 2
    %vm9923 = vcmp.eq.s32.totalorder %v9921, 0
    %v9924 = vxor.u32 %v9919, 2147483648
    %v9925 = vsel %vm9923, %v9911, %v9924
    %vm9926 = vcmp.eq.s32.totalorder %v9921, 2
    %v9927 = vxor.u32 %v9911, 2147483648
    %v9928 = vsel %vm9926, %v9927, %v9919
    %v9929 = vsel %vm9922, %v9925, %v9928
    %v9930 = vsel %vm9920, nan, %v9929
    %v9931 = vand.u32 2147483647, %v195
    %vm9932 = vcmp.le.f32.partialorder %v9931, 0.7853982
    %vm9933 = vcmp.lt.s32.totalorder %v195, 0
    %v9934 = vand.u32 %v195, 2139095040
    %v9935 = vshrl.u32 %v9934, 23
    %v9936 = vsub.s32 %v9935, 127
    %v9937 = vand.u32 2147483647, %v195
    %v9938 = vand.u32 %v9937, 8388607
    %v9939 = vor.u32 %v9938, 8388608
    %v9940 = vsub.s32 0, %v9939
    %v9941 = vadd.s32 %v9936, 1
    %vm9942 = vcmp.gt.s32.totalorder %v9941, 0
    %v9943 = vsel %vm9942, %v9941, 0
    %v9944 = vshrl.u32 %v9943, 5
    %v9945 = vand.u32 %v9943, 31
    %v9946 = vsub.s32 32, %v9945
    %v9947 = vshrl.u32 683565275, %v9946
    %v9948 = vshll.u32 683565275, %v9945
    %v9949 = vshrl.u32 2475754826, %v9946
    %v9950 = vor.u32 %v9948, %v9949
    %v9951 = vshll.u32 2475754826, %v9945
    %v9952 = vshrl.u32 2131351028, %v9946
    %v9953 = vor.u32 %v9951, %v9952
    %v9954 = vshll.u32 2131351028, %v9945
    %v9955 = vshrl.u32 2102212464, %v9946
    %v9956 = vor.u32 %v9954, %v9955
    %v9957 = vshll.u32 2102212464, %v9945
    %v9958 = vshrl.u32 920167782, %v9946
    %v9959 = vor.u32 %v9957, %v9958
    %v9960 = vshll.u32 920167782, %v9945
    %v9961 = vshrl.u32 1326507024, %v9946
    %v9962 = vor.u32 %v9960, %v9961
    %vm9963 = vcmp.lt.s32.totalorder %v9944, 1
    %vm9964 = vcmp.lt.s32.totalorder %v9944, 2
    %vm9965 = vcmp.lt.s32.totalorder %v9944, 3
    %vm9966 = vcmp.lt.s32.totalorder %v9944, 4
    %v9967 = vsel %vm9963, %v9947, %v9950
    %v9968 = vsel %vm9966, %v9956, 2102212464
    %v9969 = vsel %vm9965, %v9953, %v9968
    %v9970 = vsel %vm9964, %v9967, %v9969
    %v9971 = vsel %vm9963, %v9950, %v9953
    %v9972 = vsel %vm9966, %v9959, 920167782
    %v9973 = vsel %vm9965, %v9956, %v9972
    %v9974 = vsel %vm9964, %v9971, %v9973
    %v9975 = vsel %vm9963, %v9953, %v9956
    %v9976 = vsel %vm9966, %v9962, 1326507024
    %v9977 = vsel %vm9965, %v9959, %v9976
    %v9978 = vsel %vm9964, %v9975, %v9977
    %v9979 = vshll.u32 %v9939, 8
    %v9980 = vand.u32 %v9979, 65535
    %v9981 = vshrl.u32 %v9979, 16
    %v9982 = vand.u32 %v9978, 65535
    %v9983 = vshrl.u32 %v9978, 16
    %v9984 = vmul.u32 %v9980, %v9982
    %v9985 = vmul.u32 %v9980, %v9983
    %v9986 = vmul.u32 %v9981, %v9982
    %v9987 = vmul.u32 %v9981, %v9983
    %v9988 = vshll.u32 %v9985, 16
    %v9989 = vshrl.u32 %v9985, 16
    %v9990 = vshll.u32 %v9986, 16
    %v9991 = vshrl.u32 %v9986, 16
    %vm9992 = vc.u32 %v9984, %v9988
    %v9993 = vsel %vm9992, 1, 0
    %v9994 = vadd.s32 %v9984, %v9988
    %v9995 = vadd.s32 %v9987, %v9993
    %vm9996 = vc.u32 %v9994, %v9990
    %v9997 = vsel %vm9996, 1, 0
    %v9998 = vadd.s32 %v9994, %v9990
    %v9999 = vadd.s32 %v9995, %v9997
    %v10000 = vadd.s32 %v9999, %v9989
    %v10001 = vadd.s32 %v10000, %v9991
    %v10002 = vand.u32 %v9979, 65535
    %v10003 = vshrl.u32 %v9979, 16
    %v10004 = vand.u32 %v9974, 65535
    %v10005 = vshrl.u32 %v9974, 16
    %v10006 = vmul.u32 %v10002, %v10004
    %v10007 = vmul.u32 %v10002, %v10005
    %v10008 = vmul.u32 %v10003, %v10004
    %v10009 = vmul.u32 %v10003, %v10005
    %v10010 = vshll.u32 %v10007, 16
    %v10011 = vshrl.u32 %v10007, 16
    %v10012 = vshll.u32 %v10008, 16
    %v10013 = vshrl.u32 %v10008, 16
    %vm10014 = vc.u32 %v10006, %v10010
    %v10015 = vsel %vm10014, 1, 0
    %v10016 = vadd.s32 %v10006, %v10010
    %v10017 = vadd.s32 %v10009, %v10015
    %vm10018 = vc.u32 %v10016, %v10012
    %v10019 = vsel %vm10018, 1, 0
    %v10020 = vadd.s32 %v10016, %v10012
    %v10021 = vadd.s32 %v10017, %v10019
    %v10022 = vadd.s32 %v10021, %v10011
    %v10023 = vadd.s32 %v10022, %v10013
    %v10024 = vmul.u32 %v9979, %v9970
    %v10025 = vadd.s32 %v10001, %v10020
    %vm10026 = vc.u32 %v10001, %v10020
    %v10027 = vadd.s32 %v10023, 1
    %v10028 = vsel %vm10026, %v10027, %v10023
    %v10029 = vadd.s32 %v10024, %v10028
    %v10030 = vadd.s32 %v10029, 536870912
    %v10031 = vshrl.u32 %v10030, 30
    %v10032 = vshll.u32 %v10031, 30
    %v10033 = vsub.s32 %v10029, %v10032
    %vm10034 = vcmp.lt.s32.totalorder %v10033, 0
    %v10035 = vsub.s32 0, %v10033
    %v10036 = vsel %vm10034, %v10035, %v10033
    %v10037 = vclz %v10036
    %v10038 = vsub.s32 %v10037, 2
    %vm10039 = vcmp.gt.s32.totalorder 0, %v10038
    %v10040 = vsel %vm10039, 0, %v10038
    %v10041 = vsub.s32 32, %v10040
    %v10042 = vshll.u32 %v10033, %v10040
    %v10043 = vshrl.u32 %v10025, %v10041
    %v10044 = vor.u32 %v10042, %v10043
    %v10045 = vsub.s32 4294967266, %v10040
    %v10046 = vadd.s32 %v10045, 127
    %v10047 = vshll.u32 %v10046, 23
    %v10048 = vor.u32 4788187, %v10047
    %v10049 = vand.u32 2147483647, %v10048
    %v10051 = vcvt.s32.f32 %v10044
    %v10052 = vmul.f32 %v10051, %v10049
    %v10053 = vxor.u32 %v10052, 2147483648
    %v10054 = vsel %vm9933, %v10053, %v10052
    %v10055 = vsub.s32 4, %v10031
    %v10056 = vsel %vm9933, %v10055, %v10031
    %v10057 = vsel %vm9932, %v195, %v10054
    %v10058 = vsel %vm9932, 0, %v10056
    %v10059 = vmul.f32 %v10057, %v10057
    %v10060 = vmul.f32 %v10059, -0.001358992
    %v10061 = vadd.f32 %v10060, 0.041655596
    %v10062 = vmul.f32 %v10059, %v10061
    %v10063 = vadd.f32 %v10062, -0.4999988
    %v10064 = vmul.f32 %v10059, %v10063
    %v10065 = vadd.f32 1.0, %v10064
    %v10066 = vmul.f32 %v10057, %v10057
    %v10067 = vmul.f32 %v10066, -0.00019511016
    %v10068 = vadd.f32 %v10067, 0.008332121
    %v10069 = vmul.f32 %v10066, %v10068
    %v10070 = vadd.f32 %v10069, -0.16666654
    %v10071 = vmul.f32 %v10066, %v10070
    %v10072 = vadd.f32 %v10071, 1.0
    %v10073 = vmul.f32 %v10072, %v10057
    %vm10074 = vweird.f32 %v195
    %v10075 = vand.u32 %v10058, 3
    %vm10076 = vcmp.lt.s32.totalorder %v10075, 2
    %vm10077 = vcmp.eq.s32.totalorder %v10075, 0
    %v10078 = vxor.u32 %v10073, 2147483648
    %v10079 = vsel %vm10077, %v10065, %v10078
    %vm10080 = vcmp.eq.s32.totalorder %v10075, 2
    %v10081 = vxor.u32 %v10065, 2147483648
    %v10082 = vsel %vm10080, %v10081, %v10073
    %v10083 = vsel %vm10076, %v10079, %v10082
    %v10084 = vsel %vm10074, nan, %v10083
    %v10085 = vsel %vm196, %v351, %v5310
    %v10086 = vsel %vm196, %v506, %v5464
    %v10087 = vsel %vm196, %v661, %v5618
    %v10088 = vsel %vm196, %v816, %v5772
    %v10089 = vsel %vm196, %v971, %v5926
    %v10090 = vsel %vm196, %v1126, %v6080
    %v10091 = vsel %vm196, %v1281, %v6234
    %v10092 = vsel %vm196, %v1436, %v6388
    %v10093 = vsel %vm196, %v1591, %v6542
    %v10094 = vsel %vm196, %v1746, %v6696
    %v10095 = vsel %vm196, %v1901, %v6850
    %v10096 = vsel %vm196, %v2056, %v7004
    %v10097 = vsel %vm196, %v2211, %v7158
    %v10098 = vsel %vm196, %v2366, %v7312
    %v10099 = vsel %vm196, %v2521, %v7466
    %v10100 = vsel %vm196, %v2676, %v7620
    %v10101 = vsel %vm196, %v2831, %v7774
    %v10102 = vsel %vm196, %v2986, %v7928
    %v10103 = vsel %vm196, %v3141, %v8082
    %v10104 = vsel %vm196, %v3296, %v8236
    %v10105 = vsel %vm196, %v3451, %v8390
    %v10106 = vsel %vm196, %v3606, %v8544
    %v10107 = vsel %vm196, %v3761, %v8698
    %v10108 = vsel %vm196, %v3916, %v8852
    %v10109 = vsel %vm196, %v4071, %v9006
    %v10110 = vsel %vm196, %v4226, %v9160
    %v10111 = vsel %vm196, %v4381, %v9314
    %v10112 = vsel %vm196, %v4536, %v9468
    %v10113 = vsel %vm196, %v4691, %v9622
    %v10114 = vsel %vm196, %v4846, %v9776
    %v10115 = vsel %vm196, %v5001, %v9930
    %v10116 = vsel %vm196, %v5156, %v10084
    %v10117 = vadd.f32 %v25, %v10085
    %v10118 = vadd.f32 %v26, %v10086
    %v10119 = vadd.f32 %v27, %v10087
    %v10120 = vadd.f32 %v28, %v10088
    %v10121 = vadd.f32 %v29, %v10089
    %v10122 = vadd.f32 %v30, %v10090
    %v10123 = vadd.f32 %v31, %v10091
    %v10124 = vadd.f32 %v32, %v10092
    %v10125 = vadd.f32 %v33, %v10093
    %v10126 = vadd.f32 %v34, %v10094
    %v10127 = vadd.f32 %v35, %v10095
    %v10128 = vadd.f32 %v36, %v10096
    %v10129 = vadd.f32 %v37, %v10097
    %v10130 = vadd.f32 %v38, %v10098
    %v10131 = vadd.f32 %v39, %v10099
    %v10132 = vadd.f32 %v40, %v10100
    %v10133 = vadd.f32 %v41, %v10101
    %v10134 = vadd.f32 %v42, %v10102
    %v10135 = vadd.f32 %v43, %v10103
    %v10136 = vadd.f32 %v44, %v10104
    %v10137 = vadd.f32 %v45, %v10105
    %v10138 = vadd.f32 %v46, %v10106
    %v10139 = vadd.f32 %v47, %v10107
    %v10140 = vadd.f32 %v48, %v10108
    %v10141 = vadd.f32 %v49, %v10109
    %v10142 = vadd.f32 %v50, %v10110
    %v10143 = vadd.f32 %v51, %v10111
    %v10144 = vadd.f32 %v52, %v10112
    %v10145 = vadd.f32 %v53, %v10113
    %v10146 = vadd.f32 %v54, %v10114
    %v10147 = vadd.f32 %v55, %v10115
    %v10148 = vadd.f32 %v56, %v10116
    %10149 = vst [vmem:[#allocation5] sm:$0xff] %v10117
    %10150 = vst [vmem:[#allocation5 + $0x8] sm:$0xff] %v10118
    %10151 = vst [vmem:[#allocation5 + $0x10] sm:$0xff] %v10119
    %10152 = vst [vmem:[#allocation5 + $0x18] sm:$0xff] %v10120
    %10153 = vst [vmem:[#allocation5 + $0x20] sm:$0xff] %v10121
    %10154 = vst [vmem:[#allocation5 + $0x28] sm:$0xff] %v10122
    %10155 = vst [vmem:[#allocation5 + $0x30] sm:$0xff] %v10123
    %10156 = vst [vmem:[#allocation5 + $0x38] sm:$0xff] %v10124
    %10157 = vst [vmem:[#allocation5 + $0x40] sm:$0xff] %v10125
    %10158 = vst [vmem:[#allocation5 + $0x48] sm:$0xff] %v10126
    %10159 = vst [vmem:[#allocation5 + $0x50] sm:$0xff] %v10127
    %10160 = vst [vmem:[#allocation5 + $0x58] sm:$0xff] %v10128
    %10161 = vst [vmem:[#allocation5 + $0x60] sm:$0xff] %v10129
    %10162 = vst [vmem:[#allocation5 + $0x68] sm:$0xff] %v10130
    %10163 = vst [vmem:[#allocation5 + $0x70] sm:$0xff] %v10131
    %10164 = vst [vmem:[#allocation5 + $0x78] sm:$0xff] %v10132
    %10165 = vst [vmem:[#allocation5 + $0x80] sm:$0xff] %v10133
    %10166 = vst [vmem:[#allocation5 + $0x88] sm:$0xff] %v10134
    %10167 = vst [vmem:[#allocation5 + $0x90] sm:$0xff] %v10135
    %10168 = vst [vmem:[#allocation5 + $0x98] sm:$0xff] %v10136
    %10169 = vst [vmem:[#allocation5 + $0xa0] sm:$0xff] %v10137
    %10170 = vst [vmem:[#allocation5 + $0xa8] sm:$0xff] %v10138
    %10171 = vst [vmem:[#allocation5 + $0xb0] sm:$0xff] %v10139
    %10172 = vst [vmem:[#allocation5 + $0xb8] sm:$0xff] %v10140
    %10173 = vst [vmem:[#allocation5 + $0xc0] sm:$0xff] %v10141
    %10174 = vst [vmem:[#allocation5 + $0xc8] sm:$0xff] %v10142
    %10175 = vst [vmem:[#allocation5 + $0xd0] sm:$0xff] %v10143
    %10176 = vst [vmem:[#allocation5 + $0xd8] sm:$0xff] %v10144
    %10177 = vst [vmem:[#allocation5 + $0xe0] sm:$0xff] %v10145
    %10178 = vst [vmem:[#allocation5 + $0xe8] sm:$0xff] %v10146
    %10179 = vst [vmem:[#allocation5 + $0xf0] sm:$0xff] %v10147
    %10180 = vst [vmem:[#allocation5 + $0xf8] sm:$0xff] %v10148
    // Predicated region
    $region10: #{tpu_custom_call.1} parent=1 // pred_check
      _
    $region11: #{tpu_custom_call.1} parent=1 // pred_check_branch
      %10182 = sbr.rel (0) target = $region13
    $region12: #{tpu_custom_call.1} parent=1 // pred_region
      %10184 = vsyncadd [#allocation4], 0
      %s10185 = sshll.u32 [#allocation5], 4
      %s10186 = int_to_ptr.vmem [resolvable:$true] %s10185
      %s10187 = sshll.u32 %s1, 4
      %s10188 = int_to_ptr.hbm [resolvable:$true] %s10187
      %10193 = dma.vmem_to_hbm [thread:$0]  %s10186, 4096, %s10188, [#allocation4], 128, 128, 8
    $region13: #{tpu_custom_call.1} parent=1 // pred_fallthru
      _
    // Predicated region
    $region14: #{tpu_custom_call.1} parent=1 // pred_check
      _
    $region15: #{tpu_custom_call.1} parent=1 // pred_check_branch
      %10195 = sbr.rel (0) target = $region17
    $region16: #{tpu_custom_call.1} parent=1 // pred_region
      %10197 = dma.done [#allocation4], 4096
    $region17: #{tpu_custom_call.1} parent=1 // pred_fallthru
      _
    %10198 = vsyncpa [#allocation3], 1
    %10199 = vsyncpa [#allocation4], 1

</llo_original>
